<compile_context>
chip_gen: v5e
topology: v5e:2x2
jax: 0.10.0
libtpu: 0.0.40
codegen_flags: <defaults>
</compile_context>

<pallas_src>
import jax
import jax.numpy as jnp
from jax.experimental import pallas as pl
from jax.experimental.pallas import tpu as pltpu


# ------------------------------ fused kernel --------------------------------

def _mycnn_kernel(x1_ref, w1_ref, b1_ref, w2_ref, b2_ref, w3_ref, b3_ref,
                  wfc1_ref, bfc1_ref, wfc2_ref, bfc2_ref, o_ref,
                  y1s, x2s, y2s, x3s, y3s):
    bt = x1_ref.shape[0]
    f32 = jnp.float32

    # Halo rings of the padded inter-layer buffers must be zero; the interior
    # rows are fully rewritten below on every grid step.
    x2s[...] = jnp.zeros_like(x2s)
    x3s[...] = jnp.zeros_like(x3s)

    def conv3x3_relu(src_ref, w_ref, b_ref, dst_ref, wp, n, cin, cout):
        # src rows = zero-halo'd, row-flattened padded (wp x wp) grid, lanes =
        # Cin.  Tap (kh, kw) of padded-grid output q is a contiguous sublane
        # slice at static offset kh*wp + kw.  Accumulate the 9 batched MXU
        # dots in a value; store (bias + ReLU) exactly once.
        acc = None
        for t in range(9):
            tap = src_ref[:, pl.ds((t // 3) * wp + (t % 3), n), :]   # (BT,n,Cin)
            w_t = jnp.broadcast_to(w_ref[t], (bt, cin, cout))
            d = jnp.einsum('bqc,bco->bqo', tap, w_t,
                           preferred_element_type=f32)
            acc = d if acc is None else acc + d
        dst_ref[...] = jnp.maximum(acc + b_ref[...], 0.0)

    def maxpool2x2_into(src_ref, wp, h2n, w2n, dst_ref, dst_row):
        # 2x2 / stride-2 max-pool of the valid conv output (which lives at
        # padded-grid row (h+1)*wp + (w+1)), whole batch tile per pooled row,
        # written straight into the next layer's padded column buffer.
        for h2 in range(h2n):
            r0 = (2 * h2 + 1) * wp + 1
            p00 = src_ref[:, pl.ds(r0,          w2n, stride=2), :]
            p01 = src_ref[:, pl.ds(r0 + 1,      w2n, stride=2), :]
            p10 = src_ref[:, pl.ds(r0 + wp,     w2n, stride=2), :]
            p11 = src_ref[:, pl.ds(r0 + wp + 1, w2n, stride=2), :]
            pooled = jnp.maximum(jnp.maximum(p00, p01), jnp.maximum(p10, p11))
            dst_ref[:, pl.ds(dst_row(h2), w2n), :] = pooled

    # ---- conv1 (1->16): one batched im2col MXU dot (9 taps are in lanes) ----
    w1b = jnp.broadcast_to(w1_ref[...], (bt, 9, 16))
    y1 = jnp.einsum('bqk,bkc->bqc', x1_ref[...], w1b,
                    preferred_element_type=f32)
    y1s[...] = jnp.maximum(y1 + b1_ref[...], 0.0)

    # ---- pool1 28->14 into conv2's padded buffer (Wp=16) ----
    maxpool2x2_into(y1s, 30, 14, 14, x2s, lambda h2: (h2 + 2) * 16 + 2)

    # ---- conv2 (16->32) + ReLU, pool2 14->7 into conv3's buffer (Wp=9) ----
    conv3x3_relu(x2s, w2_ref, b2_ref, y2s, 16, 256, 16, 32)
    maxpool2x2_into(y2s, 16, 7, 7, x3s, lambda h2: (h2 + 2) * 9 + 2)

    # ---- conv3 (32->64) + ReLU ----
    conv3x3_relu(x3s, w3_ref, b3_ref, y3s, 9, 81, 32, 64)

    # ---- pool3 7->3 (floor), gathered slot-major (t = h*3 + w) so the
    #      flattened features match the slot-major fc1 weight repack ----
    feats = []
    for h2 in range(3):
        for w2 in range(3):
            r = (2 * h2 + 1) * 9 + (2 * w2 + 1)
            q00 = y3s[:, r, :]
            q01 = y3s[:, r + 1, :]
            q10 = y3s[:, r + 9, :]
            q11 = y3s[:, r + 10, :]
            feats.append(jnp.maximum(jnp.maximum(q00, q01),
                                     jnp.maximum(q10, q11)))
    feat = jnp.concatenate(feats, axis=-1)                          # (BT, 576)

    # ---- fc1 + ReLU, fc2: two batched dots, one output store ----
    hid = jnp.maximum(
        jnp.dot(feat, wfc1_ref[...], preferred_element_type=f32) + bfc1_ref[...],
        0.0)
    logits = (jnp.dot(hid, wfc2_ref[...], preferred_element_type=f32)
              + bfc2_ref[...])
    o_ref[0] = logits


def mycnn_forward(x_nchw, params):
    """MyCNN forward. x_nchw: (B, 1, 28, 28) f32 -> (B, 10) f32."""
    B = x_nchw.shape[0]
    assert x_nchw.shape[1:] == (1, 28, 28), x_nchw.shape

    # One-time data prep (tiny, pure glue): zero-pad 28x28 -> 30x30, flatten
    # rows, add a 31-row zero halo top & bottom, and pull out the 9 conv1 tap
    # columns so in-kernel conv1 is a single (BT, 900, 9) @ (9, 16) MXU dot.
    x = x_nchw.reshape(B, 28, 28).astype(jnp.float32)
    xp = jnp.pad(x, ((0, 0), (1, 1), (1, 1)))                       # (B,30,30)
    col = jnp.pad(xp.reshape(B, 900), ((0, 0), (31, 31)))           # (B,962)
    offs = [(t // 3) * 30 + (t % 3) for t in range(9)]
    x1 = jnp.stack([col[:, o:o + 900] for o in offs], axis=-1)      # (B,900,9)

    # Batch tile: large enough to fill the MXU M dim / amortize per-step cost,
    # small enough to stay well inside VMEM, and chosen so the grid has >= 2
    # parallel steps whenever B >= 2 (v7x has two TensorCores).
    BT = max(1, min(8, pl.cdiv(B, 2)))
    nb = pl.cdiv(B, BT)
    Bp = nb * BT
    if Bp != B:
        x1 = jnp.pad(x1, ((0, Bp - B), (0, 0), (0, 0)))

    grid_spec = pltpu.PrefetchScalarGridSpec(
        num_scalar_prefetch=0,
        grid=(nb,),
        in_specs=[
            pl.BlockSpec((BT, 900, 9), lambda i: (i, 0, 0)),   # conv1 im2col
            pl.BlockSpec((9, 16),      lambda i: (0, 0)),      # w1  (resident)
            pl.BlockSpec((1, 16),      lambda i: (0, 0)),      # b1
            pl.BlockSpec((9, 16, 32),  lambda i: (0, 0, 0)),   # w2
            pl.BlockSpec((1, 32),      lambda i: (0, 0)),      # b2
            pl.BlockSpec((9, 32, 64),  lambda i: (0, 0, 0)),   # w3
            pl.BlockSpec((1, 64),      lambda i: (0, 0)),      # b3
            pl.BlockSpec((576, 256),   lambda i: (0, 0)),      # wfc1 (slot-major)
            pl.BlockSpec((1, 256),     lambda i: (0, 0)),      # bfc1
            pl.BlockSpec((256, 10),    lambda i: (0, 0)),      # wfc2
            pl.BlockSpec((1, 10),      lambda i: (0, 0)),      # bfc2
        ],
        out_specs=pl.BlockSpec((1, BT, 10), lambda i: (i, 0, 0)),
        scratch_shapes=[
            pltpu.VMEM((BT, 900, 16), jnp.float32),  # y1: conv1 out (30x30 grid)
            pltpu.VMEM((BT, 290, 16), jnp.float32),  # x2: padded pooled-1 (+halo)
            pltpu.VMEM((BT, 256, 32), jnp.float32),  # y2: conv2 out (16x16 grid)
            pltpu.VMEM((BT, 101, 32), jnp.float32),  # x3: padded pooled-2 (+halo)
            pltpu.VMEM((BT, 81, 64),  jnp.float32),  # y3: conv3 out (9x9 grid)
        ],
    )

    flops_per_ex = 2 * (900 * 9 * 16 + 256 * 9 * 16 * 32 + 81 * 9 * 32 * 64
                        + 576 * 256 + 256 * 10)
    out = pl.pallas_call(
        _mycnn_kernel,
        out_shape=jax.ShapeDtypeStruct((nb, BT, 10), jnp.float32),
        grid_spec=grid_spec,
        compiler_params=pltpu.CompilerParams(
            dimension_semantics=("parallel",),
            vmem_limit_bytes=48 * 1024 * 1024,
        ),
        cost_estimate=pl.CostEstimate(
            flops=flops_per_ex * Bp,
            transcendentals=0,
            bytes_accessed=Bp * (900 * 9 + 10) * 4 + 800_000,
        ),
    )(x1, params["w1"], params["b1"], params["w2"], params["b2"],
      params["w3"], params["b3"], params["wfc1"], params["bfc1"],
      params["wfc2"], params["bfc2"])
    return out.reshape(Bp, 10)[:B]


# ----------------------- params (torch layout -> kernel) --------------------

def init_torch_params(key):
    """Random params in the PyTorch layouts (conv: (Cout,Cin,3,3), fc: (out,in))."""
    ks = jax.random.split(key, 10)

    def w(k, shape, fan_in):
        return jax.random.normal(k, shape, jnp.float32) / jnp.sqrt(fan_in)

    return {
        "conv1_w": w(ks[0], (16, 1, 3, 3), 9 * 1),
        "conv1_b": 0.01 * jax.random.normal(ks[1], (16,), jnp.float32),
        "conv2_w": w(ks[2], (32, 16, 3, 3), 9 * 16),
        "conv2_b": 0.01 * jax.random.normal(ks[3], (32,), jnp.float32),
        "conv3_w": w(ks[4], (64, 32, 3, 3), 9 * 32),
        "conv3_b": 0.01 * jax.random.normal(ks[5], (64,), jnp.float32),
        "fc1_w": w(ks[6], (256, 576), 576),
        "fc1_b": 0.01 * jax.random.normal(ks[7], (256,), jnp.float32),
        "fc2_w": w(ks[8], (10, 256), 256),
        "fc2_b": 0.01 * jax.random.normal(ks[9], (10,), jnp.float32),
    }


def pack_params(tp):
    """One-time repack of torch-layout weights into the kernel layouts."""
    def conv_w(w):  # (Cout, Cin, 3, 3) -> (9, Cin, Cout), row t = kh*3 + kw
        cout, cin = w.shape[0], w.shape[1]
        return jnp.transpose(w, (2, 3, 1, 0)).reshape(9, cin, cout)

    # torch flattens the pooled (64,3,3) map as c*9 + (i*3+j).  Repack fc1 so
    # row index is slot-major (t*64 + c), matching the kernel's feature gather
    # order -> a single (BT,576)@(576,256) dot with no runtime transpose.
    wfc1 = jnp.transpose(tp["fc1_w"].T.reshape(64, 9, 256),
                         (1, 0, 2)).reshape(576, 256)
    return {
        "w1": conv_w(tp["conv1_w"]).reshape(9, 16),
        "b1": tp["conv1_b"].reshape(1, 16),
        "w2": conv_w(tp["conv2_w"]), "b2": tp["conv2_b"].reshape(1, 32),
        "w3": conv_w(tp["conv3_w"]), "b3": tp["conv3_b"].reshape(1, 64),
        "wfc1": wfc1,                "bfc1": tp["fc1_b"].reshape(1, 256),
        "wfc2": tp["fc2_w"].T,       "bfc2": tp["fc2_b"].reshape(1, 10),
    }


# --------------------------- pure-XLA reference -----------------------------

def _reference_forward(x_nchw, tp):
    """Direct translation of the PyTorch module (for verification only)."""
    hi = jax.lax.Precision.HIGHEST
    x = jnp.transpose(x_nchw, (0, 2, 3, 1)).astype(jnp.float32)      # NHWC

    def conv(x, w_t, b):
        w = jnp.transpose(w_t, (2, 3, 1, 0))                         # HWIO
        y = jax.lax.conv_general_dilated(
            x, w, window_strides=(1, 1), padding=((1, 1), (1, 1)),
            dimension_numbers=("NHWC", "HWIO", "NHWC"), precision=hi)
        return jax.nn.relu(y + b)

    def pool(x):
        return jax.lax.reduce_window(x, -jnp.inf, jax.lax.max,
                                     (1, 2, 2, 1), (1, 2, 2, 1), "VALID")

    x = pool(conv(x, tp["conv1_w"], tp["conv1_b"]))
    x = pool(conv(x, tp["conv2_w"], tp["conv2_b"]))
    x = pool(conv(x, tp["conv3_w"], tp["conv3_b"]))
    B = x.shape[0]
    x = jnp.transpose(x, (0, 3, 1, 2)).reshape(B, 576)               # torch .view
    x = jax.nn.relu(jnp.dot(x, tp["fc1_w"].T, precision=hi) + tp["fc1_b"])
    return jnp.dot(x, tp["fc2_w"].T, precision=hi) + tp["fc2_b"]


# ---------------------------------- main -------------------------------------

if __name__ == "__main__":
    key = jax.random.PRNGKey(0)
    k_x, k_p = jax.random.split(key)
    # 28x28 single-channel input is implied by fc1 = Linear(64*3*3, 256).
    tparams = init_torch_params(k_p)
    params = pack_params(tparams)
    fwd = jax.jit(mycnn_forward)

    for B in (2, 13):   # B=13 exercises a multi-example batch tile + padding
        x = jax.random.normal(jax.random.fold_in(k_x, B),
                              (B, 1, 28, 28), jnp.float32)
        out = jax.block_until_ready(fwd(x, params))
        assert out.shape == (B, 10) and out.dtype == jnp.float32, \
            (B, out.shape, out.dtype)
        ref = jax.block_until_ready(_reference_forward(x, tparams))
        err = float(jnp.max(jnp.abs(out - ref)))
        scale = float(jnp.max(jnp.abs(ref)))
        assert err <= 0.02 * scale + 1e-4, (B, err, scale)

    print("KERNEL_OK")
</pallas_src>

<mosaic_0001>
module attributes {stable_mosaic.version = 11 : i64} {
  func.func @_mycnn_kernel(%arg0: i32, %arg1: memref<1x900x9xf32, #tpu.memory_space<vmem>>, %arg2: memref<9x16xf32, #tpu.memory_space<vmem>>, %arg3: memref<1x16xf32, #tpu.memory_space<vmem>>, %arg4: memref<9x16x32xf32, #tpu.memory_space<vmem>>, %arg5: memref<1x32xf32, #tpu.memory_space<vmem>>, %arg6: memref<9x32x64xf32, #tpu.memory_space<vmem>>, %arg7: memref<1x64xf32, #tpu.memory_space<vmem>>, %arg8: memref<576x256xf32, #tpu.memory_space<vmem>>, %arg9: memref<1x256xf32, #tpu.memory_space<vmem>>, %arg10: memref<256x10xf32, #tpu.memory_space<vmem>>, %arg11: memref<1x10xf32, #tpu.memory_space<vmem>>, %arg12: memref<1x1x10xf32, #tpu.memory_space<vmem>>, %arg13: memref<1x900x16xf32, #tpu.memory_space<vmem>>, %arg14: memref<1x290x16xf32, #tpu.memory_space<vmem>>, %arg15: memref<1x256x32xf32, #tpu.memory_space<vmem>>, %arg16: memref<1x101x32xf32, #tpu.memory_space<vmem>>, %arg17: memref<1x81x64xf32, #tpu.memory_space<vmem>>) attributes {dimension_semantics = [#tpu.dimension_semantics<parallel>], iteration_bounds = array<i64: 2>, scalar_prefetch = 0 : i64, scratch_operands = 5 : i64, tpu.core_type = #tpu.core_type<tc>, window_params = [{transform_indices = @transform_0, window_bounds = array<i64: 1, 900, 9>}, {pipeline_mode = #tpu.pipeline_mode<synchronous>, transform_indices = @transform_1, window_bounds = array<i64: 9, 16>}, {pipeline_mode = #tpu.pipeline_mode<synchronous>, transform_indices = @transform_2, window_bounds = array<i64: 1, 16>}, {pipeline_mode = #tpu.pipeline_mode<synchronous>, transform_indices = @transform_3, window_bounds = array<i64: 9, 16, 32>}, {pipeline_mode = #tpu.pipeline_mode<synchronous>, transform_indices = @transform_4, window_bounds = array<i64: 1, 32>}, {pipeline_mode = #tpu.pipeline_mode<synchronous>, transform_indices = @transform_5, window_bounds = array<i64: 9, 32, 64>}, {pipeline_mode = #tpu.pipeline_mode<synchronous>, transform_indices = @transform_6, window_bounds = array<i64: 1, 64>}, {pipeline_mode = #tpu.pipeline_mode<synchronous>, transform_indices = @transform_7, window_bounds = array<i64: 576, 256>}, {pipeline_mode = #tpu.pipeline_mode<synchronous>, transform_indices = @transform_8, window_bounds = array<i64: 1, 256>}, {pipeline_mode = #tpu.pipeline_mode<synchronous>, transform_indices = @transform_9, window_bounds = array<i64: 256, 10>}, {pipeline_mode = #tpu.pipeline_mode<synchronous>, transform_indices = @transform_10, window_bounds = array<i64: 1, 10>}, {transform_indices = @transform_11, window_bounds = array<i64: 1, 1, 10>}]} {
    %cst = arith.constant 0.000000e+00 : f32
    %0 = vector.broadcast %cst : f32 to vector<1x290x16xf32>
    %c0 = arith.constant 0 : index
    %c0_0 = arith.constant 0 : index
    %c0_1 = arith.constant 0 : index
    %1 = vector.load %arg14[%c0, %c0_0, %c0_1] : memref<1x290x16xf32, #tpu.memory_space<vmem>>, vector<1x290x16xf32>
    tpu.vector_store %arg14[%c0, %c0_0, %c0_1], %0 {strides = array<i32>} : memref<1x290x16xf32, #tpu.memory_space<vmem>>, vector<1x290x16xf32>,
    %cst_2 = arith.constant 0.000000e+00 : f32
    %2 = vector.broadcast %cst_2 : f32 to vector<1x101x32xf32>
    %c0_3 = arith.constant 0 : index
    %c0_4 = arith.constant 0 : index
    %c0_5 = arith.constant 0 : index
    %3 = vector.load %arg16[%c0_3, %c0_4, %c0_5] : memref<1x101x32xf32, #tpu.memory_space<vmem>>, vector<1x101x32xf32>
    tpu.vector_store %arg16[%c0_3, %c0_4, %c0_5], %2 {strides = array<i32>} : memref<1x101x32xf32, #tpu.memory_space<vmem>>, vector<1x101x32xf32>,
    %c0_6 = arith.constant 0 : index
    %c0_7 = arith.constant 0 : index
    %4 = vector.load %arg2[%c0_6, %c0_7] : memref<9x16xf32, #tpu.memory_space<vmem>>, vector<9x16xf32>
    %5 = vector.shape_cast %4 : vector<9x16xf32> to vector<1x9x16xf32>
    %c0_8 = arith.constant 0 : index
    %c0_9 = arith.constant 0 : index
    %c0_10 = arith.constant 0 : index
    %6 = vector.load %arg1[%c0_8, %c0_9, %c0_10] : memref<1x900x9xf32, #tpu.memory_space<vmem>>, vector<1x900x9xf32>
    "tpu.trace_start"() <{level = 10 : i32, message = "bqk,bkc->bqc"}> : () -> ()
    %cst_11 = arith.constant dense<0.000000e+00> : vector<1x900x16xf32>
    %7 = tpu.matmul %6, %5, %cst_11 {dimension_numbers = #tpu.dot_dimension_numbers<[2], [1], [1], [2], [0, 0, 0, 1, 1, 2], [0], [0]>} : vector<1x900x9xf32>, vector<1x9x16xf32>, vector<1x900x16xf32> -> vector<1x900x16xf32>
    "tpu.trace_stop"() : () -> ()
    %c0_12 = arith.constant 0 : index
    %c0_13 = arith.constant 0 : index
    %8 = vector.load %arg3[%c0_12, %c0_13] : memref<1x16xf32, #tpu.memory_space<vmem>>, vector<1x16xf32>
    %9 = vector.shape_cast %8 : vector<1x16xf32> to vector<1x1x16xf32>
    %10 = vector.broadcast %9 : vector<1x1x16xf32> to vector<1x900x16xf32>
    %11 = arith.addf %7, %10 : vector<1x900x16xf32>
    %cst_14 = arith.constant 0.000000e+00 : f32
    %12 = vector.broadcast %cst_14 : f32 to vector<1x900x16xf32>
    %13 = arith.maximumf %11, %12 : vector<1x900x16xf32>
    %c0_15 = arith.constant 0 : index
    %c0_16 = arith.constant 0 : index
    %c0_17 = arith.constant 0 : index
    %14 = vector.load %arg13[%c0_15, %c0_16, %c0_17] : memref<1x900x16xf32, #tpu.memory_space<vmem>>, vector<1x900x16xf32>
    tpu.vector_store %arg13[%c0_15, %c0_16, %c0_17], %13 {strides = array<i32>} : memref<1x900x16xf32, #tpu.memory_space<vmem>>, vector<1x900x16xf32>,
    %c0_18 = arith.constant 0 : index
    %c31 = arith.constant 31 : index
    %c0_19 = arith.constant 0 : index
    %15 = tpu.strided_load %arg13[%c0_18, %c31, %c0_19] {strides = array<i32: 1, 2, 1>} : memref<1x900x16xf32, #tpu.memory_space<vmem>>, vector<1x14x16xf32>
    %c0_20 = arith.constant 0 : index
    %c32 = arith.constant 32 : index
    %c0_21 = arith.constant 0 : index
    %16 = tpu.strided_load %arg13[%c0_20, %c32, %c0_21] {strides = array<i32: 1, 2, 1>} : memref<1x900x16xf32, #tpu.memory_space<vmem>>, vector<1x14x16xf32>
    %c0_22 = arith.constant 0 : index
    %c61 = arith.constant 61 : index
    %c0_23 = arith.constant 0 : index
    %17 = tpu.strided_load %arg13[%c0_22, %c61, %c0_23] {strides = array<i32: 1, 2, 1>} : memref<1x900x16xf32, #tpu.memory_space<vmem>>, vector<1x14x16xf32>
    %c0_24 = arith.constant 0 : index
    %c62 = arith.constant 62 : index
    %c0_25 = arith.constant 0 : index
    %18 = tpu.strided_load %arg13[%c0_24, %c62, %c0_25] {strides = array<i32: 1, 2, 1>} : memref<1x900x16xf32, #tpu.memory_space<vmem>>, vector<1x14x16xf32>
    %19 = arith.maximumf %15, %16 : vector<1x14x16xf32>
    %20 = arith.maximumf %17, %18 : vector<1x14x16xf32>
    %21 = arith.maximumf %19, %20 : vector<1x14x16xf32>
    %c0_26 = arith.constant 0 : index
    %c34 = arith.constant 34 : index
    %c0_27 = arith.constant 0 : index
    %22 = vector.load %arg14[%c0_26, %c34, %c0_27] : memref<1x290x16xf32, #tpu.memory_space<vmem>>, vector<1x14x16xf32>
    tpu.vector_store %arg14[%c0_26, %c34, %c0_27], %21 {strides = array<i32>} : memref<1x290x16xf32, #tpu.memory_space<vmem>>, vector<1x14x16xf32>,
    %c0_28 = arith.constant 0 : index
    %c91 = arith.constant 91 : index
    %c0_29 = arith.constant 0 : index
    %23 = tpu.strided_load %arg13[%c0_28, %c91, %c0_29] {strides = array<i32: 1, 2, 1>} : memref<1x900x16xf32, #tpu.memory_space<vmem>>, vector<1x14x16xf32>
    %c0_30 = arith.constant 0 : index
    %c92 = arith.constant 92 : index
    %c0_31 = arith.constant 0 : index
    %24 = tpu.strided_load %arg13[%c0_30, %c92, %c0_31] {strides = array<i32: 1, 2, 1>} : memref<1x900x16xf32, #tpu.memory_space<vmem>>, vector<1x14x16xf32>
    %c0_32 = arith.constant 0 : index
    %c121 = arith.constant 121 : index
    %c0_33 = arith.constant 0 : index
    %25 = tpu.strided_load %arg13[%c0_32, %c121, %c0_33] {strides = array<i32: 1, 2, 1>} : memref<1x900x16xf32, #tpu.memory_space<vmem>>, vector<1x14x16xf32>
    %c0_34 = arith.constant 0 : index
    %c122 = arith.constant 122 : index
    %c0_35 = arith.constant 0 : index
    %26 = tpu.strided_load %arg13[%c0_34, %c122, %c0_35] {strides = array<i32: 1, 2, 1>} : memref<1x900x16xf32, #tpu.memory_space<vmem>>, vector<1x14x16xf32>
    %27 = arith.maximumf %23, %24 : vector<1x14x16xf32>
    %28 = arith.maximumf %25, %26 : vector<1x14x16xf32>
    %29 = arith.maximumf %27, %28 : vector<1x14x16xf32>
    %c0_36 = arith.constant 0 : index
    %c50 = arith.constant 50 : index
    %c0_37 = arith.constant 0 : index
    %30 = vector.load %arg14[%c0_36, %c50, %c0_37] : memref<1x290x16xf32, #tpu.memory_space<vmem>>, vector<1x14x16xf32>
    tpu.vector_store %arg14[%c0_36, %c50, %c0_37], %29 {strides = array<i32>} : memref<1x290x16xf32, #tpu.memory_space<vmem>>, vector<1x14x16xf32>,
    %c0_38 = arith.constant 0 : index
    %c151 = arith.constant 151 : index
    %c0_39 = arith.constant 0 : index
    %31 = tpu.strided_load %arg13[%c0_38, %c151, %c0_39] {strides = array<i32: 1, 2, 1>} : memref<1x900x16xf32, #tpu.memory_space<vmem>>, vector<1x14x16xf32>
    %c0_40 = arith.constant 0 : index
    %c152 = arith.constant 152 : index
    %c0_41 = arith.constant 0 : index
    %32 = tpu.strided_load %arg13[%c0_40, %c152, %c0_41] {strides = array<i32: 1, 2, 1>} : memref<1x900x16xf32, #tpu.memory_space<vmem>>, vector<1x14x16xf32>
    %c0_42 = arith.constant 0 : index
    %c181 = arith.constant 181 : index
    %c0_43 = arith.constant 0 : index
    %33 = tpu.strided_load %arg13[%c0_42, %c181, %c0_43] {strides = array<i32: 1, 2, 1>} : memref<1x900x16xf32, #tpu.memory_space<vmem>>, vector<1x14x16xf32>
    %c0_44 = arith.constant 0 : index
    %c182 = arith.constant 182 : index
    %c0_45 = arith.constant 0 : index
    %34 = tpu.strided_load %arg13[%c0_44, %c182, %c0_45] {strides = array<i32: 1, 2, 1>} : memref<1x900x16xf32, #tpu.memory_space<vmem>>, vector<1x14x16xf32>
    %35 = arith.maximumf %31, %32 : vector<1x14x16xf32>
    %36 = arith.maximumf %33, %34 : vector<1x14x16xf32>
    %37 = arith.maximumf %35, %36 : vector<1x14x16xf32>
    %c0_46 = arith.constant 0 : index
    %c66 = arith.constant 66 : index
    %c0_47 = arith.constant 0 : index
    %38 = vector.load %arg14[%c0_46, %c66, %c0_47] : memref<1x290x16xf32, #tpu.memory_space<vmem>>, vector<1x14x16xf32>
    tpu.vector_store %arg14[%c0_46, %c66, %c0_47], %37 {strides = array<i32>} : memref<1x290x16xf32, #tpu.memory_space<vmem>>, vector<1x14x16xf32>,
    %c0_48 = arith.constant 0 : index
    %c211 = arith.constant 211 : index
    %c0_49 = arith.constant 0 : index
    %39 = tpu.strided_load %arg13[%c0_48, %c211, %c0_49] {strides = array<i32: 1, 2, 1>} : memref<1x900x16xf32, #tpu.memory_space<vmem>>, vector<1x14x16xf32>
    %c0_50 = arith.constant 0 : index
    %c212 = arith.constant 212 : index
    %c0_51 = arith.constant 0 : index
    %40 = tpu.strided_load %arg13[%c0_50, %c212, %c0_51] {strides = array<i32: 1, 2, 1>} : memref<1x900x16xf32, #tpu.memory_space<vmem>>, vector<1x14x16xf32>
    %c0_52 = arith.constant 0 : index
    %c241 = arith.constant 241 : index
    %c0_53 = arith.constant 0 : index
    %41 = tpu.strided_load %arg13[%c0_52, %c241, %c0_53] {strides = array<i32: 1, 2, 1>} : memref<1x900x16xf32, #tpu.memory_space<vmem>>, vector<1x14x16xf32>
    %c0_54 = arith.constant 0 : index
    %c242 = arith.constant 242 : index
    %c0_55 = arith.constant 0 : index
    %42 = tpu.strided_load %arg13[%c0_54, %c242, %c0_55] {strides = array<i32: 1, 2, 1>} : memref<1x900x16xf32, #tpu.memory_space<vmem>>, vector<1x14x16xf32>
    %43 = arith.maximumf %39, %40 : vector<1x14x16xf32>
    %44 = arith.maximumf %41, %42 : vector<1x14x16xf32>
    %45 = arith.maximumf %43, %44 : vector<1x14x16xf32>
    %c0_56 = arith.constant 0 : index
    %c82 = arith.constant 82 : index
    %c0_57 = arith.constant 0 : index
    %46 = vector.load %arg14[%c0_56, %c82, %c0_57] : memref<1x290x16xf32, #tpu.memory_space<vmem>>, vector<1x14x16xf32>
    tpu.vector_store %arg14[%c0_56, %c82, %c0_57], %45 {strides = array<i32>} : memref<1x290x16xf32, #tpu.memory_space<vmem>>, vector<1x14x16xf32>,
    %c0_58 = arith.constant 0 : index
    %c271 = arith.constant 271 : index
    %c0_59 = arith.constant 0 : index
    %47 = tpu.strided_load %arg13[%c0_58, %c271, %c0_59] {strides = array<i32: 1, 2, 1>} : memref<1x900x16xf32, #tpu.memory_space<vmem>>, vector<1x14x16xf32>
    %c0_60 = arith.constant 0 : index
    %c272 = arith.constant 272 : index
    %c0_61 = arith.constant 0 : index
    %48 = tpu.strided_load %arg13[%c0_60, %c272, %c0_61] {strides = array<i32: 1, 2, 1>} : memref<1x900x16xf32, #tpu.memory_space<vmem>>, vector<1x14x16xf32>
    %c0_62 = arith.constant 0 : index
    %c301 = arith.constant 301 : index
    %c0_63 = arith.constant 0 : index
    %49 = tpu.strided_load %arg13[%c0_62, %c301, %c0_63] {strides = array<i32: 1, 2, 1>} : memref<1x900x16xf32, #tpu.memory_space<vmem>>, vector<1x14x16xf32>
    %c0_64 = arith.constant 0 : index
    %c302 = arith.constant 302 : index
    %c0_65 = arith.constant 0 : index
    %50 = tpu.strided_load %arg13[%c0_64, %c302, %c0_65] {strides = array<i32: 1, 2, 1>} : memref<1x900x16xf32, #tpu.memory_space<vmem>>, vector<1x14x16xf32>
    %51 = arith.maximumf %47, %48 : vector<1x14x16xf32>
    %52 = arith.maximumf %49, %50 : vector<1x14x16xf32>
    %53 = arith.maximumf %51, %52 : vector<1x14x16xf32>
    %c0_66 = arith.constant 0 : index
    %c98 = arith.constant 98 : index
    %c0_67 = arith.constant 0 : index
    %54 = vector.load %arg14[%c0_66, %c98, %c0_67] : memref<1x290x16xf32, #tpu.memory_space<vmem>>, vector<1x14x16xf32>
    tpu.vector_store %arg14[%c0_66, %c98, %c0_67], %53 {strides = array<i32>} : memref<1x290x16xf32, #tpu.memory_space<vmem>>, vector<1x14x16xf32>,
    %c0_68 = arith.constant 0 : index
    %c331 = arith.constant 331 : index
    %c0_69 = arith.constant 0 : index
    %55 = tpu.strided_load %arg13[%c0_68, %c331, %c0_69] {strides = array<i32: 1, 2, 1>} : memref<1x900x16xf32, #tpu.memory_space<vmem>>, vector<1x14x16xf32>
    %c0_70 = arith.constant 0 : index
    %c332 = arith.constant 332 : index
    %c0_71 = arith.constant 0 : index
    %56 = tpu.strided_load %arg13[%c0_70, %c332, %c0_71] {strides = array<i32: 1, 2, 1>} : memref<1x900x16xf32, #tpu.memory_space<vmem>>, vector<1x14x16xf32>
    %c0_72 = arith.constant 0 : index
    %c361 = arith.constant 361 : index
    %c0_73 = arith.constant 0 : index
    %57 = tpu.strided_load %arg13[%c0_72, %c361, %c0_73] {strides = array<i32: 1, 2, 1>} : memref<1x900x16xf32, #tpu.memory_space<vmem>>, vector<1x14x16xf32>
    %c0_74 = arith.constant 0 : index
    %c362 = arith.constant 362 : index
    %c0_75 = arith.constant 0 : index
    %58 = tpu.strided_load %arg13[%c0_74, %c362, %c0_75] {strides = array<i32: 1, 2, 1>} : memref<1x900x16xf32, #tpu.memory_space<vmem>>, vector<1x14x16xf32>
    %59 = arith.maximumf %55, %56 : vector<1x14x16xf32>
    %60 = arith.maximumf %57, %58 : vector<1x14x16xf32>
    %61 = arith.maximumf %59, %60 : vector<1x14x16xf32>
    %c0_76 = arith.constant 0 : index
    %c114 = arith.constant 114 : index
    %c0_77 = arith.constant 0 : index
    %62 = vector.load %arg14[%c0_76, %c114, %c0_77] : memref<1x290x16xf32, #tpu.memory_space<vmem>>, vector<1x14x16xf32>
    tpu.vector_store %arg14[%c0_76, %c114, %c0_77], %61 {strides = array<i32>} : memref<1x290x16xf32, #tpu.memory_space<vmem>>, vector<1x14x16xf32>,
    %c0_78 = arith.constant 0 : index
    %c391 = arith.constant 391 : index
    %c0_79 = arith.constant 0 : index
    %63 = tpu.strided_load %arg13[%c0_78, %c391, %c0_79] {strides = array<i32: 1, 2, 1>} : memref<1x900x16xf32, #tpu.memory_space<vmem>>, vector<1x14x16xf32>
    %c0_80 = arith.constant 0 : index
    %c392 = arith.constant 392 : index
    %c0_81 = arith.constant 0 : index
    %64 = tpu.strided_load %arg13[%c0_80, %c392, %c0_81] {strides = array<i32: 1, 2, 1>} : memref<1x900x16xf32, #tpu.memory_space<vmem>>, vector<1x14x16xf32>
    %c0_82 = arith.constant 0 : index
    %c421 = arith.constant 421 : index
    %c0_83 = arith.constant 0 : index
    %65 = tpu.strided_load %arg13[%c0_82, %c421, %c0_83] {strides = array<i32: 1, 2, 1>} : memref<1x900x16xf32, #tpu.memory_space<vmem>>, vector<1x14x16xf32>
    %c0_84 = arith.constant 0 : index
    %c422 = arith.constant 422 : index
    %c0_85 = arith.constant 0 : index
    %66 = tpu.strided_load %arg13[%c0_84, %c422, %c0_85] {strides = array<i32: 1, 2, 1>} : memref<1x900x16xf32, #tpu.memory_space<vmem>>, vector<1x14x16xf32>
    %67 = arith.maximumf %63, %64 : vector<1x14x16xf32>
    %68 = arith.maximumf %65, %66 : vector<1x14x16xf32>
    %69 = arith.maximumf %67, %68 : vector<1x14x16xf32>
    %c0_86 = arith.constant 0 : index
    %c130 = arith.constant 130 : index
    %c0_87 = arith.constant 0 : index
    %70 = vector.load %arg14[%c0_86, %c130, %c0_87] : memref<1x290x16xf32, #tpu.memory_space<vmem>>, vector<1x14x16xf32>
    tpu.vector_store %arg14[%c0_86, %c130, %c0_87], %69 {strides = array<i32>} : memref<1x290x16xf32, #tpu.memory_space<vmem>>, vector<1x14x16xf32>,
    %c0_88 = arith.constant 0 : index
    %c451 = arith.constant 451 : index
    %c0_89 = arith.constant 0 : index
    %71 = tpu.strided_load %arg13[%c0_88, %c451, %c0_89] {strides = array<i32: 1, 2, 1>} : memref<1x900x16xf32, #tpu.memory_space<vmem>>, vector<1x14x16xf32>
    %c0_90 = arith.constant 0 : index
    %c452 = arith.constant 452 : index
    %c0_91 = arith.constant 0 : index
    %72 = tpu.strided_load %arg13[%c0_90, %c452, %c0_91] {strides = array<i32: 1, 2, 1>} : memref<1x900x16xf32, #tpu.memory_space<vmem>>, vector<1x14x16xf32>
    %c0_92 = arith.constant 0 : index
    %c481 = arith.constant 481 : index
    %c0_93 = arith.constant 0 : index
    %73 = tpu.strided_load %arg13[%c0_92, %c481, %c0_93] {strides = array<i32: 1, 2, 1>} : memref<1x900x16xf32, #tpu.memory_space<vmem>>, vector<1x14x16xf32>
    %c0_94 = arith.constant 0 : index
    %c482 = arith.constant 482 : index
    %c0_95 = arith.constant 0 : index
    %74 = tpu.strided_load %arg13[%c0_94, %c482, %c0_95] {strides = array<i32: 1, 2, 1>} : memref<1x900x16xf32, #tpu.memory_space<vmem>>, vector<1x14x16xf32>
    %75 = arith.maximumf %71, %72 : vector<1x14x16xf32>
    %76 = arith.maximumf %73, %74 : vector<1x14x16xf32>
    %77 = arith.maximumf %75, %76 : vector<1x14x16xf32>
    %c0_96 = arith.constant 0 : index
    %c146 = arith.constant 146 : index
    %c0_97 = arith.constant 0 : index
    %78 = vector.load %arg14[%c0_96, %c146, %c0_97] : memref<1x290x16xf32, #tpu.memory_space<vmem>>, vector<1x14x16xf32>
    tpu.vector_store %arg14[%c0_96, %c146, %c0_97], %77 {strides = array<i32>} : memref<1x290x16xf32, #tpu.memory_space<vmem>>, vector<1x14x16xf32>,
    %c0_98 = arith.constant 0 : index
    %c511 = arith.constant 511 : index
    %c0_99 = arith.constant 0 : index
    %79 = tpu.strided_load %arg13[%c0_98, %c511, %c0_99] {strides = array<i32: 1, 2, 1>} : memref<1x900x16xf32, #tpu.memory_space<vmem>>, vector<1x14x16xf32>
    %c0_100 = arith.constant 0 : index
    %c512 = arith.constant 512 : index
    %c0_101 = arith.constant 0 : index
    %80 = tpu.strided_load %arg13[%c0_100, %c512, %c0_101] {strides = array<i32: 1, 2, 1>} : memref<1x900x16xf32, #tpu.memory_space<vmem>>, vector<1x14x16xf32>
    %c0_102 = arith.constant 0 : index
    %c541 = arith.constant 541 : index
    %c0_103 = arith.constant 0 : index
    %81 = tpu.strided_load %arg13[%c0_102, %c541, %c0_103] {strides = array<i32: 1, 2, 1>} : memref<1x900x16xf32, #tpu.memory_space<vmem>>, vector<1x14x16xf32>
    %c0_104 = arith.constant 0 : index
    %c542 = arith.constant 542 : index
    %c0_105 = arith.constant 0 : index
    %82 = tpu.strided_load %arg13[%c0_104, %c542, %c0_105] {strides = array<i32: 1, 2, 1>} : memref<1x900x16xf32, #tpu.memory_space<vmem>>, vector<1x14x16xf32>
    %83 = arith.maximumf %79, %80 : vector<1x14x16xf32>
    %84 = arith.maximumf %81, %82 : vector<1x14x16xf32>
    %85 = arith.maximumf %83, %84 : vector<1x14x16xf32>
    %c0_106 = arith.constant 0 : index
    %c162 = arith.constant 162 : index
    %c0_107 = arith.constant 0 : index
    %86 = vector.load %arg14[%c0_106, %c162, %c0_107] : memref<1x290x16xf32, #tpu.memory_space<vmem>>, vector<1x14x16xf32>
    tpu.vector_store %arg14[%c0_106, %c162, %c0_107], %85 {strides = array<i32>} : memref<1x290x16xf32, #tpu.memory_space<vmem>>, vector<1x14x16xf32>,
    %c0_108 = arith.constant 0 : index
    %c571 = arith.constant 571 : index
    %c0_109 = arith.constant 0 : index
    %87 = tpu.strided_load %arg13[%c0_108, %c571, %c0_109] {strides = array<i32: 1, 2, 1>} : memref<1x900x16xf32, #tpu.memory_space<vmem>>, vector<1x14x16xf32>
    %c0_110 = arith.constant 0 : index
    %c572 = arith.constant 572 : index
    %c0_111 = arith.constant 0 : index
    %88 = tpu.strided_load %arg13[%c0_110, %c572, %c0_111] {strides = array<i32: 1, 2, 1>} : memref<1x900x16xf32, #tpu.memory_space<vmem>>, vector<1x14x16xf32>
    %c0_112 = arith.constant 0 : index
    %c601 = arith.constant 601 : index
    %c0_113 = arith.constant 0 : index
    %89 = tpu.strided_load %arg13[%c0_112, %c601, %c0_113] {strides = array<i32: 1, 2, 1>} : memref<1x900x16xf32, #tpu.memory_space<vmem>>, vector<1x14x16xf32>
    %c0_114 = arith.constant 0 : index
    %c602 = arith.constant 602 : index
    %c0_115 = arith.constant 0 : index
    %90 = tpu.strided_load %arg13[%c0_114, %c602, %c0_115] {strides = array<i32: 1, 2, 1>} : memref<1x900x16xf32, #tpu.memory_space<vmem>>, vector<1x14x16xf32>
    %91 = arith.maximumf %87, %88 : vector<1x14x16xf32>
    %92 = arith.maximumf %89, %90 : vector<1x14x16xf32>
    %93 = arith.maximumf %91, %92 : vector<1x14x16xf32>
    %c0_116 = arith.constant 0 : index
    %c178 = arith.constant 178 : index
    %c0_117 = arith.constant 0 : index
    %94 = vector.load %arg14[%c0_116, %c178, %c0_117] : memref<1x290x16xf32, #tpu.memory_space<vmem>>, vector<1x14x16xf32>
    tpu.vector_store %arg14[%c0_116, %c178, %c0_117], %93 {strides = array<i32>} : memref<1x290x16xf32, #tpu.memory_space<vmem>>, vector<1x14x16xf32>,
    %c0_118 = arith.constant 0 : index
    %c631 = arith.constant 631 : index
    %c0_119 = arith.constant 0 : index
    %95 = tpu.strided_load %arg13[%c0_118, %c631, %c0_119] {strides = array<i32: 1, 2, 1>} : memref<1x900x16xf32, #tpu.memory_space<vmem>>, vector<1x14x16xf32>
    %c0_120 = arith.constant 0 : index
    %c632 = arith.constant 632 : index
    %c0_121 = arith.constant 0 : index
    %96 = tpu.strided_load %arg13[%c0_120, %c632, %c0_121] {strides = array<i32: 1, 2, 1>} : memref<1x900x16xf32, #tpu.memory_space<vmem>>, vector<1x14x16xf32>
    %c0_122 = arith.constant 0 : index
    %c661 = arith.constant 661 : index
    %c0_123 = arith.constant 0 : index
    %97 = tpu.strided_load %arg13[%c0_122, %c661, %c0_123] {strides = array<i32: 1, 2, 1>} : memref<1x900x16xf32, #tpu.memory_space<vmem>>, vector<1x14x16xf32>
    %c0_124 = arith.constant 0 : index
    %c662 = arith.constant 662 : index
    %c0_125 = arith.constant 0 : index
    %98 = tpu.strided_load %arg13[%c0_124, %c662, %c0_125] {strides = array<i32: 1, 2, 1>} : memref<1x900x16xf32, #tpu.memory_space<vmem>>, vector<1x14x16xf32>
    %99 = arith.maximumf %95, %96 : vector<1x14x16xf32>
    %100 = arith.maximumf %97, %98 : vector<1x14x16xf32>
    %101 = arith.maximumf %99, %100 : vector<1x14x16xf32>
    %c0_126 = arith.constant 0 : index
    %c194 = arith.constant 194 : index
    %c0_127 = arith.constant 0 : index
    %102 = vector.load %arg14[%c0_126, %c194, %c0_127] : memref<1x290x16xf32, #tpu.memory_space<vmem>>, vector<1x14x16xf32>
    tpu.vector_store %arg14[%c0_126, %c194, %c0_127], %101 {strides = array<i32>} : memref<1x290x16xf32, #tpu.memory_space<vmem>>, vector<1x14x16xf32>,
    %c0_128 = arith.constant 0 : index
    %c691 = arith.constant 691 : index
    %c0_129 = arith.constant 0 : index
    %103 = tpu.strided_load %arg13[%c0_128, %c691, %c0_129] {strides = array<i32: 1, 2, 1>} : memref<1x900x16xf32, #tpu.memory_space<vmem>>, vector<1x14x16xf32>
    %c0_130 = arith.constant 0 : index
    %c692 = arith.constant 692 : index
    %c0_131 = arith.constant 0 : index
    %104 = tpu.strided_load %arg13[%c0_130, %c692, %c0_131] {strides = array<i32: 1, 2, 1>} : memref<1x900x16xf32, #tpu.memory_space<vmem>>, vector<1x14x16xf32>
    %c0_132 = arith.constant 0 : index
    %c721 = arith.constant 721 : index
    %c0_133 = arith.constant 0 : index
    %105 = tpu.strided_load %arg13[%c0_132, %c721, %c0_133] {strides = array<i32: 1, 2, 1>} : memref<1x900x16xf32, #tpu.memory_space<vmem>>, vector<1x14x16xf32>
    %c0_134 = arith.constant 0 : index
    %c722 = arith.constant 722 : index
    %c0_135 = arith.constant 0 : index
    %106 = tpu.strided_load %arg13[%c0_134, %c722, %c0_135] {strides = array<i32: 1, 2, 1>} : memref<1x900x16xf32, #tpu.memory_space<vmem>>, vector<1x14x16xf32>
    %107 = arith.maximumf %103, %104 : vector<1x14x16xf32>
    %108 = arith.maximumf %105, %106 : vector<1x14x16xf32>
    %109 = arith.maximumf %107, %108 : vector<1x14x16xf32>
    %c0_136 = arith.constant 0 : index
    %c210 = arith.constant 210 : index
    %c0_137 = arith.constant 0 : index
    %110 = vector.load %arg14[%c0_136, %c210, %c0_137] : memref<1x290x16xf32, #tpu.memory_space<vmem>>, vector<1x14x16xf32>
    tpu.vector_store %arg14[%c0_136, %c210, %c0_137], %109 {strides = array<i32>} : memref<1x290x16xf32, #tpu.memory_space<vmem>>, vector<1x14x16xf32>,
    %c0_138 = arith.constant 0 : index
    %c751 = arith.constant 751 : index
    %c0_139 = arith.constant 0 : index
    %111 = tpu.strided_load %arg13[%c0_138, %c751, %c0_139] {strides = array<i32: 1, 2, 1>} : memref<1x900x16xf32, #tpu.memory_space<vmem>>, vector<1x14x16xf32>
    %c0_140 = arith.constant 0 : index
    %c752 = arith.constant 752 : index
    %c0_141 = arith.constant 0 : index
    %112 = tpu.strided_load %arg13[%c0_140, %c752, %c0_141] {strides = array<i32: 1, 2, 1>} : memref<1x900x16xf32, #tpu.memory_space<vmem>>, vector<1x14x16xf32>
    %c0_142 = arith.constant 0 : index
    %c781 = arith.constant 781 : index
    %c0_143 = arith.constant 0 : index
    %113 = tpu.strided_load %arg13[%c0_142, %c781, %c0_143] {strides = array<i32: 1, 2, 1>} : memref<1x900x16xf32, #tpu.memory_space<vmem>>, vector<1x14x16xf32>
    %c0_144 = arith.constant 0 : index
    %c782 = arith.constant 782 : index
    %c0_145 = arith.constant 0 : index
    %114 = tpu.strided_load %arg13[%c0_144, %c782, %c0_145] {strides = array<i32: 1, 2, 1>} : memref<1x900x16xf32, #tpu.memory_space<vmem>>, vector<1x14x16xf32>
    %115 = arith.maximumf %111, %112 : vector<1x14x16xf32>
    %116 = arith.maximumf %113, %114 : vector<1x14x16xf32>
    %117 = arith.maximumf %115, %116 : vector<1x14x16xf32>
    %c0_146 = arith.constant 0 : index
    %c226 = arith.constant 226 : index
    %c0_147 = arith.constant 0 : index
    %118 = vector.load %arg14[%c0_146, %c226, %c0_147] : memref<1x290x16xf32, #tpu.memory_space<vmem>>, vector<1x14x16xf32>
    tpu.vector_store %arg14[%c0_146, %c226, %c0_147], %117 {strides = array<i32>} : memref<1x290x16xf32, #tpu.memory_space<vmem>>, vector<1x14x16xf32>,
    %c0_148 = arith.constant 0 : index
    %c811 = arith.constant 811 : index
    %c0_149 = arith.constant 0 : index
    %119 = tpu.strided_load %arg13[%c0_148, %c811, %c0_149] {strides = array<i32: 1, 2, 1>} : memref<1x900x16xf32, #tpu.memory_space<vmem>>, vector<1x14x16xf32>
    %c0_150 = arith.constant 0 : index
    %c812 = arith.constant 812 : index
    %c0_151 = arith.constant 0 : index
    %120 = tpu.strided_load %arg13[%c0_150, %c812, %c0_151] {strides = array<i32: 1, 2, 1>} : memref<1x900x16xf32, #tpu.memory_space<vmem>>, vector<1x14x16xf32>
    %c0_152 = arith.constant 0 : index
    %c841 = arith.constant 841 : index
    %c0_153 = arith.constant 0 : index
    %121 = tpu.strided_load %arg13[%c0_152, %c841, %c0_153] {strides = array<i32: 1, 2, 1>} : memref<1x900x16xf32, #tpu.memory_space<vmem>>, vector<1x14x16xf32>
    %c0_154 = arith.constant 0 : index
    %c842 = arith.constant 842 : index
    %c0_155 = arith.constant 0 : index
    %122 = tpu.strided_load %arg13[%c0_154, %c842, %c0_155] {strides = array<i32: 1, 2, 1>} : memref<1x900x16xf32, #tpu.memory_space<vmem>>, vector<1x14x16xf32>
    %123 = arith.maximumf %119, %120 : vector<1x14x16xf32>
    %124 = arith.maximumf %121, %122 : vector<1x14x16xf32>
    %125 = arith.maximumf %123, %124 : vector<1x14x16xf32>
    %c0_156 = arith.constant 0 : index
    %c242_157 = arith.constant 242 : index
    %c0_158 = arith.constant 0 : index
    %126 = vector.load %arg14[%c0_156, %c242_157, %c0_158] : memref<1x290x16xf32, #tpu.memory_space<vmem>>, vector<1x14x16xf32>
    tpu.vector_store %arg14[%c0_156, %c242_157, %c0_158], %125 {strides = array<i32>} : memref<1x290x16xf32, #tpu.memory_space<vmem>>, vector<1x14x16xf32>,
    %c0_159 = arith.constant 0 : index
    %c0_160 = arith.constant 0 : index
    %c0_161 = arith.constant 0 : index
    %127 = vector.load %arg14[%c0_159, %c0_160, %c0_161] : memref<1x290x16xf32, #tpu.memory_space<vmem>>, vector<1x256x16xf32>
    %c0_162 = arith.constant 0 : index
    %c0_163 = arith.constant 0 : index
    %c0_164 = arith.constant 0 : index
    %128 = vector.load %arg4[%c0_162, %c0_163, %c0_164] : memref<9x16x32xf32, #tpu.memory_space<vmem>>, vector<1x16x32xf32>
    %129 = vector.shape_cast %128 : vector<1x16x32xf32> to vector<16x32xf32>
    %130 = vector.shape_cast %129 : vector<16x32xf32> to vector<1x16x32xf32>
    "tpu.trace_start"() <{level = 10 : i32, message = "bqc,bco->bqo"}> : () -> ()
    %cst_165 = arith.constant dense<0.000000e+00> : vector<1x256x32xf32>
    %131 = tpu.matmul %127, %130, %cst_165 {dimension_numbers = #tpu.dot_dimension_numbers<[2], [1], [1], [2], [0, 0, 0, 1, 1, 2], [0], [0]>} : vector<1x256x16xf32>, vector<1x16x32xf32>, vector<1x256x32xf32> -> vector<1x256x32xf32>
    "tpu.trace_stop"() : () -> ()
    %c0_166 = arith.constant 0 : index
    %c1 = arith.constant 1 : index
    %c0_167 = arith.constant 0 : index
    %132 = vector.load %arg14[%c0_166, %c1, %c0_167] : memref<1x290x16xf32, #tpu.memory_space<vmem>>, vector<1x256x16xf32>
    %c1_168 = arith.constant 1 : index
    %c0_169 = arith.constant 0 : index
    %c0_170 = arith.constant 0 : index
    %133 = vector.load %arg4[%c1_168, %c0_169, %c0_170] : memref<9x16x32xf32, #tpu.memory_space<vmem>>, vector<1x16x32xf32>
    %134 = vector.shape_cast %133 : vector<1x16x32xf32> to vector<16x32xf32>
    %135 = vector.shape_cast %134 : vector<16x32xf32> to vector<1x16x32xf32>
    "tpu.trace_start"() <{level = 10 : i32, message = "bqc,bco->bqo"}> : () -> ()
    %cst_171 = arith.constant dense<0.000000e+00> : vector<1x256x32xf32>
    %136 = tpu.matmul %132, %135, %cst_171 {dimension_numbers = #tpu.dot_dimension_numbers<[2], [1], [1], [2], [0, 0, 0, 1, 1, 2], [0], [0]>} : vector<1x256x16xf32>, vector<1x16x32xf32>, vector<1x256x32xf32> -> vector<1x256x32xf32>
    "tpu.trace_stop"() : () -> ()
    %137 = arith.addf %131, %136 : vector<1x256x32xf32>
    %c0_172 = arith.constant 0 : index
    %c2 = arith.constant 2 : index
    %c0_173 = arith.constant 0 : index
    %138 = vector.load %arg14[%c0_172, %c2, %c0_173] : memref<1x290x16xf32, #tpu.memory_space<vmem>>, vector<1x256x16xf32>
    %c2_174 = arith.constant 2 : index
    %c0_175 = arith.constant 0 : index
    %c0_176 = arith.constant 0 : index
    %139 = vector.load %arg4[%c2_174, %c0_175, %c0_176] : memref<9x16x32xf32, #tpu.memory_space<vmem>>, vector<1x16x32xf32>
    %140 = vector.shape_cast %139 : vector<1x16x32xf32> to vector<16x32xf32>
    %141 = vector.shape_cast %140 : vector<16x32xf32> to vector<1x16x32xf32>
    "tpu.trace_start"() <{level = 10 : i32, message = "bqc,bco->bqo"}> : () -> ()
    %cst_177 = arith.constant dense<0.000000e+00> : vector<1x256x32xf32>
    %142 = tpu.matmul %138, %141, %cst_177 {dimension_numbers = #tpu.dot_dimension_numbers<[2], [1], [1], [2], [0, 0, 0, 1, 1, 2], [0], [0]>} : vector<1x256x16xf32>, vector<1x16x32xf32>, vector<1x256x32xf32> -> vector<1x256x32xf32>
    "tpu.trace_stop"() : () -> ()
    %143 = arith.addf %137, %142 : vector<1x256x32xf32>
    %c0_178 = arith.constant 0 : index
    %c16 = arith.constant 16 : index
    %c0_179 = arith.constant 0 : index
    %144 = vector.load %arg14[%c0_178, %c16, %c0_179] : memref<1x290x16xf32, #tpu.memory_space<vmem>>, vector<1x256x16xf32>
    %c3 = arith.constant 3 : index
    %c0_180 = arith.constant 0 : index
    %c0_181 = arith.constant 0 : index
    %145 = vector.load %arg4[%c3, %c0_180, %c0_181] : memref<9x16x32xf32, #tpu.memory_space<vmem>>, vector<1x16x32xf32>
    %146 = vector.shape_cast %145 : vector<1x16x32xf32> to vector<16x32xf32>
    %147 = vector.shape_cast %146 : vector<16x32xf32> to vector<1x16x32xf32>
    "tpu.trace_start"() <{level = 10 : i32, message = "bqc,bco->bqo"}> : () -> ()
    %cst_182 = arith.constant dense<0.000000e+00> : vector<1x256x32xf32>
    %148 = tpu.matmul %144, %147, %cst_182 {dimension_numbers = #tpu.dot_dimension_numbers<[2], [1], [1], [2], [0, 0, 0, 1, 1, 2], [0], [0]>} : vector<1x256x16xf32>, vector<1x16x32xf32>, vector<1x256x32xf32> -> vector<1x256x32xf32>
    "tpu.trace_stop"() : () -> ()
    %149 = arith.addf %143, %148 : vector<1x256x32xf32>
    %c0_183 = arith.constant 0 : index
    %c17 = arith.constant 17 : index
    %c0_184 = arith.constant 0 : index
    %150 = vector.load %arg14[%c0_183, %c17, %c0_184] : memref<1x290x16xf32, #tpu.memory_space<vmem>>, vector<1x256x16xf32>
    %c4 = arith.constant 4 : index
    %c0_185 = arith.constant 0 : index
    %c0_186 = arith.constant 0 : index
    %151 = vector.load %arg4[%c4, %c0_185, %c0_186] : memref<9x16x32xf32, #tpu.memory_space<vmem>>, vector<1x16x32xf32>
    %152 = vector.shape_cast %151 : vector<1x16x32xf32> to vector<16x32xf32>
    %153 = vector.shape_cast %152 : vector<16x32xf32> to vector<1x16x32xf32>
    "tpu.trace_start"() <{level = 10 : i32, message = "bqc,bco->bqo"}> : () -> ()
    %cst_187 = arith.constant dense<0.000000e+00> : vector<1x256x32xf32>
    %154 = tpu.matmul %150, %153, %cst_187 {dimension_numbers = #tpu.dot_dimension_numbers<[2], [1], [1], [2], [0, 0, 0, 1, 1, 2], [0], [0]>} : vector<1x256x16xf32>, vector<1x16x32xf32>, vector<1x256x32xf32> -> vector<1x256x32xf32>
    "tpu.trace_stop"() : () -> ()
    %155 = arith.addf %149, %154 : vector<1x256x32xf32>
    %c0_188 = arith.constant 0 : index
    %c18 = arith.constant 18 : index
    %c0_189 = arith.constant 0 : index
    %156 = vector.load %arg14[%c0_188, %c18, %c0_189] : memref<1x290x16xf32, #tpu.memory_space<vmem>>, vector<1x256x16xf32>
    %c5 = arith.constant 5 : index
    %c0_190 = arith.constant 0 : index
    %c0_191 = arith.constant 0 : index
    %157 = vector.load %arg4[%c5, %c0_190, %c0_191] : memref<9x16x32xf32, #tpu.memory_space<vmem>>, vector<1x16x32xf32>
    %158 = vector.shape_cast %157 : vector<1x16x32xf32> to vector<16x32xf32>
    %159 = vector.shape_cast %158 : vector<16x32xf32> to vector<1x16x32xf32>
    "tpu.trace_start"() <{level = 10 : i32, message = "bqc,bco->bqo"}> : () -> ()
    %cst_192 = arith.constant dense<0.000000e+00> : vector<1x256x32xf32>
    %160 = tpu.matmul %156, %159, %cst_192 {dimension_numbers = #tpu.dot_dimension_numbers<[2], [1], [1], [2], [0, 0, 0, 1, 1, 2], [0], [0]>} : vector<1x256x16xf32>, vector<1x16x32xf32>, vector<1x256x32xf32> -> vector<1x256x32xf32>
    "tpu.trace_stop"() : () -> ()
    %161 = arith.addf %155, %160 : vector<1x256x32xf32>
    %c0_193 = arith.constant 0 : index
    %c32_194 = arith.constant 32 : index
    %c0_195 = arith.constant 0 : index
    %162 = vector.load %arg14[%c0_193, %c32_194, %c0_195] : memref<1x290x16xf32, #tpu.memory_space<vmem>>, vector<1x256x16xf32>
    %c6 = arith.constant 6 : index
    %c0_196 = arith.constant 0 : index
    %c0_197 = arith.constant 0 : index
    %163 = vector.load %arg4[%c6, %c0_196, %c0_197] : memref<9x16x32xf32, #tpu.memory_space<vmem>>, vector<1x16x32xf32>
    %164 = vector.shape_cast %163 : vector<1x16x32xf32> to vector<16x32xf32>
    %165 = vector.shape_cast %164 : vector<16x32xf32> to vector<1x16x32xf32>
    "tpu.trace_start"() <{level = 10 : i32, message = "bqc,bco->bqo"}> : () -> ()
    %cst_198 = arith.constant dense<0.000000e+00> : vector<1x256x32xf32>
    %166 = tpu.matmul %162, %165, %cst_198 {dimension_numbers = #tpu.dot_dimension_numbers<[2], [1], [1], [2], [0, 0, 0, 1, 1, 2], [0], [0]>} : vector<1x256x16xf32>, vector<1x16x32xf32>, vector<1x256x32xf32> -> vector<1x256x32xf32>
    "tpu.trace_stop"() : () -> ()
    %167 = arith.addf %161, %166 : vector<1x256x32xf32>
    %c0_199 = arith.constant 0 : index
    %c33 = arith.constant 33 : index
    %c0_200 = arith.constant 0 : index
    %168 = vector.load %arg14[%c0_199, %c33, %c0_200] : memref<1x290x16xf32, #tpu.memory_space<vmem>>, vector<1x256x16xf32>
    %c7 = arith.constant 7 : index
    %c0_201 = arith.constant 0 : index
    %c0_202 = arith.constant 0 : index
    %169 = vector.load %arg4[%c7, %c0_201, %c0_202] : memref<9x16x32xf32, #tpu.memory_space<vmem>>, vector<1x16x32xf32>
    %170 = vector.shape_cast %169 : vector<1x16x32xf32> to vector<16x32xf32>
    %171 = vector.shape_cast %170 : vector<16x32xf32> to vector<1x16x32xf32>
    "tpu.trace_start"() <{level = 10 : i32, message = "bqc,bco->bqo"}> : () -> ()
    %cst_203 = arith.constant dense<0.000000e+00> : vector<1x256x32xf32>
    %172 = tpu.matmul %168, %171, %cst_203 {dimension_numbers = #tpu.dot_dimension_numbers<[2], [1], [1], [2], [0, 0, 0, 1, 1, 2], [0], [0]>} : vector<1x256x16xf32>, vector<1x16x32xf32>, vector<1x256x32xf32> -> vector<1x256x32xf32>
    "tpu.trace_stop"() : () -> ()
    %173 = arith.addf %167, %172 : vector<1x256x32xf32>
    %c0_204 = arith.constant 0 : index
    %c34_205 = arith.constant 34 : index
    %c0_206 = arith.constant 0 : index
    %174 = vector.load %arg14[%c0_204, %c34_205, %c0_206] : memref<1x290x16xf32, #tpu.memory_space<vmem>>, vector<1x256x16xf32>
    %c8 = arith.constant 8 : index
    %c0_207 = arith.constant 0 : index
    %c0_208 = arith.constant 0 : index
    %175 = vector.load %arg4[%c8, %c0_207, %c0_208] : memref<9x16x32xf32, #tpu.memory_space<vmem>>, vector<1x16x32xf32>
    %176 = vector.shape_cast %175 : vector<1x16x32xf32> to vector<16x32xf32>
    %177 = vector.shape_cast %176 : vector<16x32xf32> to vector<1x16x32xf32>
    "tpu.trace_start"() <{level = 10 : i32, message = "bqc,bco->bqo"}> : () -> ()
    %cst_209 = arith.constant dense<0.000000e+00> : vector<1x256x32xf32>
    %178 = tpu.matmul %174, %177, %cst_209 {dimension_numbers = #tpu.dot_dimension_numbers<[2], [1], [1], [2], [0, 0, 0, 1, 1, 2], [0], [0]>} : vector<1x256x16xf32>, vector<1x16x32xf32>, vector<1x256x32xf32> -> vector<1x256x32xf32>
    "tpu.trace_stop"() : () -> ()
    %179 = arith.addf %173, %178 : vector<1x256x32xf32>
    %c0_210 = arith.constant 0 : index
    %c0_211 = arith.constant 0 : index
    %180 = vector.load %arg5[%c0_210, %c0_211] : memref<1x32xf32, #tpu.memory_space<vmem>>, vector<1x32xf32>
    %181 = vector.shape_cast %180 : vector<1x32xf32> to vector<1x1x32xf32>
    %182 = vector.broadcast %181 : vector<1x1x32xf32> to vector<1x256x32xf32>
    %183 = arith.addf %179, %182 : vector<1x256x32xf32>
    %cst_212 = arith.constant 0.000000e+00 : f32
    %184 = vector.broadcast %cst_212 : f32 to vector<1x256x32xf32>
    %185 = arith.maximumf %183, %184 : vector<1x256x32xf32>
    %c0_213 = arith.constant 0 : index
    %c0_214 = arith.constant 0 : index
    %c0_215 = arith.constant 0 : index
    %186 = vector.load %arg15[%c0_213, %c0_214, %c0_215] : memref<1x256x32xf32, #tpu.memory_space<vmem>>, vector<1x256x32xf32>
    tpu.vector_store %arg15[%c0_213, %c0_214, %c0_215], %185 {strides = array<i32>} : memref<1x256x32xf32, #tpu.memory_space<vmem>>, vector<1x256x32xf32>,
    %c0_216 = arith.constant 0 : index
    %c17_217 = arith.constant 17 : index
    %c0_218 = arith.constant 0 : index
    %187 = tpu.strided_load %arg15[%c0_216, %c17_217, %c0_218] {strides = array<i32: 1, 2, 1>} : memref<1x256x32xf32, #tpu.memory_space<vmem>>, vector<1x7x32xf32>
    %c0_219 = arith.constant 0 : index
    %c18_220 = arith.constant 18 : index
    %c0_221 = arith.constant 0 : index
    %188 = tpu.strided_load %arg15[%c0_219, %c18_220, %c0_221] {strides = array<i32: 1, 2, 1>} : memref<1x256x32xf32, #tpu.memory_space<vmem>>, vector<1x7x32xf32>
    %c0_222 = arith.constant 0 : index
    %c33_223 = arith.constant 33 : index
    %c0_224 = arith.constant 0 : index
    %189 = tpu.strided_load %arg15[%c0_222, %c33_223, %c0_224] {strides = array<i32: 1, 2, 1>} : memref<1x256x32xf32, #tpu.memory_space<vmem>>, vector<1x7x32xf32>
    %c0_225 = arith.constant 0 : index
    %c34_226 = arith.constant 34 : index
    %c0_227 = arith.constant 0 : index
    %190 = tpu.strided_load %arg15[%c0_225, %c34_226, %c0_227] {strides = array<i32: 1, 2, 1>} : memref<1x256x32xf32, #tpu.memory_space<vmem>>, vector<1x7x32xf32>
    %191 = arith.maximumf %187, %188 : vector<1x7x32xf32>
    %192 = arith.maximumf %189, %190 : vector<1x7x32xf32>
    %193 = arith.maximumf %191, %192 : vector<1x7x32xf32>
    %c0_228 = arith.constant 0 : index
    %c20 = arith.constant 20 : index
    %c0_229 = arith.constant 0 : index
    %194 = vector.load %arg16[%c0_228, %c20, %c0_229] : memref<1x101x32xf32, #tpu.memory_space<vmem>>, vector<1x7x32xf32>
    tpu.vector_store %arg16[%c0_228, %c20, %c0_229], %193 {strides = array<i32>} : memref<1x101x32xf32, #tpu.memory_space<vmem>>, vector<1x7x32xf32>,
    %c0_230 = arith.constant 0 : index
    %c49 = arith.constant 49 : index
    %c0_231 = arith.constant 0 : index
    %195 = tpu.strided_load %arg15[%c0_230, %c49, %c0_231] {strides = array<i32: 1, 2, 1>} : memref<1x256x32xf32, #tpu.memory_space<vmem>>, vector<1x7x32xf32>
    %c0_232 = arith.constant 0 : index
    %c50_233 = arith.constant 50 : index
    %c0_234 = arith.constant 0 : index
    %196 = tpu.strided_load %arg15[%c0_232, %c50_233, %c0_234] {strides = array<i32: 1, 2, 1>} : memref<1x256x32xf32, #tpu.memory_space<vmem>>, vector<1x7x32xf32>
    %c0_235 = arith.constant 0 : index
    %c65 = arith.constant 65 : index
    %c0_236 = arith.constant 0 : index
    %197 = tpu.strided_load %arg15[%c0_235, %c65, %c0_236] {strides = array<i32: 1, 2, 1>} : memref<1x256x32xf32, #tpu.memory_space<vmem>>, vector<1x7x32xf32>
    %c0_237 = arith.constant 0 : index
    %c66_238 = arith.constant 66 : index
    %c0_239 = arith.constant 0 : index
    %198 = tpu.strided_load %arg15[%c0_237, %c66_238, %c0_239] {strides = array<i32: 1, 2, 1>} : memref<1x256x32xf32, #tpu.memory_space<vmem>>, vector<1x7x32xf32>
    %199 = arith.maximumf %195, %196 : vector<1x7x32xf32>
    %200 = arith.maximumf %197, %198 : vector<1x7x32xf32>
    %201 = arith.maximumf %199, %200 : vector<1x7x32xf32>
    %c0_240 = arith.constant 0 : index
    %c29 = arith.constant 29 : index
    %c0_241 = arith.constant 0 : index
    %202 = vector.load %arg16[%c0_240, %c29, %c0_241] : memref<1x101x32xf32, #tpu.memory_space<vmem>>, vector<1x7x32xf32>
    tpu.vector_store %arg16[%c0_240, %c29, %c0_241], %201 {strides = array<i32>} : memref<1x101x32xf32, #tpu.memory_space<vmem>>, vector<1x7x32xf32>,
    %c0_242 = arith.constant 0 : index
    %c81 = arith.constant 81 : index
    %c0_243 = arith.constant 0 : index
    %203 = tpu.strided_load %arg15[%c0_242, %c81, %c0_243] {strides = array<i32: 1, 2, 1>} : memref<1x256x32xf32, #tpu.memory_space<vmem>>, vector<1x7x32xf32>
    %c0_244 = arith.constant 0 : index
    %c82_245 = arith.constant 82 : index
    %c0_246 = arith.constant 0 : index
    %204 = tpu.strided_load %arg15[%c0_244, %c82_245, %c0_246] {strides = array<i32: 1, 2, 1>} : memref<1x256x32xf32, #tpu.memory_space<vmem>>, vector<1x7x32xf32>
    %c0_247 = arith.constant 0 : index
    %c97 = arith.constant 97 : index
    %c0_248 = arith.constant 0 : index
    %205 = tpu.strided_load %arg15[%c0_247, %c97, %c0_248] {strides = array<i32: 1, 2, 1>} : memref<1x256x32xf32, #tpu.memory_space<vmem>>, vector<1x7x32xf32>
    %c0_249 = arith.constant 0 : index
    %c98_250 = arith.constant 98 : index
    %c0_251 = arith.constant 0 : index
    %206 = tpu.strided_load %arg15[%c0_249, %c98_250, %c0_251] {strides = array<i32: 1, 2, 1>} : memref<1x256x32xf32, #tpu.memory_space<vmem>>, vector<1x7x32xf32>
    %207 = arith.maximumf %203, %204 : vector<1x7x32xf32>
    %208 = arith.maximumf %205, %206 : vector<1x7x32xf32>
    %209 = arith.maximumf %207, %208 : vector<1x7x32xf32>
    %c0_252 = arith.constant 0 : index
    %c38 = arith.constant 38 : index
    %c0_253 = arith.constant 0 : index
    %210 = vector.load %arg16[%c0_252, %c38, %c0_253] : memref<1x101x32xf32, #tpu.memory_space<vmem>>, vector<1x7x32xf32>
    tpu.vector_store %arg16[%c0_252, %c38, %c0_253], %209 {strides = array<i32>} : memref<1x101x32xf32, #tpu.memory_space<vmem>>, vector<1x7x32xf32>,
    %c0_254 = arith.constant 0 : index
    %c113 = arith.constant 113 : index
    %c0_255 = arith.constant 0 : index
    %211 = tpu.strided_load %arg15[%c0_254, %c113, %c0_255] {strides = array<i32: 1, 2, 1>} : memref<1x256x32xf32, #tpu.memory_space<vmem>>, vector<1x7x32xf32>
    %c0_256 = arith.constant 0 : index
    %c114_257 = arith.constant 114 : index
    %c0_258 = arith.constant 0 : index
    %212 = tpu.strided_load %arg15[%c0_256, %c114_257, %c0_258] {strides = array<i32: 1, 2, 1>} : memref<1x256x32xf32, #tpu.memory_space<vmem>>, vector<1x7x32xf32>
    %c0_259 = arith.constant 0 : index
    %c129 = arith.constant 129 : index
    %c0_260 = arith.constant 0 : index
    %213 = tpu.strided_load %arg15[%c0_259, %c129, %c0_260] {strides = array<i32: 1, 2, 1>} : memref<1x256x32xf32, #tpu.memory_space<vmem>>, vector<1x7x32xf32>
    %c0_261 = arith.constant 0 : index
    %c130_262 = arith.constant 130 : index
    %c0_263 = arith.constant 0 : index
    %214 = tpu.strided_load %arg15[%c0_261, %c130_262, %c0_263] {strides = array<i32: 1, 2, 1>} : memref<1x256x32xf32, #tpu.memory_space<vmem>>, vector<1x7x32xf32>
    %215 = arith.maximumf %211, %212 : vector<1x7x32xf32>
    %216 = arith.maximumf %213, %214 : vector<1x7x32xf32>
    %217 = arith.maximumf %215, %216 : vector<1x7x32xf32>
    %c0_264 = arith.constant 0 : index
    %c47 = arith.constant 47 : index
    %c0_265 = arith.constant 0 : index
    %218 = vector.load %arg16[%c0_264, %c47, %c0_265] : memref<1x101x32xf32, #tpu.memory_space<vmem>>, vector<1x7x32xf32>
    tpu.vector_store %arg16[%c0_264, %c47, %c0_265], %217 {strides = array<i32>} : memref<1x101x32xf32, #tpu.memory_space<vmem>>, vector<1x7x32xf32>,
    %c0_266 = arith.constant 0 : index
    %c145 = arith.constant 145 : index
    %c0_267 = arith.constant 0 : index
    %219 = tpu.strided_load %arg15[%c0_266, %c145, %c0_267] {strides = array<i32: 1, 2, 1>} : memref<1x256x32xf32, #tpu.memory_space<vmem>>, vector<1x7x32xf32>
    %c0_268 = arith.constant 0 : index
    %c146_269 = arith.constant 146 : index
    %c0_270 = arith.constant 0 : index
    %220 = tpu.strided_load %arg15[%c0_268, %c146_269, %c0_270] {strides = array<i32: 1, 2, 1>} : memref<1x256x32xf32, #tpu.memory_space<vmem>>, vector<1x7x32xf32>
    %c0_271 = arith.constant 0 : index
    %c161 = arith.constant 161 : index
    %c0_272 = arith.constant 0 : index
    %221 = tpu.strided_load %arg15[%c0_271, %c161, %c0_272] {strides = array<i32: 1, 2, 1>} : memref<1x256x32xf32, #tpu.memory_space<vmem>>, vector<1x7x32xf32>
    %c0_273 = arith.constant 0 : index
    %c162_274 = arith.constant 162 : index
    %c0_275 = arith.constant 0 : index
    %222 = tpu.strided_load %arg15[%c0_273, %c162_274, %c0_275] {strides = array<i32: 1, 2, 1>} : memref<1x256x32xf32, #tpu.memory_space<vmem>>, vector<1x7x32xf32>
    %223 = arith.maximumf %219, %220 : vector<1x7x32xf32>
    %224 = arith.maximumf %221, %222 : vector<1x7x32xf32>
    %225 = arith.maximumf %223, %224 : vector<1x7x32xf32>
    %c0_276 = arith.constant 0 : index
    %c56 = arith.constant 56 : index
    %c0_277 = arith.constant 0 : index
    %226 = vector.load %arg16[%c0_276, %c56, %c0_277] : memref<1x101x32xf32, #tpu.memory_space<vmem>>, vector<1x7x32xf32>
    tpu.vector_store %arg16[%c0_276, %c56, %c0_277], %225 {strides = array<i32>} : memref<1x101x32xf32, #tpu.memory_space<vmem>>, vector<1x7x32xf32>,
    %c0_278 = arith.constant 0 : index
    %c177 = arith.constant 177 : index
    %c0_279 = arith.constant 0 : index
    %227 = tpu.strided_load %arg15[%c0_278, %c177, %c0_279] {strides = array<i32: 1, 2, 1>} : memref<1x256x32xf32, #tpu.memory_space<vmem>>, vector<1x7x32xf32>
    %c0_280 = arith.constant 0 : index
    %c178_281 = arith.constant 178 : index
    %c0_282 = arith.constant 0 : index
    %228 = tpu.strided_load %arg15[%c0_280, %c178_281, %c0_282] {strides = array<i32: 1, 2, 1>} : memref<1x256x32xf32, #tpu.memory_space<vmem>>, vector<1x7x32xf32>
    %c0_283 = arith.constant 0 : index
    %c193 = arith.constant 193 : index
    %c0_284 = arith.constant 0 : index
    %229 = tpu.strided_load %arg15[%c0_283, %c193, %c0_284] {strides = array<i32: 1, 2, 1>} : memref<1x256x32xf32, #tpu.memory_space<vmem>>, vector<1x7x32xf32>
    %c0_285 = arith.constant 0 : index
    %c194_286 = arith.constant 194 : index
    %c0_287 = arith.constant 0 : index
    %230 = tpu.strided_load %arg15[%c0_285, %c194_286, %c0_287] {strides = array<i32: 1, 2, 1>} : memref<1x256x32xf32, #tpu.memory_space<vmem>>, vector<1x7x32xf32>
    %231 = arith.maximumf %227, %228 : vector<1x7x32xf32>
    %232 = arith.maximumf %229, %230 : vector<1x7x32xf32>
    %233 = arith.maximumf %231, %232 : vector<1x7x32xf32>
    %c0_288 = arith.constant 0 : index
    %c65_289 = arith.constant 65 : index
    %c0_290 = arith.constant 0 : index
    %234 = vector.load %arg16[%c0_288, %c65_289, %c0_290] : memref<1x101x32xf32, #tpu.memory_space<vmem>>, vector<1x7x32xf32>
    tpu.vector_store %arg16[%c0_288, %c65_289, %c0_290], %233 {strides = array<i32>} : memref<1x101x32xf32, #tpu.memory_space<vmem>>, vector<1x7x32xf32>,
    %c0_291 = arith.constant 0 : index
    %c209 = arith.constant 209 : index
    %c0_292 = arith.constant 0 : index
    %235 = tpu.strided_load %arg15[%c0_291, %c209, %c0_292] {strides = array<i32: 1, 2, 1>} : memref<1x256x32xf32, #tpu.memory_space<vmem>>, vector<1x7x32xf32>
    %c0_293 = arith.constant 0 : index
    %c210_294 = arith.constant 210 : index
    %c0_295 = arith.constant 0 : index
    %236 = tpu.strided_load %arg15[%c0_293, %c210_294, %c0_295] {strides = array<i32: 1, 2, 1>} : memref<1x256x32xf32, #tpu.memory_space<vmem>>, vector<1x7x32xf32>
    %c0_296 = arith.constant 0 : index
    %c225 = arith.constant 225 : index
    %c0_297 = arith.constant 0 : index
    %237 = tpu.strided_load %arg15[%c0_296, %c225, %c0_297] {strides = array<i32: 1, 2, 1>} : memref<1x256x32xf32, #tpu.memory_space<vmem>>, vector<1x7x32xf32>
    %c0_298 = arith.constant 0 : index
    %c226_299 = arith.constant 226 : index
    %c0_300 = arith.constant 0 : index
    %238 = tpu.strided_load %arg15[%c0_298, %c226_299, %c0_300] {strides = array<i32: 1, 2, 1>} : memref<1x256x32xf32, #tpu.memory_space<vmem>>, vector<1x7x32xf32>
    %239 = arith.maximumf %235, %236 : vector<1x7x32xf32>
    %240 = arith.maximumf %237, %238 : vector<1x7x32xf32>
    %241 = arith.maximumf %239, %240 : vector<1x7x32xf32>
    %c0_301 = arith.constant 0 : index
    %c74 = arith.constant 74 : index
    %c0_302 = arith.constant 0 : index
    %242 = vector.load %arg16[%c0_301, %c74, %c0_302] : memref<1x101x32xf32, #tpu.memory_space<vmem>>, vector<1x7x32xf32>
    tpu.vector_store %arg16[%c0_301, %c74, %c0_302], %241 {strides = array<i32>} : memref<1x101x32xf32, #tpu.memory_space<vmem>>, vector<1x7x32xf32>,
    %c0_303 = arith.constant 0 : index
    %c0_304 = arith.constant 0 : index
    %c0_305 = arith.constant 0 : index
    %243 = vector.load %arg16[%c0_303, %c0_304, %c0_305] : memref<1x101x32xf32, #tpu.memory_space<vmem>>, vector<1x81x32xf32>
    %c0_306 = arith.constant 0 : index
    %c0_307 = arith.constant 0 : index
    %c0_308 = arith.constant 0 : index
    %244 = vector.load %arg6[%c0_306, %c0_307, %c0_308] : memref<9x32x64xf32, #tpu.memory_space<vmem>>, vector<1x32x64xf32>
    %245 = vector.shape_cast %244 : vector<1x32x64xf32> to vector<32x64xf32>
    %246 = vector.shape_cast %245 : vector<32x64xf32> to vector<1x32x64xf32>
    "tpu.trace_start"() <{level = 10 : i32, message = "bqc,bco->bqo"}> : () -> ()
    %cst_309 = arith.constant dense<0.000000e+00> : vector<1x81x64xf32>
    %247 = tpu.matmul %243, %246, %cst_309 {dimension_numbers = #tpu.dot_dimension_numbers<[2], [1], [1], [2], [0, 0, 0, 1, 1, 2], [0], [0]>} : vector<1x81x32xf32>, vector<1x32x64xf32>, vector<1x81x64xf32> -> vector<1x81x64xf32>
    "tpu.trace_stop"() : () -> ()
    %c0_310 = arith.constant 0 : index
    %c1_311 = arith.constant 1 : index
    %c0_312 = arith.constant 0 : index
    %248 = vector.load %arg16[%c0_310, %c1_311, %c0_312] : memref<1x101x32xf32, #tpu.memory_space<vmem>>, vector<1x81x32xf32>
    %c1_313 = arith.constant 1 : index
    %c0_314 = arith.constant 0 : index
    %c0_315 = arith.constant 0 : index
    %249 = vector.load %arg6[%c1_313, %c0_314, %c0_315] : memref<9x32x64xf32, #tpu.memory_space<vmem>>, vector<1x32x64xf32>
    %250 = vector.shape_cast %249 : vector<1x32x64xf32> to vector<32x64xf32>
    %251 = vector.shape_cast %250 : vector<32x64xf32> to vector<1x32x64xf32>
    "tpu.trace_start"() <{level = 10 : i32, message = "bqc,bco->bqo"}> : () -> ()
    %cst_316 = arith.constant dense<0.000000e+00> : vector<1x81x64xf32>
    %252 = tpu.matmul %248, %251, %cst_316 {dimension_numbers = #tpu.dot_dimension_numbers<[2], [1], [1], [2], [0, 0, 0, 1, 1, 2], [0], [0]>} : vector<1x81x32xf32>, vector<1x32x64xf32>, vector<1x81x64xf32> -> vector<1x81x64xf32>
    "tpu.trace_stop"() : () -> ()
    %253 = arith.addf %247, %252 : vector<1x81x64xf32>
    %c0_317 = arith.constant 0 : index
    %c2_318 = arith.constant 2 : index
    %c0_319 = arith.constant 0 : index
    %254 = vector.load %arg16[%c0_317, %c2_318, %c0_319] : memref<1x101x32xf32, #tpu.memory_space<vmem>>, vector<1x81x32xf32>
    %c2_320 = arith.constant 2 : index
    %c0_321 = arith.constant 0 : index
    %c0_322 = arith.constant 0 : index
    %255 = vector.load %arg6[%c2_320, %c0_321, %c0_322] : memref<9x32x64xf32, #tpu.memory_space<vmem>>, vector<1x32x64xf32>
    %256 = vector.shape_cast %255 : vector<1x32x64xf32> to vector<32x64xf32>
    %257 = vector.shape_cast %256 : vector<32x64xf32> to vector<1x32x64xf32>
    "tpu.trace_start"() <{level = 10 : i32, message = "bqc,bco->bqo"}> : () -> ()
    %cst_323 = arith.constant dense<0.000000e+00> : vector<1x81x64xf32>
    %258 = tpu.matmul %254, %257, %cst_323 {dimension_numbers = #tpu.dot_dimension_numbers<[2], [1], [1], [2], [0, 0, 0, 1, 1, 2], [0], [0]>} : vector<1x81x32xf32>, vector<1x32x64xf32>, vector<1x81x64xf32> -> vector<1x81x64xf32>
    "tpu.trace_stop"() : () -> ()
    %259 = arith.addf %253, %258 : vector<1x81x64xf32>
    %c0_324 = arith.constant 0 : index
    %c9 = arith.constant 9 : index
    %c0_325 = arith.constant 0 : index
    %260 = vector.load %arg16[%c0_324, %c9, %c0_325] : memref<1x101x32xf32, #tpu.memory_space<vmem>>, vector<1x81x32xf32>
    %c3_326 = arith.constant 3 : index
    %c0_327 = arith.constant 0 : index
    %c0_328 = arith.constant 0 : index
    %261 = vector.load %arg6[%c3_326, %c0_327, %c0_328] : memref<9x32x64xf32, #tpu.memory_space<vmem>>, vector<1x32x64xf32>
    %262 = vector.shape_cast %261 : vector<1x32x64xf32> to vector<32x64xf32>
    %263 = vector.shape_cast %262 : vector<32x64xf32> to vector<1x32x64xf32>
    "tpu.trace_start"() <{level = 10 : i32, message = "bqc,bco->bqo"}> : () -> ()
    %cst_329 = arith.constant dense<0.000000e+00> : vector<1x81x64xf32>
    %264 = tpu.matmul %260, %263, %cst_329 {dimension_numbers = #tpu.dot_dimension_numbers<[2], [1], [1], [2], [0, 0, 0, 1, 1, 2], [0], [0]>} : vector<1x81x32xf32>, vector<1x32x64xf32>, vector<1x81x64xf32> -> vector<1x81x64xf32>
    "tpu.trace_stop"() : () -> ()
    %265 = arith.addf %259, %264 : vector<1x81x64xf32>
    %c0_330 = arith.constant 0 : index
    %c10 = arith.constant 10 : index
    %c0_331 = arith.constant 0 : index
    %266 = vector.load %arg16[%c0_330, %c10, %c0_331] : memref<1x101x32xf32, #tpu.memory_space<vmem>>, vector<1x81x32xf32>
    %c4_332 = arith.constant 4 : index
    %c0_333 = arith.constant 0 : index
    %c0_334 = arith.constant 0 : index
    %267 = vector.load %arg6[%c4_332, %c0_333, %c0_334] : memref<9x32x64xf32, #tpu.memory_space<vmem>>, vector<1x32x64xf32>
    %268 = vector.shape_cast %267 : vector<1x32x64xf32> to vector<32x64xf32>
    %269 = vector.shape_cast %268 : vector<32x64xf32> to vector<1x32x64xf32>
    "tpu.trace_start"() <{level = 10 : i32, message = "bqc,bco->bqo"}> : () -> ()
    %cst_335 = arith.constant dense<0.000000e+00> : vector<1x81x64xf32>
    %270 = tpu.matmul %266, %269, %cst_335 {dimension_numbers = #tpu.dot_dimension_numbers<[2], [1], [1], [2], [0, 0, 0, 1, 1, 2], [0], [0]>} : vector<1x81x32xf32>, vector<1x32x64xf32>, vector<1x81x64xf32> -> vector<1x81x64xf32>
    "tpu.trace_stop"() : () -> ()
    %271 = arith.addf %265, %270 : vector<1x81x64xf32>
    %c0_336 = arith.constant 0 : index
    %c11 = arith.constant 11 : index
    %c0_337 = arith.constant 0 : index
    %272 = vector.load %arg16[%c0_336, %c11, %c0_337] : memref<1x101x32xf32, #tpu.memory_space<vmem>>, vector<1x81x32xf32>
    %c5_338 = arith.constant 5 : index
    %c0_339 = arith.constant 0 : index
    %c0_340 = arith.constant 0 : index
    %273 = vector.load %arg6[%c5_338, %c0_339, %c0_340] : memref<9x32x64xf32, #tpu.memory_space<vmem>>, vector<1x32x64xf32>
    %274 = vector.shape_cast %273 : vector<1x32x64xf32> to vector<32x64xf32>
    %275 = vector.shape_cast %274 : vector<32x64xf32> to vector<1x32x64xf32>
    "tpu.trace_start"() <{level = 10 : i32, message = "bqc,bco->bqo"}> : () -> ()
    %cst_341 = arith.constant dense<0.000000e+00> : vector<1x81x64xf32>
    %276 = tpu.matmul %272, %275, %cst_341 {dimension_numbers = #tpu.dot_dimension_numbers<[2], [1], [1], [2], [0, 0, 0, 1, 1, 2], [0], [0]>} : vector<1x81x32xf32>, vector<1x32x64xf32>, vector<1x81x64xf32> -> vector<1x81x64xf32>
    "tpu.trace_stop"() : () -> ()
    %277 = arith.addf %271, %276 : vector<1x81x64xf32>
    %c0_342 = arith.constant 0 : index
    %c18_343 = arith.constant 18 : index
    %c0_344 = arith.constant 0 : index
    %278 = vector.load %arg16[%c0_342, %c18_343, %c0_344] : memref<1x101x32xf32, #tpu.memory_space<vmem>>, vector<1x81x32xf32>
    %c6_345 = arith.constant 6 : index
    %c0_346 = arith.constant 0 : index
    %c0_347 = arith.constant 0 : index
    %279 = vector.load %arg6[%c6_345, %c0_346, %c0_347] : memref<9x32x64xf32, #tpu.memory_space<vmem>>, vector<1x32x64xf32>
    %280 = vector.shape_cast %279 : vector<1x32x64xf32> to vector<32x64xf32>
    %281 = vector.shape_cast %280 : vector<32x64xf32> to vector<1x32x64xf32>
    "tpu.trace_start"() <{level = 10 : i32, message = "bqc,bco->bqo"}> : () -> ()
    %cst_348 = arith.constant dense<0.000000e+00> : vector<1x81x64xf32>
    %282 = tpu.matmul %278, %281, %cst_348 {dimension_numbers = #tpu.dot_dimension_numbers<[2], [1], [1], [2], [0, 0, 0, 1, 1, 2], [0], [0]>} : vector<1x81x32xf32>, vector<1x32x64xf32>, vector<1x81x64xf32> -> vector<1x81x64xf32>
    "tpu.trace_stop"() : () -> ()
    %283 = arith.addf %277, %282 : vector<1x81x64xf32>
    %c0_349 = arith.constant 0 : index
    %c19 = arith.constant 19 : index
    %c0_350 = arith.constant 0 : index
    %284 = vector.load %arg16[%c0_349, %c19, %c0_350] : memref<1x101x32xf32, #tpu.memory_space<vmem>>, vector<1x81x32xf32>
    %c7_351 = arith.constant 7 : index
    %c0_352 = arith.constant 0 : index
    %c0_353 = arith.constant 0 : index
    %285 = vector.load %arg6[%c7_351, %c0_352, %c0_353] : memref<9x32x64xf32, #tpu.memory_space<vmem>>, vector<1x32x64xf32>
    %286 = vector.shape_cast %285 : vector<1x32x64xf32> to vector<32x64xf32>
    %287 = vector.shape_cast %286 : vector<32x64xf32> to vector<1x32x64xf32>
    "tpu.trace_start"() <{level = 10 : i32, message = "bqc,bco->bqo"}> : () -> ()
    %cst_354 = arith.constant dense<0.000000e+00> : vector<1x81x64xf32>
    %288 = tpu.matmul %284, %287, %cst_354 {dimension_numbers = #tpu.dot_dimension_numbers<[2], [1], [1], [2], [0, 0, 0, 1, 1, 2], [0], [0]>} : vector<1x81x32xf32>, vector<1x32x64xf32>, vector<1x81x64xf32> -> vector<1x81x64xf32>
    "tpu.trace_stop"() : () -> ()
    %289 = arith.addf %283, %288 : vector<1x81x64xf32>
    %c0_355 = arith.constant 0 : index
    %c20_356 = arith.constant 20 : index
    %c0_357 = arith.constant 0 : index
    %290 = vector.load %arg16[%c0_355, %c20_356, %c0_357] : memref<1x101x32xf32, #tpu.memory_space<vmem>>, vector<1x81x32xf32>
    %c8_358 = arith.constant 8 : index
    %c0_359 = arith.constant 0 : index
    %c0_360 = arith.constant 0 : index
    %291 = vector.load %arg6[%c8_358, %c0_359, %c0_360] : memref<9x32x64xf32, #tpu.memory_space<vmem>>, vector<1x32x64xf32>
    %292 = vector.shape_cast %291 : vector<1x32x64xf32> to vector<32x64xf32>
    %293 = vector.shape_cast %292 : vector<32x64xf32> to vector<1x32x64xf32>
    "tpu.trace_start"() <{level = 10 : i32, message = "bqc,bco->bqo"}> : () -> ()
    %cst_361 = arith.constant dense<0.000000e+00> : vector<1x81x64xf32>
    %294 = tpu.matmul %290, %293, %cst_361 {dimension_numbers = #tpu.dot_dimension_numbers<[2], [1], [1], [2], [0, 0, 0, 1, 1, 2], [0], [0]>} : vector<1x81x32xf32>, vector<1x32x64xf32>, vector<1x81x64xf32> -> vector<1x81x64xf32>
    "tpu.trace_stop"() : () -> ()
    %295 = arith.addf %289, %294 : vector<1x81x64xf32>
    %c0_362 = arith.constant 0 : index
    %c0_363 = arith.constant 0 : index
    %296 = vector.load %arg7[%c0_362, %c0_363] : memref<1x64xf32, #tpu.memory_space<vmem>>, vector<1x64xf32>
    %297 = vector.shape_cast %296 : vector<1x64xf32> to vector<1x1x64xf32>
    %298 = vector.broadcast %297 : vector<1x1x64xf32> to vector<1x81x64xf32>
    %299 = arith.addf %295, %298 : vector<1x81x64xf32>
    %cst_364 = arith.constant 0.000000e+00 : f32
    %300 = vector.broadcast %cst_364 : f32 to vector<1x81x64xf32>
    %301 = arith.maximumf %299, %300 : vector<1x81x64xf32>
    %c0_365 = arith.constant 0 : index
    %c0_366 = arith.constant 0 : index
    %c0_367 = arith.constant 0 : index
    %302 = vector.load %arg17[%c0_365, %c0_366, %c0_367] : memref<1x81x64xf32, #tpu.memory_space<vmem>>, vector<1x81x64xf32>
    tpu.vector_store %arg17[%c0_365, %c0_366, %c0_367], %301 {strides = array<i32>} : memref<1x81x64xf32, #tpu.memory_space<vmem>>, vector<1x81x64xf32>,
    %c0_368 = arith.constant 0 : index
    %c10_369 = arith.constant 10 : index
    %c0_370 = arith.constant 0 : index
    %303 = vector.load %arg17[%c0_368, %c10_369, %c0_370] : memref<1x81x64xf32, #tpu.memory_space<vmem>>, vector<1x1x64xf32>
    %304 = vector.shape_cast %303 : vector<1x1x64xf32> to vector<1x64xf32>
    %c0_371 = arith.constant 0 : index
    %c11_372 = arith.constant 11 : index
    %c0_373 = arith.constant 0 : index
    %305 = vector.load %arg17[%c0_371, %c11_372, %c0_373] : memref<1x81x64xf32, #tpu.memory_space<vmem>>, vector<1x1x64xf32>
    %306 = vector.shape_cast %305 : vector<1x1x64xf32> to vector<1x64xf32>
    %c0_374 = arith.constant 0 : index
    %c19_375 = arith.constant 19 : index
    %c0_376 = arith.constant 0 : index
    %307 = vector.load %arg17[%c0_374, %c19_375, %c0_376] : memref<1x81x64xf32, #tpu.memory_space<vmem>>, vector<1x1x64xf32>
    %308 = vector.shape_cast %307 : vector<1x1x64xf32> to vector<1x64xf32>
    %c0_377 = arith.constant 0 : index
    %c20_378 = arith.constant 20 : index
    %c0_379 = arith.constant 0 : index
    %309 = vector.load %arg17[%c0_377, %c20_378, %c0_379] : memref<1x81x64xf32, #tpu.memory_space<vmem>>, vector<1x1x64xf32>
    %310 = vector.shape_cast %309 : vector<1x1x64xf32> to vector<1x64xf32>
    %311 = arith.maximumf %304, %306 : vector<1x64xf32>
    %312 = arith.maximumf %308, %310 : vector<1x64xf32>
    %313 = arith.maximumf %311, %312 : vector<1x64xf32>
    %c0_380 = arith.constant 0 : index
    %c12 = arith.constant 12 : index
    %c0_381 = arith.constant 0 : index
    %314 = vector.load %arg17[%c0_380, %c12, %c0_381] : memref<1x81x64xf32, #tpu.memory_space<vmem>>, vector<1x1x64xf32>
    %315 = vector.shape_cast %314 : vector<1x1x64xf32> to vector<1x64xf32>
    %c0_382 = arith.constant 0 : index
    %c13 = arith.constant 13 : index
    %c0_383 = arith.constant 0 : index
    %316 = vector.load %arg17[%c0_382, %c13, %c0_383] : memref<1x81x64xf32, #tpu.memory_space<vmem>>, vector<1x1x64xf32>
    %317 = vector.shape_cast %316 : vector<1x1x64xf32> to vector<1x64xf32>
    %c0_384 = arith.constant 0 : index
    %c21 = arith.constant 21 : index
    %c0_385 = arith.constant 0 : index
    %318 = vector.load %arg17[%c0_384, %c21, %c0_385] : memref<1x81x64xf32, #tpu.memory_space<vmem>>, vector<1x1x64xf32>
    %319 = vector.shape_cast %318 : vector<1x1x64xf32> to vector<1x64xf32>
    %c0_386 = arith.constant 0 : index
    %c22 = arith.constant 22 : index
    %c0_387 = arith.constant 0 : index
    %320 = vector.load %arg17[%c0_386, %c22, %c0_387] : memref<1x81x64xf32, #tpu.memory_space<vmem>>, vector<1x1x64xf32>
    %321 = vector.shape_cast %320 : vector<1x1x64xf32> to vector<1x64xf32>
    %322 = arith.maximumf %315, %317 : vector<1x64xf32>
    %323 = arith.maximumf %319, %321 : vector<1x64xf32>
    %324 = arith.maximumf %322, %323 : vector<1x64xf32>
    %c0_388 = arith.constant 0 : index
    %c14 = arith.constant 14 : index
    %c0_389 = arith.constant 0 : index
    %325 = vector.load %arg17[%c0_388, %c14, %c0_389] : memref<1x81x64xf32, #tpu.memory_space<vmem>>, vector<1x1x64xf32>
    %326 = vector.shape_cast %325 : vector<1x1x64xf32> to vector<1x64xf32>
    %c0_390 = arith.constant 0 : index
    %c15 = arith.constant 15 : index
    %c0_391 = arith.constant 0 : index
    %327 = vector.load %arg17[%c0_390, %c15, %c0_391] : memref<1x81x64xf32, #tpu.memory_space<vmem>>, vector<1x1x64xf32>
    %328 = vector.shape_cast %327 : vector<1x1x64xf32> to vector<1x64xf32>
    %c0_392 = arith.constant 0 : index
    %c23 = arith.constant 23 : index
    %c0_393 = arith.constant 0 : index
    %329 = vector.load %arg17[%c0_392, %c23, %c0_393] : memref<1x81x64xf32, #tpu.memory_space<vmem>>, vector<1x1x64xf32>
    %330 = vector.shape_cast %329 : vector<1x1x64xf32> to vector<1x64xf32>
    %c0_394 = arith.constant 0 : index
    %c24 = arith.constant 24 : index
    %c0_395 = arith.constant 0 : index
    %331 = vector.load %arg17[%c0_394, %c24, %c0_395] : memref<1x81x64xf32, #tpu.memory_space<vmem>>, vector<1x1x64xf32>
    %332 = vector.shape_cast %331 : vector<1x1x64xf32> to vector<1x64xf32>
    %333 = arith.maximumf %326, %328 : vector<1x64xf32>
    %334 = arith.maximumf %330, %332 : vector<1x64xf32>
    %335 = arith.maximumf %333, %334 : vector<1x64xf32>
    %c0_396 = arith.constant 0 : index
    %c28 = arith.constant 28 : index
    %c0_397 = arith.constant 0 : index
    %336 = vector.load %arg17[%c0_396, %c28, %c0_397] : memref<1x81x64xf32, #tpu.memory_space<vmem>>, vector<1x1x64xf32>
    %337 = vector.shape_cast %336 : vector<1x1x64xf32> to vector<1x64xf32>
    %c0_398 = arith.constant 0 : index
    %c29_399 = arith.constant 29 : index
    %c0_400 = arith.constant 0 : index
    %338 = vector.load %arg17[%c0_398, %c29_399, %c0_400] : memref<1x81x64xf32, #tpu.memory_space<vmem>>, vector<1x1x64xf32>
    %339 = vector.shape_cast %338 : vector<1x1x64xf32> to vector<1x64xf32>
    %c0_401 = arith.constant 0 : index
    %c37 = arith.constant 37 : index
    %c0_402 = arith.constant 0 : index
    %340 = vector.load %arg17[%c0_401, %c37, %c0_402] : memref<1x81x64xf32, #tpu.memory_space<vmem>>, vector<1x1x64xf32>
    %341 = vector.shape_cast %340 : vector<1x1x64xf32> to vector<1x64xf32>
    %c0_403 = arith.constant 0 : index
    %c38_404 = arith.constant 38 : index
    %c0_405 = arith.constant 0 : index
    %342 = vector.load %arg17[%c0_403, %c38_404, %c0_405] : memref<1x81x64xf32, #tpu.memory_space<vmem>>, vector<1x1x64xf32>
    %343 = vector.shape_cast %342 : vector<1x1x64xf32> to vector<1x64xf32>
    %344 = arith.maximumf %337, %339 : vector<1x64xf32>
    %345 = arith.maximumf %341, %343 : vector<1x64xf32>
    %346 = arith.maximumf %344, %345 : vector<1x64xf32>
    %c0_406 = arith.constant 0 : index
    %c30 = arith.constant 30 : index
    %c0_407 = arith.constant 0 : index
    %347 = vector.load %arg17[%c0_406, %c30, %c0_407] : memref<1x81x64xf32, #tpu.memory_space<vmem>>, vector<1x1x64xf32>
    %348 = vector.shape_cast %347 : vector<1x1x64xf32> to vector<1x64xf32>
    %c0_408 = arith.constant 0 : index
    %c31_409 = arith.constant 31 : index
    %c0_410 = arith.constant 0 : index
    %349 = vector.load %arg17[%c0_408, %c31_409, %c0_410] : memref<1x81x64xf32, #tpu.memory_space<vmem>>, vector<1x1x64xf32>
    %350 = vector.shape_cast %349 : vector<1x1x64xf32> to vector<1x64xf32>
    %c0_411 = arith.constant 0 : index
    %c39 = arith.constant 39 : index
    %c0_412 = arith.constant 0 : index
    %351 = vector.load %arg17[%c0_411, %c39, %c0_412] : memref<1x81x64xf32, #tpu.memory_space<vmem>>, vector<1x1x64xf32>
    %352 = vector.shape_cast %351 : vector<1x1x64xf32> to vector<1x64xf32>
    %c0_413 = arith.constant 0 : index
    %c40 = arith.constant 40 : index
    %c0_414 = arith.constant 0 : index
    %353 = vector.load %arg17[%c0_413, %c40, %c0_414] : memref<1x81x64xf32, #tpu.memory_space<vmem>>, vector<1x1x64xf32>
    %354 = vector.shape_cast %353 : vector<1x1x64xf32> to vector<1x64xf32>
    %355 = arith.maximumf %348, %350 : vector<1x64xf32>
    %356 = arith.maximumf %352, %354 : vector<1x64xf32>
    %357 = arith.maximumf %355, %356 : vector<1x64xf32>
    %c0_415 = arith.constant 0 : index
    %c32_416 = arith.constant 32 : index
    %c0_417 = arith.constant 0 : index
    %358 = vector.load %arg17[%c0_415, %c32_416, %c0_417] : memref<1x81x64xf32, #tpu.memory_space<vmem>>, vector<1x1x64xf32>
    %359 = vector.shape_cast %358 : vector<1x1x64xf32> to vector<1x64xf32>
    %c0_418 = arith.constant 0 : index
    %c33_419 = arith.constant 33 : index
    %c0_420 = arith.constant 0 : index
    %360 = vector.load %arg17[%c0_418, %c33_419, %c0_420] : memref<1x81x64xf32, #tpu.memory_space<vmem>>, vector<1x1x64xf32>
    %361 = vector.shape_cast %360 : vector<1x1x64xf32> to vector<1x64xf32>
    %c0_421 = arith.constant 0 : index
    %c41 = arith.constant 41 : index
    %c0_422 = arith.constant 0 : index
    %362 = vector.load %arg17[%c0_421, %c41, %c0_422] : memref<1x81x64xf32, #tpu.memory_space<vmem>>, vector<1x1x64xf32>
    %363 = vector.shape_cast %362 : vector<1x1x64xf32> to vector<1x64xf32>
    %c0_423 = arith.constant 0 : index
    %c42 = arith.constant 42 : index
    %c0_424 = arith.constant 0 : index
    %364 = vector.load %arg17[%c0_423, %c42, %c0_424] : memref<1x81x64xf32, #tpu.memory_space<vmem>>, vector<1x1x64xf32>
    %365 = vector.shape_cast %364 : vector<1x1x64xf32> to vector<1x64xf32>
    %366 = arith.maximumf %359, %361 : vector<1x64xf32>
    %367 = arith.maximumf %363, %365 : vector<1x64xf32>
    %368 = arith.maximumf %366, %367 : vector<1x64xf32>
    %c0_425 = arith.constant 0 : index
    %c46 = arith.constant 46 : index
    %c0_426 = arith.constant 0 : index
    %369 = vector.load %arg17[%c0_425, %c46, %c0_426] : memref<1x81x64xf32, #tpu.memory_space<vmem>>, vector<1x1x64xf32>
    %370 = vector.shape_cast %369 : vector<1x1x64xf32> to vector<1x64xf32>
    %c0_427 = arith.constant 0 : index
    %c47_428 = arith.constant 47 : index
    %c0_429 = arith.constant 0 : index
    %371 = vector.load %arg17[%c0_427, %c47_428, %c0_429] : memref<1x81x64xf32, #tpu.memory_space<vmem>>, vector<1x1x64xf32>
    %372 = vector.shape_cast %371 : vector<1x1x64xf32> to vector<1x64xf32>
    %c0_430 = arith.constant 0 : index
    %c55 = arith.constant 55 : index
    %c0_431 = arith.constant 0 : index
    %373 = vector.load %arg17[%c0_430, %c55, %c0_431] : memref<1x81x64xf32, #tpu.memory_space<vmem>>, vector<1x1x64xf32>
    %374 = vector.shape_cast %373 : vector<1x1x64xf32> to vector<1x64xf32>
    %c0_432 = arith.constant 0 : index
    %c56_433 = arith.constant 56 : index
    %c0_434 = arith.constant 0 : index
    %375 = vector.load %arg17[%c0_432, %c56_433, %c0_434] : memref<1x81x64xf32, #tpu.memory_space<vmem>>, vector<1x1x64xf32>
    %376 = vector.shape_cast %375 : vector<1x1x64xf32> to vector<1x64xf32>
    %377 = arith.maximumf %370, %372 : vector<1x64xf32>
    %378 = arith.maximumf %374, %376 : vector<1x64xf32>
    %379 = arith.maximumf %377, %378 : vector<1x64xf32>
    %c0_435 = arith.constant 0 : index
    %c48 = arith.constant 48 : index
    %c0_436 = arith.constant 0 : index
    %380 = vector.load %arg17[%c0_435, %c48, %c0_436] : memref<1x81x64xf32, #tpu.memory_space<vmem>>, vector<1x1x64xf32>
    %381 = vector.shape_cast %380 : vector<1x1x64xf32> to vector<1x64xf32>
    %c0_437 = arith.constant 0 : index
    %c49_438 = arith.constant 49 : index
    %c0_439 = arith.constant 0 : index
    %382 = vector.load %arg17[%c0_437, %c49_438, %c0_439] : memref<1x81x64xf32, #tpu.memory_space<vmem>>, vector<1x1x64xf32>
    %383 = vector.shape_cast %382 : vector<1x1x64xf32> to vector<1x64xf32>
    %c0_440 = arith.constant 0 : index
    %c57 = arith.constant 57 : index
    %c0_441 = arith.constant 0 : index
    %384 = vector.load %arg17[%c0_440, %c57, %c0_441] : memref<1x81x64xf32, #tpu.memory_space<vmem>>, vector<1x1x64xf32>
    %385 = vector.shape_cast %384 : vector<1x1x64xf32> to vector<1x64xf32>
    %c0_442 = arith.constant 0 : index
    %c58 = arith.constant 58 : index
    %c0_443 = arith.constant 0 : index
    %386 = vector.load %arg17[%c0_442, %c58, %c0_443] : memref<1x81x64xf32, #tpu.memory_space<vmem>>, vector<1x1x64xf32>
    %387 = vector.shape_cast %386 : vector<1x1x64xf32> to vector<1x64xf32>
    %388 = arith.maximumf %381, %383 : vector<1x64xf32>
    %389 = arith.maximumf %385, %387 : vector<1x64xf32>
    %390 = arith.maximumf %388, %389 : vector<1x64xf32>
    %c0_444 = arith.constant 0 : index
    %c50_445 = arith.constant 50 : index
    %c0_446 = arith.constant 0 : index
    %391 = vector.load %arg17[%c0_444, %c50_445, %c0_446] : memref<1x81x64xf32, #tpu.memory_space<vmem>>, vector<1x1x64xf32>
    %392 = vector.shape_cast %391 : vector<1x1x64xf32> to vector<1x64xf32>
    %c0_447 = arith.constant 0 : index
    %c51 = arith.constant 51 : index
    %c0_448 = arith.constant 0 : index
    %393 = vector.load %arg17[%c0_447, %c51, %c0_448] : memref<1x81x64xf32, #tpu.memory_space<vmem>>, vector<1x1x64xf32>
    %394 = vector.shape_cast %393 : vector<1x1x64xf32> to vector<1x64xf32>
    %c0_449 = arith.constant 0 : index
    %c59 = arith.constant 59 : index
    %c0_450 = arith.constant 0 : index
    %395 = vector.load %arg17[%c0_449, %c59, %c0_450] : memref<1x81x64xf32, #tpu.memory_space<vmem>>, vector<1x1x64xf32>
    %396 = vector.shape_cast %395 : vector<1x1x64xf32> to vector<1x64xf32>
    %c0_451 = arith.constant 0 : index
    %c60 = arith.constant 60 : index
    %c0_452 = arith.constant 0 : index
    %397 = vector.load %arg17[%c0_451, %c60, %c0_452] : memref<1x81x64xf32, #tpu.memory_space<vmem>>, vector<1x1x64xf32>
    %398 = vector.shape_cast %397 : vector<1x1x64xf32> to vector<1x64xf32>
    %399 = arith.maximumf %392, %394 : vector<1x64xf32>
    %400 = arith.maximumf %396, %398 : vector<1x64xf32>
    %401 = arith.maximumf %399, %400 : vector<1x64xf32>
    %402 = tpu.concatenate %313, %324, %335, %346, %357, %368, %379, %390, %401 in 1 : vector<1x64xf32>, vector<1x64xf32>, vector<1x64xf32>, vector<1x64xf32>, vector<1x64xf32>, vector<1x64xf32>, vector<1x64xf32>, vector<1x64xf32>, vector<1x64xf32> -> vector<1x576xf32>
    %c0_453 = arith.constant 0 : index
    %c0_454 = arith.constant 0 : index
    %403 = vector.load %arg8[%c0_453, %c0_454] : memref<576x256xf32, #tpu.memory_space<vmem>>, vector<576x256xf32>
    %cst_455 = arith.constant dense<0.000000e+00> : vector<1x256xf32>
    %404 = tpu.matmul %402, %403, %cst_455 {dimension_numbers = #tpu.dot_dimension_numbers<[1], [0], [0], [1], [0, 0, 1, 1], [], []>} : vector<1x576xf32>, vector<576x256xf32>, vector<1x256xf32> -> vector<1x256xf32>
    %c0_456 = arith.constant 0 : index
    %c0_457 = arith.constant 0 : index
    %405 = vector.load %arg9[%c0_456, %c0_457] : memref<1x256xf32, #tpu.memory_space<vmem>>, vector<1x256xf32>
    %406 = arith.addf %404, %405 : vector<1x256xf32>
    %cst_458 = arith.constant 0.000000e+00 : f32
    %407 = vector.broadcast %cst_458 : f32 to vector<1x256xf32>
    %408 = arith.maximumf %406, %407 : vector<1x256xf32>
    %c0_459 = arith.constant 0 : index
    %c0_460 = arith.constant 0 : index
    %409 = vector.load %arg10[%c0_459, %c0_460] : memref<256x10xf32, #tpu.memory_space<vmem>>, vector<256x10xf32>
    %cst_461 = arith.constant dense<0.000000e+00> : vector<1x10xf32>
    %410 = tpu.matmul %408, %409, %cst_461 {dimension_numbers = #tpu.dot_dimension_numbers<[1], [0], [0], [1], [0, 0, 1, 1], [], []>} : vector<1x256xf32>, vector<256x10xf32>, vector<1x10xf32> -> vector<1x10xf32>
    %c0_462 = arith.constant 0 : index
    %c0_463 = arith.constant 0 : index
    %411 = vector.load %arg11[%c0_462, %c0_463] : memref<1x10xf32, #tpu.memory_space<vmem>>, vector<1x10xf32>
    %412 = arith.addf %410, %411 : vector<1x10xf32>
    %c0_464 = arith.constant 0 : index
    %c0_465 = arith.constant 0 : index
    %c0_466 = arith.constant 0 : index
    %413 = vector.load %arg12[%c0_464, %c0_465, %c0_466] : memref<1x1x10xf32, #tpu.memory_space<vmem>>, vector<1x1x10xf32>
    %414 = vector.shape_cast %413 : vector<1x1x10xf32> to vector<1x10xf32>
    %415 = vector.shape_cast %412 : vector<1x10xf32> to vector<1x1x10xf32>
    tpu.vector_store %arg12[%c0_464, %c0_465, %c0_466], %415 {strides = array<i32>} : memref<1x1x10xf32, #tpu.memory_space<vmem>>, vector<1x1x10xf32>,
    return
  }
  func.func @transform_0(%arg0: i32) -> (i32, i32, i32) {
    %c0_i32 = arith.constant 0 : i32
    %c0_i32_0 = arith.constant 0 : i32
    %c0_i32_1 = arith.constant 0 : i32
    return %arg0, %c0_i32, %c0_i32_0 : i32, i32, i32
  }
  func.func @transform_1(%arg0: i32) -> (i32, i32) {
    %c0_i32 = arith.constant 0 : i32
    %c0_i32_0 = arith.constant 0 : i32
    %c0_i32_1 = arith.constant 0 : i32
    return %c0_i32, %c0_i32_0 : i32, i32
  }
  func.func @transform_2(%arg0: i32) -> (i32, i32) {
    %c0_i32 = arith.constant 0 : i32
    %c0_i32_0 = arith.constant 0 : i32
    %c0_i32_1 = arith.constant 0 : i32
    return %c0_i32, %c0_i32_0 : i32, i32
  }
  func.func @transform_3(%arg0: i32) -> (i32, i32, i32) {
    %c0_i32 = arith.constant 0 : i32
    %c0_i32_0 = arith.constant 0 : i32
    %c0_i32_1 = arith.constant 0 : i32
    %c0_i32_2 = arith.constant 0 : i32
    return %c0_i32, %c0_i32_0, %c0_i32_1 : i32, i32, i32
  }
  func.func @transform_4(%arg0: i32) -> (i32, i32) {
    %c0_i32 = arith.constant 0 : i32
    %c0_i32_0 = arith.constant 0 : i32
    %c0_i32_1 = arith.constant 0 : i32
    return %c0_i32, %c0_i32_0 : i32, i32
  }
  func.func @transform_5(%arg0: i32) -> (i32, i32, i32) {
    %c0_i32 = arith.constant 0 : i32
    %c0_i32_0 = arith.constant 0 : i32
    %c0_i32_1 = arith.constant 0 : i32
    %c0_i32_2 = arith.constant 0 : i32
    return %c0_i32, %c0_i32_0, %c0_i32_1 : i32, i32, i32
  }
  func.func @transform_6(%arg0: i32) -> (i32, i32) {
    %c0_i32 = arith.constant 0 : i32
    %c0_i32_0 = arith.constant 0 : i32
    %c0_i32_1 = arith.constant 0 : i32
    return %c0_i32, %c0_i32_0 : i32, i32
  }
  func.func @transform_7(%arg0: i32) -> (i32, i32) {
    %c0_i32 = arith.constant 0 : i32
    %c0_i32_0 = arith.constant 0 : i32
    %c0_i32_1 = arith.constant 0 : i32
    return %c0_i32, %c0_i32_0 : i32, i32
  }
  func.func @transform_8(%arg0: i32) -> (i32, i32) {
    %c0_i32 = arith.constant 0 : i32
    %c0_i32_0 = arith.constant 0 : i32
    %c0_i32_1 = arith.constant 0 : i32
    return %c0_i32, %c0_i32_0 : i32, i32
  }
  func.func @transform_9(%arg0: i32) -> (i32, i32) {
    %c0_i32 = arith.constant 0 : i32
    %c0_i32_0 = arith.constant 0 : i32
    %c0_i32_1 = arith.constant 0 : i32
    return %c0_i32, %c0_i32_0 : i32, i32
  }
  func.func @transform_10(%arg0: i32) -> (i32, i32) {
    %c0_i32 = arith.constant 0 : i32
    %c0_i32_0 = arith.constant 0 : i32
    %c0_i32_1 = arith.constant 0 : i32
    return %c0_i32, %c0_i32_0 : i32, i32
  }
  func.func @transform_11(%arg0: i32) -> (i32, i32, i32) {
    %c0_i32 = arith.constant 0 : i32
    %c0_i32_0 = arith.constant 0 : i32
    %c0_i32_1 = arith.constant 0 : i32
    return %arg0, %c0_i32, %c0_i32_0 : i32, i32, i32
  }
}

</mosaic_0001>

<llo_original>
// kernel: mycnn_forward.1
$region0: #{mycnn_forward.1}
  #allocation0 [shape = 'u32[]', space=smem, size = 0x4, offset = 0x4, fixed_abs, tag = 'smem constant byte address 0x4 - core index']
  #allocation1 [shape = 'u32[72,128]{1,0:T(1,128)}', space=vmem, size = 0x9000, scoped, tag = 'internal scratch']
  #allocation2 [shape = 'f32[1,900,16]{2,1,0:T(8,128)}', space=vmem, size = 0x71000, scoped, tag = 'scratch operand']
  #allocation3 [shape = 'f32[1,290,16]{2,1,0:T(8,128)}', space=vmem, size = 0x25000, scoped, tag = 'scratch operand']
  #allocation4 [shape = 'f32[1,256,32]{2,1,0:T(8,128)}', space=vmem, size = 0x20000, scoped, tag = 'scratch operand']
  #allocation5 [shape = 'f32[1,101,32]{2,1,0:T(8,128)}', space=vmem, size = 0xd000, scoped, tag = 'scratch operand']
  #allocation6 [shape = 'f32[1,81,64]{2,1,0:T(8,128)}', space=vmem, size = 0xb000, scoped, tag = 'scratch operand']
  %s0 = inlined_call_operand.vmem [shape: f32[2,900,9], index: 0, kind: input, shape index: {}]
  %s1 = inlined_call_operand.vmem [shape: f32[9,16], index: 1, kind: input, shape index: {}]
  %s2 = inlined_call_operand.vmem [shape: f32[1,16], index: 2, kind: input, shape index: {}]
  %s3 = inlined_call_operand.vmem [shape: f32[9,16,32], index: 3, kind: input, shape index: {}]
  %s4 = inlined_call_operand.vmem [shape: f32[1,32], index: 4, kind: input, shape index: {}]
  %s5 = inlined_call_operand.vmem [shape: f32[9,32,64], index: 5, kind: input, shape index: {}]
  %s6 = inlined_call_operand.vmem [shape: f32[1,64], index: 6, kind: input, shape index: {}]
  %s7 = inlined_call_operand.vmem [shape: f32[576,256], index: 7, kind: input, shape index: {}]
  %s8 = inlined_call_operand.vmem [shape: f32[1,256], index: 8, kind: input, shape index: {}]
  %s9 = inlined_call_operand.vmem [shape: f32[256,10], index: 9, kind: input, shape index: {}]
  %s10 = inlined_call_operand.vmem [shape: f32[1,10], index: 10, kind: input, shape index: {}]
  %s11 = inlined_call_operand.hbm [shape: f32[2,1,10], index: 11, kind: output, shape index: {}]
  %s12 = sld [smem:[#allocation0]]
  $region77: #{mycnn_forward.1} parent=0
    _
  %s14 = ssub.s32 1, %s12
  %s15 = scalar_select 0, %s14, %s12
  $region1: #{mycnn_forward.1} parent=0
    #allocation7 [shape = 'u8[1024]{0}', space=vmem, size = 0x400, scoped, tag = 'output window, operand 0']
    #allocation8 [shape = 's32[2]{0}', space=sflag, size = 0x8, scoped, tag = 'scoped memory for mycnn_forward.1']
    %16 = vsyncpa [#allocation8], 0
    %s17 = scalar_lea.sflag [#allocation8], 1
    %18 = vsyncpa %s17, 0
    loop: start=0, step=1, limit=4
    $region2: #{mycnn_forward.1} parent=1 // loop_pre_header
      _
    $region3: #{mycnn_forward.1} parent=1 // loop_header
      %s20 = sphi 0, %s24
      %p21 = scmp.ge.s32.totalorder %s20, 4
      %s30 = sphi 0, %s32
      %s33 = sphi 0, %s30
      %s34 = sphi 0, %s33
      %s50 = sphi 0, %s34
      %s54 = sphi 0, %s54
      %s56 = sphi 0, %s54
      %s57 = sphi 0, %s56
      %s71 = sphi 0, %s57
      %s75 = sphi 0, %s75
      %s77 = sphi 0, %s75
      %s78 = sphi 0, %s77
      %s92 = sphi 0, %s78
      %s96 = sphi 0, %s96
      %s98 = sphi 0, %s96
      %s99 = sphi 0, %s98
      %s113 = sphi 0, %s99
      %s117 = sphi 0, %s117
      %s119 = sphi 0, %s117
      %s120 = sphi 0, %s119
      %s134 = sphi 0, %s120
      %s138 = sphi 0, %s138
      %s140 = sphi 0, %s138
      %s141 = sphi 0, %s140
      %s155 = sphi 0, %s141
      %s159 = sphi 0, %s159
      %s161 = sphi 0, %s159
      %s162 = sphi 0, %s161
      %s176 = sphi 0, %s162
      %s180 = sphi 0, %s180
      %s182 = sphi 0, %s180
      %s183 = sphi 0, %s182
      %s197 = sphi 0, %s183
      %s201 = sphi 0, %s201
      %s203 = sphi 0, %s201
      %s204 = sphi 0, %s203
      %s218 = sphi 0, %s204
      %s222 = sphi 0, %s222
      %s224 = sphi 0, %s222
      %s225 = sphi 0, %s224
      %s239 = sphi 0, %s225
      %s243 = sphi 0, %s243
      %s245 = sphi 0, %s243
      %s246 = sphi 0, %s245
      %s260 = sphi 0, %s246
      %s266 = sphi 0, %s268
      %s269 = sphi 0, %s266
      %s270 = sphi 0, %s269
      %s286 = sphi 0, %s270
    $region4: #{mycnn_forward.1} parent=1 // loop_header_branch
      %23 = sbr.rel (%p21) target = $region8
    $region5: #{mycnn_forward.1} parent=1 // loop_body
      %s25 = ssub.s32 %s20, 1
      %s26 = ssub.s32 %s20, 2
      %s27 = sadd.s32 %s20, 1
      %s28 = ssub.s32 %s20, %s27
      %p29 = scmp.eq.s32.totalorder %s28, 0
      %s31 = sadd.s32 %s30, 1
      %s32 = scalar_select %p29, %s30, %s31
      %p35 = pneg %p29
      %p36 = scmp.eq.s32.totalorder %s20, 1
      %p37 = por %p35, %p36
      %p38 = scmp.ne.s32.totalorder %s30, %s33
      %p39 = scmp.eq.s32.totalorder %s20, 0
      %p40 = por %p38, %p39
      %p41 = scmp.ne.s32.totalorder %s30, %s33
      %p42 = scmp.eq.s32.totalorder %s25, 1
      %p43 = por %p41, %p42
      %p44 = scmp.ne.s32.totalorder %s33, %s34
      %p45 = scmp.eq.s32.totalorder %s25, 0
      %p46 = por %p44, %p45
      %p47 = scmp.ne.s32.totalorder %s33, %s34
      %p48 = scmp.eq.s32.totalorder %s26, 1
      %p49 = por %p47, %p48
      %p51 = scmp.ne.s32.totalorder %s34, %s50
      %p52 = scmp.eq.s32.totalorder %s26, 0
      %p53 = por %p51, %p52
      %s55 = sadd.s32 %s54, 1
      %p58 = scmp.eq.s32.totalorder %s20, 1
      %p59 = scmp.ne.s32.totalorder %s54, %s56
      %p60 = scmp.eq.s32.totalorder %s20, 0
      %p61 = por %p59, %p60
      %p62 = scmp.ne.s32.totalorder %s54, %s56
      %p63 = scmp.eq.s32.totalorder %s25, 1
      %p64 = por %p62, %p63
      %p65 = scmp.ne.s32.totalorder %s56, %s57
      %p66 = scmp.eq.s32.totalorder %s25, 0
      %p67 = por %p65, %p66
      %p68 = scmp.ne.s32.totalorder %s56, %s57
      %p69 = scmp.eq.s32.totalorder %s26, 1
      %p70 = por %p68, %p69
      %p72 = scmp.ne.s32.totalorder %s57, %s71
      %p73 = scmp.eq.s32.totalorder %s26, 0
      %p74 = por %p72, %p73
      %s76 = sadd.s32 %s75, 1
      %p79 = scmp.eq.s32.totalorder %s20, 1
      %p80 = scmp.ne.s32.totalorder %s75, %s77
      %p81 = scmp.eq.s32.totalorder %s20, 0
      %p82 = por %p80, %p81
      %p83 = scmp.ne.s32.totalorder %s75, %s77
      %p84 = scmp.eq.s32.totalorder %s25, 1
      %p85 = por %p83, %p84
      %p86 = scmp.ne.s32.totalorder %s77, %s78
      %p87 = scmp.eq.s32.totalorder %s25, 0
      %p88 = por %p86, %p87
      %p89 = scmp.ne.s32.totalorder %s77, %s78
      %p90 = scmp.eq.s32.totalorder %s26, 1
      %p91 = por %p89, %p90
      %p93 = scmp.ne.s32.totalorder %s78, %s92
      %p94 = scmp.eq.s32.totalorder %s26, 0
      %p95 = por %p93, %p94
      %s97 = sadd.s32 %s96, 1
      %p100 = scmp.eq.s32.totalorder %s20, 1
      %p101 = scmp.ne.s32.totalorder %s96, %s98
      %p102 = scmp.eq.s32.totalorder %s20, 0
      %p103 = por %p101, %p102
      %p104 = scmp.ne.s32.totalorder %s96, %s98
      %p105 = scmp.eq.s32.totalorder %s25, 1
      %p106 = por %p104, %p105
      %p107 = scmp.ne.s32.totalorder %s98, %s99
      %p108 = scmp.eq.s32.totalorder %s25, 0
      %p109 = por %p107, %p108
      %p110 = scmp.ne.s32.totalorder %s98, %s99
      %p111 = scmp.eq.s32.totalorder %s26, 1
      %p112 = por %p110, %p111
      %p114 = scmp.ne.s32.totalorder %s99, %s113
      %p115 = scmp.eq.s32.totalorder %s26, 0
      %p116 = por %p114, %p115
      %s118 = sadd.s32 %s117, 1
      %p121 = scmp.eq.s32.totalorder %s20, 1
      %p122 = scmp.ne.s32.totalorder %s117, %s119
      %p123 = scmp.eq.s32.totalorder %s20, 0
      %p124 = por %p122, %p123
      %p125 = scmp.ne.s32.totalorder %s117, %s119
      %p126 = scmp.eq.s32.totalorder %s25, 1
      %p127 = por %p125, %p126
      %p128 = scmp.ne.s32.totalorder %s119, %s120
      %p129 = scmp.eq.s32.totalorder %s25, 0
      %p130 = por %p128, %p129
      %p131 = scmp.ne.s32.totalorder %s119, %s120
      %p132 = scmp.eq.s32.totalorder %s26, 1
      %p133 = por %p131, %p132
      %p135 = scmp.ne.s32.totalorder %s120, %s134
      %p136 = scmp.eq.s32.totalorder %s26, 0
      %p137 = por %p135, %p136
      %s139 = sadd.s32 %s138, 1
      %p142 = scmp.eq.s32.totalorder %s20, 1
      %p143 = scmp.ne.s32.totalorder %s138, %s140
      %p144 = scmp.eq.s32.totalorder %s20, 0
      %p145 = por %p143, %p144
      %p146 = scmp.ne.s32.totalorder %s138, %s140
      %p147 = scmp.eq.s32.totalorder %s25, 1
      %p148 = por %p146, %p147
      %p149 = scmp.ne.s32.totalorder %s140, %s141
      %p150 = scmp.eq.s32.totalorder %s25, 0
      %p151 = por %p149, %p150
      %p152 = scmp.ne.s32.totalorder %s140, %s141
      %p153 = scmp.eq.s32.totalorder %s26, 1
      %p154 = por %p152, %p153
      %p156 = scmp.ne.s32.totalorder %s141, %s155
      %p157 = scmp.eq.s32.totalorder %s26, 0
      %p158 = por %p156, %p157
      %s160 = sadd.s32 %s159, 1
      %p163 = scmp.eq.s32.totalorder %s20, 1
      %p164 = scmp.ne.s32.totalorder %s159, %s161
      %p165 = scmp.eq.s32.totalorder %s20, 0
      %p166 = por %p164, %p165
      %p167 = scmp.ne.s32.totalorder %s159, %s161
      %p168 = scmp.eq.s32.totalorder %s25, 1
      %p169 = por %p167, %p168
      %p170 = scmp.ne.s32.totalorder %s161, %s162
      %p171 = scmp.eq.s32.totalorder %s25, 0
      %p172 = por %p170, %p171
      %p173 = scmp.ne.s32.totalorder %s161, %s162
      %p174 = scmp.eq.s32.totalorder %s26, 1
      %p175 = por %p173, %p174
      %p177 = scmp.ne.s32.totalorder %s162, %s176
      %p178 = scmp.eq.s32.totalorder %s26, 0
      %p179 = por %p177, %p178
      %s181 = sadd.s32 %s180, 1
      %p184 = scmp.eq.s32.totalorder %s20, 1
      %p185 = scmp.ne.s32.totalorder %s180, %s182
      %p186 = scmp.eq.s32.totalorder %s20, 0
      %p187 = por %p185, %p186
      %p188 = scmp.ne.s32.totalorder %s180, %s182
      %p189 = scmp.eq.s32.totalorder %s25, 1
      %p190 = por %p188, %p189
      %p191 = scmp.ne.s32.totalorder %s182, %s183
      %p192 = scmp.eq.s32.totalorder %s25, 0
      %p193 = por %p191, %p192
      %p194 = scmp.ne.s32.totalorder %s182, %s183
      %p195 = scmp.eq.s32.totalorder %s26, 1
      %p196 = por %p194, %p195
      %p198 = scmp.ne.s32.totalorder %s183, %s197
      %p199 = scmp.eq.s32.totalorder %s26, 0
      %p200 = por %p198, %p199
      %s202 = sadd.s32 %s201, 1
      %p205 = scmp.eq.s32.totalorder %s20, 1
      %p206 = scmp.ne.s32.totalorder %s201, %s203
      %p207 = scmp.eq.s32.totalorder %s20, 0
      %p208 = por %p206, %p207
      %p209 = scmp.ne.s32.totalorder %s201, %s203
      %p210 = scmp.eq.s32.totalorder %s25, 1
      %p211 = por %p209, %p210
      %p212 = scmp.ne.s32.totalorder %s203, %s204
      %p213 = scmp.eq.s32.totalorder %s25, 0
      %p214 = por %p212, %p213
      %p215 = scmp.ne.s32.totalorder %s203, %s204
      %p216 = scmp.eq.s32.totalorder %s26, 1
      %p217 = por %p215, %p216
      %p219 = scmp.ne.s32.totalorder %s204, %s218
      %p220 = scmp.eq.s32.totalorder %s26, 0
      %p221 = por %p219, %p220
      %s223 = sadd.s32 %s222, 1
      %p226 = scmp.eq.s32.totalorder %s20, 1
      %p227 = scmp.ne.s32.totalorder %s222, %s224
      %p228 = scmp.eq.s32.totalorder %s20, 0
      %p229 = por %p227, %p228
      %p230 = scmp.ne.s32.totalorder %s222, %s224
      %p231 = scmp.eq.s32.totalorder %s25, 1
      %p232 = por %p230, %p231
      %p233 = scmp.ne.s32.totalorder %s224, %s225
      %p234 = scmp.eq.s32.totalorder %s25, 0
      %p235 = por %p233, %p234
      %p236 = scmp.ne.s32.totalorder %s224, %s225
      %p237 = scmp.eq.s32.totalorder %s26, 1
      %p238 = por %p236, %p237
      %p240 = scmp.ne.s32.totalorder %s225, %s239
      %p241 = scmp.eq.s32.totalorder %s26, 0
      %p242 = por %p240, %p241
      %s244 = sadd.s32 %s243, 1
      %p247 = scmp.eq.s32.totalorder %s20, 1
      %p248 = scmp.ne.s32.totalorder %s243, %s245
      %p249 = scmp.eq.s32.totalorder %s20, 0
      %p250 = por %p248, %p249
      %p251 = scmp.ne.s32.totalorder %s243, %s245
      %p252 = scmp.eq.s32.totalorder %s25, 1
      %p253 = por %p251, %p252
      %p254 = scmp.ne.s32.totalorder %s245, %s246
      %p255 = scmp.eq.s32.totalorder %s25, 0
      %p256 = por %p254, %p255
      %p257 = scmp.ne.s32.totalorder %s245, %s246
      %p258 = scmp.eq.s32.totalorder %s26, 1
      %p259 = por %p257, %p258
      %p261 = scmp.ne.s32.totalorder %s246, %s260
      %p262 = scmp.eq.s32.totalorder %s26, 0
      %p263 = por %p261, %p262
      %s264 = ssub.s32 %s20, %s27
      %p265 = scmp.eq.s32.totalorder %s264, 0
      %s267 = sadd.s32 %s266, 1
      %s268 = scalar_select %p265, %s266, %s267
      %p271 = pneg %p265
      %p272 = scmp.eq.s32.totalorder %s20, 1
      %p273 = por %p271, %p272
      %p274 = scmp.ne.s32.totalorder %s266, %s269
      %p275 = scmp.eq.s32.totalorder %s20, 0
      %p276 = por %p274, %p275
      %p277 = scmp.ne.s32.totalorder %s266, %s269
      %p278 = scmp.eq.s32.totalorder %s25, 1
      %p279 = por %p277, %p278
      %p280 = scmp.ne.s32.totalorder %s269, %s270
      %p281 = scmp.eq.s32.totalorder %s25, 0
      %p282 = por %p280, %p281
      %p283 = scmp.ne.s32.totalorder %s269, %s270
      %p284 = scmp.eq.s32.totalorder %s26, 1
      %p285 = por %p283, %p284
      %p287 = scmp.ne.s32.totalorder %s270, %s286
      %p288 = scmp.eq.s32.totalorder %s26, 0
      %p289 = por %p287, %p288
      %p290 = scmp.le.s32.totalorder 1, %s20
      %p291 = scmp.lt.s32.totalorder %s20, 3
      %p292 = pnand %p290, %p291
      %p293 = pneg %p292
      // Predicated region
      $region9: #{mycnn_forward.1} parent=5 // pred_check
        _
      $region10: #{mycnn_forward.1} parent=5 // pred_check_branch
        %295 = sbr.rel (%p292) target = $region12
      $region11: #{mycnn_forward.1} parent=5 // pred_region
        %s296 = ssub.s32 %s20, 1
        // Predicated region
        $region13: #{mycnn_forward.1} parent=11 // pred_check
          %p297 = pneg %p67
        $region14: #{mycnn_forward.1} parent=11 // pred_check_branch
          %299 = sbr.rel (%p297) target = $region16
        $region15: #{mycnn_forward.1} parent=11 // pred_region
          _
        $region16: #{mycnn_forward.1} parent=11 // pred_fallthru
          _
        // Predicated region
        $region17: #{mycnn_forward.1} parent=11 // pred_check
          %p300 = pneg %p88
        $region18: #{mycnn_forward.1} parent=11 // pred_check_branch
          %302 = sbr.rel (%p300) target = $region20
        $region19: #{mycnn_forward.1} parent=11 // pred_region
          _
        $region20: #{mycnn_forward.1} parent=11 // pred_fallthru
          _
        // Predicated region
        $region21: #{mycnn_forward.1} parent=11 // pred_check
          %p303 = pneg %p109
        $region22: #{mycnn_forward.1} parent=11 // pred_check_branch
          %305 = sbr.rel (%p303) target = $region24
        $region23: #{mycnn_forward.1} parent=11 // pred_region
          _
        $region24: #{mycnn_forward.1} parent=11 // pred_fallthru
          _
        // Predicated region
        $region25: #{mycnn_forward.1} parent=11 // pred_check
          %p306 = pneg %p130
        $region26: #{mycnn_forward.1} parent=11 // pred_check_branch
          %308 = sbr.rel (%p306) target = $region28
        $region27: #{mycnn_forward.1} parent=11 // pred_region
          _
        $region28: #{mycnn_forward.1} parent=11 // pred_fallthru
          _
        // Predicated region
        $region29: #{mycnn_forward.1} parent=11 // pred_check
          %p309 = pneg %p151
        $region30: #{mycnn_forward.1} parent=11 // pred_check_branch
          %311 = sbr.rel (%p309) target = $region32
        $region31: #{mycnn_forward.1} parent=11 // pred_region
          _
        $region32: #{mycnn_forward.1} parent=11 // pred_fallthru
          _
        // Predicated region
        $region33: #{mycnn_forward.1} parent=11 // pred_check
          %p312 = pneg %p172
        $region34: #{mycnn_forward.1} parent=11 // pred_check_branch
          %314 = sbr.rel (%p312) target = $region36
        $region35: #{mycnn_forward.1} parent=11 // pred_region
          _
        $region36: #{mycnn_forward.1} parent=11 // pred_fallthru
          _
        // Predicated region
        $region37: #{mycnn_forward.1} parent=11 // pred_check
          %p315 = pneg %p193
        $region38: #{mycnn_forward.1} parent=11 // pred_check_branch
          %317 = sbr.rel (%p315) target = $region40
        $region39: #{mycnn_forward.1} parent=11 // pred_region
          _
        $region40: #{mycnn_forward.1} parent=11 // pred_fallthru
          _
        // Predicated region
        $region41: #{mycnn_forward.1} parent=11 // pred_check
          %p318 = pneg %p214
        $region42: #{mycnn_forward.1} parent=11 // pred_check_branch
          %320 = sbr.rel (%p318) target = $region44
        $region43: #{mycnn_forward.1} parent=11 // pred_region
          _
        $region44: #{mycnn_forward.1} parent=11 // pred_fallthru
          _
        // Predicated region
        $region45: #{mycnn_forward.1} parent=11 // pred_check
          %p321 = pneg %p235
        $region46: #{mycnn_forward.1} parent=11 // pred_check_branch
          %323 = sbr.rel (%p321) target = $region48
        $region47: #{mycnn_forward.1} parent=11 // pred_region
          _
        $region48: #{mycnn_forward.1} parent=11 // pred_fallthru
          _
        // Predicated region
        $region49: #{mycnn_forward.1} parent=11 // pred_check
          %p324 = pneg %p256
        $region50: #{mycnn_forward.1} parent=11 // pred_check_branch
          %326 = sbr.rel (%p324) target = $region52
        $region51: #{mycnn_forward.1} parent=11 // pred_region
          _
        $region52: #{mycnn_forward.1} parent=11 // pred_fallthru
          _
      $region12: #{mycnn_forward.1} parent=5 // pred_fallthru
        _
      %p327 = scmp.lt.s32.totalorder %s20, 2
      // Predicated region
      $region53: #{mycnn_forward.1} parent=5 // pred_check
        %p328 = pneg %p327
      $region54: #{mycnn_forward.1} parent=5 // pred_check_branch
        %330 = sbr.rel (%p328) target = $region56
      $region55: #{mycnn_forward.1} parent=5 // pred_region
        // Predicated region
        $region57: #{mycnn_forward.1} parent=55 // pred_check
          %p331 = pneg %p40
        $region58: #{mycnn_forward.1} parent=55 // pred_check_branch
          %333 = sbr.rel (%p331) target = $region60
        $region59: #{mycnn_forward.1} parent=55 // pred_region
          %p334 = scmp.lt.s32.totalorder %s20, 1
          %s335 = scalar_select %p334, %s20, 1
          %s336 = smul.addr %s335, 113
          %s337 = smul.addr %s336, 8
          %s338 = scalar_lea.vmem %s0, %s337
        $region60: #{mycnn_forward.1} parent=55 // pred_fallthru
          _
      $region56: #{mycnn_forward.1} parent=5 // pred_fallthru
        _
      %p339 = scmp.le.s32.totalorder 1, %s20
      %p340 = scmp.lt.s32.totalorder %s20, 3
      %p341 = pnand %p339, %p340
      %p342 = pneg %p341
      // Predicated region
      $region61: #{mycnn_forward.1} parent=5 // pred_check
        _
      $region62: #{mycnn_forward.1} parent=5 // pred_check_branch
        %344 = sbr.rel (%p341) target = $region64
      $region63: #{mycnn_forward.1} parent=5 // pred_region
        %s345 = ssub.s32 %s20, 1
        %p346 = scmp.lt.s32.totalorder %s25, 1
        %s347 = scalar_select %p346, %s25, 1
        %s348 = smul.addr %s347, 113
        %s349 = smul.addr %s348, 8
        %s350 = scalar_lea.vmem %s0, %s349
        %p351 = pneg %p46
        %p352 = pneg %p43
        %p353 = pneg %p67
        %p354 = pneg %p64
        %p355 = pneg %p88
        %p356 = pneg %p85
        %p357 = pneg %p109
        %p358 = pneg %p106
        %p359 = pneg %p130
        %p360 = pneg %p127
        %p361 = pneg %p151
        %p362 = pneg %p148
        %p363 = pneg %p172
        %p364 = pneg %p169
        %p365 = pneg %p193
        %p366 = pneg %p190
        %p367 = pneg %p214
        %p368 = pneg %p211
        %p369 = pneg %p235
        %p370 = pneg %p232
        %p371 = pneg %p256
        %p372 = pneg %p253
        %p373 = pneg %p282
        %p374 = pneg %p279
        %s375 = sand.u32 %s269, 1
        %s376 = scalar_lea.sflag [#allocation8], %s375
        %s377 = sand.u32 %s269, 1
        %s378 = scalar_lea.vmem [#allocation7], %s377
        %p379 = scmp.lt.s32.totalorder %s25, 1
        %s380 = scalar_select %p379, %s25, 1
        %s381 = smul.addr %s380, 113
        %s382 = smul.addr %s381, 8
        %s383 = scalar_lea.vmem %s0, %s382
        %vm384 = vcmask 130048
        %385 = vst.msk [vmem:[#allocation3] sm:$0xff] %vm384, 0.0
        %386 = vst.msk [vmem:[#allocation3 + $0x8] sm:$0xff] %vm384, 0.0
        %387 = vst.msk [vmem:[#allocation3 + $0x10] sm:$0xff] %vm384, 0.0
        %388 = vst.msk [vmem:[#allocation3 + $0x18] sm:$0xff] %vm384, 0.0
        %389 = vst.msk [vmem:[#allocation3 + $0x20] sm:$0xff] %vm384, 0.0
        %390 = vst.msk [vmem:[#allocation3 + $0x28] sm:$0xff] %vm384, 0.0
        %391 = vst.msk [vmem:[#allocation3 + $0x30] sm:$0xff] %vm384, 0.0
        %392 = vst.msk [vmem:[#allocation3 + $0x38] sm:$0xff] %vm384, 0.0
        %393 = vst.msk [vmem:[#allocation3 + $0x40] sm:$0xff] %vm384, 0.0
        %394 = vst.msk [vmem:[#allocation3 + $0x48] sm:$0xff] %vm384, 0.0
        %395 = vst.msk [vmem:[#allocation3 + $0x50] sm:$0xff] %vm384, 0.0
        %396 = vst.msk [vmem:[#allocation3 + $0x58] sm:$0xff] %vm384, 0.0
        %397 = vst.msk [vmem:[#allocation3 + $0x60] sm:$0xff] %vm384, 0.0
        %398 = vst.msk [vmem:[#allocation3 + $0x68] sm:$0xff] %vm384, 0.0
        %399 = vst.msk [vmem:[#allocation3 + $0x70] sm:$0xff] %vm384, 0.0
        %400 = vst.msk [vmem:[#allocation3 + $0x78] sm:$0xff] %vm384, 0.0
        %401 = vst.msk [vmem:[#allocation3 + $0x80] sm:$0xff] %vm384, 0.0
        %402 = vst.msk [vmem:[#allocation3 + $0x88] sm:$0xff] %vm384, 0.0
        %403 = vst.msk [vmem:[#allocation3 + $0x90] sm:$0xff] %vm384, 0.0
        %404 = vst.msk [vmem:[#allocation3 + $0x98] sm:$0xff] %vm384, 0.0
        %405 = vst.msk [vmem:[#allocation3 + $0xa0] sm:$0xff] %vm384, 0.0
        %406 = vst.msk [vmem:[#allocation3 + $0xa8] sm:$0xff] %vm384, 0.0
        %407 = vst.msk [vmem:[#allocation3 + $0xb0] sm:$0xff] %vm384, 0.0
        %408 = vst.msk [vmem:[#allocation3 + $0xb8] sm:$0xff] %vm384, 0.0
        %409 = vst.msk [vmem:[#allocation3 + $0xc0] sm:$0xff] %vm384, 0.0
        %410 = vst.msk [vmem:[#allocation3 + $0xc8] sm:$0xff] %vm384, 0.0
        %411 = vst.msk [vmem:[#allocation3 + $0xd0] sm:$0xff] %vm384, 0.0
        %412 = vst.msk [vmem:[#allocation3 + $0xd8] sm:$0xff] %vm384, 0.0
        %413 = vst.msk [vmem:[#allocation3 + $0xe0] sm:$0xff] %vm384, 0.0
        %414 = vst.msk [vmem:[#allocation3 + $0xe8] sm:$0xff] %vm384, 0.0
        %415 = vst.msk [vmem:[#allocation3 + $0xf0] sm:$0xff] %vm384, 0.0
        %416 = vst.msk [vmem:[#allocation3 + $0xf8] sm:$0xff] %vm384, 0.0
        %417 = vst.msk [vmem:[#allocation3 + $0x100] sm:$0xff] %vm384, 0.0
        %418 = vst.msk [vmem:[#allocation3 + $0x108] sm:$0xff] %vm384, 0.0
        %419 = vst.msk [vmem:[#allocation3 + $0x110] sm:$0xff] %vm384, 0.0
        %420 = vst.msk [vmem:[#allocation3 + $0x118] sm:$0xff] %vm384, 0.0
        %vm421 = vcmask 123904
        %422 = vst.msk [vmem:[#allocation3 + $0x120] sm:$0x3] %vm421, 0.0
        %vm423 = vcmask 261120
        %424 = vst.msk [vmem:[#allocation5] sm:$0xff] %vm423, 0.0
        %425 = vst.msk [vmem:[#allocation5 + $0x8] sm:$0xff] %vm423, 0.0
        %426 = vst.msk [vmem:[#allocation5 + $0x10] sm:$0xff] %vm423, 0.0
        %427 = vst.msk [vmem:[#allocation5 + $0x18] sm:$0xff] %vm423, 0.0
        %428 = vst.msk [vmem:[#allocation5 + $0x20] sm:$0xff] %vm423, 0.0
        %429 = vst.msk [vmem:[#allocation5 + $0x28] sm:$0xff] %vm423, 0.0
        %430 = vst.msk [vmem:[#allocation5 + $0x30] sm:$0xff] %vm423, 0.0
        %431 = vst.msk [vmem:[#allocation5 + $0x38] sm:$0xff] %vm423, 0.0
        %432 = vst.msk [vmem:[#allocation5 + $0x40] sm:$0xff] %vm423, 0.0
        %433 = vst.msk [vmem:[#allocation5 + $0x48] sm:$0xff] %vm423, 0.0
        %434 = vst.msk [vmem:[#allocation5 + $0x50] sm:$0xff] %vm423, 0.0
        %435 = vst.msk [vmem:[#allocation5 + $0x58] sm:$0xff] %vm423, 0.0
        %vm436 = vcmask 258048
        %437 = vst.msk [vmem:[#allocation5 + $0x60] sm:$0x1f] %vm436, 0.0
        %v438 = vld [vmem:[%s1] sm:$0xff]
        %v439 = vld [vmem:[%s1 + $0x8] sm:$0x1]
        %v440 = vld [vmem:[%s383] sm:$0xff]
        %v441 = vld [vmem:[%s383 + $0x8] sm:$0xff]
        %v442 = vld [vmem:[%s383 + $0x10] sm:$0xff]
        %v443 = vld [vmem:[%s383 + $0x18] sm:$0xff]
        %v444 = vld [vmem:[%s383 + $0x20] sm:$0xff]
        %v445 = vld [vmem:[%s383 + $0x28] sm:$0xff]
        %v446 = vld [vmem:[%s383 + $0x30] sm:$0xff]
        %v447 = vld [vmem:[%s383 + $0x38] sm:$0xff]
        %v448 = vld [vmem:[%s383 + $0x40] sm:$0xff]
        %v449 = vld [vmem:[%s383 + $0x48] sm:$0xff]
        %v450 = vld [vmem:[%s383 + $0x50] sm:$0xff]
        %v451 = vld [vmem:[%s383 + $0x58] sm:$0xff]
        %v452 = vld [vmem:[%s383 + $0x60] sm:$0xff]
        %v453 = vld [vmem:[%s383 + $0x68] sm:$0xff]
        %v454 = vld [vmem:[%s383 + $0x70] sm:$0xff]
        %v455 = vld [vmem:[%s383 + $0x78] sm:$0xff]
        %v456 = vld [vmem:[%s383 + $0x80] sm:$0xff]
        %v457 = vld [vmem:[%s383 + $0x88] sm:$0xff]
        %v458 = vld [vmem:[%s383 + $0x90] sm:$0xff]
        %v459 = vld [vmem:[%s383 + $0x98] sm:$0xff]
        %v460 = vld [vmem:[%s383 + $0xa0] sm:$0xff]
        %v461 = vld [vmem:[%s383 + $0xa8] sm:$0xff]
        %v462 = vld [vmem:[%s383 + $0xb0] sm:$0xff]
        %v463 = vld [vmem:[%s383 + $0xb8] sm:$0xff]
        %v464 = vld [vmem:[%s383 + $0xc0] sm:$0xff]
        %v465 = vld [vmem:[%s383 + $0xc8] sm:$0xff]
        %v466 = vld [vmem:[%s383 + $0xd0] sm:$0xff]
        %v467 = vld [vmem:[%s383 + $0xd8] sm:$0xff]
        %v468 = vld [vmem:[%s383 + $0xe0] sm:$0xff]
        %v469 = vld [vmem:[%s383 + $0xe8] sm:$0xff]
        %v470 = vld [vmem:[%s383 + $0xf0] sm:$0xff]
        %v471 = vld [vmem:[%s383 + $0xf8] sm:$0xff]
        %v472 = vld [vmem:[%s383 + $0x100] sm:$0xff]
        %v473 = vld [vmem:[%s383 + $0x108] sm:$0xff]
        %v474 = vld [vmem:[%s383 + $0x110] sm:$0xff]
        %v475 = vld [vmem:[%s383 + $0x118] sm:$0xff]
        %v476 = vld [vmem:[%s383 + $0x120] sm:$0xff]
        %v477 = vld [vmem:[%s383 + $0x128] sm:$0xff]
        %v478 = vld [vmem:[%s383 + $0x130] sm:$0xff]
        %v479 = vld [vmem:[%s383 + $0x138] sm:$0xff]
        %v480 = vld [vmem:[%s383 + $0x140] sm:$0xff]
        %v481 = vld [vmem:[%s383 + $0x148] sm:$0xff]
        %v482 = vld [vmem:[%s383 + $0x150] sm:$0xff]
        %v483 = vld [vmem:[%s383 + $0x158] sm:$0xff]
        %v484 = vld [vmem:[%s383 + $0x160] sm:$0xff]
        %v485 = vld [vmem:[%s383 + $0x168] sm:$0xff]
        %v486 = vld [vmem:[%s383 + $0x170] sm:$0xff]
        %v487 = vld [vmem:[%s383 + $0x178] sm:$0xff]
        %v488 = vld [vmem:[%s383 + $0x180] sm:$0xff]
        %v489 = vld [vmem:[%s383 + $0x188] sm:$0xff]
        %v490 = vld [vmem:[%s383 + $0x190] sm:$0xff]
        %v491 = vld [vmem:[%s383 + $0x198] sm:$0xff]
        %v492 = vld [vmem:[%s383 + $0x1a0] sm:$0xff]
        %v493 = vld [vmem:[%s383 + $0x1a8] sm:$0xff]
        %v494 = vld [vmem:[%s383 + $0x1b0] sm:$0xff]
        %v495 = vld [vmem:[%s383 + $0x1b8] sm:$0xff]
        %v496 = vld [vmem:[%s383 + $0x1c0] sm:$0xff]
        %v497 = vld [vmem:[%s383 + $0x1c8] sm:$0xff]
        %v498 = vld [vmem:[%s383 + $0x1d0] sm:$0xff]
        %v499 = vld [vmem:[%s383 + $0x1d8] sm:$0xff]
        %v500 = vld [vmem:[%s383 + $0x1e0] sm:$0xff]
        %v501 = vld [vmem:[%s383 + $0x1e8] sm:$0xff]
        %v502 = vld [vmem:[%s383 + $0x1f0] sm:$0xff]
        %v503 = vld [vmem:[%s383 + $0x1f8] sm:$0xff]
        %v504 = vld [vmem:[%s383 + $0x200] sm:$0xff]
        %v505 = vld [vmem:[%s383 + $0x208] sm:$0xff]
        %v506 = vld [vmem:[%s383 + $0x210] sm:$0xff]
        %v507 = vld [vmem:[%s383 + $0x218] sm:$0xff]
        %v508 = vld [vmem:[%s383 + $0x220] sm:$0xff]
        %v509 = vld [vmem:[%s383 + $0x228] sm:$0xff]
        %v510 = vld [vmem:[%s383 + $0x230] sm:$0xff]
        %v511 = vld [vmem:[%s383 + $0x238] sm:$0xff]
        %v512 = vld [vmem:[%s383 + $0x240] sm:$0xff]
        %v513 = vld [vmem:[%s383 + $0x248] sm:$0xff]
        %v514 = vld [vmem:[%s383 + $0x250] sm:$0xff]
        %v515 = vld [vmem:[%s383 + $0x258] sm:$0xff]
        %v516 = vld [vmem:[%s383 + $0x260] sm:$0xff]
        %v517 = vld [vmem:[%s383 + $0x268] sm:$0xff]
        %v518 = vld [vmem:[%s383 + $0x270] sm:$0xff]
        %v519 = vld [vmem:[%s383 + $0x278] sm:$0xff]
        %v520 = vld [vmem:[%s383 + $0x280] sm:$0xff]
        %v521 = vld [vmem:[%s383 + $0x288] sm:$0xff]
        %v522 = vld [vmem:[%s383 + $0x290] sm:$0xff]
        %v523 = vld [vmem:[%s383 + $0x298] sm:$0xff]
        %v524 = vld [vmem:[%s383 + $0x2a0] sm:$0xff]
        %v525 = vld [vmem:[%s383 + $0x2a8] sm:$0xff]
        %v526 = vld [vmem:[%s383 + $0x2b0] sm:$0xff]
        %v527 = vld [vmem:[%s383 + $0x2b8] sm:$0xff]
        %v528 = vld [vmem:[%s383 + $0x2c0] sm:$0xff]
        %v529 = vld [vmem:[%s383 + $0x2c8] sm:$0xff]
        %v530 = vld [vmem:[%s383 + $0x2d0] sm:$0xff]
        %v531 = vld [vmem:[%s383 + $0x2d8] sm:$0xff]
        %v532 = vld [vmem:[%s383 + $0x2e0] sm:$0xff]
        %v533 = vld [vmem:[%s383 + $0x2e8] sm:$0xff]
        %v534 = vld [vmem:[%s383 + $0x2f0] sm:$0xff]
        %v535 = vld [vmem:[%s383 + $0x2f8] sm:$0xff]
        %v536 = vld [vmem:[%s383 + $0x300] sm:$0xff]
        %v537 = vld [vmem:[%s383 + $0x308] sm:$0xff]
        %v538 = vld [vmem:[%s383 + $0x310] sm:$0xff]
        %v539 = vld [vmem:[%s383 + $0x318] sm:$0xff]
        %v540 = vld [vmem:[%s383 + $0x320] sm:$0xff]
        %v541 = vld [vmem:[%s383 + $0x328] sm:$0xff]
        %v542 = vld [vmem:[%s383 + $0x330] sm:$0xff]
        %v543 = vld [vmem:[%s383 + $0x338] sm:$0xff]
        %v544 = vld [vmem:[%s383 + $0x340] sm:$0xff]
        %v545 = vld [vmem:[%s383 + $0x348] sm:$0xff]
        %v546 = vld [vmem:[%s383 + $0x350] sm:$0xff]
        %v547 = vld [vmem:[%s383 + $0x358] sm:$0xff]
        %v548 = vld [vmem:[%s383 + $0x360] sm:$0xff]
        %v549 = vld [vmem:[%s383 + $0x368] sm:$0xff]
        %v550 = vld [vmem:[%s383 + $0x370] sm:$0xff]
        %v551 = vld [vmem:[%s383 + $0x378] sm:$0xff]
        %v552 = vld [vmem:[%s383 + $0x380] sm:$0xf]
        %v553 = vld [vmem:[%s2] sm:$0x1]
        %v555 = vperm.slane %v553, 0
        %vm557 = vcmask 72704
        %v559 = vsel %vm557, %v440, 0
        %v562 = vsel %vm557, %v441, 0
        %v565 = vsel %vm557, %v442, 0
        %v568 = vsel %vm557, %v443, 0
        %v571 = vsel %vm557, %v444, 0
        %v574 = vsel %vm557, %v445, 0
        %v577 = vsel %vm557, %v446, 0
        %v580 = vsel %vm557, %v447, 0
        %v583 = vsel %vm557, %v448, 0
        %v586 = vsel %vm557, %v449, 0
        %v589 = vsel %vm557, %v450, 0
        %v592 = vsel %vm557, %v451, 0
        %v595 = vsel %vm557, %v452, 0
        %v598 = vsel %vm557, %v453, 0
        %v601 = vsel %vm557, %v454, 0
        %v604 = vsel %vm557, %v455, 0
        %v607 = vsel %vm557, %v456, 0
        %v610 = vsel %vm557, %v457, 0
        %v613 = vsel %vm557, %v458, 0
        %v616 = vsel %vm557, %v459, 0
        %v619 = vsel %vm557, %v460, 0
        %v622 = vsel %vm557, %v461, 0
        %v625 = vsel %vm557, %v462, 0
        %v628 = vsel %vm557, %v463, 0
        %v631 = vsel %vm557, %v464, 0
        %v634 = vsel %vm557, %v465, 0
        %v637 = vsel %vm557, %v466, 0
        %v640 = vsel %vm557, %v467, 0
        %v643 = vsel %vm557, %v468, 0
        %v646 = vsel %vm557, %v469, 0
        %v649 = vsel %vm557, %v470, 0
        %v652 = vsel %vm557, %v471, 0
        %v655 = vsel %vm557, %v472, 0
        %v658 = vsel %vm557, %v473, 0
        %v661 = vsel %vm557, %v474, 0
        %v664 = vsel %vm557, %v475, 0
        %v667 = vsel %vm557, %v476, 0
        %v670 = vsel %vm557, %v477, 0
        %v673 = vsel %vm557, %v478, 0
        %v676 = vsel %vm557, %v479, 0
        %v679 = vsel %vm557, %v480, 0
        %v682 = vsel %vm557, %v481, 0
        %v685 = vsel %vm557, %v482, 0
        %v688 = vsel %vm557, %v483, 0
        %v691 = vsel %vm557, %v484, 0
        %v694 = vsel %vm557, %v485, 0
        %v697 = vsel %vm557, %v486, 0
        %v700 = vsel %vm557, %v487, 0
        %v703 = vsel %vm557, %v488, 0
        %v706 = vsel %vm557, %v489, 0
        %v709 = vsel %vm557, %v490, 0
        %v712 = vsel %vm557, %v491, 0
        %v715 = vsel %vm557, %v492, 0
        %v718 = vsel %vm557, %v493, 0
        %v721 = vsel %vm557, %v494, 0
        %v724 = vsel %vm557, %v495, 0
        %v727 = vsel %vm557, %v496, 0
        %v730 = vsel %vm557, %v497, 0
        %v733 = vsel %vm557, %v498, 0
        %v736 = vsel %vm557, %v499, 0
        %v739 = vsel %vm557, %v500, 0
        %v742 = vsel %vm557, %v501, 0
        %v745 = vsel %vm557, %v502, 0
        %v748 = vsel %vm557, %v503, 0
        %v751 = vsel %vm557, %v504, 0
        %v754 = vsel %vm557, %v505, 0
        %v757 = vsel %vm557, %v506, 0
        %v760 = vsel %vm557, %v507, 0
        %v763 = vsel %vm557, %v508, 0
        %v766 = vsel %vm557, %v509, 0
        %v769 = vsel %vm557, %v510, 0
        %v772 = vsel %vm557, %v511, 0
        %v775 = vsel %vm557, %v512, 0
        %v778 = vsel %vm557, %v513, 0
        %v781 = vsel %vm557, %v514, 0
        %v784 = vsel %vm557, %v515, 0
        %v787 = vsel %vm557, %v516, 0
        %v790 = vsel %vm557, %v517, 0
        %v793 = vsel %vm557, %v518, 0
        %v796 = vsel %vm557, %v519, 0
        %v799 = vsel %vm557, %v520, 0
        %v802 = vsel %vm557, %v521, 0
        %v805 = vsel %vm557, %v522, 0
        %v808 = vsel %vm557, %v523, 0
        %v811 = vsel %vm557, %v524, 0
        %v814 = vsel %vm557, %v525, 0
        %v817 = vsel %vm557, %v526, 0
        %v820 = vsel %vm557, %v527, 0
        %v823 = vsel %vm557, %v528, 0
        %v826 = vsel %vm557, %v529, 0
        %v829 = vsel %vm557, %v530, 0
        %v832 = vsel %vm557, %v531, 0
        %v835 = vsel %vm557, %v532, 0
        %v838 = vsel %vm557, %v533, 0
        %v841 = vsel %vm557, %v534, 0
        %v844 = vsel %vm557, %v535, 0
        %v847 = vsel %vm557, %v536, 0
        %v850 = vsel %vm557, %v537, 0
        %v853 = vsel %vm557, %v538, 0
        %v856 = vsel %vm557, %v539, 0
        %v859 = vsel %vm557, %v540, 0
        %v862 = vsel %vm557, %v541, 0
        %v865 = vsel %vm557, %v542, 0
        %v868 = vsel %vm557, %v543, 0
        %v871 = vsel %vm557, %v544, 0
        %v874 = vsel %vm557, %v545, 0
        %v877 = vsel %vm557, %v546, 0
        %v880 = vsel %vm557, %v547, 0
        %v883 = vsel %vm557, %v548, 0
        %v886 = vsel %vm557, %v549, 0
        %v889 = vsel %vm557, %v550, 0
        %v892 = vsel %vm557, %v551, 0
        %v895 = vsel %vm557, %v552, 0
        %vm897 = vcmask 1040384
        %v899 = vsel %vm897, %v439, 0
        %901 = vmatpush.msra.mxu0 0.0
        %902 = vmatpush.msra.mxu0 0.0
        %903 = vmatpush.msra.mxu0 0.0
        %904 = vmatpush.msra.mxu0 0.0
        %905 = vmatpush.msra.mxu0 0.0
        %906 = vmatpush.msra.mxu0 0.0
        %907 = vmatpush.msra.mxu0 0.0
        %908 = vmatpush.msra.mxu0 0.0
        %909 = vmatpush.msra.mxu0 0.0
        %910 = vmatpush.msra.mxu0 0.0
        %911 = vmatpush.msra.mxu0 0.0
        %912 = vmatpush.msra.mxu0 0.0
        %913 = vmatpush.msra.mxu0 0.0
        %914 = vmatpush.msra.mxu0 0.0
        %915 = vmatpush.msra.mxu0 %v899
        %916 = vmatpush.msra.mxu0 %v438
        %917 = vmatmul.f32.gmra.mxu0 %v559
        %v918 = vpop.f32.mrf.mxu0
        %v919 = vadd.f32 %v555, %v918
        %920 = vmatmul.f32.gmra.mxu0 %v562
        %v921 = vpop.f32.mrf.mxu0
        %v922 = vadd.f32 %v555, %v921
        %923 = vmatmul.f32.gmra.mxu0 %v565
        %v924 = vpop.f32.mrf.mxu0
        %v925 = vadd.f32 %v555, %v924
        %926 = vmatmul.f32.gmra.mxu0 %v568
        %v927 = vpop.f32.mrf.mxu0
        %v928 = vadd.f32 %v555, %v927
        %929 = vmatmul.f32.gmra.mxu0 %v571
        %v930 = vpop.f32.mrf.mxu0
        %v931 = vadd.f32 %v555, %v930
        %932 = vmatmul.f32.gmra.mxu0 %v574
        %v933 = vpop.f32.mrf.mxu0
        %v934 = vadd.f32 %v555, %v933
        %935 = vmatmul.f32.gmra.mxu0 %v577
        %v936 = vpop.f32.mrf.mxu0
        %v937 = vadd.f32 %v555, %v936
        %938 = vmatmul.f32.gmra.mxu0 %v580
        %v939 = vpop.f32.mrf.mxu0
        %v940 = vadd.f32 %v555, %v939
        %941 = vmatmul.f32.gmra.mxu0 %v583
        %v942 = vpop.f32.mrf.mxu0
        %v943 = vadd.f32 %v555, %v942
        %944 = vmatmul.f32.gmra.mxu0 %v586
        %v945 = vpop.f32.mrf.mxu0
        %v946 = vadd.f32 %v555, %v945
        %947 = vmatmul.f32.gmra.mxu0 %v589
        %v948 = vpop.f32.mrf.mxu0
        %v949 = vadd.f32 %v555, %v948
        %950 = vmatmul.f32.gmra.mxu0 %v592
        %v951 = vpop.f32.mrf.mxu0
        %v952 = vadd.f32 %v555, %v951
        %953 = vmatmul.f32.gmra.mxu0 %v595
        %v954 = vpop.f32.mrf.mxu0
        %v955 = vadd.f32 %v555, %v954
        %956 = vmatmul.f32.gmra.mxu0 %v598
        %v957 = vpop.f32.mrf.mxu0
        %v958 = vadd.f32 %v555, %v957
        %959 = vmatmul.f32.gmra.mxu0 %v601
        %v960 = vpop.f32.mrf.mxu0
        %v961 = vadd.f32 %v555, %v960
        %962 = vmatmul.f32.gmra.mxu0 %v604
        %v963 = vpop.f32.mrf.mxu0
        %v964 = vadd.f32 %v555, %v963
        %965 = vmatmul.f32.gmra.mxu0 %v607
        %v966 = vpop.f32.mrf.mxu0
        %v967 = vadd.f32 %v555, %v966
        %968 = vmatmul.f32.gmra.mxu0 %v610
        %v969 = vpop.f32.mrf.mxu0
        %v970 = vadd.f32 %v555, %v969
        %971 = vmatmul.f32.gmra.mxu0 %v613
        %v972 = vpop.f32.mrf.mxu0
        %v973 = vadd.f32 %v555, %v972
        %974 = vmatmul.f32.gmra.mxu0 %v616
        %v975 = vpop.f32.mrf.mxu0
        %v976 = vadd.f32 %v555, %v975
        %977 = vmatmul.f32.gmra.mxu0 %v619
        %v978 = vpop.f32.mrf.mxu0
        %v979 = vadd.f32 %v555, %v978
        %980 = vmatmul.f32.gmra.mxu0 %v622
        %v981 = vpop.f32.mrf.mxu0
        %v982 = vadd.f32 %v555, %v981
        %983 = vmatmul.f32.gmra.mxu0 %v625
        %v984 = vpop.f32.mrf.mxu0
        %v985 = vadd.f32 %v555, %v984
        %986 = vmatmul.f32.gmra.mxu0 %v628
        %v987 = vpop.f32.mrf.mxu0
        %v988 = vadd.f32 %v555, %v987
        %989 = vmatmul.f32.gmra.mxu0 %v631
        %v990 = vpop.f32.mrf.mxu0
        %v991 = vadd.f32 %v555, %v990
        %992 = vmatmul.f32.gmra.mxu0 %v634
        %v993 = vpop.f32.mrf.mxu0
        %v994 = vadd.f32 %v555, %v993
        %995 = vmatmul.f32.gmra.mxu0 %v637
        %v996 = vpop.f32.mrf.mxu0
        %v997 = vadd.f32 %v555, %v996
        %998 = vmatmul.f32.gmra.mxu0 %v640
        %v999 = vpop.f32.mrf.mxu0
        %v1000 = vadd.f32 %v555, %v999
        %1001 = vmatmul.f32.gmra.mxu0 %v643
        %v1002 = vpop.f32.mrf.mxu0
        %v1003 = vadd.f32 %v555, %v1002
        %1004 = vmatmul.f32.gmra.mxu0 %v646
        %v1005 = vpop.f32.mrf.mxu0
        %v1006 = vadd.f32 %v555, %v1005
        %1007 = vmatmul.f32.gmra.mxu0 %v649
        %v1008 = vpop.f32.mrf.mxu0
        %v1009 = vadd.f32 %v555, %v1008
        %1010 = vmatmul.f32.gmra.mxu0 %v652
        %v1011 = vpop.f32.mrf.mxu0
        %v1012 = vadd.f32 %v555, %v1011
        %1013 = vmatmul.f32.gmra.mxu0 %v655
        %v1014 = vpop.f32.mrf.mxu0
        %v1015 = vadd.f32 %v555, %v1014
        %1016 = vmatmul.f32.gmra.mxu0 %v658
        %v1017 = vpop.f32.mrf.mxu0
        %v1018 = vadd.f32 %v555, %v1017
        %1019 = vmatmul.f32.gmra.mxu0 %v661
        %v1020 = vpop.f32.mrf.mxu0
        %v1021 = vadd.f32 %v555, %v1020
        %1022 = vmatmul.f32.gmra.mxu0 %v664
        %v1023 = vpop.f32.mrf.mxu0
        %v1024 = vadd.f32 %v555, %v1023
        %1025 = vmatmul.f32.gmra.mxu0 %v667
        %v1026 = vpop.f32.mrf.mxu0
        %v1027 = vadd.f32 %v555, %v1026
        %1028 = vmatmul.f32.gmra.mxu0 %v670
        %v1029 = vpop.f32.mrf.mxu0
        %v1030 = vadd.f32 %v555, %v1029
        %1031 = vmatmul.f32.gmra.mxu0 %v673
        %v1032 = vpop.f32.mrf.mxu0
        %v1033 = vadd.f32 %v555, %v1032
        %1034 = vmatmul.f32.gmra.mxu0 %v676
        %v1035 = vpop.f32.mrf.mxu0
        %v1036 = vadd.f32 %v555, %v1035
        %1037 = vmatmul.f32.gmra.mxu0 %v679
        %v1038 = vpop.f32.mrf.mxu0
        %v1039 = vadd.f32 %v555, %v1038
        %1040 = vmatmul.f32.gmra.mxu0 %v682
        %v1041 = vpop.f32.mrf.mxu0
        %v1042 = vadd.f32 %v555, %v1041
        %1043 = vmatmul.f32.gmra.mxu0 %v685
        %v1044 = vpop.f32.mrf.mxu0
        %v1045 = vadd.f32 %v555, %v1044
        %1046 = vmatmul.f32.gmra.mxu0 %v688
        %v1047 = vpop.f32.mrf.mxu0
        %v1048 = vadd.f32 %v555, %v1047
        %1049 = vmatmul.f32.gmra.mxu0 %v691
        %v1050 = vpop.f32.mrf.mxu0
        %v1051 = vadd.f32 %v555, %v1050
        %1052 = vmatmul.f32.gmra.mxu0 %v694
        %v1053 = vpop.f32.mrf.mxu0
        %v1054 = vadd.f32 %v555, %v1053
        %1055 = vmatmul.f32.gmra.mxu0 %v697
        %v1056 = vpop.f32.mrf.mxu0
        %v1057 = vadd.f32 %v555, %v1056
        %1058 = vmatmul.f32.gmra.mxu0 %v700
        %v1059 = vpop.f32.mrf.mxu0
        %v1060 = vadd.f32 %v555, %v1059
        %1061 = vmatmul.f32.gmra.mxu0 %v703
        %v1062 = vpop.f32.mrf.mxu0
        %v1063 = vadd.f32 %v555, %v1062
        %1064 = vmatmul.f32.gmra.mxu0 %v706
        %v1065 = vpop.f32.mrf.mxu0
        %v1066 = vadd.f32 %v555, %v1065
        %1067 = vmatmul.f32.gmra.mxu0 %v709
        %v1068 = vpop.f32.mrf.mxu0
        %v1069 = vadd.f32 %v555, %v1068
        %1070 = vmatmul.f32.gmra.mxu0 %v712
        %v1071 = vpop.f32.mrf.mxu0
        %v1072 = vadd.f32 %v555, %v1071
        %1073 = vmatmul.f32.gmra.mxu0 %v715
        %v1074 = vpop.f32.mrf.mxu0
        %v1075 = vadd.f32 %v555, %v1074
        %1076 = vmatmul.f32.gmra.mxu0 %v718
        %v1077 = vpop.f32.mrf.mxu0
        %v1078 = vadd.f32 %v555, %v1077
        %1079 = vmatmul.f32.gmra.mxu0 %v721
        %v1080 = vpop.f32.mrf.mxu0
        %v1081 = vadd.f32 %v555, %v1080
        %1082 = vmatmul.f32.gmra.mxu0 %v724
        %v1083 = vpop.f32.mrf.mxu0
        %v1084 = vadd.f32 %v555, %v1083
        %1085 = vmatmul.f32.gmra.mxu0 %v727
        %v1086 = vpop.f32.mrf.mxu0
        %v1087 = vadd.f32 %v555, %v1086
        %1088 = vmatmul.f32.gmra.mxu0 %v730
        %v1089 = vpop.f32.mrf.mxu0
        %v1090 = vadd.f32 %v555, %v1089
        %1091 = vmatmul.f32.gmra.mxu0 %v733
        %v1092 = vpop.f32.mrf.mxu0
        %v1093 = vadd.f32 %v555, %v1092
        %1094 = vmatmul.f32.gmra.mxu0 %v736
        %v1095 = vpop.f32.mrf.mxu0
        %v1096 = vadd.f32 %v555, %v1095
        %1097 = vmatmul.f32.gmra.mxu0 %v739
        %v1098 = vpop.f32.mrf.mxu0
        %v1099 = vadd.f32 %v555, %v1098
        %1100 = vmatmul.f32.gmra.mxu0 %v742
        %v1101 = vpop.f32.mrf.mxu0
        %v1102 = vadd.f32 %v555, %v1101
        %1103 = vmatmul.f32.gmra.mxu0 %v745
        %v1104 = vpop.f32.mrf.mxu0
        %v1105 = vadd.f32 %v555, %v1104
        %1106 = vmatmul.f32.gmra.mxu0 %v748
        %v1107 = vpop.f32.mrf.mxu0
        %v1108 = vadd.f32 %v555, %v1107
        %1109 = vmatmul.f32.gmra.mxu0 %v751
        %v1110 = vpop.f32.mrf.mxu0
        %v1111 = vadd.f32 %v555, %v1110
        %1112 = vmatmul.f32.gmra.mxu0 %v754
        %v1113 = vpop.f32.mrf.mxu0
        %v1114 = vadd.f32 %v555, %v1113
        %1115 = vmatmul.f32.gmra.mxu0 %v757
        %v1116 = vpop.f32.mrf.mxu0
        %v1117 = vadd.f32 %v555, %v1116
        %1118 = vmatmul.f32.gmra.mxu0 %v760
        %v1119 = vpop.f32.mrf.mxu0
        %v1120 = vadd.f32 %v555, %v1119
        %1121 = vmatmul.f32.gmra.mxu0 %v763
        %v1122 = vpop.f32.mrf.mxu0
        %v1123 = vadd.f32 %v555, %v1122
        %1124 = vmatmul.f32.gmra.mxu0 %v766
        %v1125 = vpop.f32.mrf.mxu0
        %v1126 = vadd.f32 %v555, %v1125
        %1127 = vmatmul.f32.gmra.mxu0 %v769
        %v1128 = vpop.f32.mrf.mxu0
        %v1129 = vadd.f32 %v555, %v1128
        %1130 = vmatmul.f32.gmra.mxu0 %v772
        %v1131 = vpop.f32.mrf.mxu0
        %v1132 = vadd.f32 %v555, %v1131
        %1133 = vmatmul.f32.gmra.mxu0 %v775
        %v1134 = vpop.f32.mrf.mxu0
        %v1135 = vadd.f32 %v555, %v1134
        %1136 = vmatmul.f32.gmra.mxu0 %v778
        %v1137 = vpop.f32.mrf.mxu0
        %v1138 = vadd.f32 %v555, %v1137
        %1139 = vmatmul.f32.gmra.mxu0 %v781
        %v1140 = vpop.f32.mrf.mxu0
        %v1141 = vadd.f32 %v555, %v1140
        %1142 = vmatmul.f32.gmra.mxu0 %v784
        %v1143 = vpop.f32.mrf.mxu0
        %v1144 = vadd.f32 %v555, %v1143
        %1145 = vmatmul.f32.gmra.mxu0 %v787
        %v1146 = vpop.f32.mrf.mxu0
        %v1147 = vadd.f32 %v555, %v1146
        %1148 = vmatmul.f32.gmra.mxu0 %v790
        %v1149 = vpop.f32.mrf.mxu0
        %v1150 = vadd.f32 %v555, %v1149
        %1151 = vmatmul.f32.gmra.mxu0 %v793
        %v1152 = vpop.f32.mrf.mxu0
        %v1153 = vadd.f32 %v555, %v1152
        %1154 = vmatmul.f32.gmra.mxu0 %v796
        %v1155 = vpop.f32.mrf.mxu0
        %v1156 = vadd.f32 %v555, %v1155
        %1157 = vmatmul.f32.gmra.mxu0 %v799
        %v1158 = vpop.f32.mrf.mxu0
        %v1159 = vadd.f32 %v555, %v1158
        %1160 = vmatmul.f32.gmra.mxu0 %v802
        %v1161 = vpop.f32.mrf.mxu0
        %v1162 = vadd.f32 %v555, %v1161
        %1163 = vmatmul.f32.gmra.mxu0 %v805
        %v1164 = vpop.f32.mrf.mxu0
        %v1165 = vadd.f32 %v555, %v1164
        %1166 = vmatmul.f32.gmra.mxu0 %v808
        %v1167 = vpop.f32.mrf.mxu0
        %v1168 = vadd.f32 %v555, %v1167
        %1169 = vmatmul.f32.gmra.mxu0 %v811
        %v1170 = vpop.f32.mrf.mxu0
        %v1171 = vadd.f32 %v555, %v1170
        %1172 = vmatmul.f32.gmra.mxu0 %v814
        %v1173 = vpop.f32.mrf.mxu0
        %v1174 = vadd.f32 %v555, %v1173
        %1175 = vmatmul.f32.gmra.mxu0 %v817
        %v1176 = vpop.f32.mrf.mxu0
        %v1177 = vadd.f32 %v555, %v1176
        %1178 = vmatmul.f32.gmra.mxu0 %v820
        %v1179 = vpop.f32.mrf.mxu0
        %v1180 = vadd.f32 %v555, %v1179
        %1181 = vmatmul.f32.gmra.mxu0 %v823
        %v1182 = vpop.f32.mrf.mxu0
        %v1183 = vadd.f32 %v555, %v1182
        %1184 = vmatmul.f32.gmra.mxu0 %v826
        %v1185 = vpop.f32.mrf.mxu0
        %v1186 = vadd.f32 %v555, %v1185
        %1187 = vmatmul.f32.gmra.mxu0 %v829
        %v1188 = vpop.f32.mrf.mxu0
        %v1189 = vadd.f32 %v555, %v1188
        %1190 = vmatmul.f32.gmra.mxu0 %v832
        %v1191 = vpop.f32.mrf.mxu0
        %v1192 = vadd.f32 %v555, %v1191
        %1193 = vmatmul.f32.gmra.mxu0 %v835
        %v1194 = vpop.f32.mrf.mxu0
        %v1195 = vadd.f32 %v555, %v1194
        %1196 = vmatmul.f32.gmra.mxu0 %v838
        %v1197 = vpop.f32.mrf.mxu0
        %v1198 = vadd.f32 %v555, %v1197
        %1199 = vmatmul.f32.gmra.mxu0 %v841
        %v1200 = vpop.f32.mrf.mxu0
        %v1201 = vadd.f32 %v555, %v1200
        %1202 = vmatmul.f32.gmra.mxu0 %v844
        %v1203 = vpop.f32.mrf.mxu0
        %v1204 = vadd.f32 %v555, %v1203
        %1205 = vmatmul.f32.gmra.mxu0 %v847
        %v1206 = vpop.f32.mrf.mxu0
        %v1207 = vadd.f32 %v555, %v1206
        %1208 = vmatmul.f32.gmra.mxu0 %v850
        %v1209 = vpop.f32.mrf.mxu0
        %v1210 = vadd.f32 %v555, %v1209
        %1211 = vmatmul.f32.gmra.mxu0 %v853
        %v1212 = vpop.f32.mrf.mxu0
        %v1213 = vadd.f32 %v555, %v1212
        %1214 = vmatmul.f32.gmra.mxu0 %v856
        %v1215 = vpop.f32.mrf.mxu0
        %v1216 = vadd.f32 %v555, %v1215
        %1217 = vmatmul.f32.gmra.mxu0 %v859
        %v1218 = vpop.f32.mrf.mxu0
        %v1219 = vadd.f32 %v555, %v1218
        %1220 = vmatmul.f32.gmra.mxu0 %v862
        %v1221 = vpop.f32.mrf.mxu0
        %v1222 = vadd.f32 %v555, %v1221
        %1223 = vmatmul.f32.gmra.mxu0 %v865
        %v1224 = vpop.f32.mrf.mxu0
        %v1225 = vadd.f32 %v555, %v1224
        %1226 = vmatmul.f32.gmra.mxu0 %v868
        %v1227 = vpop.f32.mrf.mxu0
        %v1228 = vadd.f32 %v555, %v1227
        %1229 = vmatmul.f32.gmra.mxu0 %v871
        %v1230 = vpop.f32.mrf.mxu0
        %v1231 = vadd.f32 %v555, %v1230
        %1232 = vmatmul.f32.gmra.mxu0 %v874
        %v1233 = vpop.f32.mrf.mxu0
        %v1234 = vadd.f32 %v555, %v1233
        %1235 = vmatmul.f32.gmra.mxu0 %v877
        %v1236 = vpop.f32.mrf.mxu0
        %v1237 = vadd.f32 %v555, %v1236
        %1238 = vmatmul.f32.gmra.mxu0 %v880
        %v1239 = vpop.f32.mrf.mxu0
        %v1240 = vadd.f32 %v555, %v1239
        %1241 = vmatmul.f32.gmra.mxu0 %v883
        %v1242 = vpop.f32.mrf.mxu0
        %v1243 = vadd.f32 %v555, %v1242
        %1244 = vmatmul.f32.gmra.mxu0 %v886
        %v1245 = vpop.f32.mrf.mxu0
        %v1246 = vadd.f32 %v555, %v1245
        %1247 = vmatmul.f32.gmra.mxu0 %v889
        %v1248 = vpop.f32.mrf.mxu0
        %v1249 = vadd.f32 %v555, %v1248
        %1250 = vmatmul.f32.gmra.mxu0 %v892
        %v1251 = vpop.f32.mrf.mxu0
        %v1252 = vadd.f32 %v555, %v1251
        %1253 = vmatmul.f32.gmra.mxu0 %v895
        %v1254 = vpop.f32.mrf.mxu0
        %v1255 = vadd.f32 %v555, %v1254
        %1256 = vdwg.mxu0
        %v1257 = vmax.f32 %v919, 0.0
        %v1258 = vmax.f32 %v922, 0.0
        %v1259 = vmax.f32 %v925, 0.0
        %v1260 = vmax.f32 %v928, 0.0
        %v1261 = vmax.f32 %v931, 0.0
        %v1262 = vmax.f32 %v934, 0.0
        %v1263 = vmax.f32 %v937, 0.0
        %v1264 = vmax.f32 %v940, 0.0
        %v1265 = vmax.f32 %v943, 0.0
        %v1266 = vmax.f32 %v946, 0.0
        %v1267 = vmax.f32 %v949, 0.0
        %v1268 = vmax.f32 %v952, 0.0
        %v1269 = vmax.f32 %v955, 0.0
        %v1270 = vmax.f32 %v958, 0.0
        %v1271 = vmax.f32 %v961, 0.0
        %v1272 = vmax.f32 %v964, 0.0
        %v1273 = vmax.f32 %v967, 0.0
        %v1274 = vmax.f32 %v970, 0.0
        %v1275 = vmax.f32 %v973, 0.0
        %v1276 = vmax.f32 %v976, 0.0
        %v1277 = vmax.f32 %v979, 0.0
        %v1278 = vmax.f32 %v982, 0.0
        %v1279 = vmax.f32 %v985, 0.0
        %v1280 = vmax.f32 %v988, 0.0
        %v1281 = vmax.f32 %v991, 0.0
        %v1282 = vmax.f32 %v994, 0.0
        %v1283 = vmax.f32 %v997, 0.0
        %v1284 = vmax.f32 %v1000, 0.0
        %v1285 = vmax.f32 %v1003, 0.0
        %v1286 = vmax.f32 %v1006, 0.0
        %v1287 = vmax.f32 %v1009, 0.0
        %v1288 = vmax.f32 %v1012, 0.0
        %v1289 = vmax.f32 %v1015, 0.0
        %v1290 = vmax.f32 %v1018, 0.0
        %v1291 = vmax.f32 %v1021, 0.0
        %v1292 = vmax.f32 %v1024, 0.0
        %v1293 = vmax.f32 %v1027, 0.0
        %v1294 = vmax.f32 %v1030, 0.0
        %v1295 = vmax.f32 %v1033, 0.0
        %v1296 = vmax.f32 %v1036, 0.0
        %v1297 = vmax.f32 %v1039, 0.0
        %v1298 = vmax.f32 %v1042, 0.0
        %v1299 = vmax.f32 %v1045, 0.0
        %v1300 = vmax.f32 %v1048, 0.0
        %v1301 = vmax.f32 %v1051, 0.0
        %v1302 = vmax.f32 %v1054, 0.0
        %v1303 = vmax.f32 %v1057, 0.0
        %v1304 = vmax.f32 %v1060, 0.0
        %v1305 = vmax.f32 %v1063, 0.0
        %v1306 = vmax.f32 %v1066, 0.0
        %v1307 = vmax.f32 %v1069, 0.0
        %v1308 = vmax.f32 %v1072, 0.0
        %v1309 = vmax.f32 %v1075, 0.0
        %v1310 = vmax.f32 %v1078, 0.0
        %v1311 = vmax.f32 %v1081, 0.0
        %v1312 = vmax.f32 %v1084, 0.0
        %v1313 = vmax.f32 %v1087, 0.0
        %v1314 = vmax.f32 %v1090, 0.0
        %v1315 = vmax.f32 %v1093, 0.0
        %v1316 = vmax.f32 %v1096, 0.0
        %v1317 = vmax.f32 %v1099, 0.0
        %v1318 = vmax.f32 %v1102, 0.0
        %v1319 = vmax.f32 %v1105, 0.0
        %v1320 = vmax.f32 %v1108, 0.0
        %v1321 = vmax.f32 %v1111, 0.0
        %v1322 = vmax.f32 %v1114, 0.0
        %v1323 = vmax.f32 %v1117, 0.0
        %v1324 = vmax.f32 %v1120, 0.0
        %v1325 = vmax.f32 %v1123, 0.0
        %v1326 = vmax.f32 %v1126, 0.0
        %v1327 = vmax.f32 %v1129, 0.0
        %v1328 = vmax.f32 %v1132, 0.0
        %v1329 = vmax.f32 %v1135, 0.0
        %v1330 = vmax.f32 %v1138, 0.0
        %v1331 = vmax.f32 %v1141, 0.0
        %v1332 = vmax.f32 %v1144, 0.0
        %v1333 = vmax.f32 %v1147, 0.0
        %v1334 = vmax.f32 %v1150, 0.0
        %v1335 = vmax.f32 %v1153, 0.0
        %v1336 = vmax.f32 %v1156, 0.0
        %v1337 = vmax.f32 %v1159, 0.0
        %v1338 = vmax.f32 %v1162, 0.0
        %v1339 = vmax.f32 %v1165, 0.0
        %v1340 = vmax.f32 %v1168, 0.0
        %v1341 = vmax.f32 %v1171, 0.0
        %v1342 = vmax.f32 %v1174, 0.0
        %v1343 = vmax.f32 %v1177, 0.0
        %v1344 = vmax.f32 %v1180, 0.0
        %v1345 = vmax.f32 %v1183, 0.0
        %v1346 = vmax.f32 %v1186, 0.0
        %v1347 = vmax.f32 %v1189, 0.0
        %v1348 = vmax.f32 %v1192, 0.0
        %v1349 = vmax.f32 %v1195, 0.0
        %v1350 = vmax.f32 %v1198, 0.0
        %v1351 = vmax.f32 %v1201, 0.0
        %v1352 = vmax.f32 %v1204, 0.0
        %v1353 = vmax.f32 %v1207, 0.0
        %v1354 = vmax.f32 %v1210, 0.0
        %v1355 = vmax.f32 %v1213, 0.0
        %v1356 = vmax.f32 %v1216, 0.0
        %v1357 = vmax.f32 %v1219, 0.0
        %v1358 = vmax.f32 %v1222, 0.0
        %v1359 = vmax.f32 %v1225, 0.0
        %v1360 = vmax.f32 %v1228, 0.0
        %v1361 = vmax.f32 %v1231, 0.0
        %v1362 = vmax.f32 %v1234, 0.0
        %v1363 = vmax.f32 %v1237, 0.0
        %v1364 = vmax.f32 %v1240, 0.0
        %v1365 = vmax.f32 %v1243, 0.0
        %v1366 = vmax.f32 %v1246, 0.0
        %v1367 = vmax.f32 %v1249, 0.0
        %v1368 = vmax.f32 %v1252, 0.0
        %v1369 = vmax.f32 %v1255, 0.0
        %1370 = vst.msk [vmem:[#allocation2] sm:$0xff] %vm384, %v1257
        %1371 = vst.msk [vmem:[#allocation2 + $0x8] sm:$0xff] %vm384, %v1258
        %1372 = vst.msk [vmem:[#allocation2 + $0x10] sm:$0xff] %vm384, %v1259
        %1373 = vst.msk [vmem:[#allocation2 + $0x18] sm:$0xff] %vm384, %v1260
        %1374 = vst.msk [vmem:[#allocation2 + $0x20] sm:$0xff] %vm384, %v1261
        %1375 = vst.msk [vmem:[#allocation2 + $0x28] sm:$0xff] %vm384, %v1262
        %1376 = vst.msk [vmem:[#allocation2 + $0x30] sm:$0xff] %vm384, %v1263
        %1377 = vst.msk [vmem:[#allocation2 + $0x38] sm:$0xff] %vm384, %v1264
        %1378 = vst.msk [vmem:[#allocation2 + $0x40] sm:$0xff] %vm384, %v1265
        %1379 = vst.msk [vmem:[#allocation2 + $0x48] sm:$0xff] %vm384, %v1266
        %1380 = vst.msk [vmem:[#allocation2 + $0x50] sm:$0xff] %vm384, %v1267
        %1381 = vst.msk [vmem:[#allocation2 + $0x58] sm:$0xff] %vm384, %v1268
        %1382 = vst.msk [vmem:[#allocation2 + $0x60] sm:$0xff] %vm384, %v1269
        %1383 = vst.msk [vmem:[#allocation2 + $0x68] sm:$0xff] %vm384, %v1270
        %1384 = vst.msk [vmem:[#allocation2 + $0x70] sm:$0xff] %vm384, %v1271
        %1385 = vst.msk [vmem:[#allocation2 + $0x78] sm:$0xff] %vm384, %v1272
        %1386 = vst.msk [vmem:[#allocation2 + $0x80] sm:$0xff] %vm384, %v1273
        %1387 = vst.msk [vmem:[#allocation2 + $0x88] sm:$0xff] %vm384, %v1274
        %1388 = vst.msk [vmem:[#allocation2 + $0x90] sm:$0xff] %vm384, %v1275
        %1389 = vst.msk [vmem:[#allocation2 + $0x98] sm:$0xff] %vm384, %v1276
        %1390 = vst.msk [vmem:[#allocation2 + $0xa0] sm:$0xff] %vm384, %v1277
        %1391 = vst.msk [vmem:[#allocation2 + $0xa8] sm:$0xff] %vm384, %v1278
        %1392 = vst.msk [vmem:[#allocation2 + $0xb0] sm:$0xff] %vm384, %v1279
        %1393 = vst.msk [vmem:[#allocation2 + $0xb8] sm:$0xff] %vm384, %v1280
        %1394 = vst.msk [vmem:[#allocation2 + $0xc0] sm:$0xff] %vm384, %v1281
        %1395 = vst.msk [vmem:[#allocation2 + $0xc8] sm:$0xff] %vm384, %v1282
        %1396 = vst.msk [vmem:[#allocation2 + $0xd0] sm:$0xff] %vm384, %v1283
        %1397 = vst.msk [vmem:[#allocation2 + $0xd8] sm:$0xff] %vm384, %v1284
        %1398 = vst.msk [vmem:[#allocation2 + $0xe0] sm:$0xff] %vm384, %v1285
        %1399 = vst.msk [vmem:[#allocation2 + $0xe8] sm:$0xff] %vm384, %v1286
        %1400 = vst.msk [vmem:[#allocation2 + $0xf0] sm:$0xff] %vm384, %v1287
        %1401 = vst.msk [vmem:[#allocation2 + $0xf8] sm:$0xff] %vm384, %v1288
        %1402 = vst.msk [vmem:[#allocation2 + $0x100] sm:$0xff] %vm384, %v1289
        %1403 = vst.msk [vmem:[#allocation2 + $0x108] sm:$0xff] %vm384, %v1290
        %1404 = vst.msk [vmem:[#allocation2 + $0x110] sm:$0xff] %vm384, %v1291
        %1405 = vst.msk [vmem:[#allocation2 + $0x118] sm:$0xff] %vm384, %v1292
        %1406 = vst.msk [vmem:[#allocation2 + $0x120] sm:$0xff] %vm384, %v1293
        %1407 = vst.msk [vmem:[#allocation2 + $0x128] sm:$0xff] %vm384, %v1294
        %1408 = vst.msk [vmem:[#allocation2 + $0x130] sm:$0xff] %vm384, %v1295
        %1409 = vst.msk [vmem:[#allocation2 + $0x138] sm:$0xff] %vm384, %v1296
        %1410 = vst.msk [vmem:[#allocation2 + $0x140] sm:$0xff] %vm384, %v1297
        %1411 = vst.msk [vmem:[#allocation2 + $0x148] sm:$0xff] %vm384, %v1298
        %1412 = vst.msk [vmem:[#allocation2 + $0x150] sm:$0xff] %vm384, %v1299
        %1413 = vst.msk [vmem:[#allocation2 + $0x158] sm:$0xff] %vm384, %v1300
        %1414 = vst.msk [vmem:[#allocation2 + $0x160] sm:$0xff] %vm384, %v1301
        %1415 = vst.msk [vmem:[#allocation2 + $0x168] sm:$0xff] %vm384, %v1302
        %1416 = vst.msk [vmem:[#allocation2 + $0x170] sm:$0xff] %vm384, %v1303
        %1417 = vst.msk [vmem:[#allocation2 + $0x178] sm:$0xff] %vm384, %v1304
        %1418 = vst.msk [vmem:[#allocation2 + $0x180] sm:$0xff] %vm384, %v1305
        %1419 = vst.msk [vmem:[#allocation2 + $0x188] sm:$0xff] %vm384, %v1306
        %1420 = vst.msk [vmem:[#allocation2 + $0x190] sm:$0xff] %vm384, %v1307
        %1421 = vst.msk [vmem:[#allocation2 + $0x198] sm:$0xff] %vm384, %v1308
        %1422 = vst.msk [vmem:[#allocation2 + $0x1a0] sm:$0xff] %vm384, %v1309
        %1423 = vst.msk [vmem:[#allocation2 + $0x1a8] sm:$0xff] %vm384, %v1310
        %1424 = vst.msk [vmem:[#allocation2 + $0x1b0] sm:$0xff] %vm384, %v1311
        %1425 = vst.msk [vmem:[#allocation2 + $0x1b8] sm:$0xff] %vm384, %v1312
        %1426 = vst.msk [vmem:[#allocation2 + $0x1c0] sm:$0xff] %vm384, %v1313
        %1427 = vst.msk [vmem:[#allocation2 + $0x1c8] sm:$0xff] %vm384, %v1314
        %1428 = vst.msk [vmem:[#allocation2 + $0x1d0] sm:$0xff] %vm384, %v1315
        %1429 = vst.msk [vmem:[#allocation2 + $0x1d8] sm:$0xff] %vm384, %v1316
        %1430 = vst.msk [vmem:[#allocation2 + $0x1e0] sm:$0xff] %vm384, %v1317
        %1431 = vst.msk [vmem:[#allocation2 + $0x1e8] sm:$0xff] %vm384, %v1318
        %1432 = vst.msk [vmem:[#allocation2 + $0x1f0] sm:$0xff] %vm384, %v1319
        %1433 = vst.msk [vmem:[#allocation2 + $0x1f8] sm:$0xff] %vm384, %v1320
        %1434 = vst.msk [vmem:[#allocation2 + $0x200] sm:$0xff] %vm384, %v1321
        %1435 = vst.msk [vmem:[#allocation2 + $0x208] sm:$0xff] %vm384, %v1322
        %1436 = vst.msk [vmem:[#allocation2 + $0x210] sm:$0xff] %vm384, %v1323
        %1437 = vst.msk [vmem:[#allocation2 + $0x218] sm:$0xff] %vm384, %v1324
        %1438 = vst.msk [vmem:[#allocation2 + $0x220] sm:$0xff] %vm384, %v1325
        %1439 = vst.msk [vmem:[#allocation2 + $0x228] sm:$0xff] %vm384, %v1326
        %1440 = vst.msk [vmem:[#allocation2 + $0x230] sm:$0xff] %vm384, %v1327
        %1441 = vst.msk [vmem:[#allocation2 + $0x238] sm:$0xff] %vm384, %v1328
        %1442 = vst.msk [vmem:[#allocation2 + $0x240] sm:$0xff] %vm384, %v1329
        %1443 = vst.msk [vmem:[#allocation2 + $0x248] sm:$0xff] %vm384, %v1330
        %1444 = vst.msk [vmem:[#allocation2 + $0x250] sm:$0xff] %vm384, %v1331
        %1445 = vst.msk [vmem:[#allocation2 + $0x258] sm:$0xff] %vm384, %v1332
        %1446 = vst.msk [vmem:[#allocation2 + $0x260] sm:$0xff] %vm384, %v1333
        %1447 = vst.msk [vmem:[#allocation2 + $0x268] sm:$0xff] %vm384, %v1334
        %1448 = vst.msk [vmem:[#allocation2 + $0x270] sm:$0xff] %vm384, %v1335
        %1449 = vst.msk [vmem:[#allocation2 + $0x278] sm:$0xff] %vm384, %v1336
        %1450 = vst.msk [vmem:[#allocation2 + $0x280] sm:$0xff] %vm384, %v1337
        %1451 = vst.msk [vmem:[#allocation2 + $0x288] sm:$0xff] %vm384, %v1338
        %1452 = vst.msk [vmem:[#allocation2 + $0x290] sm:$0xff] %vm384, %v1339
        %1453 = vst.msk [vmem:[#allocation2 + $0x298] sm:$0xff] %vm384, %v1340
        %1454 = vst.msk [vmem:[#allocation2 + $0x2a0] sm:$0xff] %vm384, %v1341
        %1455 = vst.msk [vmem:[#allocation2 + $0x2a8] sm:$0xff] %vm384, %v1342
        %1456 = vst.msk [vmem:[#allocation2 + $0x2b0] sm:$0xff] %vm384, %v1343
        %1457 = vst.msk [vmem:[#allocation2 + $0x2b8] sm:$0xff] %vm384, %v1344
        %1458 = vst.msk [vmem:[#allocation2 + $0x2c0] sm:$0xff] %vm384, %v1345
        %1459 = vst.msk [vmem:[#allocation2 + $0x2c8] sm:$0xff] %vm384, %v1346
        %1460 = vst.msk [vmem:[#allocation2 + $0x2d0] sm:$0xff] %vm384, %v1347
        %1461 = vst.msk [vmem:[#allocation2 + $0x2d8] sm:$0xff] %vm384, %v1348
        %1462 = vst.msk [vmem:[#allocation2 + $0x2e0] sm:$0xff] %vm384, %v1349
        %1463 = vst.msk [vmem:[#allocation2 + $0x2e8] sm:$0xff] %vm384, %v1350
        %1464 = vst.msk [vmem:[#allocation2 + $0x2f0] sm:$0xff] %vm384, %v1351
        %1465 = vst.msk [vmem:[#allocation2 + $0x2f8] sm:$0xff] %vm384, %v1352
        %1466 = vst.msk [vmem:[#allocation2 + $0x300] sm:$0xff] %vm384, %v1353
        %1467 = vst.msk [vmem:[#allocation2 + $0x308] sm:$0xff] %vm384, %v1354
        %1468 = vst.msk [vmem:[#allocation2 + $0x310] sm:$0xff] %vm384, %v1355
        %1469 = vst.msk [vmem:[#allocation2 + $0x318] sm:$0xff] %vm384, %v1356
        %1470 = vst.msk [vmem:[#allocation2 + $0x320] sm:$0xff] %vm384, %v1357
        %1471 = vst.msk [vmem:[#allocation2 + $0x328] sm:$0xff] %vm384, %v1358
        %1472 = vst.msk [vmem:[#allocation2 + $0x330] sm:$0xff] %vm384, %v1359
        %1473 = vst.msk [vmem:[#allocation2 + $0x338] sm:$0xff] %vm384, %v1360
        %1474 = vst.msk [vmem:[#allocation2 + $0x340] sm:$0xff] %vm384, %v1361
        %1475 = vst.msk [vmem:[#allocation2 + $0x348] sm:$0xff] %vm384, %v1362
        %1476 = vst.msk [vmem:[#allocation2 + $0x350] sm:$0xff] %vm384, %v1363
        %1477 = vst.msk [vmem:[#allocation2 + $0x358] sm:$0xff] %vm384, %v1364
        %1478 = vst.msk [vmem:[#allocation2 + $0x360] sm:$0xff] %vm384, %v1365
        %1479 = vst.msk [vmem:[#allocation2 + $0x368] sm:$0xff] %vm384, %v1366
        %1480 = vst.msk [vmem:[#allocation2 + $0x370] sm:$0xff] %vm384, %v1367
        %1481 = vst.msk [vmem:[#allocation2 + $0x378] sm:$0xff] %vm384, %v1368
        %vm1482 = vcmask 125952
        %1483 = vst.msk [vmem:[#allocation2 + $0x380] sm:$0xf] %vm1482, %v1369
        %s1484 = scalar_lea.vmem [#allocation2], 31
        %v1485 = vld [vmem:[%s1484] ss:$2 sm:$0xff]
        %s1486 = scalar_lea.vmem [#allocation2], 47
        %v1487 = vld [vmem:[%s1486] ss:$2 sm:$0x3f]
        %s1488 = scalar_lea.vmem [#allocation2], 32
        %v1489 = vld [vmem:[%s1488] ss:$2 sm:$0xff]
        %s1490 = scalar_lea.vmem [#allocation2], 48
        %v1491 = vld [vmem:[%s1490] ss:$2 sm:$0x3f]
        %s1492 = scalar_lea.vmem [#allocation2], 61
        %v1493 = vld [vmem:[%s1492] ss:$2 sm:$0xff]
        %s1494 = scalar_lea.vmem [#allocation2], 77
        %v1495 = vld [vmem:[%s1494] ss:$2 sm:$0x3f]
        %s1496 = scalar_lea.vmem [#allocation2], 62
        %v1497 = vld [vmem:[%s1496] ss:$2 sm:$0xff]
        %s1498 = scalar_lea.vmem [#allocation2], 78
        %v1499 = vld [vmem:[%s1498] ss:$2 sm:$0x3f]
        %v1500 = vmax.f32 %v1485, %v1489
        %v1501 = vmax.f32 %v1487, %v1491
        %v1502 = vmax.f32 %v1493, %v1497
        %v1503 = vmax.f32 %v1495, %v1499
        %v1504 = vmax.f32 %v1500, %v1502
        %v1505 = vmax.f32 %v1501, %v1503
        %1506 = vst.msk [vmem:[#allocation3 + $0x22] sm:$0xff] %vm384, %v1504
        %vm1507 = vcmask 128000
        %1508 = vst.msk [vmem:[#allocation3 + $0x2a] sm:$0x3f] %vm1507, %v1505
        %s1509 = scalar_lea.vmem [#allocation2], 91
        %v1510 = vld [vmem:[%s1509] ss:$2 sm:$0xff]
        %s1511 = scalar_lea.vmem [#allocation2], 107
        %v1512 = vld [vmem:[%s1511] ss:$2 sm:$0x3f]
        %s1513 = scalar_lea.vmem [#allocation2], 92
        %v1514 = vld [vmem:[%s1513] ss:$2 sm:$0xff]
        %s1515 = scalar_lea.vmem [#allocation2], 108
        %v1516 = vld [vmem:[%s1515] ss:$2 sm:$0x3f]
        %s1517 = scalar_lea.vmem [#allocation2], 121
        %v1518 = vld [vmem:[%s1517] ss:$2 sm:$0xff]
        %s1519 = scalar_lea.vmem [#allocation2], 137
        %v1520 = vld [vmem:[%s1519] ss:$2 sm:$0x3f]
        %s1521 = scalar_lea.vmem [#allocation2], 122
        %v1522 = vld [vmem:[%s1521] ss:$2 sm:$0xff]
        %s1523 = scalar_lea.vmem [#allocation2], 138
        %v1524 = vld [vmem:[%s1523] ss:$2 sm:$0x3f]
        %v1525 = vmax.f32 %v1510, %v1514
        %v1526 = vmax.f32 %v1512, %v1516
        %v1527 = vmax.f32 %v1518, %v1522
        %v1528 = vmax.f32 %v1520, %v1524
        %v1529 = vmax.f32 %v1525, %v1527
        %v1530 = vmax.f32 %v1526, %v1528
        %1531 = vst.msk [vmem:[#allocation3 + $0x32] sm:$0xff] %vm384, %v1529
        %1532 = vst.msk [vmem:[#allocation3 + $0x3a] sm:$0x3f] %vm1507, %v1530
        %s1533 = scalar_lea.vmem [#allocation2], 151
        %v1534 = vld [vmem:[%s1533] ss:$2 sm:$0xff]
        %s1535 = scalar_lea.vmem [#allocation2], 167
        %v1536 = vld [vmem:[%s1535] ss:$2 sm:$0x3f]
        %s1537 = scalar_lea.vmem [#allocation2], 152
        %v1538 = vld [vmem:[%s1537] ss:$2 sm:$0xff]
        %s1539 = scalar_lea.vmem [#allocation2], 168
        %v1540 = vld [vmem:[%s1539] ss:$2 sm:$0x3f]
        %s1541 = scalar_lea.vmem [#allocation2], 181
        %v1542 = vld [vmem:[%s1541] ss:$2 sm:$0xff]
        %s1543 = scalar_lea.vmem [#allocation2], 197
        %v1544 = vld [vmem:[%s1543] ss:$2 sm:$0x3f]
        %s1545 = scalar_lea.vmem [#allocation2], 182
        %v1546 = vld [vmem:[%s1545] ss:$2 sm:$0xff]
        %s1547 = scalar_lea.vmem [#allocation2], 198
        %v1548 = vld [vmem:[%s1547] ss:$2 sm:$0x3f]
        %v1549 = vmax.f32 %v1534, %v1538
        %v1550 = vmax.f32 %v1536, %v1540
        %v1551 = vmax.f32 %v1542, %v1546
        %v1552 = vmax.f32 %v1544, %v1548
        %v1553 = vmax.f32 %v1549, %v1551
        %v1554 = vmax.f32 %v1550, %v1552
        %1555 = vst.msk [vmem:[#allocation3 + $0x42] sm:$0xff] %vm384, %v1553
        %1556 = vst.msk [vmem:[#allocation3 + $0x4a] sm:$0x3f] %vm1507, %v1554
        %s1557 = scalar_lea.vmem [#allocation2], 211
        %v1558 = vld [vmem:[%s1557] ss:$2 sm:$0xff]
        %s1559 = scalar_lea.vmem [#allocation2], 227
        %v1560 = vld [vmem:[%s1559] ss:$2 sm:$0x3f]
        %s1561 = scalar_lea.vmem [#allocation2], 212
        %v1562 = vld [vmem:[%s1561] ss:$2 sm:$0xff]
        %s1563 = scalar_lea.vmem [#allocation2], 228
        %v1564 = vld [vmem:[%s1563] ss:$2 sm:$0x3f]
        %s1565 = scalar_lea.vmem [#allocation2], 241
        %v1566 = vld [vmem:[%s1565] ss:$2 sm:$0xff]
        %s1567 = scalar_lea.vmem [#allocation2], 257
        %v1568 = vld [vmem:[%s1567] ss:$2 sm:$0x3f]
        %s1569 = scalar_lea.vmem [#allocation2], 242
        %v1570 = vld [vmem:[%s1569] ss:$2 sm:$0xff]
        %s1571 = scalar_lea.vmem [#allocation2], 258
        %v1572 = vld [vmem:[%s1571] ss:$2 sm:$0x3f]
        %v1573 = vmax.f32 %v1558, %v1562
        %v1574 = vmax.f32 %v1560, %v1564
        %v1575 = vmax.f32 %v1566, %v1570
        %v1576 = vmax.f32 %v1568, %v1572
        %v1577 = vmax.f32 %v1573, %v1575
        %v1578 = vmax.f32 %v1574, %v1576
        %1579 = vst.msk [vmem:[#allocation3 + $0x52] sm:$0xff] %vm384, %v1577
        %1580 = vst.msk [vmem:[#allocation3 + $0x5a] sm:$0x3f] %vm1507, %v1578
        %s1581 = scalar_lea.vmem [#allocation2], 271
        %v1582 = vld [vmem:[%s1581] ss:$2 sm:$0xff]
        %s1583 = scalar_lea.vmem [#allocation2], 287
        %v1584 = vld [vmem:[%s1583] ss:$2 sm:$0x3f]
        %s1585 = scalar_lea.vmem [#allocation2], 272
        %v1586 = vld [vmem:[%s1585] ss:$2 sm:$0xff]
        %s1587 = scalar_lea.vmem [#allocation2], 288
        %v1588 = vld [vmem:[%s1587] ss:$2 sm:$0x3f]
        %s1589 = scalar_lea.vmem [#allocation2], 301
        %v1590 = vld [vmem:[%s1589] ss:$2 sm:$0xff]
        %s1591 = scalar_lea.vmem [#allocation2], 317
        %v1592 = vld [vmem:[%s1591] ss:$2 sm:$0x3f]
        %s1593 = scalar_lea.vmem [#allocation2], 302
        %v1594 = vld [vmem:[%s1593] ss:$2 sm:$0xff]
        %s1595 = scalar_lea.vmem [#allocation2], 318
        %v1596 = vld [vmem:[%s1595] ss:$2 sm:$0x3f]
        %v1597 = vmax.f32 %v1582, %v1586
        %v1598 = vmax.f32 %v1584, %v1588
        %v1599 = vmax.f32 %v1590, %v1594
        %v1600 = vmax.f32 %v1592, %v1596
        %v1601 = vmax.f32 %v1597, %v1599
        %v1602 = vmax.f32 %v1598, %v1600
        %1603 = vst.msk [vmem:[#allocation3 + $0x62] sm:$0xff] %vm384, %v1601
        %1604 = vst.msk [vmem:[#allocation3 + $0x6a] sm:$0x3f] %vm1507, %v1602
        %s1605 = scalar_lea.vmem [#allocation2], 331
        %v1606 = vld [vmem:[%s1605] ss:$2 sm:$0xff]
        %s1607 = scalar_lea.vmem [#allocation2], 347
        %v1608 = vld [vmem:[%s1607] ss:$2 sm:$0x3f]
        %s1609 = scalar_lea.vmem [#allocation2], 332
        %v1610 = vld [vmem:[%s1609] ss:$2 sm:$0xff]
        %s1611 = scalar_lea.vmem [#allocation2], 348
        %v1612 = vld [vmem:[%s1611] ss:$2 sm:$0x3f]
        %s1613 = scalar_lea.vmem [#allocation2], 361
        %v1614 = vld [vmem:[%s1613] ss:$2 sm:$0xff]
        %s1615 = scalar_lea.vmem [#allocation2], 377
        %v1616 = vld [vmem:[%s1615] ss:$2 sm:$0x3f]
        %s1617 = scalar_lea.vmem [#allocation2], 362
        %v1618 = vld [vmem:[%s1617] ss:$2 sm:$0xff]
        %s1619 = scalar_lea.vmem [#allocation2], 378
        %v1620 = vld [vmem:[%s1619] ss:$2 sm:$0x3f]
        %v1621 = vmax.f32 %v1606, %v1610
        %v1622 = vmax.f32 %v1608, %v1612
        %v1623 = vmax.f32 %v1614, %v1618
        %v1624 = vmax.f32 %v1616, %v1620
        %v1625 = vmax.f32 %v1621, %v1623
        %v1626 = vmax.f32 %v1622, %v1624
        %1627 = vst.msk [vmem:[#allocation3 + $0x72] sm:$0xff] %vm384, %v1625
        %1628 = vst.msk [vmem:[#allocation3 + $0x7a] sm:$0x3f] %vm1507, %v1626
        %s1629 = scalar_lea.vmem [#allocation2], 391
        %v1630 = vld [vmem:[%s1629] ss:$2 sm:$0xff]
        %s1631 = scalar_lea.vmem [#allocation2], 407
        %v1632 = vld [vmem:[%s1631] ss:$2 sm:$0x3f]
        %s1633 = scalar_lea.vmem [#allocation2], 392
        %v1634 = vld [vmem:[%s1633] ss:$2 sm:$0xff]
        %s1635 = scalar_lea.vmem [#allocation2], 408
        %v1636 = vld [vmem:[%s1635] ss:$2 sm:$0x3f]
        %s1637 = scalar_lea.vmem [#allocation2], 421
        %v1638 = vld [vmem:[%s1637] ss:$2 sm:$0xff]
        %s1639 = scalar_lea.vmem [#allocation2], 437
        %v1640 = vld [vmem:[%s1639] ss:$2 sm:$0x3f]
        %s1641 = scalar_lea.vmem [#allocation2], 422
        %v1642 = vld [vmem:[%s1641] ss:$2 sm:$0xff]
        %s1643 = scalar_lea.vmem [#allocation2], 438
        %v1644 = vld [vmem:[%s1643] ss:$2 sm:$0x3f]
        %v1645 = vmax.f32 %v1630, %v1634
        %v1646 = vmax.f32 %v1632, %v1636
        %v1647 = vmax.f32 %v1638, %v1642
        %v1648 = vmax.f32 %v1640, %v1644
        %v1649 = vmax.f32 %v1645, %v1647
        %v1650 = vmax.f32 %v1646, %v1648
        %1651 = vst.msk [vmem:[#allocation3 + $0x82] sm:$0xff] %vm384, %v1649
        %1652 = vst.msk [vmem:[#allocation3 + $0x8a] sm:$0x3f] %vm1507, %v1650
        %s1653 = scalar_lea.vmem [#allocation2], 451
        %v1654 = vld [vmem:[%s1653] ss:$2 sm:$0xff]
        %s1655 = scalar_lea.vmem [#allocation2], 467
        %v1656 = vld [vmem:[%s1655] ss:$2 sm:$0x3f]
        %s1657 = scalar_lea.vmem [#allocation2], 452
        %v1658 = vld [vmem:[%s1657] ss:$2 sm:$0xff]
        %s1659 = scalar_lea.vmem [#allocation2], 468
        %v1660 = vld [vmem:[%s1659] ss:$2 sm:$0x3f]
        %s1661 = scalar_lea.vmem [#allocation2], 481
        %v1662 = vld [vmem:[%s1661] ss:$2 sm:$0xff]
        %s1663 = scalar_lea.vmem [#allocation2], 497
        %v1664 = vld [vmem:[%s1663] ss:$2 sm:$0x3f]
        %s1665 = scalar_lea.vmem [#allocation2], 482
        %v1666 = vld [vmem:[%s1665] ss:$2 sm:$0xff]
        %s1667 = scalar_lea.vmem [#allocation2], 498
        %v1668 = vld [vmem:[%s1667] ss:$2 sm:$0x3f]
        %v1669 = vmax.f32 %v1654, %v1658
        %v1670 = vmax.f32 %v1656, %v1660
        %v1671 = vmax.f32 %v1662, %v1666
        %v1672 = vmax.f32 %v1664, %v1668
        %v1673 = vmax.f32 %v1669, %v1671
        %v1674 = vmax.f32 %v1670, %v1672
        %1675 = vst.msk [vmem:[#allocation3 + $0x92] sm:$0xff] %vm384, %v1673
        %1676 = vst.msk [vmem:[#allocation3 + $0x9a] sm:$0x3f] %vm1507, %v1674
        %s1677 = scalar_lea.vmem [#allocation2], 511
        %v1678 = vld [vmem:[%s1677] ss:$2 sm:$0xff]
        %s1679 = scalar_lea.vmem [#allocation2], 527
        %v1680 = vld [vmem:[%s1679] ss:$2 sm:$0x3f]
        %s1681 = scalar_lea.vmem [#allocation2], 512
        %v1682 = vld [vmem:[%s1681] ss:$2 sm:$0xff]
        %s1683 = scalar_lea.vmem [#allocation2], 528
        %v1684 = vld [vmem:[%s1683] ss:$2 sm:$0x3f]
        %s1685 = scalar_lea.vmem [#allocation2], 541
        %v1686 = vld [vmem:[%s1685] ss:$2 sm:$0xff]
        %s1687 = scalar_lea.vmem [#allocation2], 557
        %v1688 = vld [vmem:[%s1687] ss:$2 sm:$0x3f]
        %s1689 = scalar_lea.vmem [#allocation2], 542
        %v1690 = vld [vmem:[%s1689] ss:$2 sm:$0xff]
        %s1691 = scalar_lea.vmem [#allocation2], 558
        %v1692 = vld [vmem:[%s1691] ss:$2 sm:$0x3f]
        %v1693 = vmax.f32 %v1678, %v1682
        %v1694 = vmax.f32 %v1680, %v1684
        %v1695 = vmax.f32 %v1686, %v1690
        %v1696 = vmax.f32 %v1688, %v1692
        %v1697 = vmax.f32 %v1693, %v1695
        %v1698 = vmax.f32 %v1694, %v1696
        %1699 = vst.msk [vmem:[#allocation3 + $0xa2] sm:$0xff] %vm384, %v1697
        %1700 = vst.msk [vmem:[#allocation3 + $0xaa] sm:$0x3f] %vm1507, %v1698
        %s1701 = scalar_lea.vmem [#allocation2], 571
        %v1702 = vld [vmem:[%s1701] ss:$2 sm:$0xff]
        %s1703 = scalar_lea.vmem [#allocation2], 587
        %v1704 = vld [vmem:[%s1703] ss:$2 sm:$0x3f]
        %s1705 = scalar_lea.vmem [#allocation2], 572
        %v1706 = vld [vmem:[%s1705] ss:$2 sm:$0xff]
        %s1707 = scalar_lea.vmem [#allocation2], 588
        %v1708 = vld [vmem:[%s1707] ss:$2 sm:$0x3f]
        %s1709 = scalar_lea.vmem [#allocation2], 601
        %v1710 = vld [vmem:[%s1709] ss:$2 sm:$0xff]
        %s1711 = scalar_lea.vmem [#allocation2], 617
        %v1712 = vld [vmem:[%s1711] ss:$2 sm:$0x3f]
        %s1713 = scalar_lea.vmem [#allocation2], 602
        %v1714 = vld [vmem:[%s1713] ss:$2 sm:$0xff]
        %s1715 = scalar_lea.vmem [#allocation2], 618
        %v1716 = vld [vmem:[%s1715] ss:$2 sm:$0x3f]
        %v1717 = vmax.f32 %v1702, %v1706
        %v1718 = vmax.f32 %v1704, %v1708
        %v1719 = vmax.f32 %v1710, %v1714
        %v1720 = vmax.f32 %v1712, %v1716
        %v1721 = vmax.f32 %v1717, %v1719
        %v1722 = vmax.f32 %v1718, %v1720
        %1723 = vst.msk [vmem:[#allocation3 + $0xb2] sm:$0xff] %vm384, %v1721
        %1724 = vst.msk [vmem:[#allocation3 + $0xba] sm:$0x3f] %vm1507, %v1722
        %s1725 = scalar_lea.vmem [#allocation2], 631
        %v1726 = vld [vmem:[%s1725] ss:$2 sm:$0xff]
        %s1727 = scalar_lea.vmem [#allocation2], 647
        %v1728 = vld [vmem:[%s1727] ss:$2 sm:$0x3f]
        %s1729 = scalar_lea.vmem [#allocation2], 632
        %v1730 = vld [vmem:[%s1729] ss:$2 sm:$0xff]
        %s1731 = scalar_lea.vmem [#allocation2], 648
        %v1732 = vld [vmem:[%s1731] ss:$2 sm:$0x3f]
        %s1733 = scalar_lea.vmem [#allocation2], 661
        %v1734 = vld [vmem:[%s1733] ss:$2 sm:$0xff]
        %s1735 = scalar_lea.vmem [#allocation2], 677
        %v1736 = vld [vmem:[%s1735] ss:$2 sm:$0x3f]
        %s1737 = scalar_lea.vmem [#allocation2], 662
        %v1738 = vld [vmem:[%s1737] ss:$2 sm:$0xff]
        %s1739 = scalar_lea.vmem [#allocation2], 678
        %v1740 = vld [vmem:[%s1739] ss:$2 sm:$0x3f]
        %v1741 = vmax.f32 %v1726, %v1730
        %v1742 = vmax.f32 %v1728, %v1732
        %v1743 = vmax.f32 %v1734, %v1738
        %v1744 = vmax.f32 %v1736, %v1740
        %v1745 = vmax.f32 %v1741, %v1743
        %v1746 = vmax.f32 %v1742, %v1744
        %1747 = vst.msk [vmem:[#allocation3 + $0xc2] sm:$0xff] %vm384, %v1745
        %1748 = vst.msk [vmem:[#allocation3 + $0xca] sm:$0x3f] %vm1507, %v1746
        %s1749 = scalar_lea.vmem [#allocation2], 691
        %v1750 = vld [vmem:[%s1749] ss:$2 sm:$0xff]
        %s1751 = scalar_lea.vmem [#allocation2], 707
        %v1752 = vld [vmem:[%s1751] ss:$2 sm:$0x3f]
        %s1753 = scalar_lea.vmem [#allocation2], 692
        %v1754 = vld [vmem:[%s1753] ss:$2 sm:$0xff]
        %s1755 = scalar_lea.vmem [#allocation2], 708
        %v1756 = vld [vmem:[%s1755] ss:$2 sm:$0x3f]
        %s1757 = scalar_lea.vmem [#allocation2], 721
        %v1758 = vld [vmem:[%s1757] ss:$2 sm:$0xff]
        %s1759 = scalar_lea.vmem [#allocation2], 737
        %v1760 = vld [vmem:[%s1759] ss:$2 sm:$0x3f]
        %s1761 = scalar_lea.vmem [#allocation2], 722
        %v1762 = vld [vmem:[%s1761] ss:$2 sm:$0xff]
        %s1763 = scalar_lea.vmem [#allocation2], 738
        %v1764 = vld [vmem:[%s1763] ss:$2 sm:$0x3f]
        %v1765 = vmax.f32 %v1750, %v1754
        %v1766 = vmax.f32 %v1752, %v1756
        %v1767 = vmax.f32 %v1758, %v1762
        %v1768 = vmax.f32 %v1760, %v1764
        %v1769 = vmax.f32 %v1765, %v1767
        %v1770 = vmax.f32 %v1766, %v1768
        %1771 = vst.msk [vmem:[#allocation3 + $0xd2] sm:$0xff] %vm384, %v1769
        %1772 = vst.msk [vmem:[#allocation3 + $0xda] sm:$0x3f] %vm1507, %v1770
        %s1773 = scalar_lea.vmem [#allocation2], 751
        %v1774 = vld [vmem:[%s1773] ss:$2 sm:$0xff]
        %s1775 = scalar_lea.vmem [#allocation2], 767
        %v1776 = vld [vmem:[%s1775] ss:$2 sm:$0x3f]
        %s1777 = scalar_lea.vmem [#allocation2], 752
        %v1778 = vld [vmem:[%s1777] ss:$2 sm:$0xff]
        %s1779 = scalar_lea.vmem [#allocation2], 768
        %v1780 = vld [vmem:[%s1779] ss:$2 sm:$0x3f]
        %s1781 = scalar_lea.vmem [#allocation2], 781
        %v1782 = vld [vmem:[%s1781] ss:$2 sm:$0xff]
        %s1783 = scalar_lea.vmem [#allocation2], 797
        %v1784 = vld [vmem:[%s1783] ss:$2 sm:$0x3f]
        %s1785 = scalar_lea.vmem [#allocation2], 782
        %v1786 = vld [vmem:[%s1785] ss:$2 sm:$0xff]
        %s1787 = scalar_lea.vmem [#allocation2], 798
        %v1788 = vld [vmem:[%s1787] ss:$2 sm:$0x3f]
        %v1789 = vmax.f32 %v1774, %v1778
        %v1790 = vmax.f32 %v1776, %v1780
        %v1791 = vmax.f32 %v1782, %v1786
        %v1792 = vmax.f32 %v1784, %v1788
        %v1793 = vmax.f32 %v1789, %v1791
        %v1794 = vmax.f32 %v1790, %v1792
        %1795 = vst.msk [vmem:[#allocation3 + $0xe2] sm:$0xff] %vm384, %v1793
        %1796 = vst.msk [vmem:[#allocation3 + $0xea] sm:$0x3f] %vm1507, %v1794
        %s1797 = scalar_lea.vmem [#allocation2], 811
        %v1798 = vld [vmem:[%s1797] ss:$2 sm:$0xff]
        %s1799 = scalar_lea.vmem [#allocation2], 827
        %v1800 = vld [vmem:[%s1799] ss:$2 sm:$0x3f]
        %s1801 = scalar_lea.vmem [#allocation2], 812
        %v1802 = vld [vmem:[%s1801] ss:$2 sm:$0xff]
        %s1803 = scalar_lea.vmem [#allocation2], 828
        %v1804 = vld [vmem:[%s1803] ss:$2 sm:$0x3f]
        %s1805 = scalar_lea.vmem [#allocation2], 841
        %v1806 = vld [vmem:[%s1805] ss:$2 sm:$0xff]
        %s1807 = scalar_lea.vmem [#allocation2], 857
        %v1808 = vld [vmem:[%s1807] ss:$2 sm:$0x3f]
        %s1809 = scalar_lea.vmem [#allocation2], 842
        %v1810 = vld [vmem:[%s1809] ss:$2 sm:$0xff]
        %s1811 = scalar_lea.vmem [#allocation2], 858
        %v1812 = vld [vmem:[%s1811] ss:$2 sm:$0x3f]
        %v1813 = vmax.f32 %v1798, %v1802
        %v1814 = vmax.f32 %v1800, %v1804
        %v1815 = vmax.f32 %v1806, %v1810
        %v1816 = vmax.f32 %v1808, %v1812
        %v1817 = vmax.f32 %v1813, %v1815
        %v1818 = vmax.f32 %v1814, %v1816
        %1819 = vst.msk [vmem:[#allocation3 + $0xf2] sm:$0xff] %vm384, %v1817
        %1820 = vst.msk [vmem:[#allocation3 + $0xfa] sm:$0x3f] %vm1507, %v1818
        %v1821 = vld [vmem:[#allocation3] sm:$0xff]
        %v1822 = vld [vmem:[#allocation3 + $0x8] sm:$0xff]
        %v1823 = vld [vmem:[#allocation3 + $0x10] sm:$0xff]
        %v1824 = vld [vmem:[#allocation3 + $0x18] sm:$0xff]
        %v1825 = vld [vmem:[#allocation3 + $0x20] sm:$0xff]
        %v1826 = vld [vmem:[#allocation3 + $0x28] sm:$0xff]
        %v1827 = vld [vmem:[#allocation3 + $0x30] sm:$0xff]
        %v1828 = vld [vmem:[#allocation3 + $0x38] sm:$0xff]
        %v1829 = vld [vmem:[#allocation3 + $0x40] sm:$0xff]
        %v1830 = vld [vmem:[#allocation3 + $0x48] sm:$0xff]
        %v1831 = vld [vmem:[#allocation3 + $0x50] sm:$0xff]
        %v1832 = vld [vmem:[#allocation3 + $0x58] sm:$0xff]
        %v1833 = vld [vmem:[#allocation3 + $0x60] sm:$0xff]
        %v1834 = vld [vmem:[#allocation3 + $0x68] sm:$0xff]
        %v1835 = vld [vmem:[#allocation3 + $0x70] sm:$0xff]
        %v1836 = vld [vmem:[#allocation3 + $0x78] sm:$0xff]
        %v1837 = vld [vmem:[#allocation3 + $0x80] sm:$0xff]
        %v1838 = vld [vmem:[#allocation3 + $0x88] sm:$0xff]
        %v1839 = vld [vmem:[#allocation3 + $0x90] sm:$0xff]
        %v1840 = vld [vmem:[#allocation3 + $0x98] sm:$0xff]
        %v1841 = vld [vmem:[#allocation3 + $0xa0] sm:$0xff]
        %v1842 = vld [vmem:[#allocation3 + $0xa8] sm:$0xff]
        %v1843 = vld [vmem:[#allocation3 + $0xb0] sm:$0xff]
        %v1844 = vld [vmem:[#allocation3 + $0xb8] sm:$0xff]
        %v1845 = vld [vmem:[#allocation3 + $0xc0] sm:$0xff]
        %v1846 = vld [vmem:[#allocation3 + $0xc8] sm:$0xff]
        %v1847 = vld [vmem:[#allocation3 + $0xd0] sm:$0xff]
        %v1848 = vld [vmem:[#allocation3 + $0xd8] sm:$0xff]
        %v1849 = vld [vmem:[#allocation3 + $0xe0] sm:$0xff]
        %v1850 = vld [vmem:[#allocation3 + $0xe8] sm:$0xff]
        %v1851 = vld [vmem:[#allocation3 + $0xf0] sm:$0xff]
        %v1852 = vld [vmem:[#allocation3 + $0xf8] sm:$0xff]
        %v1853 = vld [vmem:[%s3] sm:$0xff]
        %v1854 = vld [vmem:[%s3 + $0x8] sm:$0xff]
        %v1855 = vld [vmem:[#allocation3 + $0x1] sm:$0xff]
        %v1856 = vld [vmem:[#allocation3 + $0x9] sm:$0xff]
        %v1857 = vld [vmem:[#allocation3 + $0x11] sm:$0xff]
        %v1858 = vld [vmem:[#allocation3 + $0x19] sm:$0xff]
        %v1859 = vld [vmem:[#allocation3 + $0x21] sm:$0xff]
        %v1860 = vld [vmem:[#allocation3 + $0x29] sm:$0xff]
        %v1861 = vld [vmem:[#allocation3 + $0x31] sm:$0xff]
        %v1862 = vld [vmem:[#allocation3 + $0x39] sm:$0xff]
        %v1863 = vld [vmem:[#allocation3 + $0x41] sm:$0xff]
        %v1864 = vld [vmem:[#allocation3 + $0x49] sm:$0xff]
        %v1865 = vld [vmem:[#allocation3 + $0x51] sm:$0xff]
        %v1866 = vld [vmem:[#allocation3 + $0x59] sm:$0xff]
        %v1867 = vld [vmem:[#allocation3 + $0x61] sm:$0xff]
        %v1868 = vld [vmem:[#allocation3 + $0x69] sm:$0xff]
        %v1869 = vld [vmem:[#allocation3 + $0x71] sm:$0xff]
        %v1870 = vld [vmem:[#allocation3 + $0x79] sm:$0xff]
        %v1871 = vld [vmem:[#allocation3 + $0x81] sm:$0xff]
        %v1872 = vld [vmem:[#allocation3 + $0x89] sm:$0xff]
        %v1873 = vld [vmem:[#allocation3 + $0x91] sm:$0xff]
        %v1874 = vld [vmem:[#allocation3 + $0x99] sm:$0xff]
        %v1875 = vld [vmem:[#allocation3 + $0xa1] sm:$0xff]
        %v1876 = vld [vmem:[#allocation3 + $0xa9] sm:$0xff]
        %v1877 = vld [vmem:[#allocation3 + $0xb1] sm:$0xff]
        %v1878 = vld [vmem:[#allocation3 + $0xb9] sm:$0xff]
        %v1879 = vld [vmem:[#allocation3 + $0xc1] sm:$0xff]
        %v1880 = vld [vmem:[#allocation3 + $0xc9] sm:$0xff]
        %v1881 = vld [vmem:[#allocation3 + $0xd1] sm:$0xff]
        %v1882 = vld [vmem:[#allocation3 + $0xd9] sm:$0xff]
        %v1883 = vld [vmem:[#allocation3 + $0xe1] sm:$0xff]
        %v1884 = vld [vmem:[#allocation3 + $0xe9] sm:$0xff]
        %v1885 = vld [vmem:[#allocation3 + $0xf1] sm:$0xff]
        %v1886 = vld [vmem:[#allocation3 + $0xf9] sm:$0xff]
        %s1887 = scalar_lea.vmem %s3, 16
        %v1888 = vld [vmem:[%s1887] sm:$0xff]
        %v1889 = vld [vmem:[%s1887 + $0x8] sm:$0xff]
        %v1891 = vsel %vm384, %v1855, 0
        %v1894 = vsel %vm384, %v1856, 0
        %v1897 = vsel %vm384, %v1857, 0
        %v1900 = vsel %vm384, %v1858, 0
        %v1903 = vsel %vm384, %v1859, 0
        %v1906 = vsel %vm384, %v1860, 0
        %v1909 = vsel %vm384, %v1861, 0
        %v1912 = vsel %vm384, %v1862, 0
        %v1915 = vsel %vm384, %v1863, 0
        %v1918 = vsel %vm384, %v1864, 0
        %v1921 = vsel %vm384, %v1865, 0
        %v1924 = vsel %vm384, %v1866, 0
        %v1927 = vsel %vm384, %v1867, 0
        %v1930 = vsel %vm384, %v1868, 0
        %v1933 = vsel %vm384, %v1869, 0
        %v1936 = vsel %vm384, %v1870, 0
        %v1939 = vsel %vm384, %v1871, 0
        %v1942 = vsel %vm384, %v1872, 0
        %v1945 = vsel %vm384, %v1873, 0
        %v1948 = vsel %vm384, %v1874, 0
        %v1951 = vsel %vm384, %v1875, 0
        %v1954 = vsel %vm384, %v1876, 0
        %v1957 = vsel %vm384, %v1877, 0
        %v1960 = vsel %vm384, %v1878, 0
        %v1963 = vsel %vm384, %v1879, 0
        %v1966 = vsel %vm384, %v1880, 0
        %v1969 = vsel %vm384, %v1881, 0
        %v1972 = vsel %vm384, %v1882, 0
        %v1975 = vsel %vm384, %v1883, 0
        %v1978 = vsel %vm384, %v1884, 0
        %v1981 = vsel %vm384, %v1885, 0
        %v1984 = vsel %vm384, %v1886, 0
        %1986 = vmatpush.msra.mxu0 0.0
        %1987 = vmatpush.msra.mxu0 0.0
        %1988 = vmatpush.msra.mxu0 0.0
        %1989 = vmatpush.msra.mxu0 0.0
        %1990 = vmatpush.msra.mxu0 0.0
        %1991 = vmatpush.msra.mxu0 0.0
        %1992 = vmatpush.msra.mxu0 0.0
        %1993 = vmatpush.msra.mxu0 0.0
        %1994 = vmatpush.msra.mxu0 0.0
        %1995 = vmatpush.msra.mxu0 0.0
        %1996 = vmatpush.msra.mxu0 0.0
        %1997 = vmatpush.msra.mxu0 0.0
        %1998 = vmatpush.msra.mxu0 0.0
        %1999 = vmatpush.msra.mxu0 0.0
        %2000 = vmatpush.msra.mxu0 %v1889
        %2001 = vmatpush.msra.mxu0 %v1888
        %2002 = vmatmul.f32.gmra.mxu0 %v1891
        %v2003 = vpop.f32.mrf.mxu0
        %v2004 = vadd.f32 0.0, %v2003
        %2005 = vmatmul.f32.gmra.mxu0 %v1894
        %v2006 = vpop.f32.mrf.mxu0
        %v2007 = vadd.f32 0.0, %v2006
        %2008 = vmatmul.f32.gmra.mxu0 %v1897
        %v2009 = vpop.f32.mrf.mxu0
        %v2010 = vadd.f32 0.0, %v2009
        %2011 = vmatmul.f32.gmra.mxu0 %v1900
        %v2012 = vpop.f32.mrf.mxu0
        %v2013 = vadd.f32 0.0, %v2012
        %2014 = vmatmul.f32.gmra.mxu0 %v1903
        %v2015 = vpop.f32.mrf.mxu0
        %v2016 = vadd.f32 0.0, %v2015
        %2017 = vmatmul.f32.gmra.mxu0 %v1906
        %v2018 = vpop.f32.mrf.mxu0
        %v2019 = vadd.f32 0.0, %v2018
        %2020 = vmatmul.f32.gmra.mxu0 %v1909
        %v2021 = vpop.f32.mrf.mxu0
        %v2022 = vadd.f32 0.0, %v2021
        %2023 = vmatmul.f32.gmra.mxu0 %v1912
        %v2024 = vpop.f32.mrf.mxu0
        %v2025 = vadd.f32 0.0, %v2024
        %2026 = vmatmul.f32.gmra.mxu0 %v1915
        %v2027 = vpop.f32.mrf.mxu0
        %v2028 = vadd.f32 0.0, %v2027
        %2029 = vmatmul.f32.gmra.mxu0 %v1918
        %v2030 = vpop.f32.mrf.mxu0
        %v2031 = vadd.f32 0.0, %v2030
        %2032 = vmatmul.f32.gmra.mxu0 %v1921
        %v2033 = vpop.f32.mrf.mxu0
        %v2034 = vadd.f32 0.0, %v2033
        %2035 = vmatmul.f32.gmra.mxu0 %v1924
        %v2036 = vpop.f32.mrf.mxu0
        %v2037 = vadd.f32 0.0, %v2036
        %2038 = vmatmul.f32.gmra.mxu0 %v1927
        %v2039 = vpop.f32.mrf.mxu0
        %v2040 = vadd.f32 0.0, %v2039
        %2041 = vmatmul.f32.gmra.mxu0 %v1930
        %v2042 = vpop.f32.mrf.mxu0
        %v2043 = vadd.f32 0.0, %v2042
        %2044 = vmatmul.f32.gmra.mxu0 %v1933
        %v2045 = vpop.f32.mrf.mxu0
        %v2046 = vadd.f32 0.0, %v2045
        %2047 = vmatmul.f32.gmra.mxu0 %v1936
        %v2048 = vpop.f32.mrf.mxu0
        %v2049 = vadd.f32 0.0, %v2048
        %2050 = vmatmul.f32.gmra.mxu0 %v1939
        %v2051 = vpop.f32.mrf.mxu0
        %v2052 = vadd.f32 0.0, %v2051
        %2053 = vmatmul.f32.gmra.mxu0 %v1942
        %v2054 = vpop.f32.mrf.mxu0
        %v2055 = vadd.f32 0.0, %v2054
        %2056 = vmatmul.f32.gmra.mxu0 %v1945
        %v2057 = vpop.f32.mrf.mxu0
        %v2058 = vadd.f32 0.0, %v2057
        %2059 = vmatmul.f32.gmra.mxu0 %v1948
        %v2060 = vpop.f32.mrf.mxu0
        %v2061 = vadd.f32 0.0, %v2060
        %2062 = vmatmul.f32.gmra.mxu0 %v1951
        %v2063 = vpop.f32.mrf.mxu0
        %v2064 = vadd.f32 0.0, %v2063
        %2065 = vmatmul.f32.gmra.mxu0 %v1954
        %v2066 = vpop.f32.mrf.mxu0
        %v2067 = vadd.f32 0.0, %v2066
        %2068 = vmatmul.f32.gmra.mxu0 %v1957
        %v2069 = vpop.f32.mrf.mxu0
        %v2070 = vadd.f32 0.0, %v2069
        %2071 = vmatmul.f32.gmra.mxu0 %v1960
        %v2072 = vpop.f32.mrf.mxu0
        %v2073 = vadd.f32 0.0, %v2072
        %2074 = vmatmul.f32.gmra.mxu0 %v1963
        %v2075 = vpop.f32.mrf.mxu0
        %v2076 = vadd.f32 0.0, %v2075
        %2077 = vmatmul.f32.gmra.mxu0 %v1966
        %v2078 = vpop.f32.mrf.mxu0
        %v2079 = vadd.f32 0.0, %v2078
        %2080 = vmatmul.f32.gmra.mxu0 %v1969
        %v2081 = vpop.f32.mrf.mxu0
        %v2082 = vadd.f32 0.0, %v2081
        %2083 = vmatmul.f32.gmra.mxu0 %v1972
        %v2084 = vpop.f32.mrf.mxu0
        %v2085 = vadd.f32 0.0, %v2084
        %2086 = vmatmul.f32.gmra.mxu0 %v1975
        %v2087 = vpop.f32.mrf.mxu0
        %v2088 = vadd.f32 0.0, %v2087
        %2089 = vmatmul.f32.gmra.mxu0 %v1978
        %v2090 = vpop.f32.mrf.mxu0
        %v2091 = vadd.f32 0.0, %v2090
        %2092 = vmatmul.f32.gmra.mxu0 %v1981
        %v2093 = vpop.f32.mrf.mxu0
        %v2094 = vadd.f32 0.0, %v2093
        %2095 = vmatmul.f32.gmra.mxu0 %v1984
        %v2096 = vpop.f32.mrf.mxu0
        %v2097 = vadd.f32 0.0, %v2096
        %2098 = vdwg.mxu0
        %v2100 = vsel %vm384, %v1821, 0
        %v2103 = vsel %vm384, %v1822, 0
        %v2106 = vsel %vm384, %v1823, 0
        %v2109 = vsel %vm384, %v1824, 0
        %v2112 = vsel %vm384, %v1825, 0
        %v2115 = vsel %vm384, %v1826, 0
        %v2118 = vsel %vm384, %v1827, 0
        %v2121 = vsel %vm384, %v1828, 0
        %v2124 = vsel %vm384, %v1829, 0
        %v2127 = vsel %vm384, %v1830, 0
        %v2130 = vsel %vm384, %v1831, 0
        %v2133 = vsel %vm384, %v1832, 0
        %v2136 = vsel %vm384, %v1833, 0
        %v2139 = vsel %vm384, %v1834, 0
        %v2142 = vsel %vm384, %v1835, 0
        %v2145 = vsel %vm384, %v1836, 0
        %v2148 = vsel %vm384, %v1837, 0
        %v2151 = vsel %vm384, %v1838, 0
        %v2154 = vsel %vm384, %v1839, 0
        %v2157 = vsel %vm384, %v1840, 0
        %v2160 = vsel %vm384, %v1841, 0
        %v2163 = vsel %vm384, %v1842, 0
        %v2166 = vsel %vm384, %v1843, 0
        %v2169 = vsel %vm384, %v1844, 0
        %v2172 = vsel %vm384, %v1845, 0
        %v2175 = vsel %vm384, %v1846, 0
        %v2178 = vsel %vm384, %v1847, 0
        %v2181 = vsel %vm384, %v1848, 0
        %v2184 = vsel %vm384, %v1849, 0
        %v2187 = vsel %vm384, %v1850, 0
        %v2190 = vsel %vm384, %v1851, 0
        %v2193 = vsel %vm384, %v1852, 0
        %2195 = vmatpush.msra.mxu0 0.0
        %2196 = vmatpush.msra.mxu0 0.0
        %2197 = vmatpush.msra.mxu0 0.0
        %2198 = vmatpush.msra.mxu0 0.0
        %2199 = vmatpush.msra.mxu0 0.0
        %2200 = vmatpush.msra.mxu0 0.0
        %2201 = vmatpush.msra.mxu0 0.0
        %2202 = vmatpush.msra.mxu0 0.0
        %2203 = vmatpush.msra.mxu0 0.0
        %2204 = vmatpush.msra.mxu0 0.0
        %2205 = vmatpush.msra.mxu0 0.0
        %2206 = vmatpush.msra.mxu0 0.0
        %2207 = vmatpush.msra.mxu0 0.0
        %2208 = vmatpush.msra.mxu0 0.0
        %2209 = vmatpush.msra.mxu0 %v1854
        %2210 = vmatpush.msra.mxu0 %v1853
        %2211 = vmatmul.f32.gmra.mxu0 %v2100
        %v2212 = vpop.f32.mrf.mxu0
        %v2213 = vadd.f32 %v2004, %v2212
        %2214 = vmatmul.f32.gmra.mxu0 %v2103
        %v2215 = vpop.f32.mrf.mxu0
        %v2216 = vadd.f32 %v2007, %v2215
        %2217 = vmatmul.f32.gmra.mxu0 %v2106
        %v2218 = vpop.f32.mrf.mxu0
        %v2219 = vadd.f32 %v2010, %v2218
        %2220 = vmatmul.f32.gmra.mxu0 %v2109
        %v2221 = vpop.f32.mrf.mxu0
        %v2222 = vadd.f32 %v2013, %v2221
        %2223 = vmatmul.f32.gmra.mxu0 %v2112
        %v2224 = vpop.f32.mrf.mxu0
        %v2225 = vadd.f32 %v2016, %v2224
        %2226 = vmatmul.f32.gmra.mxu0 %v2115
        %v2227 = vpop.f32.mrf.mxu0
        %v2228 = vadd.f32 %v2019, %v2227
        %2229 = vmatmul.f32.gmra.mxu0 %v2118
        %v2230 = vpop.f32.mrf.mxu0
        %v2231 = vadd.f32 %v2022, %v2230
        %2232 = vmatmul.f32.gmra.mxu0 %v2121
        %v2233 = vpop.f32.mrf.mxu0
        %v2234 = vadd.f32 %v2025, %v2233
        %2235 = vmatmul.f32.gmra.mxu0 %v2124
        %v2236 = vpop.f32.mrf.mxu0
        %v2237 = vadd.f32 %v2028, %v2236
        %2238 = vmatmul.f32.gmra.mxu0 %v2127
        %v2239 = vpop.f32.mrf.mxu0
        %v2240 = vadd.f32 %v2031, %v2239
        %2241 = vmatmul.f32.gmra.mxu0 %v2130
        %v2242 = vpop.f32.mrf.mxu0
        %v2243 = vadd.f32 %v2034, %v2242
        %2244 = vmatmul.f32.gmra.mxu0 %v2133
        %v2245 = vpop.f32.mrf.mxu0
        %v2246 = vadd.f32 %v2037, %v2245
        %2247 = vmatmul.f32.gmra.mxu0 %v2136
        %v2248 = vpop.f32.mrf.mxu0
        %v2249 = vadd.f32 %v2040, %v2248
        %2250 = vmatmul.f32.gmra.mxu0 %v2139
        %v2251 = vpop.f32.mrf.mxu0
        %v2252 = vadd.f32 %v2043, %v2251
        %2253 = vmatmul.f32.gmra.mxu0 %v2142
        %v2254 = vpop.f32.mrf.mxu0
        %v2255 = vadd.f32 %v2046, %v2254
        %2256 = vmatmul.f32.gmra.mxu0 %v2145
        %v2257 = vpop.f32.mrf.mxu0
        %v2258 = vadd.f32 %v2049, %v2257
        %2259 = vmatmul.f32.gmra.mxu0 %v2148
        %v2260 = vpop.f32.mrf.mxu0
        %v2261 = vadd.f32 %v2052, %v2260
        %2262 = vmatmul.f32.gmra.mxu0 %v2151
        %v2263 = vpop.f32.mrf.mxu0
        %v2264 = vadd.f32 %v2055, %v2263
        %2265 = vmatmul.f32.gmra.mxu0 %v2154
        %v2266 = vpop.f32.mrf.mxu0
        %v2267 = vadd.f32 %v2058, %v2266
        %2268 = vmatmul.f32.gmra.mxu0 %v2157
        %v2269 = vpop.f32.mrf.mxu0
        %v2270 = vadd.f32 %v2061, %v2269
        %2271 = vmatmul.f32.gmra.mxu0 %v2160
        %v2272 = vpop.f32.mrf.mxu0
        %v2273 = vadd.f32 %v2064, %v2272
        %2274 = vmatmul.f32.gmra.mxu0 %v2163
        %v2275 = vpop.f32.mrf.mxu0
        %v2276 = vadd.f32 %v2067, %v2275
        %2277 = vmatmul.f32.gmra.mxu0 %v2166
        %v2278 = vpop.f32.mrf.mxu0
        %v2279 = vadd.f32 %v2070, %v2278
        %2280 = vmatmul.f32.gmra.mxu0 %v2169
        %v2281 = vpop.f32.mrf.mxu0
        %v2282 = vadd.f32 %v2073, %v2281
        %2283 = vmatmul.f32.gmra.mxu0 %v2172
        %v2284 = vpop.f32.mrf.mxu0
        %v2285 = vadd.f32 %v2076, %v2284
        %2286 = vmatmul.f32.gmra.mxu0 %v2175
        %v2287 = vpop.f32.mrf.mxu0
        %v2288 = vadd.f32 %v2079, %v2287
        %2289 = vmatmul.f32.gmra.mxu0 %v2178
        %v2290 = vpop.f32.mrf.mxu0
        %v2291 = vadd.f32 %v2082, %v2290
        %2292 = vmatmul.f32.gmra.mxu0 %v2181
        %v2293 = vpop.f32.mrf.mxu0
        %v2294 = vadd.f32 %v2085, %v2293
        %2295 = vmatmul.f32.gmra.mxu0 %v2184
        %v2296 = vpop.f32.mrf.mxu0
        %v2297 = vadd.f32 %v2088, %v2296
        %2298 = vmatmul.f32.gmra.mxu0 %v2187
        %v2299 = vpop.f32.mrf.mxu0
        %v2300 = vadd.f32 %v2091, %v2299
        %2301 = vmatmul.f32.gmra.mxu0 %v2190
        %v2302 = vpop.f32.mrf.mxu0
        %v2303 = vadd.f32 %v2094, %v2302
        %2304 = vmatmul.f32.gmra.mxu0 %v2193
        %v2305 = vpop.f32.mrf.mxu0
        %v2306 = vadd.f32 %v2097, %v2305
        %2307 = vdwg.mxu0
        %v2308 = vld [vmem:[#allocation3 + $0x2] sm:$0xff]
        %v2309 = vld [vmem:[#allocation3 + $0xa] sm:$0xff]
        %v2310 = vld [vmem:[#allocation3 + $0x12] sm:$0xff]
        %v2311 = vld [vmem:[#allocation3 + $0x1a] sm:$0xff]
        %v2312 = vld [vmem:[#allocation3 + $0x22] sm:$0xff]
        %v2313 = vld [vmem:[#allocation3 + $0x2a] sm:$0xff]
        %v2314 = vld [vmem:[#allocation3 + $0x32] sm:$0xff]
        %v2315 = vld [vmem:[#allocation3 + $0x3a] sm:$0xff]
        %v2316 = vld [vmem:[#allocation3 + $0x42] sm:$0xff]
        %v2317 = vld [vmem:[#allocation3 + $0x4a] sm:$0xff]
        %v2318 = vld [vmem:[#allocation3 + $0x52] sm:$0xff]
        %v2319 = vld [vmem:[#allocation3 + $0x5a] sm:$0xff]
        %v2320 = vld [vmem:[#allocation3 + $0x62] sm:$0xff]
        %v2321 = vld [vmem:[#allocation3 + $0x6a] sm:$0xff]
        %v2322 = vld [vmem:[#allocation3 + $0x72] sm:$0xff]
        %v2323 = vld [vmem:[#allocation3 + $0x7a] sm:$0xff]
        %v2324 = vld [vmem:[#allocation3 + $0x82] sm:$0xff]
        %v2325 = vld [vmem:[#allocation3 + $0x8a] sm:$0xff]
        %v2326 = vld [vmem:[#allocation3 + $0x92] sm:$0xff]
        %v2327 = vld [vmem:[#allocation3 + $0x9a] sm:$0xff]
        %v2328 = vld [vmem:[#allocation3 + $0xa2] sm:$0xff]
        %v2329 = vld [vmem:[#allocation3 + $0xaa] sm:$0xff]
        %v2330 = vld [vmem:[#allocation3 + $0xb2] sm:$0xff]
        %v2331 = vld [vmem:[#allocation3 + $0xba] sm:$0xff]
        %v2332 = vld [vmem:[#allocation3 + $0xc2] sm:$0xff]
        %v2333 = vld [vmem:[#allocation3 + $0xca] sm:$0xff]
        %v2334 = vld [vmem:[#allocation3 + $0xd2] sm:$0xff]
        %v2335 = vld [vmem:[#allocation3 + $0xda] sm:$0xff]
        %v2336 = vld [vmem:[#allocation3 + $0xe2] sm:$0xff]
        %v2337 = vld [vmem:[#allocation3 + $0xea] sm:$0xff]
        %v2338 = vld [vmem:[#allocation3 + $0xf2] sm:$0xff]
        %v2339 = vld [vmem:[#allocation3 + $0xfa] sm:$0xff]
        %s2340 = scalar_lea.vmem %s3, 32
        %v2341 = vld [vmem:[%s2340] sm:$0xff]
        %v2342 = vld [vmem:[%s2340 + $0x8] sm:$0xff]
        %v2344 = vsel %vm384, %v2308, 0
        %v2347 = vsel %vm384, %v2309, 0
        %v2350 = vsel %vm384, %v2310, 0
        %v2353 = vsel %vm384, %v2311, 0
        %v2356 = vsel %vm384, %v2312, 0
        %v2359 = vsel %vm384, %v2313, 0
        %v2362 = vsel %vm384, %v2314, 0
        %v2365 = vsel %vm384, %v2315, 0
        %v2368 = vsel %vm384, %v2316, 0
        %v2371 = vsel %vm384, %v2317, 0
        %v2374 = vsel %vm384, %v2318, 0
        %v2377 = vsel %vm384, %v2319, 0
        %v2380 = vsel %vm384, %v2320, 0
        %v2383 = vsel %vm384, %v2321, 0
        %v2386 = vsel %vm384, %v2322, 0
        %v2389 = vsel %vm384, %v2323, 0
        %v2392 = vsel %vm384, %v2324, 0
        %v2395 = vsel %vm384, %v2325, 0
        %v2398 = vsel %vm384, %v2326, 0
        %v2401 = vsel %vm384, %v2327, 0
        %v2404 = vsel %vm384, %v2328, 0
        %v2407 = vsel %vm384, %v2329, 0
        %v2410 = vsel %vm384, %v2330, 0
        %v2413 = vsel %vm384, %v2331, 0
        %v2416 = vsel %vm384, %v2332, 0
        %v2419 = vsel %vm384, %v2333, 0
        %v2422 = vsel %vm384, %v2334, 0
        %v2425 = vsel %vm384, %v2335, 0
        %v2428 = vsel %vm384, %v2336, 0
        %v2431 = vsel %vm384, %v2337, 0
        %v2434 = vsel %vm384, %v2338, 0
        %v2437 = vsel %vm384, %v2339, 0
        %2439 = vmatpush.msra.mxu0 0.0
        %2440 = vmatpush.msra.mxu0 0.0
        %2441 = vmatpush.msra.mxu0 0.0
        %2442 = vmatpush.msra.mxu0 0.0
        %2443 = vmatpush.msra.mxu0 0.0
        %2444 = vmatpush.msra.mxu0 0.0
        %2445 = vmatpush.msra.mxu0 0.0
        %2446 = vmatpush.msra.mxu0 0.0
        %2447 = vmatpush.msra.mxu0 0.0
        %2448 = vmatpush.msra.mxu0 0.0
        %2449 = vmatpush.msra.mxu0 0.0
        %2450 = vmatpush.msra.mxu0 0.0
        %2451 = vmatpush.msra.mxu0 0.0
        %2452 = vmatpush.msra.mxu0 0.0
        %2453 = vmatpush.msra.mxu0 %v2342
        %2454 = vmatpush.msra.mxu0 %v2341
        %2455 = vmatmul.f32.gmra.mxu0 %v2344
        %v2456 = vpop.f32.mrf.mxu0
        %v2457 = vadd.f32 0.0, %v2456
        %2458 = vmatmul.f32.gmra.mxu0 %v2347
        %v2459 = vpop.f32.mrf.mxu0
        %v2460 = vadd.f32 0.0, %v2459
        %2461 = vmatmul.f32.gmra.mxu0 %v2350
        %v2462 = vpop.f32.mrf.mxu0
        %v2463 = vadd.f32 0.0, %v2462
        %2464 = vmatmul.f32.gmra.mxu0 %v2353
        %v2465 = vpop.f32.mrf.mxu0
        %v2466 = vadd.f32 0.0, %v2465
        %2467 = vmatmul.f32.gmra.mxu0 %v2356
        %v2468 = vpop.f32.mrf.mxu0
        %v2469 = vadd.f32 0.0, %v2468
        %2470 = vmatmul.f32.gmra.mxu0 %v2359
        %v2471 = vpop.f32.mrf.mxu0
        %v2472 = vadd.f32 0.0, %v2471
        %2473 = vmatmul.f32.gmra.mxu0 %v2362
        %v2474 = vpop.f32.mrf.mxu0
        %v2475 = vadd.f32 0.0, %v2474
        %2476 = vmatmul.f32.gmra.mxu0 %v2365
        %v2477 = vpop.f32.mrf.mxu0
        %v2478 = vadd.f32 0.0, %v2477
        %2479 = vmatmul.f32.gmra.mxu0 %v2368
        %v2480 = vpop.f32.mrf.mxu0
        %v2481 = vadd.f32 0.0, %v2480
        %2482 = vmatmul.f32.gmra.mxu0 %v2371
        %v2483 = vpop.f32.mrf.mxu0
        %v2484 = vadd.f32 0.0, %v2483
        %2485 = vmatmul.f32.gmra.mxu0 %v2374
        %v2486 = vpop.f32.mrf.mxu0
        %v2487 = vadd.f32 0.0, %v2486
        %2488 = vmatmul.f32.gmra.mxu0 %v2377
        %v2489 = vpop.f32.mrf.mxu0
        %v2490 = vadd.f32 0.0, %v2489
        %2491 = vmatmul.f32.gmra.mxu0 %v2380
        %v2492 = vpop.f32.mrf.mxu0
        %v2493 = vadd.f32 0.0, %v2492
        %2494 = vmatmul.f32.gmra.mxu0 %v2383
        %v2495 = vpop.f32.mrf.mxu0
        %v2496 = vadd.f32 0.0, %v2495
        %2497 = vmatmul.f32.gmra.mxu0 %v2386
        %v2498 = vpop.f32.mrf.mxu0
        %v2499 = vadd.f32 0.0, %v2498
        %2500 = vmatmul.f32.gmra.mxu0 %v2389
        %v2501 = vpop.f32.mrf.mxu0
        %v2502 = vadd.f32 0.0, %v2501
        %2503 = vmatmul.f32.gmra.mxu0 %v2392
        %v2504 = vpop.f32.mrf.mxu0
        %v2505 = vadd.f32 0.0, %v2504
        %2506 = vmatmul.f32.gmra.mxu0 %v2395
        %v2507 = vpop.f32.mrf.mxu0
        %v2508 = vadd.f32 0.0, %v2507
        %2509 = vmatmul.f32.gmra.mxu0 %v2398
        %v2510 = vpop.f32.mrf.mxu0
        %v2511 = vadd.f32 0.0, %v2510
        %2512 = vmatmul.f32.gmra.mxu0 %v2401
        %v2513 = vpop.f32.mrf.mxu0
        %v2514 = vadd.f32 0.0, %v2513
        %2515 = vmatmul.f32.gmra.mxu0 %v2404
        %v2516 = vpop.f32.mrf.mxu0
        %v2517 = vadd.f32 0.0, %v2516
        %2518 = vmatmul.f32.gmra.mxu0 %v2407
        %v2519 = vpop.f32.mrf.mxu0
        %v2520 = vadd.f32 0.0, %v2519
        %2521 = vmatmul.f32.gmra.mxu0 %v2410
        %v2522 = vpop.f32.mrf.mxu0
        %v2523 = vadd.f32 0.0, %v2522
        %2524 = vmatmul.f32.gmra.mxu0 %v2413
        %v2525 = vpop.f32.mrf.mxu0
        %v2526 = vadd.f32 0.0, %v2525
        %2527 = vmatmul.f32.gmra.mxu0 %v2416
        %v2528 = vpop.f32.mrf.mxu0
        %v2529 = vadd.f32 0.0, %v2528
        %2530 = vmatmul.f32.gmra.mxu0 %v2419
        %v2531 = vpop.f32.mrf.mxu0
        %v2532 = vadd.f32 0.0, %v2531
        %2533 = vmatmul.f32.gmra.mxu0 %v2422
        %v2534 = vpop.f32.mrf.mxu0
        %v2535 = vadd.f32 0.0, %v2534
        %2536 = vmatmul.f32.gmra.mxu0 %v2425
        %v2537 = vpop.f32.mrf.mxu0
        %v2538 = vadd.f32 0.0, %v2537
        %2539 = vmatmul.f32.gmra.mxu0 %v2428
        %v2540 = vpop.f32.mrf.mxu0
        %v2541 = vadd.f32 0.0, %v2540
        %2542 = vmatmul.f32.gmra.mxu0 %v2431
        %v2543 = vpop.f32.mrf.mxu0
        %v2544 = vadd.f32 0.0, %v2543
        %2545 = vmatmul.f32.gmra.mxu0 %v2434
        %v2546 = vpop.f32.mrf.mxu0
        %v2547 = vadd.f32 0.0, %v2546
        %2548 = vmatmul.f32.gmra.mxu0 %v2437
        %v2549 = vpop.f32.mrf.mxu0
        %v2550 = vadd.f32 0.0, %v2549
        %2551 = vdwg.mxu0
        %v2552 = vadd.f32 %v2213, %v2457
        %v2553 = vadd.f32 %v2216, %v2460
        %v2554 = vadd.f32 %v2219, %v2463
        %v2555 = vadd.f32 %v2222, %v2466
        %v2556 = vadd.f32 %v2225, %v2469
        %v2557 = vadd.f32 %v2228, %v2472
        %v2558 = vadd.f32 %v2231, %v2475
        %v2559 = vadd.f32 %v2234, %v2478
        %v2560 = vadd.f32 %v2237, %v2481
        %v2561 = vadd.f32 %v2240, %v2484
        %v2562 = vadd.f32 %v2243, %v2487
        %v2563 = vadd.f32 %v2246, %v2490
        %v2564 = vadd.f32 %v2249, %v2493
        %v2565 = vadd.f32 %v2252, %v2496
        %v2566 = vadd.f32 %v2255, %v2499
        %v2567 = vadd.f32 %v2258, %v2502
        %v2568 = vadd.f32 %v2261, %v2505
        %v2569 = vadd.f32 %v2264, %v2508
        %v2570 = vadd.f32 %v2267, %v2511
        %v2571 = vadd.f32 %v2270, %v2514
        %v2572 = vadd.f32 %v2273, %v2517
        %v2573 = vadd.f32 %v2276, %v2520
        %v2574 = vadd.f32 %v2279, %v2523
        %v2575 = vadd.f32 %v2282, %v2526
        %v2576 = vadd.f32 %v2285, %v2529
        %v2577 = vadd.f32 %v2288, %v2532
        %v2578 = vadd.f32 %v2291, %v2535
        %v2579 = vadd.f32 %v2294, %v2538
        %v2580 = vadd.f32 %v2297, %v2541
        %v2581 = vadd.f32 %v2300, %v2544
        %v2582 = vadd.f32 %v2303, %v2547
        %v2583 = vadd.f32 %v2306, %v2550
        %v2584 = vld [vmem:[#allocation3 + $0x10] sm:$0xff]
        %v2585 = vld [vmem:[#allocation3 + $0x18] sm:$0xff]
        %v2586 = vld [vmem:[#allocation3 + $0x20] sm:$0xff]
        %v2587 = vld [vmem:[#allocation3 + $0x28] sm:$0xff]
        %v2588 = vld [vmem:[#allocation3 + $0x30] sm:$0xff]
        %v2589 = vld [vmem:[#allocation3 + $0x38] sm:$0xff]
        %v2590 = vld [vmem:[#allocation3 + $0x40] sm:$0xff]
        %v2591 = vld [vmem:[#allocation3 + $0x48] sm:$0xff]
        %v2592 = vld [vmem:[#allocation3 + $0x50] sm:$0xff]
        %v2593 = vld [vmem:[#allocation3 + $0x58] sm:$0xff]
        %v2594 = vld [vmem:[#allocation3 + $0x60] sm:$0xff]
        %v2595 = vld [vmem:[#allocation3 + $0x68] sm:$0xff]
        %v2596 = vld [vmem:[#allocation3 + $0x70] sm:$0xff]
        %v2597 = vld [vmem:[#allocation3 + $0x78] sm:$0xff]
        %v2598 = vld [vmem:[#allocation3 + $0x80] sm:$0xff]
        %v2599 = vld [vmem:[#allocation3 + $0x88] sm:$0xff]
        %v2600 = vld [vmem:[#allocation3 + $0x90] sm:$0xff]
        %v2601 = vld [vmem:[#allocation3 + $0x98] sm:$0xff]
        %v2602 = vld [vmem:[#allocation3 + $0xa0] sm:$0xff]
        %v2603 = vld [vmem:[#allocation3 + $0xa8] sm:$0xff]
        %v2604 = vld [vmem:[#allocation3 + $0xb0] sm:$0xff]
        %v2605 = vld [vmem:[#allocation3 + $0xb8] sm:$0xff]
        %v2606 = vld [vmem:[#allocation3 + $0xc0] sm:$0xff]
        %v2607 = vld [vmem:[#allocation3 + $0xc8] sm:$0xff]
        %v2608 = vld [vmem:[#allocation3 + $0xd0] sm:$0xff]
        %v2609 = vld [vmem:[#allocation3 + $0xd8] sm:$0xff]
        %v2610 = vld [vmem:[#allocation3 + $0xe0] sm:$0xff]
        %v2611 = vld [vmem:[#allocation3 + $0xe8] sm:$0xff]
        %v2612 = vld [vmem:[#allocation3 + $0xf0] sm:$0xff]
        %v2613 = vld [vmem:[#allocation3 + $0xf8] sm:$0xff]
        %v2614 = vld [vmem:[#allocation3 + $0x100] sm:$0xff]
        %v2615 = vld [vmem:[#allocation3 + $0x108] sm:$0xff]
        %s2616 = scalar_lea.vmem %s3, 48
        %v2617 = vld [vmem:[%s2616] sm:$0xff]
        %v2618 = vld [vmem:[%s2616 + $0x8] sm:$0xff]
        %v2620 = vsel %vm384, %v2584, 0
        %v2623 = vsel %vm384, %v2585, 0
        %v2626 = vsel %vm384, %v2586, 0
        %v2629 = vsel %vm384, %v2587, 0
        %v2632 = vsel %vm384, %v2588, 0
        %v2635 = vsel %vm384, %v2589, 0
        %v2638 = vsel %vm384, %v2590, 0
        %v2641 = vsel %vm384, %v2591, 0
        %v2644 = vsel %vm384, %v2592, 0
        %v2647 = vsel %vm384, %v2593, 0
        %v2650 = vsel %vm384, %v2594, 0
        %v2653 = vsel %vm384, %v2595, 0
        %v2656 = vsel %vm384, %v2596, 0
        %v2659 = vsel %vm384, %v2597, 0
        %v2662 = vsel %vm384, %v2598, 0
        %v2665 = vsel %vm384, %v2599, 0
        %v2668 = vsel %vm384, %v2600, 0
        %v2671 = vsel %vm384, %v2601, 0
        %v2674 = vsel %vm384, %v2602, 0
        %v2677 = vsel %vm384, %v2603, 0
        %v2680 = vsel %vm384, %v2604, 0
        %v2683 = vsel %vm384, %v2605, 0
        %v2686 = vsel %vm384, %v2606, 0
        %v2689 = vsel %vm384, %v2607, 0
        %v2692 = vsel %vm384, %v2608, 0
        %v2695 = vsel %vm384, %v2609, 0
        %v2698 = vsel %vm384, %v2610, 0
        %v2701 = vsel %vm384, %v2611, 0
        %v2704 = vsel %vm384, %v2612, 0
        %v2707 = vsel %vm384, %v2613, 0
        %v2710 = vsel %vm384, %v2614, 0
        %v2713 = vsel %vm384, %v2615, 0
        %2715 = vmatpush.msra.mxu0 0.0
        %2716 = vmatpush.msra.mxu0 0.0
        %2717 = vmatpush.msra.mxu0 0.0
        %2718 = vmatpush.msra.mxu0 0.0
        %2719 = vmatpush.msra.mxu0 0.0
        %2720 = vmatpush.msra.mxu0 0.0
        %2721 = vmatpush.msra.mxu0 0.0
        %2722 = vmatpush.msra.mxu0 0.0
        %2723 = vmatpush.msra.mxu0 0.0
        %2724 = vmatpush.msra.mxu0 0.0
        %2725 = vmatpush.msra.mxu0 0.0
        %2726 = vmatpush.msra.mxu0 0.0
        %2727 = vmatpush.msra.mxu0 0.0
        %2728 = vmatpush.msra.mxu0 0.0
        %2729 = vmatpush.msra.mxu0 %v2618
        %2730 = vmatpush.msra.mxu0 %v2617
        %2731 = vmatmul.f32.gmra.mxu0 %v2620
        %v2732 = vpop.f32.mrf.mxu0
        %v2733 = vadd.f32 0.0, %v2732
        %2734 = vmatmul.f32.gmra.mxu0 %v2623
        %v2735 = vpop.f32.mrf.mxu0
        %v2736 = vadd.f32 0.0, %v2735
        %2737 = vmatmul.f32.gmra.mxu0 %v2626
        %v2738 = vpop.f32.mrf.mxu0
        %v2739 = vadd.f32 0.0, %v2738
        %2740 = vmatmul.f32.gmra.mxu0 %v2629
        %v2741 = vpop.f32.mrf.mxu0
        %v2742 = vadd.f32 0.0, %v2741
        %2743 = vmatmul.f32.gmra.mxu0 %v2632
        %v2744 = vpop.f32.mrf.mxu0
        %v2745 = vadd.f32 0.0, %v2744
        %2746 = vmatmul.f32.gmra.mxu0 %v2635
        %v2747 = vpop.f32.mrf.mxu0
        %v2748 = vadd.f32 0.0, %v2747
        %2749 = vmatmul.f32.gmra.mxu0 %v2638
        %v2750 = vpop.f32.mrf.mxu0
        %v2751 = vadd.f32 0.0, %v2750
        %2752 = vmatmul.f32.gmra.mxu0 %v2641
        %v2753 = vpop.f32.mrf.mxu0
        %v2754 = vadd.f32 0.0, %v2753
        %2755 = vmatmul.f32.gmra.mxu0 %v2644
        %v2756 = vpop.f32.mrf.mxu0
        %v2757 = vadd.f32 0.0, %v2756
        %2758 = vmatmul.f32.gmra.mxu0 %v2647
        %v2759 = vpop.f32.mrf.mxu0
        %v2760 = vadd.f32 0.0, %v2759
        %2761 = vmatmul.f32.gmra.mxu0 %v2650
        %v2762 = vpop.f32.mrf.mxu0
        %v2763 = vadd.f32 0.0, %v2762
        %2764 = vmatmul.f32.gmra.mxu0 %v2653
        %v2765 = vpop.f32.mrf.mxu0
        %v2766 = vadd.f32 0.0, %v2765
        %2767 = vmatmul.f32.gmra.mxu0 %v2656
        %v2768 = vpop.f32.mrf.mxu0
        %v2769 = vadd.f32 0.0, %v2768
        %2770 = vmatmul.f32.gmra.mxu0 %v2659
        %v2771 = vpop.f32.mrf.mxu0
        %v2772 = vadd.f32 0.0, %v2771
        %2773 = vmatmul.f32.gmra.mxu0 %v2662
        %v2774 = vpop.f32.mrf.mxu0
        %v2775 = vadd.f32 0.0, %v2774
        %2776 = vmatmul.f32.gmra.mxu0 %v2665
        %v2777 = vpop.f32.mrf.mxu0
        %v2778 = vadd.f32 0.0, %v2777
        %2779 = vmatmul.f32.gmra.mxu0 %v2668
        %v2780 = vpop.f32.mrf.mxu0
        %v2781 = vadd.f32 0.0, %v2780
        %2782 = vmatmul.f32.gmra.mxu0 %v2671
        %v2783 = vpop.f32.mrf.mxu0
        %v2784 = vadd.f32 0.0, %v2783
        %2785 = vmatmul.f32.gmra.mxu0 %v2674
        %v2786 = vpop.f32.mrf.mxu0
        %v2787 = vadd.f32 0.0, %v2786
        %2788 = vmatmul.f32.gmra.mxu0 %v2677
        %v2789 = vpop.f32.mrf.mxu0
        %v2790 = vadd.f32 0.0, %v2789
        %2791 = vmatmul.f32.gmra.mxu0 %v2680
        %v2792 = vpop.f32.mrf.mxu0
        %v2793 = vadd.f32 0.0, %v2792
        %2794 = vmatmul.f32.gmra.mxu0 %v2683
        %v2795 = vpop.f32.mrf.mxu0
        %v2796 = vadd.f32 0.0, %v2795
        %2797 = vmatmul.f32.gmra.mxu0 %v2686
        %v2798 = vpop.f32.mrf.mxu0
        %v2799 = vadd.f32 0.0, %v2798
        %2800 = vmatmul.f32.gmra.mxu0 %v2689
        %v2801 = vpop.f32.mrf.mxu0
        %v2802 = vadd.f32 0.0, %v2801
        %2803 = vmatmul.f32.gmra.mxu0 %v2692
        %v2804 = vpop.f32.mrf.mxu0
        %v2805 = vadd.f32 0.0, %v2804
        %2806 = vmatmul.f32.gmra.mxu0 %v2695
        %v2807 = vpop.f32.mrf.mxu0
        %v2808 = vadd.f32 0.0, %v2807
        %2809 = vmatmul.f32.gmra.mxu0 %v2698
        %v2810 = vpop.f32.mrf.mxu0
        %v2811 = vadd.f32 0.0, %v2810
        %2812 = vmatmul.f32.gmra.mxu0 %v2701
        %v2813 = vpop.f32.mrf.mxu0
        %v2814 = vadd.f32 0.0, %v2813
        %2815 = vmatmul.f32.gmra.mxu0 %v2704
        %v2816 = vpop.f32.mrf.mxu0
        %v2817 = vadd.f32 0.0, %v2816
        %2818 = vmatmul.f32.gmra.mxu0 %v2707
        %v2819 = vpop.f32.mrf.mxu0
        %v2820 = vadd.f32 0.0, %v2819
        %2821 = vmatmul.f32.gmra.mxu0 %v2710
        %v2822 = vpop.f32.mrf.mxu0
        %v2823 = vadd.f32 0.0, %v2822
        %2824 = vmatmul.f32.gmra.mxu0 %v2713
        %v2825 = vpop.f32.mrf.mxu0
        %v2826 = vadd.f32 0.0, %v2825
        %2827 = vdwg.mxu0
        %v2828 = vadd.f32 %v2552, %v2733
        %v2829 = vadd.f32 %v2553, %v2736
        %v2830 = vadd.f32 %v2554, %v2739
        %v2831 = vadd.f32 %v2555, %v2742
        %v2832 = vadd.f32 %v2556, %v2745
        %v2833 = vadd.f32 %v2557, %v2748
        %v2834 = vadd.f32 %v2558, %v2751
        %v2835 = vadd.f32 %v2559, %v2754
        %v2836 = vadd.f32 %v2560, %v2757
        %v2837 = vadd.f32 %v2561, %v2760
        %v2838 = vadd.f32 %v2562, %v2763
        %v2839 = vadd.f32 %v2563, %v2766
        %v2840 = vadd.f32 %v2564, %v2769
        %v2841 = vadd.f32 %v2565, %v2772
        %v2842 = vadd.f32 %v2566, %v2775
        %v2843 = vadd.f32 %v2567, %v2778
        %v2844 = vadd.f32 %v2568, %v2781
        %v2845 = vadd.f32 %v2569, %v2784
        %v2846 = vadd.f32 %v2570, %v2787
        %v2847 = vadd.f32 %v2571, %v2790
        %v2848 = vadd.f32 %v2572, %v2793
        %v2849 = vadd.f32 %v2573, %v2796
        %v2850 = vadd.f32 %v2574, %v2799
        %v2851 = vadd.f32 %v2575, %v2802
        %v2852 = vadd.f32 %v2576, %v2805
        %v2853 = vadd.f32 %v2577, %v2808
        %v2854 = vadd.f32 %v2578, %v2811
        %v2855 = vadd.f32 %v2579, %v2814
        %v2856 = vadd.f32 %v2580, %v2817
        %v2857 = vadd.f32 %v2581, %v2820
        %v2858 = vadd.f32 %v2582, %v2823
        %v2859 = vadd.f32 %v2583, %v2826
        %v2860 = vld [vmem:[#allocation3 + $0x11] sm:$0xff]
        %v2861 = vld [vmem:[#allocation3 + $0x19] sm:$0xff]
        %v2862 = vld [vmem:[#allocation3 + $0x21] sm:$0xff]
        %v2863 = vld [vmem:[#allocation3 + $0x29] sm:$0xff]
        %v2864 = vld [vmem:[#allocation3 + $0x31] sm:$0xff]
        %v2865 = vld [vmem:[#allocation3 + $0x39] sm:$0xff]
        %v2866 = vld [vmem:[#allocation3 + $0x41] sm:$0xff]
        %v2867 = vld [vmem:[#allocation3 + $0x49] sm:$0xff]
        %v2868 = vld [vmem:[#allocation3 + $0x51] sm:$0xff]
        %v2869 = vld [vmem:[#allocation3 + $0x59] sm:$0xff]
        %v2870 = vld [vmem:[#allocation3 + $0x61] sm:$0xff]
        %v2871 = vld [vmem:[#allocation3 + $0x69] sm:$0xff]
        %v2872 = vld [vmem:[#allocation3 + $0x71] sm:$0xff]
        %v2873 = vld [vmem:[#allocation3 + $0x79] sm:$0xff]
        %v2874 = vld [vmem:[#allocation3 + $0x81] sm:$0xff]
        %v2875 = vld [vmem:[#allocation3 + $0x89] sm:$0xff]
        %v2876 = vld [vmem:[#allocation3 + $0x91] sm:$0xff]
        %v2877 = vld [vmem:[#allocation3 + $0x99] sm:$0xff]
        %v2878 = vld [vmem:[#allocation3 + $0xa1] sm:$0xff]
        %v2879 = vld [vmem:[#allocation3 + $0xa9] sm:$0xff]
        %v2880 = vld [vmem:[#allocation3 + $0xb1] sm:$0xff]
        %v2881 = vld [vmem:[#allocation3 + $0xb9] sm:$0xff]
        %v2882 = vld [vmem:[#allocation3 + $0xc1] sm:$0xff]
        %v2883 = vld [vmem:[#allocation3 + $0xc9] sm:$0xff]
        %v2884 = vld [vmem:[#allocation3 + $0xd1] sm:$0xff]
        %v2885 = vld [vmem:[#allocation3 + $0xd9] sm:$0xff]
        %v2886 = vld [vmem:[#allocation3 + $0xe1] sm:$0xff]
        %v2887 = vld [vmem:[#allocation3 + $0xe9] sm:$0xff]
        %v2888 = vld [vmem:[#allocation3 + $0xf1] sm:$0xff]
        %v2889 = vld [vmem:[#allocation3 + $0xf9] sm:$0xff]
        %v2890 = vld [vmem:[#allocation3 + $0x101] sm:$0xff]
        %v2891 = vld [vmem:[#allocation3 + $0x109] sm:$0xff]
        %s2892 = scalar_lea.vmem %s3, 64
        %v2893 = vld [vmem:[%s2892] sm:$0xff]
        %v2894 = vld [vmem:[%s2892 + $0x8] sm:$0xff]
        %v2896 = vsel %vm384, %v2860, 0
        %v2899 = vsel %vm384, %v2861, 0
        %v2902 = vsel %vm384, %v2862, 0
        %v2905 = vsel %vm384, %v2863, 0
        %v2908 = vsel %vm384, %v2864, 0
        %v2911 = vsel %vm384, %v2865, 0
        %v2914 = vsel %vm384, %v2866, 0
        %v2917 = vsel %vm384, %v2867, 0
        %v2920 = vsel %vm384, %v2868, 0
        %v2923 = vsel %vm384, %v2869, 0
        %v2926 = vsel %vm384, %v2870, 0
        %v2929 = vsel %vm384, %v2871, 0
        %v2932 = vsel %vm384, %v2872, 0
        %v2935 = vsel %vm384, %v2873, 0
        %v2938 = vsel %vm384, %v2874, 0
        %v2941 = vsel %vm384, %v2875, 0
        %v2944 = vsel %vm384, %v2876, 0
        %v2947 = vsel %vm384, %v2877, 0
        %v2950 = vsel %vm384, %v2878, 0
        %v2953 = vsel %vm384, %v2879, 0
        %v2956 = vsel %vm384, %v2880, 0
        %v2959 = vsel %vm384, %v2881, 0
        %v2962 = vsel %vm384, %v2882, 0
        %v2965 = vsel %vm384, %v2883, 0
        %v2968 = vsel %vm384, %v2884, 0
        %v2971 = vsel %vm384, %v2885, 0
        %v2974 = vsel %vm384, %v2886, 0
        %v2977 = vsel %vm384, %v2887, 0
        %v2980 = vsel %vm384, %v2888, 0
        %v2983 = vsel %vm384, %v2889, 0
        %v2986 = vsel %vm384, %v2890, 0
        %v2989 = vsel %vm384, %v2891, 0
        %2991 = vmatpush.msra.mxu0 0.0
        %2992 = vmatpush.msra.mxu0 0.0
        %2993 = vmatpush.msra.mxu0 0.0
        %2994 = vmatpush.msra.mxu0 0.0
        %2995 = vmatpush.msra.mxu0 0.0
        %2996 = vmatpush.msra.mxu0 0.0
        %2997 = vmatpush.msra.mxu0 0.0
        %2998 = vmatpush.msra.mxu0 0.0
        %2999 = vmatpush.msra.mxu0 0.0
        %3000 = vmatpush.msra.mxu0 0.0
        %3001 = vmatpush.msra.mxu0 0.0
        %3002 = vmatpush.msra.mxu0 0.0
        %3003 = vmatpush.msra.mxu0 0.0
        %3004 = vmatpush.msra.mxu0 0.0
        %3005 = vmatpush.msra.mxu0 %v2894
        %3006 = vmatpush.msra.mxu0 %v2893
        %3007 = vmatmul.f32.gmra.mxu0 %v2896
        %v3008 = vpop.f32.mrf.mxu0
        %v3009 = vadd.f32 0.0, %v3008
        %3010 = vmatmul.f32.gmra.mxu0 %v2899
        %v3011 = vpop.f32.mrf.mxu0
        %v3012 = vadd.f32 0.0, %v3011
        %3013 = vmatmul.f32.gmra.mxu0 %v2902
        %v3014 = vpop.f32.mrf.mxu0
        %v3015 = vadd.f32 0.0, %v3014
        %3016 = vmatmul.f32.gmra.mxu0 %v2905
        %v3017 = vpop.f32.mrf.mxu0
        %v3018 = vadd.f32 0.0, %v3017
        %3019 = vmatmul.f32.gmra.mxu0 %v2908
        %v3020 = vpop.f32.mrf.mxu0
        %v3021 = vadd.f32 0.0, %v3020
        %3022 = vmatmul.f32.gmra.mxu0 %v2911
        %v3023 = vpop.f32.mrf.mxu0
        %v3024 = vadd.f32 0.0, %v3023
        %3025 = vmatmul.f32.gmra.mxu0 %v2914
        %v3026 = vpop.f32.mrf.mxu0
        %v3027 = vadd.f32 0.0, %v3026
        %3028 = vmatmul.f32.gmra.mxu0 %v2917
        %v3029 = vpop.f32.mrf.mxu0
        %v3030 = vadd.f32 0.0, %v3029
        %3031 = vmatmul.f32.gmra.mxu0 %v2920
        %v3032 = vpop.f32.mrf.mxu0
        %v3033 = vadd.f32 0.0, %v3032
        %3034 = vmatmul.f32.gmra.mxu0 %v2923
        %v3035 = vpop.f32.mrf.mxu0
        %v3036 = vadd.f32 0.0, %v3035
        %3037 = vmatmul.f32.gmra.mxu0 %v2926
        %v3038 = vpop.f32.mrf.mxu0
        %v3039 = vadd.f32 0.0, %v3038
        %3040 = vmatmul.f32.gmra.mxu0 %v2929
        %v3041 = vpop.f32.mrf.mxu0
        %v3042 = vadd.f32 0.0, %v3041
        %3043 = vmatmul.f32.gmra.mxu0 %v2932
        %v3044 = vpop.f32.mrf.mxu0
        %v3045 = vadd.f32 0.0, %v3044
        %3046 = vmatmul.f32.gmra.mxu0 %v2935
        %v3047 = vpop.f32.mrf.mxu0
        %v3048 = vadd.f32 0.0, %v3047
        %3049 = vmatmul.f32.gmra.mxu0 %v2938
        %v3050 = vpop.f32.mrf.mxu0
        %v3051 = vadd.f32 0.0, %v3050
        %3052 = vmatmul.f32.gmra.mxu0 %v2941
        %v3053 = vpop.f32.mrf.mxu0
        %v3054 = vadd.f32 0.0, %v3053
        %3055 = vmatmul.f32.gmra.mxu0 %v2944
        %v3056 = vpop.f32.mrf.mxu0
        %v3057 = vadd.f32 0.0, %v3056
        %3058 = vmatmul.f32.gmra.mxu0 %v2947
        %v3059 = vpop.f32.mrf.mxu0
        %v3060 = vadd.f32 0.0, %v3059
        %3061 = vmatmul.f32.gmra.mxu0 %v2950
        %v3062 = vpop.f32.mrf.mxu0
        %v3063 = vadd.f32 0.0, %v3062
        %3064 = vmatmul.f32.gmra.mxu0 %v2953
        %v3065 = vpop.f32.mrf.mxu0
        %v3066 = vadd.f32 0.0, %v3065
        %3067 = vmatmul.f32.gmra.mxu0 %v2956
        %v3068 = vpop.f32.mrf.mxu0
        %v3069 = vadd.f32 0.0, %v3068
        %3070 = vmatmul.f32.gmra.mxu0 %v2959
        %v3071 = vpop.f32.mrf.mxu0
        %v3072 = vadd.f32 0.0, %v3071
        %3073 = vmatmul.f32.gmra.mxu0 %v2962
        %v3074 = vpop.f32.mrf.mxu0
        %v3075 = vadd.f32 0.0, %v3074
        %3076 = vmatmul.f32.gmra.mxu0 %v2965
        %v3077 = vpop.f32.mrf.mxu0
        %v3078 = vadd.f32 0.0, %v3077
        %3079 = vmatmul.f32.gmra.mxu0 %v2968
        %v3080 = vpop.f32.mrf.mxu0
        %v3081 = vadd.f32 0.0, %v3080
        %3082 = vmatmul.f32.gmra.mxu0 %v2971
        %v3083 = vpop.f32.mrf.mxu0
        %v3084 = vadd.f32 0.0, %v3083
        %3085 = vmatmul.f32.gmra.mxu0 %v2974
        %v3086 = vpop.f32.mrf.mxu0
        %v3087 = vadd.f32 0.0, %v3086
        %3088 = vmatmul.f32.gmra.mxu0 %v2977
        %v3089 = vpop.f32.mrf.mxu0
        %v3090 = vadd.f32 0.0, %v3089
        %3091 = vmatmul.f32.gmra.mxu0 %v2980
        %v3092 = vpop.f32.mrf.mxu0
        %v3093 = vadd.f32 0.0, %v3092
        %3094 = vmatmul.f32.gmra.mxu0 %v2983
        %v3095 = vpop.f32.mrf.mxu0
        %v3096 = vadd.f32 0.0, %v3095
        %3097 = vmatmul.f32.gmra.mxu0 %v2986
        %v3098 = vpop.f32.mrf.mxu0
        %v3099 = vadd.f32 0.0, %v3098
        %3100 = vmatmul.f32.gmra.mxu0 %v2989
        %v3101 = vpop.f32.mrf.mxu0
        %v3102 = vadd.f32 0.0, %v3101
        %3103 = vdwg.mxu0
        %v3104 = vadd.f32 %v2828, %v3009
        %v3105 = vadd.f32 %v2829, %v3012
        %v3106 = vadd.f32 %v2830, %v3015
        %v3107 = vadd.f32 %v2831, %v3018
        %v3108 = vadd.f32 %v2832, %v3021
        %v3109 = vadd.f32 %v2833, %v3024
        %v3110 = vadd.f32 %v2834, %v3027
        %v3111 = vadd.f32 %v2835, %v3030
        %v3112 = vadd.f32 %v2836, %v3033
        %v3113 = vadd.f32 %v2837, %v3036
        %v3114 = vadd.f32 %v2838, %v3039
        %v3115 = vadd.f32 %v2839, %v3042
        %v3116 = vadd.f32 %v2840, %v3045
        %v3117 = vadd.f32 %v2841, %v3048
        %v3118 = vadd.f32 %v2842, %v3051
        %v3119 = vadd.f32 %v2843, %v3054
        %v3120 = vadd.f32 %v2844, %v3057
        %v3121 = vadd.f32 %v2845, %v3060
        %v3122 = vadd.f32 %v2846, %v3063
        %v3123 = vadd.f32 %v2847, %v3066
        %v3124 = vadd.f32 %v2848, %v3069
        %v3125 = vadd.f32 %v2849, %v3072
        %v3126 = vadd.f32 %v2850, %v3075
        %v3127 = vadd.f32 %v2851, %v3078
        %v3128 = vadd.f32 %v2852, %v3081
        %v3129 = vadd.f32 %v2853, %v3084
        %v3130 = vadd.f32 %v2854, %v3087
        %v3131 = vadd.f32 %v2855, %v3090
        %v3132 = vadd.f32 %v2856, %v3093
        %v3133 = vadd.f32 %v2857, %v3096
        %v3134 = vadd.f32 %v2858, %v3099
        %v3135 = vadd.f32 %v2859, %v3102
        %v3136 = vld [vmem:[#allocation3 + $0x12] sm:$0xff]
        %v3137 = vld [vmem:[#allocation3 + $0x1a] sm:$0xff]
        %v3138 = vld [vmem:[#allocation3 + $0x22] sm:$0xff]
        %v3139 = vld [vmem:[#allocation3 + $0x2a] sm:$0xff]
        %v3140 = vld [vmem:[#allocation3 + $0x32] sm:$0xff]
        %v3141 = vld [vmem:[#allocation3 + $0x3a] sm:$0xff]
        %v3142 = vld [vmem:[#allocation3 + $0x42] sm:$0xff]
        %v3143 = vld [vmem:[#allocation3 + $0x4a] sm:$0xff]
        %v3144 = vld [vmem:[#allocation3 + $0x52] sm:$0xff]
        %v3145 = vld [vmem:[#allocation3 + $0x5a] sm:$0xff]
        %v3146 = vld [vmem:[#allocation3 + $0x62] sm:$0xff]
        %v3147 = vld [vmem:[#allocation3 + $0x6a] sm:$0xff]
        %v3148 = vld [vmem:[#allocation3 + $0x72] sm:$0xff]
        %v3149 = vld [vmem:[#allocation3 + $0x7a] sm:$0xff]
        %v3150 = vld [vmem:[#allocation3 + $0x82] sm:$0xff]
        %v3151 = vld [vmem:[#allocation3 + $0x8a] sm:$0xff]
        %v3152 = vld [vmem:[#allocation3 + $0x92] sm:$0xff]
        %v3153 = vld [vmem:[#allocation3 + $0x9a] sm:$0xff]
        %v3154 = vld [vmem:[#allocation3 + $0xa2] sm:$0xff]
        %v3155 = vld [vmem:[#allocation3 + $0xaa] sm:$0xff]
        %v3156 = vld [vmem:[#allocation3 + $0xb2] sm:$0xff]
        %v3157 = vld [vmem:[#allocation3 + $0xba] sm:$0xff]
        %v3158 = vld [vmem:[#allocation3 + $0xc2] sm:$0xff]
        %v3159 = vld [vmem:[#allocation3 + $0xca] sm:$0xff]
        %v3160 = vld [vmem:[#allocation3 + $0xd2] sm:$0xff]
        %v3161 = vld [vmem:[#allocation3 + $0xda] sm:$0xff]
        %v3162 = vld [vmem:[#allocation3 + $0xe2] sm:$0xff]
        %v3163 = vld [vmem:[#allocation3 + $0xea] sm:$0xff]
        %v3164 = vld [vmem:[#allocation3 + $0xf2] sm:$0xff]
        %v3165 = vld [vmem:[#allocation3 + $0xfa] sm:$0xff]
        %v3166 = vld [vmem:[#allocation3 + $0x102] sm:$0xff]
        %v3167 = vld [vmem:[#allocation3 + $0x10a] sm:$0xff]
        %s3168 = scalar_lea.vmem %s3, 80
        %v3169 = vld [vmem:[%s3168] sm:$0xff]
        %v3170 = vld [vmem:[%s3168 + $0x8] sm:$0xff]
        %v3172 = vsel %vm384, %v3136, 0
        %v3175 = vsel %vm384, %v3137, 0
        %v3178 = vsel %vm384, %v3138, 0
        %v3181 = vsel %vm384, %v3139, 0
        %v3184 = vsel %vm384, %v3140, 0
        %v3187 = vsel %vm384, %v3141, 0
        %v3190 = vsel %vm384, %v3142, 0
        %v3193 = vsel %vm384, %v3143, 0
        %v3196 = vsel %vm384, %v3144, 0
        %v3199 = vsel %vm384, %v3145, 0
        %v3202 = vsel %vm384, %v3146, 0
        %v3205 = vsel %vm384, %v3147, 0
        %v3208 = vsel %vm384, %v3148, 0
        %v3211 = vsel %vm384, %v3149, 0
        %v3214 = vsel %vm384, %v3150, 0
        %v3217 = vsel %vm384, %v3151, 0
        %v3220 = vsel %vm384, %v3152, 0
        %v3223 = vsel %vm384, %v3153, 0
        %v3226 = vsel %vm384, %v3154, 0
        %v3229 = vsel %vm384, %v3155, 0
        %v3232 = vsel %vm384, %v3156, 0
        %v3235 = vsel %vm384, %v3157, 0
        %v3238 = vsel %vm384, %v3158, 0
        %v3241 = vsel %vm384, %v3159, 0
        %v3244 = vsel %vm384, %v3160, 0
        %v3247 = vsel %vm384, %v3161, 0
        %v3250 = vsel %vm384, %v3162, 0
        %v3253 = vsel %vm384, %v3163, 0
        %v3256 = vsel %vm384, %v3164, 0
        %v3259 = vsel %vm384, %v3165, 0
        %v3262 = vsel %vm384, %v3166, 0
        %v3265 = vsel %vm384, %v3167, 0
        %3267 = vmatpush.msra.mxu0 0.0
        %3268 = vmatpush.msra.mxu0 0.0
        %3269 = vmatpush.msra.mxu0 0.0
        %3270 = vmatpush.msra.mxu0 0.0
        %3271 = vmatpush.msra.mxu0 0.0
        %3272 = vmatpush.msra.mxu0 0.0
        %3273 = vmatpush.msra.mxu0 0.0
        %3274 = vmatpush.msra.mxu0 0.0
        %3275 = vmatpush.msra.mxu0 0.0
        %3276 = vmatpush.msra.mxu0 0.0
        %3277 = vmatpush.msra.mxu0 0.0
        %3278 = vmatpush.msra.mxu0 0.0
        %3279 = vmatpush.msra.mxu0 0.0
        %3280 = vmatpush.msra.mxu0 0.0
        %3281 = vmatpush.msra.mxu0 %v3170
        %3282 = vmatpush.msra.mxu0 %v3169
        %3283 = vmatmul.f32.gmra.mxu0 %v3172
        %v3284 = vpop.f32.mrf.mxu0
        %v3285 = vadd.f32 0.0, %v3284
        %3286 = vmatmul.f32.gmra.mxu0 %v3175
        %v3287 = vpop.f32.mrf.mxu0
        %v3288 = vadd.f32 0.0, %v3287
        %3289 = vmatmul.f32.gmra.mxu0 %v3178
        %v3290 = vpop.f32.mrf.mxu0
        %v3291 = vadd.f32 0.0, %v3290
        %3292 = vmatmul.f32.gmra.mxu0 %v3181
        %v3293 = vpop.f32.mrf.mxu0
        %v3294 = vadd.f32 0.0, %v3293
        %3295 = vmatmul.f32.gmra.mxu0 %v3184
        %v3296 = vpop.f32.mrf.mxu0
        %v3297 = vadd.f32 0.0, %v3296
        %3298 = vmatmul.f32.gmra.mxu0 %v3187
        %v3299 = vpop.f32.mrf.mxu0
        %v3300 = vadd.f32 0.0, %v3299
        %3301 = vmatmul.f32.gmra.mxu0 %v3190
        %v3302 = vpop.f32.mrf.mxu0
        %v3303 = vadd.f32 0.0, %v3302
        %3304 = vmatmul.f32.gmra.mxu0 %v3193
        %v3305 = vpop.f32.mrf.mxu0
        %v3306 = vadd.f32 0.0, %v3305
        %3307 = vmatmul.f32.gmra.mxu0 %v3196
        %v3308 = vpop.f32.mrf.mxu0
        %v3309 = vadd.f32 0.0, %v3308
        %3310 = vmatmul.f32.gmra.mxu0 %v3199
        %v3311 = vpop.f32.mrf.mxu0
        %v3312 = vadd.f32 0.0, %v3311
        %3313 = vmatmul.f32.gmra.mxu0 %v3202
        %v3314 = vpop.f32.mrf.mxu0
        %v3315 = vadd.f32 0.0, %v3314
        %3316 = vmatmul.f32.gmra.mxu0 %v3205
        %v3317 = vpop.f32.mrf.mxu0
        %v3318 = vadd.f32 0.0, %v3317
        %3319 = vmatmul.f32.gmra.mxu0 %v3208
        %v3320 = vpop.f32.mrf.mxu0
        %v3321 = vadd.f32 0.0, %v3320
        %3322 = vmatmul.f32.gmra.mxu0 %v3211
        %v3323 = vpop.f32.mrf.mxu0
        %v3324 = vadd.f32 0.0, %v3323
        %3325 = vmatmul.f32.gmra.mxu0 %v3214
        %v3326 = vpop.f32.mrf.mxu0
        %v3327 = vadd.f32 0.0, %v3326
        %3328 = vmatmul.f32.gmra.mxu0 %v3217
        %v3329 = vpop.f32.mrf.mxu0
        %v3330 = vadd.f32 0.0, %v3329
        %3331 = vmatmul.f32.gmra.mxu0 %v3220
        %v3332 = vpop.f32.mrf.mxu0
        %v3333 = vadd.f32 0.0, %v3332
        %3334 = vmatmul.f32.gmra.mxu0 %v3223
        %v3335 = vpop.f32.mrf.mxu0
        %v3336 = vadd.f32 0.0, %v3335
        %3337 = vmatmul.f32.gmra.mxu0 %v3226
        %v3338 = vpop.f32.mrf.mxu0
        %v3339 = vadd.f32 0.0, %v3338
        %3340 = vmatmul.f32.gmra.mxu0 %v3229
        %v3341 = vpop.f32.mrf.mxu0
        %v3342 = vadd.f32 0.0, %v3341
        %3343 = vmatmul.f32.gmra.mxu0 %v3232
        %v3344 = vpop.f32.mrf.mxu0
        %v3345 = vadd.f32 0.0, %v3344
        %3346 = vmatmul.f32.gmra.mxu0 %v3235
        %v3347 = vpop.f32.mrf.mxu0
        %v3348 = vadd.f32 0.0, %v3347
        %3349 = vmatmul.f32.gmra.mxu0 %v3238
        %v3350 = vpop.f32.mrf.mxu0
        %v3351 = vadd.f32 0.0, %v3350
        %3352 = vmatmul.f32.gmra.mxu0 %v3241
        %v3353 = vpop.f32.mrf.mxu0
        %v3354 = vadd.f32 0.0, %v3353
        %3355 = vmatmul.f32.gmra.mxu0 %v3244
        %v3356 = vpop.f32.mrf.mxu0
        %v3357 = vadd.f32 0.0, %v3356
        %3358 = vmatmul.f32.gmra.mxu0 %v3247
        %v3359 = vpop.f32.mrf.mxu0
        %v3360 = vadd.f32 0.0, %v3359
        %3361 = vmatmul.f32.gmra.mxu0 %v3250
        %v3362 = vpop.f32.mrf.mxu0
        %v3363 = vadd.f32 0.0, %v3362
        %3364 = vmatmul.f32.gmra.mxu0 %v3253
        %v3365 = vpop.f32.mrf.mxu0
        %v3366 = vadd.f32 0.0, %v3365
        %3367 = vmatmul.f32.gmra.mxu0 %v3256
        %v3368 = vpop.f32.mrf.mxu0
        %v3369 = vadd.f32 0.0, %v3368
        %3370 = vmatmul.f32.gmra.mxu0 %v3259
        %v3371 = vpop.f32.mrf.mxu0
        %v3372 = vadd.f32 0.0, %v3371
        %3373 = vmatmul.f32.gmra.mxu0 %v3262
        %v3374 = vpop.f32.mrf.mxu0
        %v3375 = vadd.f32 0.0, %v3374
        %3376 = vmatmul.f32.gmra.mxu0 %v3265
        %v3377 = vpop.f32.mrf.mxu0
        %v3378 = vadd.f32 0.0, %v3377
        %3379 = vdwg.mxu0
        %v3380 = vadd.f32 %v3104, %v3285
        %v3381 = vadd.f32 %v3105, %v3288
        %v3382 = vadd.f32 %v3106, %v3291
        %v3383 = vadd.f32 %v3107, %v3294
        %v3384 = vadd.f32 %v3108, %v3297
        %v3385 = vadd.f32 %v3109, %v3300
        %v3386 = vadd.f32 %v3110, %v3303
        %v3387 = vadd.f32 %v3111, %v3306
        %v3388 = vadd.f32 %v3112, %v3309
        %v3389 = vadd.f32 %v3113, %v3312
        %v3390 = vadd.f32 %v3114, %v3315
        %v3391 = vadd.f32 %v3115, %v3318
        %v3392 = vadd.f32 %v3116, %v3321
        %v3393 = vadd.f32 %v3117, %v3324
        %v3394 = vadd.f32 %v3118, %v3327
        %v3395 = vadd.f32 %v3119, %v3330
        %v3396 = vadd.f32 %v3120, %v3333
        %v3397 = vadd.f32 %v3121, %v3336
        %v3398 = vadd.f32 %v3122, %v3339
        %v3399 = vadd.f32 %v3123, %v3342
        %v3400 = vadd.f32 %v3124, %v3345
        %v3401 = vadd.f32 %v3125, %v3348
        %v3402 = vadd.f32 %v3126, %v3351
        %v3403 = vadd.f32 %v3127, %v3354
        %v3404 = vadd.f32 %v3128, %v3357
        %v3405 = vadd.f32 %v3129, %v3360
        %v3406 = vadd.f32 %v3130, %v3363
        %v3407 = vadd.f32 %v3131, %v3366
        %v3408 = vadd.f32 %v3132, %v3369
        %v3409 = vadd.f32 %v3133, %v3372
        %v3410 = vadd.f32 %v3134, %v3375
        %v3411 = vadd.f32 %v3135, %v3378
        %v3412 = vld [vmem:[#allocation3 + $0x20] sm:$0xff]
        %v3413 = vld [vmem:[#allocation3 + $0x28] sm:$0xff]
        %v3414 = vld [vmem:[#allocation3 + $0x30] sm:$0xff]
        %v3415 = vld [vmem:[#allocation3 + $0x38] sm:$0xff]
        %v3416 = vld [vmem:[#allocation3 + $0x40] sm:$0xff]
        %v3417 = vld [vmem:[#allocation3 + $0x48] sm:$0xff]
        %v3418 = vld [vmem:[#allocation3 + $0x50] sm:$0xff]
        %v3419 = vld [vmem:[#allocation3 + $0x58] sm:$0xff]
        %v3420 = vld [vmem:[#allocation3 + $0x60] sm:$0xff]
        %v3421 = vld [vmem:[#allocation3 + $0x68] sm:$0xff]
        %v3422 = vld [vmem:[#allocation3 + $0x70] sm:$0xff]
        %v3423 = vld [vmem:[#allocation3 + $0x78] sm:$0xff]
        %v3424 = vld [vmem:[#allocation3 + $0x80] sm:$0xff]
        %v3425 = vld [vmem:[#allocation3 + $0x88] sm:$0xff]
        %v3426 = vld [vmem:[#allocation3 + $0x90] sm:$0xff]
        %v3427 = vld [vmem:[#allocation3 + $0x98] sm:$0xff]
        %v3428 = vld [vmem:[#allocation3 + $0xa0] sm:$0xff]
        %v3429 = vld [vmem:[#allocation3 + $0xa8] sm:$0xff]
        %v3430 = vld [vmem:[#allocation3 + $0xb0] sm:$0xff]
        %v3431 = vld [vmem:[#allocation3 + $0xb8] sm:$0xff]
        %v3432 = vld [vmem:[#allocation3 + $0xc0] sm:$0xff]
        %v3433 = vld [vmem:[#allocation3 + $0xc8] sm:$0xff]
        %v3434 = vld [vmem:[#allocation3 + $0xd0] sm:$0xff]
        %v3435 = vld [vmem:[#allocation3 + $0xd8] sm:$0xff]
        %v3436 = vld [vmem:[#allocation3 + $0xe0] sm:$0xff]
        %v3437 = vld [vmem:[#allocation3 + $0xe8] sm:$0xff]
        %v3438 = vld [vmem:[#allocation3 + $0xf0] sm:$0xff]
        %v3439 = vld [vmem:[#allocation3 + $0xf8] sm:$0xff]
        %v3440 = vld [vmem:[#allocation3 + $0x100] sm:$0xff]
        %v3441 = vld [vmem:[#allocation3 + $0x108] sm:$0xff]
        %v3442 = vld [vmem:[#allocation3 + $0x110] sm:$0xff]
        %v3443 = vld [vmem:[#allocation3 + $0x118] sm:$0xff]
        %s3444 = scalar_lea.vmem %s3, 96
        %v3445 = vld [vmem:[%s3444] sm:$0xff]
        %v3446 = vld [vmem:[%s3444 + $0x8] sm:$0xff]
        %v3448 = vsel %vm384, %v3412, 0
        %v3451 = vsel %vm384, %v3413, 0
        %v3454 = vsel %vm384, %v3414, 0
        %v3457 = vsel %vm384, %v3415, 0
        %v3460 = vsel %vm384, %v3416, 0
        %v3463 = vsel %vm384, %v3417, 0
        %v3466 = vsel %vm384, %v3418, 0
        %v3469 = vsel %vm384, %v3419, 0
        %v3472 = vsel %vm384, %v3420, 0
        %v3475 = vsel %vm384, %v3421, 0
        %v3478 = vsel %vm384, %v3422, 0
        %v3481 = vsel %vm384, %v3423, 0
        %v3484 = vsel %vm384, %v3424, 0
        %v3487 = vsel %vm384, %v3425, 0
        %v3490 = vsel %vm384, %v3426, 0
        %v3493 = vsel %vm384, %v3427, 0
        %v3496 = vsel %vm384, %v3428, 0
        %v3499 = vsel %vm384, %v3429, 0
        %v3502 = vsel %vm384, %v3430, 0
        %v3505 = vsel %vm384, %v3431, 0
        %v3508 = vsel %vm384, %v3432, 0
        %v3511 = vsel %vm384, %v3433, 0
        %v3514 = vsel %vm384, %v3434, 0
        %v3517 = vsel %vm384, %v3435, 0
        %v3520 = vsel %vm384, %v3436, 0
        %v3523 = vsel %vm384, %v3437, 0
        %v3526 = vsel %vm384, %v3438, 0
        %v3529 = vsel %vm384, %v3439, 0
        %v3532 = vsel %vm384, %v3440, 0
        %v3535 = vsel %vm384, %v3441, 0
        %v3538 = vsel %vm384, %v3442, 0
        %v3541 = vsel %vm384, %v3443, 0
        %3543 = vmatpush.msra.mxu0 0.0
        %3544 = vmatpush.msra.mxu0 0.0
        %3545 = vmatpush.msra.mxu0 0.0
        %3546 = vmatpush.msra.mxu0 0.0
        %3547 = vmatpush.msra.mxu0 0.0
        %3548 = vmatpush.msra.mxu0 0.0
        %3549 = vmatpush.msra.mxu0 0.0
        %3550 = vmatpush.msra.mxu0 0.0
        %3551 = vmatpush.msra.mxu0 0.0
        %3552 = vmatpush.msra.mxu0 0.0
        %3553 = vmatpush.msra.mxu0 0.0
        %3554 = vmatpush.msra.mxu0 0.0
        %3555 = vmatpush.msra.mxu0 0.0
        %3556 = vmatpush.msra.mxu0 0.0
        %3557 = vmatpush.msra.mxu0 %v3446
        %3558 = vmatpush.msra.mxu0 %v3445
        %3559 = vmatmul.f32.gmra.mxu0 %v3448
        %v3560 = vpop.f32.mrf.mxu0
        %v3561 = vadd.f32 0.0, %v3560
        %3562 = vmatmul.f32.gmra.mxu0 %v3451
        %v3563 = vpop.f32.mrf.mxu0
        %v3564 = vadd.f32 0.0, %v3563
        %3565 = vmatmul.f32.gmra.mxu0 %v3454
        %v3566 = vpop.f32.mrf.mxu0
        %v3567 = vadd.f32 0.0, %v3566
        %3568 = vmatmul.f32.gmra.mxu0 %v3457
        %v3569 = vpop.f32.mrf.mxu0
        %v3570 = vadd.f32 0.0, %v3569
        %3571 = vmatmul.f32.gmra.mxu0 %v3460
        %v3572 = vpop.f32.mrf.mxu0
        %v3573 = vadd.f32 0.0, %v3572
        %3574 = vmatmul.f32.gmra.mxu0 %v3463
        %v3575 = vpop.f32.mrf.mxu0
        %v3576 = vadd.f32 0.0, %v3575
        %3577 = vmatmul.f32.gmra.mxu0 %v3466
        %v3578 = vpop.f32.mrf.mxu0
        %v3579 = vadd.f32 0.0, %v3578
        %3580 = vmatmul.f32.gmra.mxu0 %v3469
        %v3581 = vpop.f32.mrf.mxu0
        %v3582 = vadd.f32 0.0, %v3581
        %3583 = vmatmul.f32.gmra.mxu0 %v3472
        %v3584 = vpop.f32.mrf.mxu0
        %v3585 = vadd.f32 0.0, %v3584
        %3586 = vmatmul.f32.gmra.mxu0 %v3475
        %v3587 = vpop.f32.mrf.mxu0
        %v3588 = vadd.f32 0.0, %v3587
        %3589 = vmatmul.f32.gmra.mxu0 %v3478
        %v3590 = vpop.f32.mrf.mxu0
        %v3591 = vadd.f32 0.0, %v3590
        %3592 = vmatmul.f32.gmra.mxu0 %v3481
        %v3593 = vpop.f32.mrf.mxu0
        %v3594 = vadd.f32 0.0, %v3593
        %3595 = vmatmul.f32.gmra.mxu0 %v3484
        %v3596 = vpop.f32.mrf.mxu0
        %v3597 = vadd.f32 0.0, %v3596
        %3598 = vmatmul.f32.gmra.mxu0 %v3487
        %v3599 = vpop.f32.mrf.mxu0
        %v3600 = vadd.f32 0.0, %v3599
        %3601 = vmatmul.f32.gmra.mxu0 %v3490
        %v3602 = vpop.f32.mrf.mxu0
        %v3603 = vadd.f32 0.0, %v3602
        %3604 = vmatmul.f32.gmra.mxu0 %v3493
        %v3605 = vpop.f32.mrf.mxu0
        %v3606 = vadd.f32 0.0, %v3605
        %3607 = vmatmul.f32.gmra.mxu0 %v3496
        %v3608 = vpop.f32.mrf.mxu0
        %v3609 = vadd.f32 0.0, %v3608
        %3610 = vmatmul.f32.gmra.mxu0 %v3499
        %v3611 = vpop.f32.mrf.mxu0
        %v3612 = vadd.f32 0.0, %v3611
        %3613 = vmatmul.f32.gmra.mxu0 %v3502
        %v3614 = vpop.f32.mrf.mxu0
        %v3615 = vadd.f32 0.0, %v3614
        %3616 = vmatmul.f32.gmra.mxu0 %v3505
        %v3617 = vpop.f32.mrf.mxu0
        %v3618 = vadd.f32 0.0, %v3617
        %3619 = vmatmul.f32.gmra.mxu0 %v3508
        %v3620 = vpop.f32.mrf.mxu0
        %v3621 = vadd.f32 0.0, %v3620
        %3622 = vmatmul.f32.gmra.mxu0 %v3511
        %v3623 = vpop.f32.mrf.mxu0
        %v3624 = vadd.f32 0.0, %v3623
        %3625 = vmatmul.f32.gmra.mxu0 %v3514
        %v3626 = vpop.f32.mrf.mxu0
        %v3627 = vadd.f32 0.0, %v3626
        %3628 = vmatmul.f32.gmra.mxu0 %v3517
        %v3629 = vpop.f32.mrf.mxu0
        %v3630 = vadd.f32 0.0, %v3629
        %3631 = vmatmul.f32.gmra.mxu0 %v3520
        %v3632 = vpop.f32.mrf.mxu0
        %v3633 = vadd.f32 0.0, %v3632
        %3634 = vmatmul.f32.gmra.mxu0 %v3523
        %v3635 = vpop.f32.mrf.mxu0
        %v3636 = vadd.f32 0.0, %v3635
        %3637 = vmatmul.f32.gmra.mxu0 %v3526
        %v3638 = vpop.f32.mrf.mxu0
        %v3639 = vadd.f32 0.0, %v3638
        %3640 = vmatmul.f32.gmra.mxu0 %v3529
        %v3641 = vpop.f32.mrf.mxu0
        %v3642 = vadd.f32 0.0, %v3641
        %3643 = vmatmul.f32.gmra.mxu0 %v3532
        %v3644 = vpop.f32.mrf.mxu0
        %v3645 = vadd.f32 0.0, %v3644
        %3646 = vmatmul.f32.gmra.mxu0 %v3535
        %v3647 = vpop.f32.mrf.mxu0
        %v3648 = vadd.f32 0.0, %v3647
        %3649 = vmatmul.f32.gmra.mxu0 %v3538
        %v3650 = vpop.f32.mrf.mxu0
        %v3651 = vadd.f32 0.0, %v3650
        %3652 = vmatmul.f32.gmra.mxu0 %v3541
        %v3653 = vpop.f32.mrf.mxu0
        %v3654 = vadd.f32 0.0, %v3653
        %3655 = vdwg.mxu0
        %v3656 = vadd.f32 %v3380, %v3561
        %v3657 = vadd.f32 %v3381, %v3564
        %v3658 = vadd.f32 %v3382, %v3567
        %v3659 = vadd.f32 %v3383, %v3570
        %v3660 = vadd.f32 %v3384, %v3573
        %v3661 = vadd.f32 %v3385, %v3576
        %v3662 = vadd.f32 %v3386, %v3579
        %v3663 = vadd.f32 %v3387, %v3582
        %v3664 = vadd.f32 %v3388, %v3585
        %v3665 = vadd.f32 %v3389, %v3588
        %v3666 = vadd.f32 %v3390, %v3591
        %v3667 = vadd.f32 %v3391, %v3594
        %v3668 = vadd.f32 %v3392, %v3597
        %v3669 = vadd.f32 %v3393, %v3600
        %v3670 = vadd.f32 %v3394, %v3603
        %v3671 = vadd.f32 %v3395, %v3606
        %v3672 = vadd.f32 %v3396, %v3609
        %v3673 = vadd.f32 %v3397, %v3612
        %v3674 = vadd.f32 %v3398, %v3615
        %v3675 = vadd.f32 %v3399, %v3618
        %v3676 = vadd.f32 %v3400, %v3621
        %v3677 = vadd.f32 %v3401, %v3624
        %v3678 = vadd.f32 %v3402, %v3627
        %v3679 = vadd.f32 %v3403, %v3630
        %v3680 = vadd.f32 %v3404, %v3633
        %v3681 = vadd.f32 %v3405, %v3636
        %v3682 = vadd.f32 %v3406, %v3639
        %v3683 = vadd.f32 %v3407, %v3642
        %v3684 = vadd.f32 %v3408, %v3645
        %v3685 = vadd.f32 %v3409, %v3648
        %v3686 = vadd.f32 %v3410, %v3651
        %v3687 = vadd.f32 %v3411, %v3654
        %v3688 = vld [vmem:[#allocation3 + $0x21] sm:$0xff]
        %v3689 = vld [vmem:[#allocation3 + $0x29] sm:$0xff]
        %v3690 = vld [vmem:[#allocation3 + $0x31] sm:$0xff]
        %v3691 = vld [vmem:[#allocation3 + $0x39] sm:$0xff]
        %v3692 = vld [vmem:[#allocation3 + $0x41] sm:$0xff]
        %v3693 = vld [vmem:[#allocation3 + $0x49] sm:$0xff]
        %v3694 = vld [vmem:[#allocation3 + $0x51] sm:$0xff]
        %v3695 = vld [vmem:[#allocation3 + $0x59] sm:$0xff]
        %v3696 = vld [vmem:[#allocation3 + $0x61] sm:$0xff]
        %v3697 = vld [vmem:[#allocation3 + $0x69] sm:$0xff]
        %v3698 = vld [vmem:[#allocation3 + $0x71] sm:$0xff]
        %v3699 = vld [vmem:[#allocation3 + $0x79] sm:$0xff]
        %v3700 = vld [vmem:[#allocation3 + $0x81] sm:$0xff]
        %v3701 = vld [vmem:[#allocation3 + $0x89] sm:$0xff]
        %v3702 = vld [vmem:[#allocation3 + $0x91] sm:$0xff]
        %v3703 = vld [vmem:[#allocation3 + $0x99] sm:$0xff]
        %v3704 = vld [vmem:[#allocation3 + $0xa1] sm:$0xff]
        %v3705 = vld [vmem:[#allocation3 + $0xa9] sm:$0xff]
        %v3706 = vld [vmem:[#allocation3 + $0xb1] sm:$0xff]
        %v3707 = vld [vmem:[#allocation3 + $0xb9] sm:$0xff]
        %v3708 = vld [vmem:[#allocation3 + $0xc1] sm:$0xff]
        %v3709 = vld [vmem:[#allocation3 + $0xc9] sm:$0xff]
        %v3710 = vld [vmem:[#allocation3 + $0xd1] sm:$0xff]
        %v3711 = vld [vmem:[#allocation3 + $0xd9] sm:$0xff]
        %v3712 = vld [vmem:[#allocation3 + $0xe1] sm:$0xff]
        %v3713 = vld [vmem:[#allocation3 + $0xe9] sm:$0xff]
        %v3714 = vld [vmem:[#allocation3 + $0xf1] sm:$0xff]
        %v3715 = vld [vmem:[#allocation3 + $0xf9] sm:$0xff]
        %v3716 = vld [vmem:[#allocation3 + $0x101] sm:$0xff]
        %v3717 = vld [vmem:[#allocation3 + $0x109] sm:$0xff]
        %v3718 = vld [vmem:[#allocation3 + $0x111] sm:$0xff]
        %v3719 = vld [vmem:[#allocation3 + $0x119] sm:$0xff]
        %s3720 = scalar_lea.vmem %s3, 112
        %v3721 = vld [vmem:[%s3720] sm:$0xff]
        %v3722 = vld [vmem:[%s3720 + $0x8] sm:$0xff]
        %v3724 = vsel %vm384, %v3688, 0
        %v3727 = vsel %vm384, %v3689, 0
        %v3730 = vsel %vm384, %v3690, 0
        %v3733 = vsel %vm384, %v3691, 0
        %v3736 = vsel %vm384, %v3692, 0
        %v3739 = vsel %vm384, %v3693, 0
        %v3742 = vsel %vm384, %v3694, 0
        %v3745 = vsel %vm384, %v3695, 0
        %v3748 = vsel %vm384, %v3696, 0
        %v3751 = vsel %vm384, %v3697, 0
        %v3754 = vsel %vm384, %v3698, 0
        %v3757 = vsel %vm384, %v3699, 0
        %v3760 = vsel %vm384, %v3700, 0
        %v3763 = vsel %vm384, %v3701, 0
        %v3766 = vsel %vm384, %v3702, 0
        %v3769 = vsel %vm384, %v3703, 0
        %v3772 = vsel %vm384, %v3704, 0
        %v3775 = vsel %vm384, %v3705, 0
        %v3778 = vsel %vm384, %v3706, 0
        %v3781 = vsel %vm384, %v3707, 0
        %v3784 = vsel %vm384, %v3708, 0
        %v3787 = vsel %vm384, %v3709, 0
        %v3790 = vsel %vm384, %v3710, 0
        %v3793 = vsel %vm384, %v3711, 0
        %v3796 = vsel %vm384, %v3712, 0
        %v3799 = vsel %vm384, %v3713, 0
        %v3802 = vsel %vm384, %v3714, 0
        %v3805 = vsel %vm384, %v3715, 0
        %v3808 = vsel %vm384, %v3716, 0
        %v3811 = vsel %vm384, %v3717, 0
        %v3814 = vsel %vm384, %v3718, 0
        %v3817 = vsel %vm384, %v3719, 0
        %3819 = vmatpush.msra.mxu0 0.0
        %3820 = vmatpush.msra.mxu0 0.0
        %3821 = vmatpush.msra.mxu0 0.0
        %3822 = vmatpush.msra.mxu0 0.0
        %3823 = vmatpush.msra.mxu0 0.0
        %3824 = vmatpush.msra.mxu0 0.0
        %3825 = vmatpush.msra.mxu0 0.0
        %3826 = vmatpush.msra.mxu0 0.0
        %3827 = vmatpush.msra.mxu0 0.0
        %3828 = vmatpush.msra.mxu0 0.0
        %3829 = vmatpush.msra.mxu0 0.0
        %3830 = vmatpush.msra.mxu0 0.0
        %3831 = vmatpush.msra.mxu0 0.0
        %3832 = vmatpush.msra.mxu0 0.0
        %3833 = vmatpush.msra.mxu0 %v3722
        %3834 = vmatpush.msra.mxu0 %v3721
        %3835 = vmatmul.f32.gmra.mxu0 %v3724
        %v3836 = vpop.f32.mrf.mxu0
        %v3837 = vadd.f32 0.0, %v3836
        %3838 = vmatmul.f32.gmra.mxu0 %v3727
        %v3839 = vpop.f32.mrf.mxu0
        %v3840 = vadd.f32 0.0, %v3839
        %3841 = vmatmul.f32.gmra.mxu0 %v3730
        %v3842 = vpop.f32.mrf.mxu0
        %v3843 = vadd.f32 0.0, %v3842
        %3844 = vmatmul.f32.gmra.mxu0 %v3733
        %v3845 = vpop.f32.mrf.mxu0
        %v3846 = vadd.f32 0.0, %v3845
        %3847 = vmatmul.f32.gmra.mxu0 %v3736
        %v3848 = vpop.f32.mrf.mxu0
        %v3849 = vadd.f32 0.0, %v3848
        %3850 = vmatmul.f32.gmra.mxu0 %v3739
        %v3851 = vpop.f32.mrf.mxu0
        %v3852 = vadd.f32 0.0, %v3851
        %3853 = vmatmul.f32.gmra.mxu0 %v3742
        %v3854 = vpop.f32.mrf.mxu0
        %v3855 = vadd.f32 0.0, %v3854
        %3856 = vmatmul.f32.gmra.mxu0 %v3745
        %v3857 = vpop.f32.mrf.mxu0
        %v3858 = vadd.f32 0.0, %v3857
        %3859 = vmatmul.f32.gmra.mxu0 %v3748
        %v3860 = vpop.f32.mrf.mxu0
        %v3861 = vadd.f32 0.0, %v3860
        %3862 = vmatmul.f32.gmra.mxu0 %v3751
        %v3863 = vpop.f32.mrf.mxu0
        %v3864 = vadd.f32 0.0, %v3863
        %3865 = vmatmul.f32.gmra.mxu0 %v3754
        %v3866 = vpop.f32.mrf.mxu0
        %v3867 = vadd.f32 0.0, %v3866
        %3868 = vmatmul.f32.gmra.mxu0 %v3757
        %v3869 = vpop.f32.mrf.mxu0
        %v3870 = vadd.f32 0.0, %v3869
        %3871 = vmatmul.f32.gmra.mxu0 %v3760
        %v3872 = vpop.f32.mrf.mxu0
        %v3873 = vadd.f32 0.0, %v3872
        %3874 = vmatmul.f32.gmra.mxu0 %v3763
        %v3875 = vpop.f32.mrf.mxu0
        %v3876 = vadd.f32 0.0, %v3875
        %3877 = vmatmul.f32.gmra.mxu0 %v3766
        %v3878 = vpop.f32.mrf.mxu0
        %v3879 = vadd.f32 0.0, %v3878
        %3880 = vmatmul.f32.gmra.mxu0 %v3769
        %v3881 = vpop.f32.mrf.mxu0
        %v3882 = vadd.f32 0.0, %v3881
        %3883 = vmatmul.f32.gmra.mxu0 %v3772
        %v3884 = vpop.f32.mrf.mxu0
        %v3885 = vadd.f32 0.0, %v3884
        %3886 = vmatmul.f32.gmra.mxu0 %v3775
        %v3887 = vpop.f32.mrf.mxu0
        %v3888 = vadd.f32 0.0, %v3887
        %3889 = vmatmul.f32.gmra.mxu0 %v3778
        %v3890 = vpop.f32.mrf.mxu0
        %v3891 = vadd.f32 0.0, %v3890
        %3892 = vmatmul.f32.gmra.mxu0 %v3781
        %v3893 = vpop.f32.mrf.mxu0
        %v3894 = vadd.f32 0.0, %v3893
        %3895 = vmatmul.f32.gmra.mxu0 %v3784
        %v3896 = vpop.f32.mrf.mxu0
        %v3897 = vadd.f32 0.0, %v3896
        %3898 = vmatmul.f32.gmra.mxu0 %v3787
        %v3899 = vpop.f32.mrf.mxu0
        %v3900 = vadd.f32 0.0, %v3899
        %3901 = vmatmul.f32.gmra.mxu0 %v3790
        %v3902 = vpop.f32.mrf.mxu0
        %v3903 = vadd.f32 0.0, %v3902
        %3904 = vmatmul.f32.gmra.mxu0 %v3793
        %v3905 = vpop.f32.mrf.mxu0
        %v3906 = vadd.f32 0.0, %v3905
        %3907 = vmatmul.f32.gmra.mxu0 %v3796
        %v3908 = vpop.f32.mrf.mxu0
        %v3909 = vadd.f32 0.0, %v3908
        %3910 = vmatmul.f32.gmra.mxu0 %v3799
        %v3911 = vpop.f32.mrf.mxu0
        %v3912 = vadd.f32 0.0, %v3911
        %3913 = vmatmul.f32.gmra.mxu0 %v3802
        %v3914 = vpop.f32.mrf.mxu0
        %v3915 = vadd.f32 0.0, %v3914
        %3916 = vmatmul.f32.gmra.mxu0 %v3805
        %v3917 = vpop.f32.mrf.mxu0
        %v3918 = vadd.f32 0.0, %v3917
        %3919 = vmatmul.f32.gmra.mxu0 %v3808
        %v3920 = vpop.f32.mrf.mxu0
        %v3921 = vadd.f32 0.0, %v3920
        %3922 = vmatmul.f32.gmra.mxu0 %v3811
        %v3923 = vpop.f32.mrf.mxu0
        %v3924 = vadd.f32 0.0, %v3923
        %3925 = vmatmul.f32.gmra.mxu0 %v3814
        %v3926 = vpop.f32.mrf.mxu0
        %v3927 = vadd.f32 0.0, %v3926
        %3928 = vmatmul.f32.gmra.mxu0 %v3817
        %v3929 = vpop.f32.mrf.mxu0
        %v3930 = vadd.f32 0.0, %v3929
        %3931 = vdwg.mxu0
        %v3932 = vadd.f32 %v3656, %v3837
        %v3933 = vadd.f32 %v3657, %v3840
        %v3934 = vadd.f32 %v3658, %v3843
        %v3935 = vadd.f32 %v3659, %v3846
        %v3936 = vadd.f32 %v3660, %v3849
        %v3937 = vadd.f32 %v3661, %v3852
        %v3938 = vadd.f32 %v3662, %v3855
        %v3939 = vadd.f32 %v3663, %v3858
        %v3940 = vadd.f32 %v3664, %v3861
        %v3941 = vadd.f32 %v3665, %v3864
        %v3942 = vadd.f32 %v3666, %v3867
        %v3943 = vadd.f32 %v3667, %v3870
        %v3944 = vadd.f32 %v3668, %v3873
        %v3945 = vadd.f32 %v3669, %v3876
        %v3946 = vadd.f32 %v3670, %v3879
        %v3947 = vadd.f32 %v3671, %v3882
        %v3948 = vadd.f32 %v3672, %v3885
        %v3949 = vadd.f32 %v3673, %v3888
        %v3950 = vadd.f32 %v3674, %v3891
        %v3951 = vadd.f32 %v3675, %v3894
        %v3952 = vadd.f32 %v3676, %v3897
        %v3953 = vadd.f32 %v3677, %v3900
        %v3954 = vadd.f32 %v3678, %v3903
        %v3955 = vadd.f32 %v3679, %v3906
        %v3956 = vadd.f32 %v3680, %v3909
        %v3957 = vadd.f32 %v3681, %v3912
        %v3958 = vadd.f32 %v3682, %v3915
        %v3959 = vadd.f32 %v3683, %v3918
        %v3960 = vadd.f32 %v3684, %v3921
        %v3961 = vadd.f32 %v3685, %v3924
        %v3962 = vadd.f32 %v3686, %v3927
        %v3963 = vadd.f32 %v3687, %v3930
        %v3964 = vld [vmem:[#allocation3 + $0x22] sm:$0xff]
        %v3965 = vld [vmem:[#allocation3 + $0x2a] sm:$0xff]
        %v3966 = vld [vmem:[#allocation3 + $0x32] sm:$0xff]
        %v3967 = vld [vmem:[#allocation3 + $0x3a] sm:$0xff]
        %v3968 = vld [vmem:[#allocation3 + $0x42] sm:$0xff]
        %v3969 = vld [vmem:[#allocation3 + $0x4a] sm:$0xff]
        %v3970 = vld [vmem:[#allocation3 + $0x52] sm:$0xff]
        %v3971 = vld [vmem:[#allocation3 + $0x5a] sm:$0xff]
        %v3972 = vld [vmem:[#allocation3 + $0x62] sm:$0xff]
        %v3973 = vld [vmem:[#allocation3 + $0x6a] sm:$0xff]
        %v3974 = vld [vmem:[#allocation3 + $0x72] sm:$0xff]
        %v3975 = vld [vmem:[#allocation3 + $0x7a] sm:$0xff]
        %v3976 = vld [vmem:[#allocation3 + $0x82] sm:$0xff]
        %v3977 = vld [vmem:[#allocation3 + $0x8a] sm:$0xff]
        %v3978 = vld [vmem:[#allocation3 + $0x92] sm:$0xff]
        %v3979 = vld [vmem:[#allocation3 + $0x9a] sm:$0xff]
        %v3980 = vld [vmem:[#allocation3 + $0xa2] sm:$0xff]
        %v3981 = vld [vmem:[#allocation3 + $0xaa] sm:$0xff]
        %v3982 = vld [vmem:[#allocation3 + $0xb2] sm:$0xff]
        %v3983 = vld [vmem:[#allocation3 + $0xba] sm:$0xff]
        %v3984 = vld [vmem:[#allocation3 + $0xc2] sm:$0xff]
        %v3985 = vld [vmem:[#allocation3 + $0xca] sm:$0xff]
        %v3986 = vld [vmem:[#allocation3 + $0xd2] sm:$0xff]
        %v3987 = vld [vmem:[#allocation3 + $0xda] sm:$0xff]
        %v3988 = vld [vmem:[#allocation3 + $0xe2] sm:$0xff]
        %v3989 = vld [vmem:[#allocation3 + $0xea] sm:$0xff]
        %v3990 = vld [vmem:[#allocation3 + $0xf2] sm:$0xff]
        %v3991 = vld [vmem:[#allocation3 + $0xfa] sm:$0xff]
        %v3992 = vld [vmem:[#allocation3 + $0x102] sm:$0xff]
        %v3993 = vld [vmem:[#allocation3 + $0x10a] sm:$0xff]
        %v3994 = vld [vmem:[#allocation3 + $0x112] sm:$0xff]
        %v3995 = vld [vmem:[#allocation3 + $0x11a] sm:$0xff]
        %s3996 = scalar_lea.vmem %s3, 128
        %v3997 = vld [vmem:[%s3996] sm:$0xff]
        %v3998 = vld [vmem:[%s3996 + $0x8] sm:$0xff]
        %v4000 = vsel %vm384, %v3964, 0
        %v4003 = vsel %vm384, %v3965, 0
        %v4006 = vsel %vm384, %v3966, 0
        %v4009 = vsel %vm384, %v3967, 0
        %v4012 = vsel %vm384, %v3968, 0
        %v4015 = vsel %vm384, %v3969, 0
        %v4018 = vsel %vm384, %v3970, 0
        %v4021 = vsel %vm384, %v3971, 0
        %v4024 = vsel %vm384, %v3972, 0
        %v4027 = vsel %vm384, %v3973, 0
        %v4030 = vsel %vm384, %v3974, 0
        %v4033 = vsel %vm384, %v3975, 0
        %v4036 = vsel %vm384, %v3976, 0
        %v4039 = vsel %vm384, %v3977, 0
        %v4042 = vsel %vm384, %v3978, 0
        %v4045 = vsel %vm384, %v3979, 0
        %v4048 = vsel %vm384, %v3980, 0
        %v4051 = vsel %vm384, %v3981, 0
        %v4054 = vsel %vm384, %v3982, 0
        %v4057 = vsel %vm384, %v3983, 0
        %v4060 = vsel %vm384, %v3984, 0
        %v4063 = vsel %vm384, %v3985, 0
        %v4066 = vsel %vm384, %v3986, 0
        %v4069 = vsel %vm384, %v3987, 0
        %v4072 = vsel %vm384, %v3988, 0
        %v4075 = vsel %vm384, %v3989, 0
        %v4078 = vsel %vm384, %v3990, 0
        %v4081 = vsel %vm384, %v3991, 0
        %v4084 = vsel %vm384, %v3992, 0
        %v4087 = vsel %vm384, %v3993, 0
        %v4090 = vsel %vm384, %v3994, 0
        %v4093 = vsel %vm384, %v3995, 0
        %4095 = vmatpush.msra.mxu0 0.0
        %4096 = vmatpush.msra.mxu0 0.0
        %4097 = vmatpush.msra.mxu0 0.0
        %4098 = vmatpush.msra.mxu0 0.0
        %4099 = vmatpush.msra.mxu0 0.0
        %4100 = vmatpush.msra.mxu0 0.0
        %4101 = vmatpush.msra.mxu0 0.0
        %4102 = vmatpush.msra.mxu0 0.0
        %4103 = vmatpush.msra.mxu0 0.0
        %4104 = vmatpush.msra.mxu0 0.0
        %4105 = vmatpush.msra.mxu0 0.0
        %4106 = vmatpush.msra.mxu0 0.0
        %4107 = vmatpush.msra.mxu0 0.0
        %4108 = vmatpush.msra.mxu0 0.0
        %4109 = vmatpush.msra.mxu0 %v3998
        %4110 = vmatpush.msra.mxu0 %v3997
        %4111 = vmatmul.f32.gmra.mxu0 %v4000
        %v4112 = vpop.f32.mrf.mxu0
        %v4113 = vadd.f32 0.0, %v4112
        %4114 = vmatmul.f32.gmra.mxu0 %v4003
        %v4115 = vpop.f32.mrf.mxu0
        %v4116 = vadd.f32 0.0, %v4115
        %4117 = vmatmul.f32.gmra.mxu0 %v4006
        %v4118 = vpop.f32.mrf.mxu0
        %v4119 = vadd.f32 0.0, %v4118
        %4120 = vmatmul.f32.gmra.mxu0 %v4009
        %v4121 = vpop.f32.mrf.mxu0
        %v4122 = vadd.f32 0.0, %v4121
        %4123 = vmatmul.f32.gmra.mxu0 %v4012
        %v4124 = vpop.f32.mrf.mxu0
        %v4125 = vadd.f32 0.0, %v4124
        %4126 = vmatmul.f32.gmra.mxu0 %v4015
        %v4127 = vpop.f32.mrf.mxu0
        %v4128 = vadd.f32 0.0, %v4127
        %4129 = vmatmul.f32.gmra.mxu0 %v4018
        %v4130 = vpop.f32.mrf.mxu0
        %v4131 = vadd.f32 0.0, %v4130
        %4132 = vmatmul.f32.gmra.mxu0 %v4021
        %v4133 = vpop.f32.mrf.mxu0
        %v4134 = vadd.f32 0.0, %v4133
        %4135 = vmatmul.f32.gmra.mxu0 %v4024
        %v4136 = vpop.f32.mrf.mxu0
        %v4137 = vadd.f32 0.0, %v4136
        %4138 = vmatmul.f32.gmra.mxu0 %v4027
        %v4139 = vpop.f32.mrf.mxu0
        %v4140 = vadd.f32 0.0, %v4139
        %4141 = vmatmul.f32.gmra.mxu0 %v4030
        %v4142 = vpop.f32.mrf.mxu0
        %v4143 = vadd.f32 0.0, %v4142
        %4144 = vmatmul.f32.gmra.mxu0 %v4033
        %v4145 = vpop.f32.mrf.mxu0
        %v4146 = vadd.f32 0.0, %v4145
        %4147 = vmatmul.f32.gmra.mxu0 %v4036
        %v4148 = vpop.f32.mrf.mxu0
        %v4149 = vadd.f32 0.0, %v4148
        %4150 = vmatmul.f32.gmra.mxu0 %v4039
        %v4151 = vpop.f32.mrf.mxu0
        %v4152 = vadd.f32 0.0, %v4151
        %4153 = vmatmul.f32.gmra.mxu0 %v4042
        %v4154 = vpop.f32.mrf.mxu0
        %v4155 = vadd.f32 0.0, %v4154
        %4156 = vmatmul.f32.gmra.mxu0 %v4045
        %v4157 = vpop.f32.mrf.mxu0
        %v4158 = vadd.f32 0.0, %v4157
        %4159 = vmatmul.f32.gmra.mxu0 %v4048
        %v4160 = vpop.f32.mrf.mxu0
        %v4161 = vadd.f32 0.0, %v4160
        %4162 = vmatmul.f32.gmra.mxu0 %v4051
        %v4163 = vpop.f32.mrf.mxu0
        %v4164 = vadd.f32 0.0, %v4163
        %4165 = vmatmul.f32.gmra.mxu0 %v4054
        %v4166 = vpop.f32.mrf.mxu0
        %v4167 = vadd.f32 0.0, %v4166
        %4168 = vmatmul.f32.gmra.mxu0 %v4057
        %v4169 = vpop.f32.mrf.mxu0
        %v4170 = vadd.f32 0.0, %v4169
        %4171 = vmatmul.f32.gmra.mxu0 %v4060
        %v4172 = vpop.f32.mrf.mxu0
        %v4173 = vadd.f32 0.0, %v4172
        %4174 = vmatmul.f32.gmra.mxu0 %v4063
        %v4175 = vpop.f32.mrf.mxu0
        %v4176 = vadd.f32 0.0, %v4175
        %4177 = vmatmul.f32.gmra.mxu0 %v4066
        %v4178 = vpop.f32.mrf.mxu0
        %v4179 = vadd.f32 0.0, %v4178
        %4180 = vmatmul.f32.gmra.mxu0 %v4069
        %v4181 = vpop.f32.mrf.mxu0
        %v4182 = vadd.f32 0.0, %v4181
        %4183 = vmatmul.f32.gmra.mxu0 %v4072
        %v4184 = vpop.f32.mrf.mxu0
        %v4185 = vadd.f32 0.0, %v4184
        %4186 = vmatmul.f32.gmra.mxu0 %v4075
        %v4187 = vpop.f32.mrf.mxu0
        %v4188 = vadd.f32 0.0, %v4187
        %4189 = vmatmul.f32.gmra.mxu0 %v4078
        %v4190 = vpop.f32.mrf.mxu0
        %v4191 = vadd.f32 0.0, %v4190
        %4192 = vmatmul.f32.gmra.mxu0 %v4081
        %v4193 = vpop.f32.mrf.mxu0
        %v4194 = vadd.f32 0.0, %v4193
        %4195 = vmatmul.f32.gmra.mxu0 %v4084
        %v4196 = vpop.f32.mrf.mxu0
        %v4197 = vadd.f32 0.0, %v4196
        %4198 = vmatmul.f32.gmra.mxu0 %v4087
        %v4199 = vpop.f32.mrf.mxu0
        %v4200 = vadd.f32 0.0, %v4199
        %4201 = vmatmul.f32.gmra.mxu0 %v4090
        %v4202 = vpop.f32.mrf.mxu0
        %v4203 = vadd.f32 0.0, %v4202
        %4204 = vmatmul.f32.gmra.mxu0 %v4093
        %v4205 = vpop.f32.mrf.mxu0
        %v4206 = vadd.f32 0.0, %v4205
        %4207 = vdwg.mxu0
        %v4208 = vadd.f32 %v3932, %v4113
        %v4209 = vadd.f32 %v3933, %v4116
        %v4210 = vadd.f32 %v3934, %v4119
        %v4211 = vadd.f32 %v3935, %v4122
        %v4212 = vadd.f32 %v3936, %v4125
        %v4213 = vadd.f32 %v3937, %v4128
        %v4214 = vadd.f32 %v3938, %v4131
        %v4215 = vadd.f32 %v3939, %v4134
        %v4216 = vadd.f32 %v3940, %v4137
        %v4217 = vadd.f32 %v3941, %v4140
        %v4218 = vadd.f32 %v3942, %v4143
        %v4219 = vadd.f32 %v3943, %v4146
        %v4220 = vadd.f32 %v3944, %v4149
        %v4221 = vadd.f32 %v3945, %v4152
        %v4222 = vadd.f32 %v3946, %v4155
        %v4223 = vadd.f32 %v3947, %v4158
        %v4224 = vadd.f32 %v3948, %v4161
        %v4225 = vadd.f32 %v3949, %v4164
        %v4226 = vadd.f32 %v3950, %v4167
        %v4227 = vadd.f32 %v3951, %v4170
        %v4228 = vadd.f32 %v3952, %v4173
        %v4229 = vadd.f32 %v3953, %v4176
        %v4230 = vadd.f32 %v3954, %v4179
        %v4231 = vadd.f32 %v3955, %v4182
        %v4232 = vadd.f32 %v3956, %v4185
        %v4233 = vadd.f32 %v3957, %v4188
        %v4234 = vadd.f32 %v3958, %v4191
        %v4235 = vadd.f32 %v3959, %v4194
        %v4236 = vadd.f32 %v3960, %v4197
        %v4237 = vadd.f32 %v3961, %v4200
        %v4238 = vadd.f32 %v3962, %v4203
        %v4239 = vadd.f32 %v3963, %v4206
        %v4240 = vld [vmem:[%s4] sm:$0x1]
        %v4242 = vperm.slane %v4240, 0
        %v4244 = vadd.f32 %v4208, %v4242
        %v4245 = vadd.f32 %v4209, %v4242
        %v4246 = vadd.f32 %v4210, %v4242
        %v4247 = vadd.f32 %v4211, %v4242
        %v4248 = vadd.f32 %v4212, %v4242
        %v4249 = vadd.f32 %v4213, %v4242
        %v4250 = vadd.f32 %v4214, %v4242
        %v4251 = vadd.f32 %v4215, %v4242
        %v4252 = vadd.f32 %v4216, %v4242
        %v4253 = vadd.f32 %v4217, %v4242
        %v4254 = vadd.f32 %v4218, %v4242
        %v4255 = vadd.f32 %v4219, %v4242
        %v4256 = vadd.f32 %v4220, %v4242
        %v4257 = vadd.f32 %v4221, %v4242
        %v4258 = vadd.f32 %v4222, %v4242
        %v4259 = vadd.f32 %v4223, %v4242
        %v4260 = vadd.f32 %v4224, %v4242
        %v4261 = vadd.f32 %v4225, %v4242
        %v4262 = vadd.f32 %v4226, %v4242
        %v4263 = vadd.f32 %v4227, %v4242
        %v4264 = vadd.f32 %v4228, %v4242
        %v4265 = vadd.f32 %v4229, %v4242
        %v4266 = vadd.f32 %v4230, %v4242
        %v4267 = vadd.f32 %v4231, %v4242
        %v4268 = vadd.f32 %v4232, %v4242
        %v4269 = vadd.f32 %v4233, %v4242
        %v4270 = vadd.f32 %v4234, %v4242
        %v4271 = vadd.f32 %v4235, %v4242
        %v4272 = vadd.f32 %v4236, %v4242
        %v4273 = vadd.f32 %v4237, %v4242
        %v4274 = vadd.f32 %v4238, %v4242
        %v4275 = vadd.f32 %v4239, %v4242
        %v4276 = vmax.f32 %v4244, 0.0
        %v4277 = vmax.f32 %v4245, 0.0
        %v4278 = vmax.f32 %v4246, 0.0
        %v4279 = vmax.f32 %v4247, 0.0
        %v4280 = vmax.f32 %v4248, 0.0
        %v4281 = vmax.f32 %v4249, 0.0
        %v4282 = vmax.f32 %v4250, 0.0
        %v4283 = vmax.f32 %v4251, 0.0
        %v4284 = vmax.f32 %v4252, 0.0
        %v4285 = vmax.f32 %v4253, 0.0
        %v4286 = vmax.f32 %v4254, 0.0
        %v4287 = vmax.f32 %v4255, 0.0
        %v4288 = vmax.f32 %v4256, 0.0
        %v4289 = vmax.f32 %v4257, 0.0
        %v4290 = vmax.f32 %v4258, 0.0
        %v4291 = vmax.f32 %v4259, 0.0
        %v4292 = vmax.f32 %v4260, 0.0
        %v4293 = vmax.f32 %v4261, 0.0
        %v4294 = vmax.f32 %v4262, 0.0
        %v4295 = vmax.f32 %v4263, 0.0
        %v4296 = vmax.f32 %v4264, 0.0
        %v4297 = vmax.f32 %v4265, 0.0
        %v4298 = vmax.f32 %v4266, 0.0
        %v4299 = vmax.f32 %v4267, 0.0
        %v4300 = vmax.f32 %v4268, 0.0
        %v4301 = vmax.f32 %v4269, 0.0
        %v4302 = vmax.f32 %v4270, 0.0
        %v4303 = vmax.f32 %v4271, 0.0
        %v4304 = vmax.f32 %v4272, 0.0
        %v4305 = vmax.f32 %v4273, 0.0
        %v4306 = vmax.f32 %v4274, 0.0
        %v4307 = vmax.f32 %v4275, 0.0
        %4308 = vst.msk [vmem:[#allocation4] sm:$0xff] %vm423, %v4276
        %4309 = vst.msk [vmem:[#allocation4 + $0x8] sm:$0xff] %vm423, %v4277
        %4310 = vst.msk [vmem:[#allocation4 + $0x10] sm:$0xff] %vm423, %v4278
        %4311 = vst.msk [vmem:[#allocation4 + $0x18] sm:$0xff] %vm423, %v4279
        %4312 = vst.msk [vmem:[#allocation4 + $0x20] sm:$0xff] %vm423, %v4280
        %4313 = vst.msk [vmem:[#allocation4 + $0x28] sm:$0xff] %vm423, %v4281
        %4314 = vst.msk [vmem:[#allocation4 + $0x30] sm:$0xff] %vm423, %v4282
        %4315 = vst.msk [vmem:[#allocation4 + $0x38] sm:$0xff] %vm423, %v4283
        %4316 = vst.msk [vmem:[#allocation4 + $0x40] sm:$0xff] %vm423, %v4284
        %4317 = vst.msk [vmem:[#allocation4 + $0x48] sm:$0xff] %vm423, %v4285
        %4318 = vst.msk [vmem:[#allocation4 + $0x50] sm:$0xff] %vm423, %v4286
        %4319 = vst.msk [vmem:[#allocation4 + $0x58] sm:$0xff] %vm423, %v4287
        %4320 = vst.msk [vmem:[#allocation4 + $0x60] sm:$0xff] %vm423, %v4288
        %4321 = vst.msk [vmem:[#allocation4 + $0x68] sm:$0xff] %vm423, %v4289
        %4322 = vst.msk [vmem:[#allocation4 + $0x70] sm:$0xff] %vm423, %v4290
        %4323 = vst.msk [vmem:[#allocation4 + $0x78] sm:$0xff] %vm423, %v4291
        %4324 = vst.msk [vmem:[#allocation4 + $0x80] sm:$0xff] %vm423, %v4292
        %4325 = vst.msk [vmem:[#allocation4 + $0x88] sm:$0xff] %vm423, %v4293
        %4326 = vst.msk [vmem:[#allocation4 + $0x90] sm:$0xff] %vm423, %v4294
        %4327 = vst.msk [vmem:[#allocation4 + $0x98] sm:$0xff] %vm423, %v4295
        %4328 = vst.msk [vmem:[#allocation4 + $0xa0] sm:$0xff] %vm423, %v4296
        %4329 = vst.msk [vmem:[#allocation4 + $0xa8] sm:$0xff] %vm423, %v4297
        %4330 = vst.msk [vmem:[#allocation4 + $0xb0] sm:$0xff] %vm423, %v4298
        %4331 = vst.msk [vmem:[#allocation4 + $0xb8] sm:$0xff] %vm423, %v4299
        %4332 = vst.msk [vmem:[#allocation4 + $0xc0] sm:$0xff] %vm423, %v4300
        %4333 = vst.msk [vmem:[#allocation4 + $0xc8] sm:$0xff] %vm423, %v4301
        %4334 = vst.msk [vmem:[#allocation4 + $0xd0] sm:$0xff] %vm423, %v4302
        %4335 = vst.msk [vmem:[#allocation4 + $0xd8] sm:$0xff] %vm423, %v4303
        %4336 = vst.msk [vmem:[#allocation4 + $0xe0] sm:$0xff] %vm423, %v4304
        %4337 = vst.msk [vmem:[#allocation4 + $0xe8] sm:$0xff] %vm423, %v4305
        %4338 = vst.msk [vmem:[#allocation4 + $0xf0] sm:$0xff] %vm423, %v4306
        %4339 = vst.msk [vmem:[#allocation4 + $0xf8] sm:$0xff] %vm423, %v4307
        %s4340 = scalar_lea.vmem [#allocation4], 17
        %v4341 = vld [vmem:[%s4340] ss:$2 sm:$0x7f]
        %s4342 = scalar_lea.vmem [#allocation4], 18
        %v4343 = vld [vmem:[%s4342] ss:$2 sm:$0x7f]
        %s4344 = scalar_lea.vmem [#allocation4], 33
        %v4345 = vld [vmem:[%s4344] ss:$2 sm:$0x7f]
        %s4346 = scalar_lea.vmem [#allocation4], 34
        %v4347 = vld [vmem:[%s4346] ss:$2 sm:$0x7f]
        %v4348 = vmax.f32 %v4341, %v4343
        %v4349 = vmax.f32 %v4345, %v4347
        %v4350 = vmax.f32 %v4348, %v4349
        %vm4351 = vcmask 260096
        %4352 = vst.msk [vmem:[#allocation5 + $0x14] sm:$0x7f] %vm4351, %v4350
        %s4353 = scalar_lea.vmem [#allocation4], 49
        %v4354 = vld [vmem:[%s4353] ss:$2 sm:$0x7f]
        %s4355 = scalar_lea.vmem [#allocation4], 50
        %v4356 = vld [vmem:[%s4355] ss:$2 sm:$0x7f]
        %s4357 = scalar_lea.vmem [#allocation4], 65
        %v4358 = vld [vmem:[%s4357] ss:$2 sm:$0x7f]
        %s4359 = scalar_lea.vmem [#allocation4], 66
        %v4360 = vld [vmem:[%s4359] ss:$2 sm:$0x7f]
        %v4361 = vmax.f32 %v4354, %v4356
        %v4362 = vmax.f32 %v4358, %v4360
        %v4363 = vmax.f32 %v4361, %v4362
        %4364 = vst.msk [vmem:[#allocation5 + $0x1d] sm:$0x7f] %vm4351, %v4363
        %s4365 = scalar_lea.vmem [#allocation4], 81
        %v4366 = vld [vmem:[%s4365] ss:$2 sm:$0x7f]
        %s4367 = scalar_lea.vmem [#allocation4], 82
        %v4368 = vld [vmem:[%s4367] ss:$2 sm:$0x7f]
        %s4369 = scalar_lea.vmem [#allocation4], 97
        %v4370 = vld [vmem:[%s4369] ss:$2 sm:$0x7f]
        %s4371 = scalar_lea.vmem [#allocation4], 98
        %v4372 = vld [vmem:[%s4371] ss:$2 sm:$0x7f]
        %v4373 = vmax.f32 %v4366, %v4368
        %v4374 = vmax.f32 %v4370, %v4372
        %v4375 = vmax.f32 %v4373, %v4374
        %4376 = vst.msk [vmem:[#allocation5 + $0x26] sm:$0x7f] %vm4351, %v4375
        %s4377 = scalar_lea.vmem [#allocation4], 113
        %v4378 = vld [vmem:[%s4377] ss:$2 sm:$0x7f]
        %s4379 = scalar_lea.vmem [#allocation4], 114
        %v4380 = vld [vmem:[%s4379] ss:$2 sm:$0x7f]
        %s4381 = scalar_lea.vmem [#allocation4], 129
        %v4382 = vld [vmem:[%s4381] ss:$2 sm:$0x7f]
        %s4383 = scalar_lea.vmem [#allocation4], 130
        %v4384 = vld [vmem:[%s4383] ss:$2 sm:$0x7f]
        %v4385 = vmax.f32 %v4378, %v4380
        %v4386 = vmax.f32 %v4382, %v4384
        %v4387 = vmax.f32 %v4385, %v4386
        %4388 = vst.msk [vmem:[#allocation5 + $0x2f] sm:$0x7f] %vm4351, %v4387
        %s4389 = scalar_lea.vmem [#allocation4], 145
        %v4390 = vld [vmem:[%s4389] ss:$2 sm:$0x7f]
        %s4391 = scalar_lea.vmem [#allocation4], 146
        %v4392 = vld [vmem:[%s4391] ss:$2 sm:$0x7f]
        %s4393 = scalar_lea.vmem [#allocation4], 161
        %v4394 = vld [vmem:[%s4393] ss:$2 sm:$0x7f]
        %s4395 = scalar_lea.vmem [#allocation4], 162
        %v4396 = vld [vmem:[%s4395] ss:$2 sm:$0x7f]
        %v4397 = vmax.f32 %v4390, %v4392
        %v4398 = vmax.f32 %v4394, %v4396
        %v4399 = vmax.f32 %v4397, %v4398
        %4400 = vst.msk [vmem:[#allocation5 + $0x38] sm:$0x7f] %vm4351, %v4399
        %s4401 = scalar_lea.vmem [#allocation4], 177
        %v4402 = vld [vmem:[%s4401] ss:$2 sm:$0x7f]
        %s4403 = scalar_lea.vmem [#allocation4], 178
        %v4404 = vld [vmem:[%s4403] ss:$2 sm:$0x7f]
        %s4405 = scalar_lea.vmem [#allocation4], 193
        %v4406 = vld [vmem:[%s4405] ss:$2 sm:$0x7f]
        %s4407 = scalar_lea.vmem [#allocation4], 194
        %v4408 = vld [vmem:[%s4407] ss:$2 sm:$0x7f]
        %v4409 = vmax.f32 %v4402, %v4404
        %v4410 = vmax.f32 %v4406, %v4408
        %v4411 = vmax.f32 %v4409, %v4410
        %4412 = vst.msk [vmem:[#allocation5 + $0x41] sm:$0x7f] %vm4351, %v4411
        %s4413 = scalar_lea.vmem [#allocation4], 209
        %v4414 = vld [vmem:[%s4413] ss:$2 sm:$0x7f]
        %s4415 = scalar_lea.vmem [#allocation4], 210
        %v4416 = vld [vmem:[%s4415] ss:$2 sm:$0x7f]
        %s4417 = scalar_lea.vmem [#allocation4], 225
        %v4418 = vld [vmem:[%s4417] ss:$2 sm:$0x7f]
        %s4419 = scalar_lea.vmem [#allocation4], 226
        %v4420 = vld [vmem:[%s4419] ss:$2 sm:$0x7f]
        %v4421 = vmax.f32 %v4414, %v4416
        %v4422 = vmax.f32 %v4418, %v4420
        %v4423 = vmax.f32 %v4421, %v4422
        %4424 = vst.msk [vmem:[#allocation5 + $0x4a] sm:$0x7f] %vm4351, %v4423
        %v4425 = vld [vmem:[#allocation5] sm:$0xff]
        %v4426 = vld [vmem:[#allocation5 + $0x8] sm:$0xff]
        %v4427 = vld [vmem:[#allocation5 + $0x10] sm:$0xff]
        %v4428 = vld [vmem:[#allocation5 + $0x18] sm:$0xff]
        %v4429 = vld [vmem:[#allocation5 + $0x20] sm:$0xff]
        %v4430 = vld [vmem:[#allocation5 + $0x28] sm:$0xff]
        %v4431 = vld [vmem:[#allocation5 + $0x30] sm:$0xff]
        %v4432 = vld [vmem:[#allocation5 + $0x38] sm:$0xff]
        %v4433 = vld [vmem:[#allocation5 + $0x40] sm:$0xff]
        %v4434 = vld [vmem:[#allocation5 + $0x48] sm:$0xff]
        %v4435 = vld [vmem:[#allocation5 + $0x50] sm:$0x1]
        %v4436 = vld [vmem:[%s5] sm:$0xff]
        %v4437 = vld [vmem:[%s5 + $0x8] sm:$0xff]
        %v4438 = vld [vmem:[%s5 + $0x10] sm:$0xff]
        %v4439 = vld [vmem:[%s5 + $0x18] sm:$0xff]
        %v4440 = vld [vmem:[#allocation5 + $0x1] sm:$0xff]
        %v4441 = vld [vmem:[#allocation5 + $0x9] sm:$0xff]
        %v4442 = vld [vmem:[#allocation5 + $0x11] sm:$0xff]
        %v4443 = vld [vmem:[#allocation5 + $0x19] sm:$0xff]
        %v4444 = vld [vmem:[#allocation5 + $0x21] sm:$0xff]
        %v4445 = vld [vmem:[#allocation5 + $0x29] sm:$0xff]
        %v4446 = vld [vmem:[#allocation5 + $0x31] sm:$0xff]
        %v4447 = vld [vmem:[#allocation5 + $0x39] sm:$0xff]
        %v4448 = vld [vmem:[#allocation5 + $0x41] sm:$0xff]
        %v4449 = vld [vmem:[#allocation5 + $0x49] sm:$0xff]
        %v4450 = vld [vmem:[#allocation5 + $0x51] sm:$0x1]
        %s4451 = scalar_lea.vmem %s5, 32
        %v4452 = vld [vmem:[%s4451] sm:$0xff]
        %v4453 = vld [vmem:[%s4451 + $0x8] sm:$0xff]
        %v4454 = vld [vmem:[%s4451 + $0x10] sm:$0xff]
        %v4455 = vld [vmem:[%s4451 + $0x18] sm:$0xff]
        %v4457 = vsel %vm423, %v4440, 0
        %v4460 = vsel %vm423, %v4441, 0
        %v4463 = vsel %vm423, %v4442, 0
        %v4466 = vsel %vm423, %v4443, 0
        %v4469 = vsel %vm423, %v4444, 0
        %v4472 = vsel %vm423, %v4445, 0
        %v4475 = vsel %vm423, %v4446, 0
        %v4478 = vsel %vm423, %v4447, 0
        %v4481 = vsel %vm423, %v4448, 0
        %v4484 = vsel %vm423, %v4449, 0
        %v4487 = vsel %vm423, %v4450, 0
        %4489 = vmatpush.msra.mxu0 0.0
        %4490 = vmatpush.msra.mxu0 0.0
        %4491 = vmatpush.msra.mxu0 0.0
        %4492 = vmatpush.msra.mxu0 0.0
        %4493 = vmatpush.msra.mxu0 0.0
        %4494 = vmatpush.msra.mxu0 0.0
        %4495 = vmatpush.msra.mxu0 0.0
        %4496 = vmatpush.msra.mxu0 0.0
        %4497 = vmatpush.msra.mxu0 0.0
        %4498 = vmatpush.msra.mxu0 0.0
        %4499 = vmatpush.msra.mxu0 0.0
        %4500 = vmatpush.msra.mxu0 0.0
        %4501 = vmatpush.msra.mxu0 %v4455
        %4502 = vmatpush.msra.mxu0 %v4454
        %4503 = vmatpush.msra.mxu0 %v4453
        %4504 = vmatpush.msra.mxu0 %v4452
        %4505 = vmatmul.f32.gmra.mxu0 %v4457
        %v4506 = vpop.f32.mrf.mxu0
        %v4507 = vadd.f32 0.0, %v4506
        %4508 = vmatmul.f32.gmra.mxu0 %v4460
        %v4509 = vpop.f32.mrf.mxu0
        %v4510 = vadd.f32 0.0, %v4509
        %4511 = vmatmul.f32.gmra.mxu0 %v4463
        %v4512 = vpop.f32.mrf.mxu0
        %v4513 = vadd.f32 0.0, %v4512
        %4514 = vmatmul.f32.gmra.mxu0 %v4466
        %v4515 = vpop.f32.mrf.mxu0
        %v4516 = vadd.f32 0.0, %v4515
        %4517 = vmatmul.f32.gmra.mxu0 %v4469
        %v4518 = vpop.f32.mrf.mxu0
        %v4519 = vadd.f32 0.0, %v4518
        %4520 = vmatmul.f32.gmra.mxu0 %v4472
        %v4521 = vpop.f32.mrf.mxu0
        %v4522 = vadd.f32 0.0, %v4521
        %4523 = vmatmul.f32.gmra.mxu0 %v4475
        %v4524 = vpop.f32.mrf.mxu0
        %v4525 = vadd.f32 0.0, %v4524
        %4526 = vmatmul.f32.gmra.mxu0 %v4478
        %v4527 = vpop.f32.mrf.mxu0
        %v4528 = vadd.f32 0.0, %v4527
        %4529 = vmatmul.f32.gmra.mxu0 %v4481
        %v4530 = vpop.f32.mrf.mxu0
        %v4531 = vadd.f32 0.0, %v4530
        %4532 = vmatmul.f32.gmra.mxu0 %v4484
        %v4533 = vpop.f32.mrf.mxu0
        %v4534 = vadd.f32 0.0, %v4533
        %4535 = vmatmul.f32.gmra.mxu0 %v4487
        %v4536 = vpop.f32.mrf.mxu0
        %v4537 = vadd.f32 0.0, %v4536
        %4538 = vdwg.mxu0
        %v4540 = vsel %vm423, %v4425, 0
        %v4543 = vsel %vm423, %v4426, 0
        %v4546 = vsel %vm423, %v4427, 0
        %v4549 = vsel %vm423, %v4428, 0
        %v4552 = vsel %vm423, %v4429, 0
        %v4555 = vsel %vm423, %v4430, 0
        %v4558 = vsel %vm423, %v4431, 0
        %v4561 = vsel %vm423, %v4432, 0
        %v4564 = vsel %vm423, %v4433, 0
        %v4567 = vsel %vm423, %v4434, 0
        %v4570 = vsel %vm423, %v4435, 0
        %4572 = vmatpush.msra.mxu0 0.0
        %4573 = vmatpush.msra.mxu0 0.0
        %4574 = vmatpush.msra.mxu0 0.0
        %4575 = vmatpush.msra.mxu0 0.0
        %4576 = vmatpush.msra.mxu0 0.0
        %4577 = vmatpush.msra.mxu0 0.0
        %4578 = vmatpush.msra.mxu0 0.0
        %4579 = vmatpush.msra.mxu0 0.0
        %4580 = vmatpush.msra.mxu0 0.0
        %4581 = vmatpush.msra.mxu0 0.0
        %4582 = vmatpush.msra.mxu0 0.0
        %4583 = vmatpush.msra.mxu0 0.0
        %4584 = vmatpush.msra.mxu0 %v4439
        %4585 = vmatpush.msra.mxu0 %v4438
        %4586 = vmatpush.msra.mxu0 %v4437
        %4587 = vmatpush.msra.mxu0 %v4436
        %4588 = vmatmul.f32.gmra.mxu0 %v4540
        %v4589 = vpop.f32.mrf.mxu0
        %v4590 = vadd.f32 %v4507, %v4589
        %4591 = vmatmul.f32.gmra.mxu0 %v4543
        %v4592 = vpop.f32.mrf.mxu0
        %v4593 = vadd.f32 %v4510, %v4592
        %4594 = vmatmul.f32.gmra.mxu0 %v4546
        %v4595 = vpop.f32.mrf.mxu0
        %v4596 = vadd.f32 %v4513, %v4595
        %4597 = vmatmul.f32.gmra.mxu0 %v4549
        %v4598 = vpop.f32.mrf.mxu0
        %v4599 = vadd.f32 %v4516, %v4598
        %4600 = vmatmul.f32.gmra.mxu0 %v4552
        %v4601 = vpop.f32.mrf.mxu0
        %v4602 = vadd.f32 %v4519, %v4601
        %4603 = vmatmul.f32.gmra.mxu0 %v4555
        %v4604 = vpop.f32.mrf.mxu0
        %v4605 = vadd.f32 %v4522, %v4604
        %4606 = vmatmul.f32.gmra.mxu0 %v4558
        %v4607 = vpop.f32.mrf.mxu0
        %v4608 = vadd.f32 %v4525, %v4607
        %4609 = vmatmul.f32.gmra.mxu0 %v4561
        %v4610 = vpop.f32.mrf.mxu0
        %v4611 = vadd.f32 %v4528, %v4610
        %4612 = vmatmul.f32.gmra.mxu0 %v4564
        %v4613 = vpop.f32.mrf.mxu0
        %v4614 = vadd.f32 %v4531, %v4613
        %4615 = vmatmul.f32.gmra.mxu0 %v4567
        %v4616 = vpop.f32.mrf.mxu0
        %v4617 = vadd.f32 %v4534, %v4616
        %4618 = vmatmul.f32.gmra.mxu0 %v4570
        %v4619 = vpop.f32.mrf.mxu0
        %v4620 = vadd.f32 %v4537, %v4619
        %4621 = vdwg.mxu0
        %v4622 = vld [vmem:[#allocation5 + $0x2] sm:$0xff]
        %v4623 = vld [vmem:[#allocation5 + $0xa] sm:$0xff]
        %v4624 = vld [vmem:[#allocation5 + $0x12] sm:$0xff]
        %v4625 = vld [vmem:[#allocation5 + $0x1a] sm:$0xff]
        %v4626 = vld [vmem:[#allocation5 + $0x22] sm:$0xff]
        %v4627 = vld [vmem:[#allocation5 + $0x2a] sm:$0xff]
        %v4628 = vld [vmem:[#allocation5 + $0x32] sm:$0xff]
        %v4629 = vld [vmem:[#allocation5 + $0x3a] sm:$0xff]
        %v4630 = vld [vmem:[#allocation5 + $0x42] sm:$0xff]
        %v4631 = vld [vmem:[#allocation5 + $0x4a] sm:$0xff]
        %v4632 = vld [vmem:[#allocation5 + $0x52] sm:$0x1]
        %s4633 = scalar_lea.vmem %s5, 64
        %v4634 = vld [vmem:[%s4633] sm:$0xff]
        %v4635 = vld [vmem:[%s4633 + $0x8] sm:$0xff]
        %v4636 = vld [vmem:[%s4633 + $0x10] sm:$0xff]
        %v4637 = vld [vmem:[%s4633 + $0x18] sm:$0xff]
        %v4639 = vsel %vm423, %v4622, 0
        %v4642 = vsel %vm423, %v4623, 0
        %v4645 = vsel %vm423, %v4624, 0
        %v4648 = vsel %vm423, %v4625, 0
        %v4651 = vsel %vm423, %v4626, 0
        %v4654 = vsel %vm423, %v4627, 0
        %v4657 = vsel %vm423, %v4628, 0
        %v4660 = vsel %vm423, %v4629, 0
        %v4663 = vsel %vm423, %v4630, 0
        %v4666 = vsel %vm423, %v4631, 0
        %v4669 = vsel %vm423, %v4632, 0
        %4671 = vmatpush.msra.mxu0 0.0
        %4672 = vmatpush.msra.mxu0 0.0
        %4673 = vmatpush.msra.mxu0 0.0
        %4674 = vmatpush.msra.mxu0 0.0
        %4675 = vmatpush.msra.mxu0 0.0
        %4676 = vmatpush.msra.mxu0 0.0
        %4677 = vmatpush.msra.mxu0 0.0
        %4678 = vmatpush.msra.mxu0 0.0
        %4679 = vmatpush.msra.mxu0 0.0
        %4680 = vmatpush.msra.mxu0 0.0
        %4681 = vmatpush.msra.mxu0 0.0
        %4682 = vmatpush.msra.mxu0 0.0
        %4683 = vmatpush.msra.mxu0 %v4637
        %4684 = vmatpush.msra.mxu0 %v4636
        %4685 = vmatpush.msra.mxu0 %v4635
        %4686 = vmatpush.msra.mxu0 %v4634
        %4687 = vmatmul.f32.gmra.mxu0 %v4639
        %v4688 = vpop.f32.mrf.mxu0
        %v4689 = vadd.f32 0.0, %v4688
        %4690 = vmatmul.f32.gmra.mxu0 %v4642
        %v4691 = vpop.f32.mrf.mxu0
        %v4692 = vadd.f32 0.0, %v4691
        %4693 = vmatmul.f32.gmra.mxu0 %v4645
        %v4694 = vpop.f32.mrf.mxu0
        %v4695 = vadd.f32 0.0, %v4694
        %4696 = vmatmul.f32.gmra.mxu0 %v4648
        %v4697 = vpop.f32.mrf.mxu0
        %v4698 = vadd.f32 0.0, %v4697
        %4699 = vmatmul.f32.gmra.mxu0 %v4651
        %v4700 = vpop.f32.mrf.mxu0
        %v4701 = vadd.f32 0.0, %v4700
        %4702 = vmatmul.f32.gmra.mxu0 %v4654
        %v4703 = vpop.f32.mrf.mxu0
        %v4704 = vadd.f32 0.0, %v4703
        %4705 = vmatmul.f32.gmra.mxu0 %v4657
        %v4706 = vpop.f32.mrf.mxu0
        %v4707 = vadd.f32 0.0, %v4706
        %4708 = vmatmul.f32.gmra.mxu0 %v4660
        %v4709 = vpop.f32.mrf.mxu0
        %v4710 = vadd.f32 0.0, %v4709
        %4711 = vmatmul.f32.gmra.mxu0 %v4663
        %v4712 = vpop.f32.mrf.mxu0
        %v4713 = vadd.f32 0.0, %v4712
        %4714 = vmatmul.f32.gmra.mxu0 %v4666
        %v4715 = vpop.f32.mrf.mxu0
        %v4716 = vadd.f32 0.0, %v4715
        %4717 = vmatmul.f32.gmra.mxu0 %v4669
        %v4718 = vpop.f32.mrf.mxu0
        %v4719 = vadd.f32 0.0, %v4718
        %4720 = vdwg.mxu0
        %v4721 = vadd.f32 %v4590, %v4689
        %v4722 = vadd.f32 %v4593, %v4692
        %v4723 = vadd.f32 %v4596, %v4695
        %v4724 = vadd.f32 %v4599, %v4698
        %v4725 = vadd.f32 %v4602, %v4701
        %v4726 = vadd.f32 %v4605, %v4704
        %v4727 = vadd.f32 %v4608, %v4707
        %v4728 = vadd.f32 %v4611, %v4710
        %v4729 = vadd.f32 %v4614, %v4713
        %v4730 = vadd.f32 %v4617, %v4716
        %v4731 = vadd.f32 %v4620, %v4719
        %v4732 = vld [vmem:[#allocation5 + $0x9] sm:$0xff]
        %v4733 = vld [vmem:[#allocation5 + $0x11] sm:$0xff]
        %v4734 = vld [vmem:[#allocation5 + $0x19] sm:$0xff]
        %v4735 = vld [vmem:[#allocation5 + $0x21] sm:$0xff]
        %v4736 = vld [vmem:[#allocation5 + $0x29] sm:$0xff]
        %v4737 = vld [vmem:[#allocation5 + $0x31] sm:$0xff]
        %v4738 = vld [vmem:[#allocation5 + $0x39] sm:$0xff]
        %v4739 = vld [vmem:[#allocation5 + $0x41] sm:$0xff]
        %v4740 = vld [vmem:[#allocation5 + $0x49] sm:$0xff]
        %v4741 = vld [vmem:[#allocation5 + $0x51] sm:$0xff]
        %v4742 = vld [vmem:[#allocation5 + $0x59] sm:$0x1]
        %s4743 = scalar_lea.vmem %s5, 96
        %v4744 = vld [vmem:[%s4743] sm:$0xff]
        %v4745 = vld [vmem:[%s4743 + $0x8] sm:$0xff]
        %v4746 = vld [vmem:[%s4743 + $0x10] sm:$0xff]
        %v4747 = vld [vmem:[%s4743 + $0x18] sm:$0xff]
        %v4749 = vsel %vm423, %v4732, 0
        %v4752 = vsel %vm423, %v4733, 0
        %v4755 = vsel %vm423, %v4734, 0
        %v4758 = vsel %vm423, %v4735, 0
        %v4761 = vsel %vm423, %v4736, 0
        %v4764 = vsel %vm423, %v4737, 0
        %v4767 = vsel %vm423, %v4738, 0
        %v4770 = vsel %vm423, %v4739, 0
        %v4773 = vsel %vm423, %v4740, 0
        %v4776 = vsel %vm423, %v4741, 0
        %v4779 = vsel %vm423, %v4742, 0
        %4781 = vmatpush.msra.mxu0 0.0
        %4782 = vmatpush.msra.mxu0 0.0
        %4783 = vmatpush.msra.mxu0 0.0
        %4784 = vmatpush.msra.mxu0 0.0
        %4785 = vmatpush.msra.mxu0 0.0
        %4786 = vmatpush.msra.mxu0 0.0
        %4787 = vmatpush.msra.mxu0 0.0
        %4788 = vmatpush.msra.mxu0 0.0
        %4789 = vmatpush.msra.mxu0 0.0
        %4790 = vmatpush.msra.mxu0 0.0
        %4791 = vmatpush.msra.mxu0 0.0
        %4792 = vmatpush.msra.mxu0 0.0
        %4793 = vmatpush.msra.mxu0 %v4747
        %4794 = vmatpush.msra.mxu0 %v4746
        %4795 = vmatpush.msra.mxu0 %v4745
        %4796 = vmatpush.msra.mxu0 %v4744
        %4797 = vmatmul.f32.gmra.mxu0 %v4749
        %v4798 = vpop.f32.mrf.mxu0
        %v4799 = vadd.f32 0.0, %v4798
        %4800 = vmatmul.f32.gmra.mxu0 %v4752
        %v4801 = vpop.f32.mrf.mxu0
        %v4802 = vadd.f32 0.0, %v4801
        %4803 = vmatmul.f32.gmra.mxu0 %v4755
        %v4804 = vpop.f32.mrf.mxu0
        %v4805 = vadd.f32 0.0, %v4804
        %4806 = vmatmul.f32.gmra.mxu0 %v4758
        %v4807 = vpop.f32.mrf.mxu0
        %v4808 = vadd.f32 0.0, %v4807
        %4809 = vmatmul.f32.gmra.mxu0 %v4761
        %v4810 = vpop.f32.mrf.mxu0
        %v4811 = vadd.f32 0.0, %v4810
        %4812 = vmatmul.f32.gmra.mxu0 %v4764
        %v4813 = vpop.f32.mrf.mxu0
        %v4814 = vadd.f32 0.0, %v4813
        %4815 = vmatmul.f32.gmra.mxu0 %v4767
        %v4816 = vpop.f32.mrf.mxu0
        %v4817 = vadd.f32 0.0, %v4816
        %4818 = vmatmul.f32.gmra.mxu0 %v4770
        %v4819 = vpop.f32.mrf.mxu0
        %v4820 = vadd.f32 0.0, %v4819
        %4821 = vmatmul.f32.gmra.mxu0 %v4773
        %v4822 = vpop.f32.mrf.mxu0
        %v4823 = vadd.f32 0.0, %v4822
        %4824 = vmatmul.f32.gmra.mxu0 %v4776
        %v4825 = vpop.f32.mrf.mxu0
        %v4826 = vadd.f32 0.0, %v4825
        %4827 = vmatmul.f32.gmra.mxu0 %v4779
        %v4828 = vpop.f32.mrf.mxu0
        %v4829 = vadd.f32 0.0, %v4828
        %4830 = vdwg.mxu0
        %v4831 = vadd.f32 %v4721, %v4799
        %v4832 = vadd.f32 %v4722, %v4802
        %v4833 = vadd.f32 %v4723, %v4805
        %v4834 = vadd.f32 %v4724, %v4808
        %v4835 = vadd.f32 %v4725, %v4811
        %v4836 = vadd.f32 %v4726, %v4814
        %v4837 = vadd.f32 %v4727, %v4817
        %v4838 = vadd.f32 %v4728, %v4820
        %v4839 = vadd.f32 %v4729, %v4823
        %v4840 = vadd.f32 %v4730, %v4826
        %v4841 = vadd.f32 %v4731, %v4829
        %v4842 = vld [vmem:[#allocation5 + $0xa] sm:$0xff]
        %v4843 = vld [vmem:[#allocation5 + $0x12] sm:$0xff]
        %v4844 = vld [vmem:[#allocation5 + $0x1a] sm:$0xff]
        %v4845 = vld [vmem:[#allocation5 + $0x22] sm:$0xff]
        %v4846 = vld [vmem:[#allocation5 + $0x2a] sm:$0xff]
        %v4847 = vld [vmem:[#allocation5 + $0x32] sm:$0xff]
        %v4848 = vld [vmem:[#allocation5 + $0x3a] sm:$0xff]
        %v4849 = vld [vmem:[#allocation5 + $0x42] sm:$0xff]
        %v4850 = vld [vmem:[#allocation5 + $0x4a] sm:$0xff]
        %v4851 = vld [vmem:[#allocation5 + $0x52] sm:$0xff]
        %v4852 = vld [vmem:[#allocation5 + $0x5a] sm:$0x1]
        %s4853 = scalar_lea.vmem %s5, 128
        %v4854 = vld [vmem:[%s4853] sm:$0xff]
        %v4855 = vld [vmem:[%s4853 + $0x8] sm:$0xff]
        %v4856 = vld [vmem:[%s4853 + $0x10] sm:$0xff]
        %v4857 = vld [vmem:[%s4853 + $0x18] sm:$0xff]
        %v4859 = vsel %vm423, %v4842, 0
        %v4862 = vsel %vm423, %v4843, 0
        %v4865 = vsel %vm423, %v4844, 0
        %v4868 = vsel %vm423, %v4845, 0
        %v4871 = vsel %vm423, %v4846, 0
        %v4874 = vsel %vm423, %v4847, 0
        %v4877 = vsel %vm423, %v4848, 0
        %v4880 = vsel %vm423, %v4849, 0
        %v4883 = vsel %vm423, %v4850, 0
        %v4886 = vsel %vm423, %v4851, 0
        %v4889 = vsel %vm423, %v4852, 0
        %4891 = vmatpush.msra.mxu0 0.0
        %4892 = vmatpush.msra.mxu0 0.0
        %4893 = vmatpush.msra.mxu0 0.0
        %4894 = vmatpush.msra.mxu0 0.0
        %4895 = vmatpush.msra.mxu0 0.0
        %4896 = vmatpush.msra.mxu0 0.0
        %4897 = vmatpush.msra.mxu0 0.0
        %4898 = vmatpush.msra.mxu0 0.0
        %4899 = vmatpush.msra.mxu0 0.0
        %4900 = vmatpush.msra.mxu0 0.0
        %4901 = vmatpush.msra.mxu0 0.0
        %4902 = vmatpush.msra.mxu0 0.0
        %4903 = vmatpush.msra.mxu0 %v4857
        %4904 = vmatpush.msra.mxu0 %v4856
        %4905 = vmatpush.msra.mxu0 %v4855
        %4906 = vmatpush.msra.mxu0 %v4854
        %4907 = vmatmul.f32.gmra.mxu0 %v4859
        %v4908 = vpop.f32.mrf.mxu0
        %v4909 = vadd.f32 0.0, %v4908
        %4910 = vmatmul.f32.gmra.mxu0 %v4862
        %v4911 = vpop.f32.mrf.mxu0
        %v4912 = vadd.f32 0.0, %v4911
        %4913 = vmatmul.f32.gmra.mxu0 %v4865
        %v4914 = vpop.f32.mrf.mxu0
        %v4915 = vadd.f32 0.0, %v4914
        %4916 = vmatmul.f32.gmra.mxu0 %v4868
        %v4917 = vpop.f32.mrf.mxu0
        %v4918 = vadd.f32 0.0, %v4917
        %4919 = vmatmul.f32.gmra.mxu0 %v4871
        %v4920 = vpop.f32.mrf.mxu0
        %v4921 = vadd.f32 0.0, %v4920
        %4922 = vmatmul.f32.gmra.mxu0 %v4874
        %v4923 = vpop.f32.mrf.mxu0
        %v4924 = vadd.f32 0.0, %v4923
        %4925 = vmatmul.f32.gmra.mxu0 %v4877
        %v4926 = vpop.f32.mrf.mxu0
        %v4927 = vadd.f32 0.0, %v4926
        %4928 = vmatmul.f32.gmra.mxu0 %v4880
        %v4929 = vpop.f32.mrf.mxu0
        %v4930 = vadd.f32 0.0, %v4929
        %4931 = vmatmul.f32.gmra.mxu0 %v4883
        %v4932 = vpop.f32.mrf.mxu0
        %v4933 = vadd.f32 0.0, %v4932
        %4934 = vmatmul.f32.gmra.mxu0 %v4886
        %v4935 = vpop.f32.mrf.mxu0
        %v4936 = vadd.f32 0.0, %v4935
        %4937 = vmatmul.f32.gmra.mxu0 %v4889
        %v4938 = vpop.f32.mrf.mxu0
        %v4939 = vadd.f32 0.0, %v4938
        %4940 = vdwg.mxu0
        %v4941 = vadd.f32 %v4831, %v4909
        %v4942 = vadd.f32 %v4832, %v4912
        %v4943 = vadd.f32 %v4833, %v4915
        %v4944 = vadd.f32 %v4834, %v4918
        %v4945 = vadd.f32 %v4835, %v4921
        %v4946 = vadd.f32 %v4836, %v4924
        %v4947 = vadd.f32 %v4837, %v4927
        %v4948 = vadd.f32 %v4838, %v4930
        %v4949 = vadd.f32 %v4839, %v4933
        %v4950 = vadd.f32 %v4840, %v4936
        %v4951 = vadd.f32 %v4841, %v4939
        %v4952 = vld [vmem:[#allocation5 + $0xb] sm:$0xff]
        %v4953 = vld [vmem:[#allocation5 + $0x13] sm:$0xff]
        %v4954 = vld [vmem:[#allocation5 + $0x1b] sm:$0xff]
        %v4955 = vld [vmem:[#allocation5 + $0x23] sm:$0xff]
        %v4956 = vld [vmem:[#allocation5 + $0x2b] sm:$0xff]
        %v4957 = vld [vmem:[#allocation5 + $0x33] sm:$0xff]
        %v4958 = vld [vmem:[#allocation5 + $0x3b] sm:$0xff]
        %v4959 = vld [vmem:[#allocation5 + $0x43] sm:$0xff]
        %v4960 = vld [vmem:[#allocation5 + $0x4b] sm:$0xff]
        %v4961 = vld [vmem:[#allocation5 + $0x53] sm:$0xff]
        %v4962 = vld [vmem:[#allocation5 + $0x5b] sm:$0x1]
        %s4963 = scalar_lea.vmem %s5, 160
        %v4964 = vld [vmem:[%s4963] sm:$0xff]
        %v4965 = vld [vmem:[%s4963 + $0x8] sm:$0xff]
        %v4966 = vld [vmem:[%s4963 + $0x10] sm:$0xff]
        %v4967 = vld [vmem:[%s4963 + $0x18] sm:$0xff]
        %v4969 = vsel %vm423, %v4952, 0
        %v4972 = vsel %vm423, %v4953, 0
        %v4975 = vsel %vm423, %v4954, 0
        %v4978 = vsel %vm423, %v4955, 0
        %v4981 = vsel %vm423, %v4956, 0
        %v4984 = vsel %vm423, %v4957, 0
        %v4987 = vsel %vm423, %v4958, 0
        %v4990 = vsel %vm423, %v4959, 0
        %v4993 = vsel %vm423, %v4960, 0
        %v4996 = vsel %vm423, %v4961, 0
        %v4999 = vsel %vm423, %v4962, 0
        %5001 = vmatpush.msra.mxu0 0.0
        %5002 = vmatpush.msra.mxu0 0.0
        %5003 = vmatpush.msra.mxu0 0.0
        %5004 = vmatpush.msra.mxu0 0.0
        %5005 = vmatpush.msra.mxu0 0.0
        %5006 = vmatpush.msra.mxu0 0.0
        %5007 = vmatpush.msra.mxu0 0.0
        %5008 = vmatpush.msra.mxu0 0.0
        %5009 = vmatpush.msra.mxu0 0.0
        %5010 = vmatpush.msra.mxu0 0.0
        %5011 = vmatpush.msra.mxu0 0.0
        %5012 = vmatpush.msra.mxu0 0.0
        %5013 = vmatpush.msra.mxu0 %v4967
        %5014 = vmatpush.msra.mxu0 %v4966
        %5015 = vmatpush.msra.mxu0 %v4965
        %5016 = vmatpush.msra.mxu0 %v4964
        %5017 = vmatmul.f32.gmra.mxu0 %v4969
        %v5018 = vpop.f32.mrf.mxu0
        %v5019 = vadd.f32 0.0, %v5018
        %5020 = vmatmul.f32.gmra.mxu0 %v4972
        %v5021 = vpop.f32.mrf.mxu0
        %v5022 = vadd.f32 0.0, %v5021
        %5023 = vmatmul.f32.gmra.mxu0 %v4975
        %v5024 = vpop.f32.mrf.mxu0
        %v5025 = vadd.f32 0.0, %v5024
        %5026 = vmatmul.f32.gmra.mxu0 %v4978
        %v5027 = vpop.f32.mrf.mxu0
        %v5028 = vadd.f32 0.0, %v5027
        %5029 = vmatmul.f32.gmra.mxu0 %v4981
        %v5030 = vpop.f32.mrf.mxu0
        %v5031 = vadd.f32 0.0, %v5030
        %5032 = vmatmul.f32.gmra.mxu0 %v4984
        %v5033 = vpop.f32.mrf.mxu0
        %v5034 = vadd.f32 0.0, %v5033
        %5035 = vmatmul.f32.gmra.mxu0 %v4987
        %v5036 = vpop.f32.mrf.mxu0
        %v5037 = vadd.f32 0.0, %v5036
        %5038 = vmatmul.f32.gmra.mxu0 %v4990
        %v5039 = vpop.f32.mrf.mxu0
        %v5040 = vadd.f32 0.0, %v5039
        %5041 = vmatmul.f32.gmra.mxu0 %v4993
        %v5042 = vpop.f32.mrf.mxu0
        %v5043 = vadd.f32 0.0, %v5042
        %5044 = vmatmul.f32.gmra.mxu0 %v4996
        %v5045 = vpop.f32.mrf.mxu0
        %v5046 = vadd.f32 0.0, %v5045
        %5047 = vmatmul.f32.gmra.mxu0 %v4999
        %v5048 = vpop.f32.mrf.mxu0
        %v5049 = vadd.f32 0.0, %v5048
        %5050 = vdwg.mxu0
        %v5051 = vadd.f32 %v4941, %v5019
        %v5052 = vadd.f32 %v4942, %v5022
        %v5053 = vadd.f32 %v4943, %v5025
        %v5054 = vadd.f32 %v4944, %v5028
        %v5055 = vadd.f32 %v4945, %v5031
        %v5056 = vadd.f32 %v4946, %v5034
        %v5057 = vadd.f32 %v4947, %v5037
        %v5058 = vadd.f32 %v4948, %v5040
        %v5059 = vadd.f32 %v4949, %v5043
        %v5060 = vadd.f32 %v4950, %v5046
        %v5061 = vadd.f32 %v4951, %v5049
        %v5062 = vld [vmem:[#allocation5 + $0x12] sm:$0xff]
        %v5063 = vld [vmem:[#allocation5 + $0x1a] sm:$0xff]
        %v5064 = vld [vmem:[#allocation5 + $0x22] sm:$0xff]
        %v5065 = vld [vmem:[#allocation5 + $0x2a] sm:$0xff]
        %v5066 = vld [vmem:[#allocation5 + $0x32] sm:$0xff]
        %v5067 = vld [vmem:[#allocation5 + $0x3a] sm:$0xff]
        %v5068 = vld [vmem:[#allocation5 + $0x42] sm:$0xff]
        %v5069 = vld [vmem:[#allocation5 + $0x4a] sm:$0xff]
        %v5070 = vld [vmem:[#allocation5 + $0x52] sm:$0xff]
        %v5071 = vld [vmem:[#allocation5 + $0x5a] sm:$0xff]
        %v5072 = vld [vmem:[#allocation5 + $0x62] sm:$0x1]
        %s5073 = scalar_lea.vmem %s5, 192
        %v5074 = vld [vmem:[%s5073] sm:$0xff]
        %v5075 = vld [vmem:[%s5073 + $0x8] sm:$0xff]
        %v5076 = vld [vmem:[%s5073 + $0x10] sm:$0xff]
        %v5077 = vld [vmem:[%s5073 + $0x18] sm:$0xff]
        %v5079 = vsel %vm423, %v5062, 0
        %v5082 = vsel %vm423, %v5063, 0
        %v5085 = vsel %vm423, %v5064, 0
        %v5088 = vsel %vm423, %v5065, 0
        %v5091 = vsel %vm423, %v5066, 0
        %v5094 = vsel %vm423, %v5067, 0
        %v5097 = vsel %vm423, %v5068, 0
        %v5100 = vsel %vm423, %v5069, 0
        %v5103 = vsel %vm423, %v5070, 0
        %v5106 = vsel %vm423, %v5071, 0
        %v5109 = vsel %vm423, %v5072, 0
        %5111 = vmatpush.msra.mxu0 0.0
        %5112 = vmatpush.msra.mxu0 0.0
        %5113 = vmatpush.msra.mxu0 0.0
        %5114 = vmatpush.msra.mxu0 0.0
        %5115 = vmatpush.msra.mxu0 0.0
        %5116 = vmatpush.msra.mxu0 0.0
        %5117 = vmatpush.msra.mxu0 0.0
        %5118 = vmatpush.msra.mxu0 0.0
        %5119 = vmatpush.msra.mxu0 0.0
        %5120 = vmatpush.msra.mxu0 0.0
        %5121 = vmatpush.msra.mxu0 0.0
        %5122 = vmatpush.msra.mxu0 0.0
        %5123 = vmatpush.msra.mxu0 %v5077
        %5124 = vmatpush.msra.mxu0 %v5076
        %5125 = vmatpush.msra.mxu0 %v5075
        %5126 = vmatpush.msra.mxu0 %v5074
        %5127 = vmatmul.f32.gmra.mxu0 %v5079
        %v5128 = vpop.f32.mrf.mxu0
        %v5129 = vadd.f32 0.0, %v5128
        %5130 = vmatmul.f32.gmra.mxu0 %v5082
        %v5131 = vpop.f32.mrf.mxu0
        %v5132 = vadd.f32 0.0, %v5131
        %5133 = vmatmul.f32.gmra.mxu0 %v5085
        %v5134 = vpop.f32.mrf.mxu0
        %v5135 = vadd.f32 0.0, %v5134
        %5136 = vmatmul.f32.gmra.mxu0 %v5088
        %v5137 = vpop.f32.mrf.mxu0
        %v5138 = vadd.f32 0.0, %v5137
        %5139 = vmatmul.f32.gmra.mxu0 %v5091
        %v5140 = vpop.f32.mrf.mxu0
        %v5141 = vadd.f32 0.0, %v5140
        %5142 = vmatmul.f32.gmra.mxu0 %v5094
        %v5143 = vpop.f32.mrf.mxu0
        %v5144 = vadd.f32 0.0, %v5143
        %5145 = vmatmul.f32.gmra.mxu0 %v5097
        %v5146 = vpop.f32.mrf.mxu0
        %v5147 = vadd.f32 0.0, %v5146
        %5148 = vmatmul.f32.gmra.mxu0 %v5100
        %v5149 = vpop.f32.mrf.mxu0
        %v5150 = vadd.f32 0.0, %v5149
        %5151 = vmatmul.f32.gmra.mxu0 %v5103
        %v5152 = vpop.f32.mrf.mxu0
        %v5153 = vadd.f32 0.0, %v5152
        %5154 = vmatmul.f32.gmra.mxu0 %v5106
        %v5155 = vpop.f32.mrf.mxu0
        %v5156 = vadd.f32 0.0, %v5155
        %5157 = vmatmul.f32.gmra.mxu0 %v5109
        %v5158 = vpop.f32.mrf.mxu0
        %v5159 = vadd.f32 0.0, %v5158
        %5160 = vdwg.mxu0
        %v5161 = vadd.f32 %v5051, %v5129
        %v5162 = vadd.f32 %v5052, %v5132
        %v5163 = vadd.f32 %v5053, %v5135
        %v5164 = vadd.f32 %v5054, %v5138
        %v5165 = vadd.f32 %v5055, %v5141
        %v5166 = vadd.f32 %v5056, %v5144
        %v5167 = vadd.f32 %v5057, %v5147
        %v5168 = vadd.f32 %v5058, %v5150
        %v5169 = vadd.f32 %v5059, %v5153
        %v5170 = vadd.f32 %v5060, %v5156
        %v5171 = vadd.f32 %v5061, %v5159
        %v5172 = vld [vmem:[#allocation5 + $0x13] sm:$0xff]
        %v5173 = vld [vmem:[#allocation5 + $0x1b] sm:$0xff]
        %v5174 = vld [vmem:[#allocation5 + $0x23] sm:$0xff]
        %v5175 = vld [vmem:[#allocation5 + $0x2b] sm:$0xff]
        %v5176 = vld [vmem:[#allocation5 + $0x33] sm:$0xff]
        %v5177 = vld [vmem:[#allocation5 + $0x3b] sm:$0xff]
        %v5178 = vld [vmem:[#allocation5 + $0x43] sm:$0xff]
        %v5179 = vld [vmem:[#allocation5 + $0x4b] sm:$0xff]
        %v5180 = vld [vmem:[#allocation5 + $0x53] sm:$0xff]
        %v5181 = vld [vmem:[#allocation5 + $0x5b] sm:$0xff]
        %v5182 = vld [vmem:[#allocation5 + $0x63] sm:$0x1]
        %s5183 = scalar_lea.vmem %s5, 224
        %v5184 = vld [vmem:[%s5183] sm:$0xff]
        %v5185 = vld [vmem:[%s5183 + $0x8] sm:$0xff]
        %v5186 = vld [vmem:[%s5183 + $0x10] sm:$0xff]
        %v5187 = vld [vmem:[%s5183 + $0x18] sm:$0xff]
        %v5189 = vsel %vm423, %v5172, 0
        %v5192 = vsel %vm423, %v5173, 0
        %v5195 = vsel %vm423, %v5174, 0
        %v5198 = vsel %vm423, %v5175, 0
        %v5201 = vsel %vm423, %v5176, 0
        %v5204 = vsel %vm423, %v5177, 0
        %v5207 = vsel %vm423, %v5178, 0
        %v5210 = vsel %vm423, %v5179, 0
        %v5213 = vsel %vm423, %v5180, 0
        %v5216 = vsel %vm423, %v5181, 0
        %v5219 = vsel %vm423, %v5182, 0
        %5221 = vmatpush.msra.mxu0 0.0
        %5222 = vmatpush.msra.mxu0 0.0
        %5223 = vmatpush.msra.mxu0 0.0
        %5224 = vmatpush.msra.mxu0 0.0
        %5225 = vmatpush.msra.mxu0 0.0
        %5226 = vmatpush.msra.mxu0 0.0
        %5227 = vmatpush.msra.mxu0 0.0
        %5228 = vmatpush.msra.mxu0 0.0
        %5229 = vmatpush.msra.mxu0 0.0
        %5230 = vmatpush.msra.mxu0 0.0
        %5231 = vmatpush.msra.mxu0 0.0
        %5232 = vmatpush.msra.mxu0 0.0
        %5233 = vmatpush.msra.mxu0 %v5187
        %5234 = vmatpush.msra.mxu0 %v5186
        %5235 = vmatpush.msra.mxu0 %v5185
        %5236 = vmatpush.msra.mxu0 %v5184
        %5237 = vmatmul.f32.gmra.mxu0 %v5189
        %v5238 = vpop.f32.mrf.mxu0
        %v5239 = vadd.f32 0.0, %v5238
        %5240 = vmatmul.f32.gmra.mxu0 %v5192
        %v5241 = vpop.f32.mrf.mxu0
        %v5242 = vadd.f32 0.0, %v5241
        %5243 = vmatmul.f32.gmra.mxu0 %v5195
        %v5244 = vpop.f32.mrf.mxu0
        %v5245 = vadd.f32 0.0, %v5244
        %5246 = vmatmul.f32.gmra.mxu0 %v5198
        %v5247 = vpop.f32.mrf.mxu0
        %v5248 = vadd.f32 0.0, %v5247
        %5249 = vmatmul.f32.gmra.mxu0 %v5201
        %v5250 = vpop.f32.mrf.mxu0
        %v5251 = vadd.f32 0.0, %v5250
        %5252 = vmatmul.f32.gmra.mxu0 %v5204
        %v5253 = vpop.f32.mrf.mxu0
        %v5254 = vadd.f32 0.0, %v5253
        %5255 = vmatmul.f32.gmra.mxu0 %v5207
        %v5256 = vpop.f32.mrf.mxu0
        %v5257 = vadd.f32 0.0, %v5256
        %5258 = vmatmul.f32.gmra.mxu0 %v5210
        %v5259 = vpop.f32.mrf.mxu0
        %v5260 = vadd.f32 0.0, %v5259
        %5261 = vmatmul.f32.gmra.mxu0 %v5213
        %v5262 = vpop.f32.mrf.mxu0
        %v5263 = vadd.f32 0.0, %v5262
        %5264 = vmatmul.f32.gmra.mxu0 %v5216
        %v5265 = vpop.f32.mrf.mxu0
        %v5266 = vadd.f32 0.0, %v5265
        %5267 = vmatmul.f32.gmra.mxu0 %v5219
        %v5268 = vpop.f32.mrf.mxu0
        %v5269 = vadd.f32 0.0, %v5268
        %5270 = vdwg.mxu0
        %v5271 = vadd.f32 %v5161, %v5239
        %v5272 = vadd.f32 %v5162, %v5242
        %v5273 = vadd.f32 %v5163, %v5245
        %v5274 = vadd.f32 %v5164, %v5248
        %v5275 = vadd.f32 %v5165, %v5251
        %v5276 = vadd.f32 %v5166, %v5254
        %v5277 = vadd.f32 %v5167, %v5257
        %v5278 = vadd.f32 %v5168, %v5260
        %v5279 = vadd.f32 %v5169, %v5263
        %v5280 = vadd.f32 %v5170, %v5266
        %v5281 = vadd.f32 %v5171, %v5269
        %v5282 = vld [vmem:[#allocation5 + $0x14] sm:$0xff]
        %v5283 = vld [vmem:[#allocation5 + $0x1c] sm:$0xff]
        %v5284 = vld [vmem:[#allocation5 + $0x24] sm:$0xff]
        %v5285 = vld [vmem:[#allocation5 + $0x2c] sm:$0xff]
        %v5286 = vld [vmem:[#allocation5 + $0x34] sm:$0xff]
        %v5287 = vld [vmem:[#allocation5 + $0x3c] sm:$0xff]
        %v5288 = vld [vmem:[#allocation5 + $0x44] sm:$0xff]
        %v5289 = vld [vmem:[#allocation5 + $0x4c] sm:$0xff]
        %v5290 = vld [vmem:[#allocation5 + $0x54] sm:$0xff]
        %v5291 = vld [vmem:[#allocation5 + $0x5c] sm:$0xff]
        %v5292 = vld [vmem:[#allocation5 + $0x64] sm:$0x1]
        %s5293 = scalar_lea.vmem %s5, 256
        %v5294 = vld [vmem:[%s5293] sm:$0xff]
        %v5295 = vld [vmem:[%s5293 + $0x8] sm:$0xff]
        %v5296 = vld [vmem:[%s5293 + $0x10] sm:$0xff]
        %v5297 = vld [vmem:[%s5293 + $0x18] sm:$0xff]
        %v5299 = vsel %vm423, %v5282, 0
        %v5302 = vsel %vm423, %v5283, 0
        %v5305 = vsel %vm423, %v5284, 0
        %v5308 = vsel %vm423, %v5285, 0
        %v5311 = vsel %vm423, %v5286, 0
        %v5314 = vsel %vm423, %v5287, 0
        %v5317 = vsel %vm423, %v5288, 0
        %v5320 = vsel %vm423, %v5289, 0
        %v5323 = vsel %vm423, %v5290, 0
        %v5326 = vsel %vm423, %v5291, 0
        %v5329 = vsel %vm423, %v5292, 0
        %5331 = vmatpush.msra.mxu0 0.0
        %5332 = vmatpush.msra.mxu0 0.0
        %5333 = vmatpush.msra.mxu0 0.0
        %5334 = vmatpush.msra.mxu0 0.0
        %5335 = vmatpush.msra.mxu0 0.0
        %5336 = vmatpush.msra.mxu0 0.0
        %5337 = vmatpush.msra.mxu0 0.0
        %5338 = vmatpush.msra.mxu0 0.0
        %5339 = vmatpush.msra.mxu0 0.0
        %5340 = vmatpush.msra.mxu0 0.0
        %5341 = vmatpush.msra.mxu0 0.0
        %5342 = vmatpush.msra.mxu0 0.0
        %5343 = vmatpush.msra.mxu0 %v5297
        %5344 = vmatpush.msra.mxu0 %v5296
        %5345 = vmatpush.msra.mxu0 %v5295
        %5346 = vmatpush.msra.mxu0 %v5294
        %5347 = vmatmul.f32.gmra.mxu0 %v5299
        %v5348 = vpop.f32.mrf.mxu0
        %v5349 = vadd.f32 0.0, %v5348
        %5350 = vmatmul.f32.gmra.mxu0 %v5302
        %v5351 = vpop.f32.mrf.mxu0
        %v5352 = vadd.f32 0.0, %v5351
        %5353 = vmatmul.f32.gmra.mxu0 %v5305
        %v5354 = vpop.f32.mrf.mxu0
        %v5355 = vadd.f32 0.0, %v5354
        %5356 = vmatmul.f32.gmra.mxu0 %v5308
        %v5357 = vpop.f32.mrf.mxu0
        %v5358 = vadd.f32 0.0, %v5357
        %5359 = vmatmul.f32.gmra.mxu0 %v5311
        %v5360 = vpop.f32.mrf.mxu0
        %v5361 = vadd.f32 0.0, %v5360
        %5362 = vmatmul.f32.gmra.mxu0 %v5314
        %v5363 = vpop.f32.mrf.mxu0
        %v5364 = vadd.f32 0.0, %v5363
        %5365 = vmatmul.f32.gmra.mxu0 %v5317
        %v5366 = vpop.f32.mrf.mxu0
        %v5367 = vadd.f32 0.0, %v5366
        %5368 = vmatmul.f32.gmra.mxu0 %v5320
        %v5369 = vpop.f32.mrf.mxu0
        %v5370 = vadd.f32 0.0, %v5369
        %5371 = vmatmul.f32.gmra.mxu0 %v5323
        %v5372 = vpop.f32.mrf.mxu0
        %v5373 = vadd.f32 0.0, %v5372
        %5374 = vmatmul.f32.gmra.mxu0 %v5326
        %v5375 = vpop.f32.mrf.mxu0
        %v5376 = vadd.f32 0.0, %v5375
        %5377 = vmatmul.f32.gmra.mxu0 %v5329
        %v5378 = vpop.f32.mrf.mxu0
        %v5379 = vadd.f32 0.0, %v5378
        %5380 = vdwg.mxu0
        %v5381 = vadd.f32 %v5271, %v5349
        %v5382 = vadd.f32 %v5272, %v5352
        %v5383 = vadd.f32 %v5273, %v5355
        %v5384 = vadd.f32 %v5274, %v5358
        %v5385 = vadd.f32 %v5275, %v5361
        %v5386 = vadd.f32 %v5276, %v5364
        %v5387 = vadd.f32 %v5277, %v5367
        %v5388 = vadd.f32 %v5278, %v5370
        %v5389 = vadd.f32 %v5279, %v5373
        %v5390 = vadd.f32 %v5280, %v5376
        %v5391 = vadd.f32 %v5281, %v5379
        %v5392 = vld [vmem:[%s6] sm:$0x1]
        %v5394 = vperm.slane %v5392, 0
        %v5396 = vadd.f32 %v5381, %v5394
        %v5397 = vadd.f32 %v5382, %v5394
        %v5398 = vadd.f32 %v5383, %v5394
        %v5399 = vadd.f32 %v5384, %v5394
        %v5400 = vadd.f32 %v5385, %v5394
        %v5401 = vadd.f32 %v5386, %v5394
        %v5402 = vadd.f32 %v5387, %v5394
        %v5403 = vadd.f32 %v5388, %v5394
        %v5404 = vadd.f32 %v5389, %v5394
        %v5405 = vadd.f32 %v5390, %v5394
        %v5406 = vadd.f32 %v5391, %v5394
        %v5407 = vmax.f32 %v5396, 0.0
        %v5408 = vmax.f32 %v5397, 0.0
        %v5409 = vmax.f32 %v5398, 0.0
        %v5410 = vmax.f32 %v5399, 0.0
        %v5411 = vmax.f32 %v5400, 0.0
        %v5412 = vmax.f32 %v5401, 0.0
        %v5413 = vmax.f32 %v5402, 0.0
        %v5414 = vmax.f32 %v5403, 0.0
        %v5415 = vmax.f32 %v5404, 0.0
        %v5416 = vmax.f32 %v5405, 0.0
        %v5417 = vmax.f32 %v5406, 0.0
        %vm5418 = vcmask 523264
        %5419 = vst.msk [vmem:[#allocation6] sm:$0xff] %vm5418, %v5407
        %5420 = vst.msk [vmem:[#allocation6 + $0x8] sm:$0xff] %vm5418, %v5408
        %5421 = vst.msk [vmem:[#allocation6 + $0x10] sm:$0xff] %vm5418, %v5409
        %5422 = vst.msk [vmem:[#allocation6 + $0x18] sm:$0xff] %vm5418, %v5410
        %5423 = vst.msk [vmem:[#allocation6 + $0x20] sm:$0xff] %vm5418, %v5411
        %5424 = vst.msk [vmem:[#allocation6 + $0x28] sm:$0xff] %vm5418, %v5412
        %5425 = vst.msk [vmem:[#allocation6 + $0x30] sm:$0xff] %vm5418, %v5413
        %5426 = vst.msk [vmem:[#allocation6 + $0x38] sm:$0xff] %vm5418, %v5414
        %5427 = vst.msk [vmem:[#allocation6 + $0x40] sm:$0xff] %vm5418, %v5415
        %5428 = vst.msk [vmem:[#allocation6 + $0x48] sm:$0xff] %vm5418, %v5416
        %vm5429 = vcmask 516096
        %5430 = vst.msk [vmem:[#allocation6 + $0x50] sm:$0x1] %vm5429, %v5417
        %v5431 = vld [vmem:[#allocation6 + $0xa] sm:$0x1]
        %v5432 = vld [vmem:[#allocation6 + $0xb] sm:$0x1]
        %v5433 = vld [vmem:[#allocation6 + $0x13] sm:$0x1]
        %v5434 = vld [vmem:[#allocation6 + $0x14] sm:$0x1]
        %v5435 = vmax.f32 %v5431, %v5432
        %v5436 = vmax.f32 %v5433, %v5434
        %v5437 = vmax.f32 %v5435, %v5436
        %v5438 = vld [vmem:[#allocation6 + $0xc] sm:$0x1]
        %v5439 = vld [vmem:[#allocation6 + $0xd] sm:$0x1]
        %v5440 = vld [vmem:[#allocation6 + $0x15] sm:$0x1]
        %v5441 = vld [vmem:[#allocation6 + $0x16] sm:$0x1]
        %v5442 = vmax.f32 %v5438, %v5439
        %v5443 = vmax.f32 %v5440, %v5441
        %v5444 = vmax.f32 %v5442, %v5443
        %v5445 = vld [vmem:[#allocation6 + $0xe] sm:$0x1]
        %v5446 = vld [vmem:[#allocation6 + $0xf] sm:$0x1]
        %v5447 = vld [vmem:[#allocation6 + $0x17] sm:$0x1]
        %v5448 = vld [vmem:[#allocation6 + $0x18] sm:$0x1]
        %v5449 = vmax.f32 %v5445, %v5446
        %v5450 = vmax.f32 %v5447, %v5448
        %v5451 = vmax.f32 %v5449, %v5450
        %v5452 = vld [vmem:[#allocation6 + $0x1c] sm:$0x1]
        %v5453 = vld [vmem:[#allocation6 + $0x1d] sm:$0x1]
        %v5454 = vld [vmem:[#allocation6 + $0x25] sm:$0x1]
        %v5455 = vld [vmem:[#allocation6 + $0x26] sm:$0x1]
        %v5456 = vmax.f32 %v5452, %v5453
        %v5457 = vmax.f32 %v5454, %v5455
        %v5458 = vmax.f32 %v5456, %v5457
        %v5459 = vld [vmem:[#allocation6 + $0x1e] sm:$0x1]
        %v5460 = vld [vmem:[#allocation6 + $0x1f] sm:$0x1]
        %v5461 = vld [vmem:[#allocation6 + $0x27] sm:$0x1]
        %v5462 = vld [vmem:[#allocation6 + $0x28] sm:$0x1]
        %v5463 = vmax.f32 %v5459, %v5460
        %v5464 = vmax.f32 %v5461, %v5462
        %v5465 = vmax.f32 %v5463, %v5464
        %v5466 = vld [vmem:[#allocation6 + $0x20] sm:$0x1]
        %v5467 = vld [vmem:[#allocation6 + $0x21] sm:$0x1]
        %v5468 = vld [vmem:[#allocation6 + $0x29] sm:$0x1]
        %v5469 = vld [vmem:[#allocation6 + $0x2a] sm:$0x1]
        %v5470 = vmax.f32 %v5466, %v5467
        %v5471 = vmax.f32 %v5468, %v5469
        %v5472 = vmax.f32 %v5470, %v5471
        %v5473 = vld [vmem:[#allocation6 + $0x2e] sm:$0x1]
        %v5474 = vld [vmem:[#allocation6 + $0x2f] sm:$0x1]
        %v5475 = vld [vmem:[#allocation6 + $0x37] sm:$0x1]
        %v5476 = vld [vmem:[#allocation6 + $0x38] sm:$0x1]
        %v5477 = vmax.f32 %v5473, %v5474
        %v5478 = vmax.f32 %v5475, %v5476
        %v5479 = vmax.f32 %v5477, %v5478
        %v5480 = vld [vmem:[#allocation6 + $0x30] sm:$0x1]
        %v5481 = vld [vmem:[#allocation6 + $0x31] sm:$0x1]
        %v5482 = vld [vmem:[#allocation6 + $0x39] sm:$0x1]
        %v5483 = vld [vmem:[#allocation6 + $0x3a] sm:$0x1]
        %v5484 = vmax.f32 %v5480, %v5481
        %v5485 = vmax.f32 %v5482, %v5483
        %v5486 = vmax.f32 %v5484, %v5485
        %v5487 = vld [vmem:[#allocation6 + $0x32] sm:$0x1]
        %v5488 = vld [vmem:[#allocation6 + $0x33] sm:$0x1]
        %v5489 = vld [vmem:[#allocation6 + $0x3b] sm:$0x1]
        %v5490 = vld [vmem:[#allocation6 + $0x3c] sm:$0x1]
        %v5491 = vmax.f32 %v5487, %v5488
        %v5492 = vmax.f32 %v5489, %v5490
        %v5493 = vmax.f32 %v5491, %v5492
        %5495 = vrot.lane.b32.xlu0 %v5444, 64
        %v5496 = vpop.permute.xlu0 %5495
        %5499 = vrot.lane.b32.xlu0 %v5458, 64
        %v5500 = vpop.permute.xlu0 %5499
        %5503 = vrot.lane.b32.xlu0 %v5472, 64
        %v5504 = vpop.permute.xlu0 %5503
        %5507 = vrot.lane.b32.xlu0 %v5486, 64
        %v5508 = vpop.permute.xlu0 %5507
        %v5510 = vsel %vm5418, %v5437, %v5496
        %v5511 = vsel %vm5418, %v5451, %v5500
        %v5512 = vsel %vm5418, %v5465, %v5504
        %v5513 = vsel %vm5418, %v5479, %v5508
        %v5514 = vld [vmem:[%s7] sm:$0xff]
        %v5515 = vld [vmem:[%s7 + $0x8] sm:$0xff]
        %v5516 = vld [vmem:[%s7 + $0x10] sm:$0xff]
        %v5517 = vld [vmem:[%s7 + $0x18] sm:$0xff]
        %v5518 = vld [vmem:[%s7 + $0x20] sm:$0xff]
        %v5519 = vld [vmem:[%s7 + $0x28] sm:$0xff]
        %v5520 = vld [vmem:[%s7 + $0x30] sm:$0xff]
        %v5521 = vld [vmem:[%s7 + $0x38] sm:$0xff]
        %v5522 = vld [vmem:[%s7 + $0x40] sm:$0xff]
        %v5523 = vld [vmem:[%s7 + $0x48] sm:$0xff]
        %v5524 = vld [vmem:[%s7 + $0x50] sm:$0xff]
        %v5525 = vld [vmem:[%s7 + $0x58] sm:$0xff]
        %v5526 = vld [vmem:[%s7 + $0x60] sm:$0xff]
        %v5527 = vld [vmem:[%s7 + $0x68] sm:$0xff]
        %v5528 = vld [vmem:[%s7 + $0x70] sm:$0xff]
        %v5529 = vld [vmem:[%s7 + $0x78] sm:$0xff]
        %v5530 = vld [vmem:[%s7 + $0x80] sm:$0xff]
        %v5531 = vld [vmem:[%s7 + $0x88] sm:$0xff]
        %v5532 = vld [vmem:[%s7 + $0x90] sm:$0xff]
        %v5533 = vld [vmem:[%s7 + $0x98] sm:$0xff]
        %v5534 = vld [vmem:[%s7 + $0xa0] sm:$0xff]
        %v5535 = vld [vmem:[%s7 + $0xa8] sm:$0xff]
        %v5536 = vld [vmem:[%s7 + $0xb0] sm:$0xff]
        %v5537 = vld [vmem:[%s7 + $0xb8] sm:$0xff]
        %v5538 = vld [vmem:[%s7 + $0xc0] sm:$0xff]
        %v5539 = vld [vmem:[%s7 + $0xc8] sm:$0xff]
        %v5540 = vld [vmem:[%s7 + $0xd0] sm:$0xff]
        %v5541 = vld [vmem:[%s7 + $0xd8] sm:$0xff]
        %v5542 = vld [vmem:[%s7 + $0xe0] sm:$0xff]
        %v5543 = vld [vmem:[%s7 + $0xe8] sm:$0xff]
        %v5544 = vld [vmem:[%s7 + $0xf0] sm:$0xff]
        %v5545 = vld [vmem:[%s7 + $0xf8] sm:$0xff]
        %v5546 = vld [vmem:[%s7 + $0x100] sm:$0xff]
        %v5547 = vld [vmem:[%s7 + $0x108] sm:$0xff]
        %v5548 = vld [vmem:[%s7 + $0x110] sm:$0xff]
        %v5549 = vld [vmem:[%s7 + $0x118] sm:$0xff]
        %v5550 = vld [vmem:[%s7 + $0x120] sm:$0xff]
        %v5551 = vld [vmem:[%s7 + $0x128] sm:$0xff]
        %v5552 = vld [vmem:[%s7 + $0x130] sm:$0xff]
        %v5553 = vld [vmem:[%s7 + $0x138] sm:$0xff]
        %v5554 = vld [vmem:[%s7 + $0x140] sm:$0xff]
        %v5555 = vld [vmem:[%s7 + $0x148] sm:$0xff]
        %v5556 = vld [vmem:[%s7 + $0x150] sm:$0xff]
        %v5557 = vld [vmem:[%s7 + $0x158] sm:$0xff]
        %v5558 = vld [vmem:[%s7 + $0x160] sm:$0xff]
        %v5559 = vld [vmem:[%s7 + $0x168] sm:$0xff]
        %v5560 = vld [vmem:[%s7 + $0x170] sm:$0xff]
        %v5561 = vld [vmem:[%s7 + $0x178] sm:$0xff]
        %v5562 = vld [vmem:[%s7 + $0x180] sm:$0xff]
        %v5563 = vld [vmem:[%s7 + $0x188] sm:$0xff]
        %v5564 = vld [vmem:[%s7 + $0x190] sm:$0xff]
        %v5565 = vld [vmem:[%s7 + $0x198] sm:$0xff]
        %v5566 = vld [vmem:[%s7 + $0x1a0] sm:$0xff]
        %v5567 = vld [vmem:[%s7 + $0x1a8] sm:$0xff]
        %v5568 = vld [vmem:[%s7 + $0x1b0] sm:$0xff]
        %v5569 = vld [vmem:[%s7 + $0x1b8] sm:$0xff]
        %v5570 = vld [vmem:[%s7 + $0x1c0] sm:$0xff]
        %v5571 = vld [vmem:[%s7 + $0x1c8] sm:$0xff]
        %v5572 = vld [vmem:[%s7 + $0x1d0] sm:$0xff]
        %v5573 = vld [vmem:[%s7 + $0x1d8] sm:$0xff]
        %v5574 = vld [vmem:[%s7 + $0x1e0] sm:$0xff]
        %v5575 = vld [vmem:[%s7 + $0x1e8] sm:$0xff]
        %v5576 = vld [vmem:[%s7 + $0x1f0] sm:$0xff]
        %v5577 = vld [vmem:[%s7 + $0x1f8] sm:$0xff]
        %v5578 = vld [vmem:[%s7 + $0x200] sm:$0xff]
        %v5579 = vld [vmem:[%s7 + $0x208] sm:$0xff]
        %v5580 = vld [vmem:[%s7 + $0x210] sm:$0xff]
        %v5581 = vld [vmem:[%s7 + $0x218] sm:$0xff]
        %v5582 = vld [vmem:[%s7 + $0x220] sm:$0xff]
        %v5583 = vld [vmem:[%s7 + $0x228] sm:$0xff]
        %v5584 = vld [vmem:[%s7 + $0x230] sm:$0xff]
        %v5585 = vld [vmem:[%s7 + $0x238] sm:$0xff]
        %v5586 = vld [vmem:[%s7 + $0x240] sm:$0xff]
        %v5587 = vld [vmem:[%s7 + $0x248] sm:$0xff]
        %v5588 = vld [vmem:[%s7 + $0x250] sm:$0xff]
        %v5589 = vld [vmem:[%s7 + $0x258] sm:$0xff]
        %v5590 = vld [vmem:[%s7 + $0x260] sm:$0xff]
        %v5591 = vld [vmem:[%s7 + $0x268] sm:$0xff]
        %v5592 = vld [vmem:[%s7 + $0x270] sm:$0xff]
        %v5593 = vld [vmem:[%s7 + $0x278] sm:$0xff]
        %v5594 = vld [vmem:[%s7 + $0x280] sm:$0xff]
        %v5595 = vld [vmem:[%s7 + $0x288] sm:$0xff]
        %v5596 = vld [vmem:[%s7 + $0x290] sm:$0xff]
        %v5597 = vld [vmem:[%s7 + $0x298] sm:$0xff]
        %v5598 = vld [vmem:[%s7 + $0x2a0] sm:$0xff]
        %v5599 = vld [vmem:[%s7 + $0x2a8] sm:$0xff]
        %v5600 = vld [vmem:[%s7 + $0x2b0] sm:$0xff]
        %v5601 = vld [vmem:[%s7 + $0x2b8] sm:$0xff]
        %v5602 = vld [vmem:[%s7 + $0x2c0] sm:$0xff]
        %v5603 = vld [vmem:[%s7 + $0x2c8] sm:$0xff]
        %v5604 = vld [vmem:[%s7 + $0x2d0] sm:$0xff]
        %v5605 = vld [vmem:[%s7 + $0x2d8] sm:$0xff]
        %v5606 = vld [vmem:[%s7 + $0x2e0] sm:$0xff]
        %v5607 = vld [vmem:[%s7 + $0x2e8] sm:$0xff]
        %v5608 = vld [vmem:[%s7 + $0x2f0] sm:$0xff]
        %v5609 = vld [vmem:[%s7 + $0x2f8] sm:$0xff]
        %v5610 = vld [vmem:[%s7 + $0x300] sm:$0xff]
        %v5611 = vld [vmem:[%s7 + $0x308] sm:$0xff]
        %v5612 = vld [vmem:[%s7 + $0x310] sm:$0xff]
        %v5613 = vld [vmem:[%s7 + $0x318] sm:$0xff]
        %v5614 = vld [vmem:[%s7 + $0x320] sm:$0xff]
        %v5615 = vld [vmem:[%s7 + $0x328] sm:$0xff]
        %v5616 = vld [vmem:[%s7 + $0x330] sm:$0xff]
        %v5617 = vld [vmem:[%s7 + $0x338] sm:$0xff]
        %v5618 = vld [vmem:[%s7 + $0x340] sm:$0xff]
        %v5619 = vld [vmem:[%s7 + $0x348] sm:$0xff]
        %v5620 = vld [vmem:[%s7 + $0x350] sm:$0xff]
        %v5621 = vld [vmem:[%s7 + $0x358] sm:$0xff]
        %v5622 = vld [vmem:[%s7 + $0x360] sm:$0xff]
        %v5623 = vld [vmem:[%s7 + $0x368] sm:$0xff]
        %v5624 = vld [vmem:[%s7 + $0x370] sm:$0xff]
        %v5625 = vld [vmem:[%s7 + $0x378] sm:$0xff]
        %v5626 = vld [vmem:[%s7 + $0x380] sm:$0xff]
        %v5627 = vld [vmem:[%s7 + $0x388] sm:$0xff]
        %v5628 = vld [vmem:[%s7 + $0x390] sm:$0xff]
        %v5629 = vld [vmem:[%s7 + $0x398] sm:$0xff]
        %v5630 = vld [vmem:[%s7 + $0x3a0] sm:$0xff]
        %v5631 = vld [vmem:[%s7 + $0x3a8] sm:$0xff]
        %v5632 = vld [vmem:[%s7 + $0x3b0] sm:$0xff]
        %v5633 = vld [vmem:[%s7 + $0x3b8] sm:$0xff]
        %v5634 = vld [vmem:[%s7 + $0x3c0] sm:$0xff]
        %v5635 = vld [vmem:[%s7 + $0x3c8] sm:$0xff]
        %v5636 = vld [vmem:[%s7 + $0x3d0] sm:$0xff]
        %v5637 = vld [vmem:[%s7 + $0x3d8] sm:$0xff]
        %v5638 = vld [vmem:[%s7 + $0x3e0] sm:$0xff]
        %v5639 = vld [vmem:[%s7 + $0x3e8] sm:$0xff]
        %v5640 = vld [vmem:[%s7 + $0x3f0] sm:$0xff]
        %v5641 = vld [vmem:[%s7 + $0x3f8] sm:$0xff]
        %v5642 = vld [vmem:[%s7 + $0x400] sm:$0xff]
        %v5643 = vld [vmem:[%s7 + $0x408] sm:$0xff]
        %v5644 = vld [vmem:[%s7 + $0x410] sm:$0xff]
        %v5645 = vld [vmem:[%s7 + $0x418] sm:$0xff]
        %v5646 = vld [vmem:[%s7 + $0x420] sm:$0xff]
        %v5647 = vld [vmem:[%s7 + $0x428] sm:$0xff]
        %v5648 = vld [vmem:[%s7 + $0x430] sm:$0xff]
        %v5649 = vld [vmem:[%s7 + $0x438] sm:$0xff]
        %v5650 = vld [vmem:[%s7 + $0x440] sm:$0xff]
        %v5651 = vld [vmem:[%s7 + $0x448] sm:$0xff]
        %v5652 = vld [vmem:[%s7 + $0x450] sm:$0xff]
        %v5653 = vld [vmem:[%s7 + $0x458] sm:$0xff]
        %v5654 = vld [vmem:[%s7 + $0x460] sm:$0xff]
        %v5655 = vld [vmem:[%s7 + $0x468] sm:$0xff]
        %v5656 = vld [vmem:[%s7 + $0x470] sm:$0xff]
        %v5657 = vld [vmem:[%s7 + $0x478] sm:$0xff]
        %v5658 = vld [vmem:[%s8] sm:$0x3]
        %v5660 = vperm.slane %v5658, 0
        %v5661 = vperm.slane %v5658, 1
        %v5665 = vsel %vm5418, %v5493, 0
        %5667 = vmatpush.msra.mxu0 %v5544
        %5668 = vmatpush.msra.mxu0 %v5542
        %5669 = vmatpush.msra.mxu0 %v5540
        %5670 = vmatpush.msra.mxu0 %v5538
        %5671 = vmatpush.msra.mxu0 %v5536
        %5672 = vmatpush.msra.mxu0 %v5534
        %5673 = vmatpush.msra.mxu0 %v5532
        %5674 = vmatpush.msra.mxu0 %v5530
        %5675 = vmatpush.msra.mxu0 %v5528
        %5676 = vmatpush.msra.mxu0 %v5526
        %5677 = vmatpush.msra.mxu0 %v5524
        %5678 = vmatpush.msra.mxu0 %v5522
        %5679 = vmatpush.msra.mxu0 %v5520
        %5680 = vmatpush.msra.mxu0 %v5518
        %5681 = vmatpush.msra.mxu0 %v5516
        %5682 = vmatpush.msra.mxu0 %v5514
        %5683 = vmatmul.f32.gmra.mxu0 %v5510
        %v5684 = vpop.f32.mrf.mxu0
        %v5685 = vadd.f32 %v5660, %v5684
        %5686 = vdwg.mxu0
        %5687 = vmatpush.msra.mxu0 %v5576
        %5688 = vmatpush.msra.mxu0 %v5574
        %5689 = vmatpush.msra.mxu0 %v5572
        %5690 = vmatpush.msra.mxu0 %v5570
        %5691 = vmatpush.msra.mxu0 %v5568
        %5692 = vmatpush.msra.mxu0 %v5566
        %5693 = vmatpush.msra.mxu0 %v5564
        %5694 = vmatpush.msra.mxu0 %v5562
        %5695 = vmatpush.msra.mxu0 %v5560
        %5696 = vmatpush.msra.mxu0 %v5558
        %5697 = vmatpush.msra.mxu0 %v5556
        %5698 = vmatpush.msra.mxu0 %v5554
        %5699 = vmatpush.msra.mxu0 %v5552
        %5700 = vmatpush.msra.mxu0 %v5550
        %5701 = vmatpush.msra.mxu0 %v5548
        %5702 = vmatpush.msra.mxu0 %v5546
        %5703 = vmatmul.f32.gmra.mxu0 %v5511
        %v5704 = vpop.f32.mrf.mxu0
        %v5705 = vadd.f32 %v5685, %v5704
        %5706 = vdwg.mxu0
        %5707 = vmatpush.msra.mxu0 %v5608
        %5708 = vmatpush.msra.mxu0 %v5606
        %5709 = vmatpush.msra.mxu0 %v5604
        %5710 = vmatpush.msra.mxu0 %v5602
        %5711 = vmatpush.msra.mxu0 %v5600
        %5712 = vmatpush.msra.mxu0 %v5598
        %5713 = vmatpush.msra.mxu0 %v5596
        %5714 = vmatpush.msra.mxu0 %v5594
        %5715 = vmatpush.msra.mxu0 %v5592
        %5716 = vmatpush.msra.mxu0 %v5590
        %5717 = vmatpush.msra.mxu0 %v5588
        %5718 = vmatpush.msra.mxu0 %v5586
        %5719 = vmatpush.msra.mxu0 %v5584
        %5720 = vmatpush.msra.mxu0 %v5582
        %5721 = vmatpush.msra.mxu0 %v5580
        %5722 = vmatpush.msra.mxu0 %v5578
        %5723 = vmatmul.f32.gmra.mxu0 %v5512
        %v5724 = vpop.f32.mrf.mxu0
        %v5725 = vadd.f32 %v5705, %v5724
        %5726 = vdwg.mxu0
        %5727 = vmatpush.msra.mxu0 %v5640
        %5728 = vmatpush.msra.mxu0 %v5638
        %5729 = vmatpush.msra.mxu0 %v5636
        %5730 = vmatpush.msra.mxu0 %v5634
        %5731 = vmatpush.msra.mxu0 %v5632
        %5732 = vmatpush.msra.mxu0 %v5630
        %5733 = vmatpush.msra.mxu0 %v5628
        %5734 = vmatpush.msra.mxu0 %v5626
        %5735 = vmatpush.msra.mxu0 %v5624
        %5736 = vmatpush.msra.mxu0 %v5622
        %5737 = vmatpush.msra.mxu0 %v5620
        %5738 = vmatpush.msra.mxu0 %v5618
        %5739 = vmatpush.msra.mxu0 %v5616
        %5740 = vmatpush.msra.mxu0 %v5614
        %5741 = vmatpush.msra.mxu0 %v5612
        %5742 = vmatpush.msra.mxu0 %v5610
        %5743 = vmatmul.f32.gmra.mxu0 %v5513
        %v5744 = vpop.f32.mrf.mxu0
        %v5745 = vadd.f32 %v5725, %v5744
        %5746 = vdwg.mxu0
        %5747 = vmatpush.msra.mxu0 0.0
        %5748 = vmatpush.msra.mxu0 0.0
        %5749 = vmatpush.msra.mxu0 0.0
        %5750 = vmatpush.msra.mxu0 0.0
        %5751 = vmatpush.msra.mxu0 0.0
        %5752 = vmatpush.msra.mxu0 0.0
        %5753 = vmatpush.msra.mxu0 0.0
        %5754 = vmatpush.msra.mxu0 0.0
        %5755 = vmatpush.msra.mxu0 %v5656
        %5756 = vmatpush.msra.mxu0 %v5654
        %5757 = vmatpush.msra.mxu0 %v5652
        %5758 = vmatpush.msra.mxu0 %v5650
        %5759 = vmatpush.msra.mxu0 %v5648
        %5760 = vmatpush.msra.mxu0 %v5646
        %5761 = vmatpush.msra.mxu0 %v5644
        %5762 = vmatpush.msra.mxu0 %v5642
        %5763 = vmatmul.f32.gmra.mxu0 %v5665
        %v5764 = vpop.f32.mrf.mxu0
        %v5765 = vadd.f32 %v5745, %v5764
        %5766 = vdwg.mxu0
        %5767 = vmatpush.msra.mxu0 %v5545
        %5768 = vmatpush.msra.mxu0 %v5543
        %5769 = vmatpush.msra.mxu0 %v5541
        %5770 = vmatpush.msra.mxu0 %v5539
        %5771 = vmatpush.msra.mxu0 %v5537
        %5772 = vmatpush.msra.mxu0 %v5535
        %5773 = vmatpush.msra.mxu0 %v5533
        %5774 = vmatpush.msra.mxu0 %v5531
        %5775 = vmatpush.msra.mxu0 %v5529
        %5776 = vmatpush.msra.mxu0 %v5527
        %5777 = vmatpush.msra.mxu0 %v5525
        %5778 = vmatpush.msra.mxu0 %v5523
        %5779 = vmatpush.msra.mxu0 %v5521
        %5780 = vmatpush.msra.mxu0 %v5519
        %5781 = vmatpush.msra.mxu0 %v5517
        %5782 = vmatpush.msra.mxu0 %v5515
        %5783 = vmatmul.f32.gmra.mxu0 %v5510
        %v5784 = vpop.f32.mrf.mxu0
        %v5785 = vadd.f32 %v5661, %v5784
        %5786 = vdwg.mxu0
        %5787 = vmatpush.msra.mxu0 %v5577
        %5788 = vmatpush.msra.mxu0 %v5575
        %5789 = vmatpush.msra.mxu0 %v5573
        %5790 = vmatpush.msra.mxu0 %v5571
        %5791 = vmatpush.msra.mxu0 %v5569
        %5792 = vmatpush.msra.mxu0 %v5567
        %5793 = vmatpush.msra.mxu0 %v5565
        %5794 = vmatpush.msra.mxu0 %v5563
        %5795 = vmatpush.msra.mxu0 %v5561
        %5796 = vmatpush.msra.mxu0 %v5559
        %5797 = vmatpush.msra.mxu0 %v5557
        %5798 = vmatpush.msra.mxu0 %v5555
        %5799 = vmatpush.msra.mxu0 %v5553
        %5800 = vmatpush.msra.mxu0 %v5551
        %5801 = vmatpush.msra.mxu0 %v5549
        %5802 = vmatpush.msra.mxu0 %v5547
        %5803 = vmatmul.f32.gmra.mxu0 %v5511
        %v5804 = vpop.f32.mrf.mxu0
        %v5805 = vadd.f32 %v5785, %v5804
        %5806 = vdwg.mxu0
        %5807 = vmatpush.msra.mxu0 %v5609
        %5808 = vmatpush.msra.mxu0 %v5607
        %5809 = vmatpush.msra.mxu0 %v5605
        %5810 = vmatpush.msra.mxu0 %v5603
        %5811 = vmatpush.msra.mxu0 %v5601
        %5812 = vmatpush.msra.mxu0 %v5599
        %5813 = vmatpush.msra.mxu0 %v5597
        %5814 = vmatpush.msra.mxu0 %v5595
        %5815 = vmatpush.msra.mxu0 %v5593
        %5816 = vmatpush.msra.mxu0 %v5591
        %5817 = vmatpush.msra.mxu0 %v5589
        %5818 = vmatpush.msra.mxu0 %v5587
        %5819 = vmatpush.msra.mxu0 %v5585
        %5820 = vmatpush.msra.mxu0 %v5583
        %5821 = vmatpush.msra.mxu0 %v5581
        %5822 = vmatpush.msra.mxu0 %v5579
        %5823 = vmatmul.f32.gmra.mxu0 %v5512
        %v5824 = vpop.f32.mrf.mxu0
        %v5825 = vadd.f32 %v5805, %v5824
        %5826 = vdwg.mxu0
        %5827 = vmatpush.msra.mxu0 %v5641
        %5828 = vmatpush.msra.mxu0 %v5639
        %5829 = vmatpush.msra.mxu0 %v5637
        %5830 = vmatpush.msra.mxu0 %v5635
        %5831 = vmatpush.msra.mxu0 %v5633
        %5832 = vmatpush.msra.mxu0 %v5631
        %5833 = vmatpush.msra.mxu0 %v5629
        %5834 = vmatpush.msra.mxu0 %v5627
        %5835 = vmatpush.msra.mxu0 %v5625
        %5836 = vmatpush.msra.mxu0 %v5623
        %5837 = vmatpush.msra.mxu0 %v5621
        %5838 = vmatpush.msra.mxu0 %v5619
        %5839 = vmatpush.msra.mxu0 %v5617
        %5840 = vmatpush.msra.mxu0 %v5615
        %5841 = vmatpush.msra.mxu0 %v5613
        %5842 = vmatpush.msra.mxu0 %v5611
        %5843 = vmatmul.f32.gmra.mxu0 %v5513
        %v5844 = vpop.f32.mrf.mxu0
        %v5845 = vadd.f32 %v5825, %v5844
        %5846 = vdwg.mxu0
        %5847 = vmatpush.msra.mxu0 0.0
        %5848 = vmatpush.msra.mxu0 0.0
        %5849 = vmatpush.msra.mxu0 0.0
        %5850 = vmatpush.msra.mxu0 0.0
        %5851 = vmatpush.msra.mxu0 0.0
        %5852 = vmatpush.msra.mxu0 0.0
        %5853 = vmatpush.msra.mxu0 0.0
        %5854 = vmatpush.msra.mxu0 0.0
        %5855 = vmatpush.msra.mxu0 %v5657
        %5856 = vmatpush.msra.mxu0 %v5655
        %5857 = vmatpush.msra.mxu0 %v5653
        %5858 = vmatpush.msra.mxu0 %v5651
        %5859 = vmatpush.msra.mxu0 %v5649
        %5860 = vmatpush.msra.mxu0 %v5647
        %5861 = vmatpush.msra.mxu0 %v5645
        %5862 = vmatpush.msra.mxu0 %v5643
        %5863 = vmatmul.f32.gmra.mxu0 %v5665
        %v5864 = vpop.f32.mrf.mxu0
        %v5865 = vadd.f32 %v5845, %v5864
        %5866 = vdwg.mxu0
        %v5867 = vmax.f32 %v5765, 0.0
        %v5868 = vmax.f32 %v5865, 0.0
        %v5869 = vld [vmem:[%s9] sm:$0xff]
        %v5870 = vld [vmem:[%s9 + $0x8] sm:$0xff]
        %v5871 = vld [vmem:[%s9 + $0x10] sm:$0xff]
        %v5872 = vld [vmem:[%s9 + $0x18] sm:$0xff]
        %v5873 = vld [vmem:[%s9 + $0x20] sm:$0xff]
        %v5874 = vld [vmem:[%s9 + $0x28] sm:$0xff]
        %v5875 = vld [vmem:[%s9 + $0x30] sm:$0xff]
        %v5876 = vld [vmem:[%s9 + $0x38] sm:$0xff]
        %v5877 = vld [vmem:[%s9 + $0x40] sm:$0xff]
        %v5878 = vld [vmem:[%s9 + $0x48] sm:$0xff]
        %v5879 = vld [vmem:[%s9 + $0x50] sm:$0xff]
        %v5880 = vld [vmem:[%s9 + $0x58] sm:$0xff]
        %v5881 = vld [vmem:[%s9 + $0x60] sm:$0xff]
        %v5882 = vld [vmem:[%s9 + $0x68] sm:$0xff]
        %v5883 = vld [vmem:[%s9 + $0x70] sm:$0xff]
        %v5884 = vld [vmem:[%s9 + $0x78] sm:$0xff]
        %v5885 = vld [vmem:[%s9 + $0x80] sm:$0xff]
        %v5886 = vld [vmem:[%s9 + $0x88] sm:$0xff]
        %v5887 = vld [vmem:[%s9 + $0x90] sm:$0xff]
        %v5888 = vld [vmem:[%s9 + $0x98] sm:$0xff]
        %v5889 = vld [vmem:[%s9 + $0xa0] sm:$0xff]
        %v5890 = vld [vmem:[%s9 + $0xa8] sm:$0xff]
        %v5891 = vld [vmem:[%s9 + $0xb0] sm:$0xff]
        %v5892 = vld [vmem:[%s9 + $0xb8] sm:$0xff]
        %v5893 = vld [vmem:[%s9 + $0xc0] sm:$0xff]
        %v5894 = vld [vmem:[%s9 + $0xc8] sm:$0xff]
        %v5895 = vld [vmem:[%s9 + $0xd0] sm:$0xff]
        %v5896 = vld [vmem:[%s9 + $0xd8] sm:$0xff]
        %v5897 = vld [vmem:[%s9 + $0xe0] sm:$0xff]
        %v5898 = vld [vmem:[%s9 + $0xe8] sm:$0xff]
        %v5899 = vld [vmem:[%s9 + $0xf0] sm:$0xff]
        %v5900 = vld [vmem:[%s9 + $0xf8] sm:$0xff]
        %v5901 = vld [vmem:[%s10] sm:$0x1]
        %5902 = vmatpush.msra.mxu0 %v5884
        %5903 = vmatpush.msra.mxu0 %v5883
        %5904 = vmatpush.msra.mxu0 %v5882
        %5905 = vmatpush.msra.mxu0 %v5881
        %5906 = vmatpush.msra.mxu0 %v5880
        %5907 = vmatpush.msra.mxu0 %v5879
        %5908 = vmatpush.msra.mxu0 %v5878
        %5909 = vmatpush.msra.mxu0 %v5877
        %5910 = vmatpush.msra.mxu0 %v5876
        %5911 = vmatpush.msra.mxu0 %v5875
        %5912 = vmatpush.msra.mxu0 %v5874
        %5913 = vmatpush.msra.mxu0 %v5873
        %5914 = vmatpush.msra.mxu0 %v5872
        %5915 = vmatpush.msra.mxu0 %v5871
        %5916 = vmatpush.msra.mxu0 %v5870
        %5917 = vmatpush.msra.mxu0 %v5869
        %5918 = vmatmul.f32.gmra.mxu0 %v5867
        %v5919 = vpop.f32.mrf.mxu0
        %v5920 = vadd.f32 %v5901, %v5919
        %5921 = vdwg.mxu0
        %5922 = vmatpush.msra.mxu0 %v5900
        %5923 = vmatpush.msra.mxu0 %v5899
        %5924 = vmatpush.msra.mxu0 %v5898
        %5925 = vmatpush.msra.mxu0 %v5897
        %5926 = vmatpush.msra.mxu0 %v5896
        %5927 = vmatpush.msra.mxu0 %v5895
        %5928 = vmatpush.msra.mxu0 %v5894
        %5929 = vmatpush.msra.mxu0 %v5893
        %5930 = vmatpush.msra.mxu0 %v5892
        %5931 = vmatpush.msra.mxu0 %v5891
        %5932 = vmatpush.msra.mxu0 %v5890
        %5933 = vmatpush.msra.mxu0 %v5889
        %5934 = vmatpush.msra.mxu0 %v5888
        %5935 = vmatpush.msra.mxu0 %v5887
        %5936 = vmatpush.msra.mxu0 %v5886
        %5937 = vmatpush.msra.mxu0 %v5885
        %5938 = vmatmul.f32.gmra.mxu0 %v5868
        %v5939 = vpop.f32.mrf.mxu0
        %v5940 = vadd.f32 %v5920, %v5939
        %5941 = vdwg.mxu0
        %vm5942 = vcmask 73728
        %5943 = vst.msk [vmem:[%s378] sm:$0x1] %vm5942, %v5940
        %s5944 = sand.u32 %s269, 1
        %s5945 = scalar_lea.sflag [#allocation8], %s5944
        %s5946 = sand.u32 %s269, 1
        %s5947 = scalar_lea.vmem [#allocation7], %s5946
        // Predicated region
        $region65: #{mycnn_forward.1} parent=63 // pred_check
          %p5948 = pneg %p279
        $region66: #{mycnn_forward.1} parent=63 // pred_check_branch
          %5950 = sbr.rel (%p5948) target = $region68
        $region67: #{mycnn_forward.1} parent=63 // pred_region
          %5952 = vsyncadd %s5945, 0
          %s5953 = scalar_lea.hbm %s11, %s25
          %s5955 = sshll.u32 %s5947, 4
          %s5956 = int_to_ptr.vmem [resolvable:$true] %s5955
          %s5957 = sshll.u32 %s5953, 4
          %s5958 = int_to_ptr.hbm [resolvable:$true] %s5957
          %5960 = dma.vmem_to_hbm [thread:$0]  %s5956, 16, %s5958, %s5945
        $region68: #{mycnn_forward.1} parent=63 // pred_fallthru
          _
      $region64: #{mycnn_forward.1} parent=5 // pred_fallthru
        _
      %p5961 = scmp.le.s32.totalorder 2, %s20
      // Predicated region
      $region69: #{mycnn_forward.1} parent=5 // pred_check
        %p5962 = pneg %p5961
      $region70: #{mycnn_forward.1} parent=5 // pred_check_branch
        %5964 = sbr.rel (%p5962) target = $region72
      $region71: #{mycnn_forward.1} parent=5 // pred_region
        %s5965 = ssub.s32 %s20, 2
        // Predicated region
        $region73: #{mycnn_forward.1} parent=71 // pred_check
          %p5966 = pneg %p285
        $region74: #{mycnn_forward.1} parent=71 // pred_check_branch
          %5968 = sbr.rel (%p5966) target = $region76
        $region75: #{mycnn_forward.1} parent=71 // pred_region
          %s5969 = sand.u32 %s270, 1
          %s5970 = scalar_lea.sflag [#allocation8], %s5969
          %s5971 = sand.u32 %s270, 1
          %s5972 = scalar_lea.vmem [#allocation7], %s5971
          %5974 = dma.done %s5970, 16
        $region76: #{mycnn_forward.1} parent=71 // pred_fallthru
          _
      $region72: #{mycnn_forward.1} parent=5 // pred_fallthru
        _
    $region6: #{mycnn_forward.1} parent=1 // loop_footer
      %s24 = sadd.s32 1, %s20
    $region7: #{mycnn_forward.1} parent=1 // loop_footer_branch
      %19 = sbr.rel target = $region3
    $region8: #{mycnn_forward.1} parent=1 // loop_exit
      _
    %5975 = vsyncpa [#allocation8], 1
    %s5976 = scalar_lea.sflag [#allocation8], 1
    %5977 = vsyncpa %s5976, 1

</llo_original>
